<compile_context>
chip_gen: v7x
topology: tpu7x:2x2x1
jax: 0.10.0
libtpu: 0.0.40
codegen_flags: <defaults>
</compile_context>

<pallas_src>
import functools

import jax
import jax.numpy as jnp
from jax.experimental import pallas as pl
from jax.experimental.pallas import tpu as pltpu


BACKBONE_DIM = 2048          # ResNet50 feature dim (transfomation_in_channel)
TRANS_DIM = 256              # Transformation output / Encoder input dim
EMBED_DIM = 128              # cfg.MODEL.EMBEDDER_MODEL.EMBEDDING_SIZE
PROJ_HIDDEN = 64             # cfg.MODEL.PROJECTION_HIDDEN_SIZE
FFN_DIM = 4 * TRANS_DIM


def _vmem_limit_bytes():
    # Generation-aware scoped-VMEM budget.
    kind = ""
    try:
        kind = jax.devices()[0].device_kind.lower()
    except Exception:  # pragma: no cover - defensive
        pass
    if "v7" in kind:
        return 48 * 1024 * 1024       # 64 MiB physical -> leave headroom
    if "v5" in kind or "v6" in kind:
        return 96 * 1024 * 1024       # 128 MiB physical
    return 48 * 1024 * 1024           # conservative default


_VMEM_LIMIT = _vmem_limit_bytes()
_MAX_TK = 3072 if _VMEM_LIMIT >= 64 * 1024 * 1024 else 2048
_MAX_ROW_TILE = 1024                  # single weight stream while M <= 1024


def _round_up(x, m):
    return (x + m - 1) // m * m


def _pick_k_tile(k_dim, max_tk):
    """Largest multiple-of-128 divisor of k_dim that is <= max_tk (or None)."""
    best = None
    t = 128
    while t <= min(k_dim, max_tk):
        if k_dim % t == 0:
            best = t
        t += 128
    return best


def _pick_row_tile(m):
    """Single row tile (stream backbone_w exactly once) while M is modest;
    only split rows when M is large enough to be compute-bound."""
    if m <= _MAX_ROW_TILE:
        return m
    for tm in range(_MAX_ROW_TILE, 7, -8):
        if m % tm == 0:
            return tm
    return m  # no clean multiple-of-8 divisor: keep one full-extent tile


# -----------------------------------------------------------------------------
# Fused backbone (K-tiled linear to 2048) + Transformation (2048 -> 256).
# Grid = (row_tiles [parallel], k_tiles [arbitrary]); the 2048-d features stay
# in a VMEM f32 accumulator and are never written to HBM.
# -----------------------------------------------------------------------------
def _backbone_trans_kernel(x_ref, bw_ref, bb_ref, tw_ref, tb_ref, o_ref, acc_ref):
    k = pl.program_id(1)

    @pl.when(k == 0)
    def _():
        acc_ref[...] = jnp.zeros_like(acc_ref)

    acc_ref[...] += jnp.dot(x_ref[...].astype(jnp.bfloat16), bw_ref[...],
                            preferred_element_type=jnp.float32)

    @pl.when(k == pl.num_programs(1) - 1)
    def _():
        feats = acc_ref[...] + bb_ref[...]                       # (tm, 2048) f32
        trans = jnp.dot(feats.astype(jnp.bfloat16), tw_ref[...],
                        preferred_element_type=jnp.float32) + tb_ref[...]
        o_ref[...] = trans.astype(o_ref.dtype)


def pallas_backbone_transformation(frames, backbone_w, backbone_b, trans_w, trans_b):
    m, k_dim = frames.shape

    tk = _pick_k_tile(k_dim, _MAX_TK)
    if tk is None:
        # Degenerate K with no multiple-of-128 divisor: pad once (not hit for
        # standard C*H*W frame sizes such as 3*224*224 or 3*16*16).
        k_pad = _round_up(k_dim, 128)
        frames = jnp.pad(frames, ((0, 0), (0, k_pad - k_dim)))
        backbone_w = jnp.pad(backbone_w, ((0, k_pad - k_dim), (0, 0)))
        k_dim = k_pad
        tk = _pick_k_tile(k_dim, _MAX_TK)

    tm = _pick_row_tile(m)
    grid = (m // tm, k_dim // tk)
    # VMEM sizing (worst realistic case tm=1024, tk=1792 bf16):
    #   x blocks 2*3.5 MiB + weight blocks 2*7 MiB + acc 8 MiB + trans_w 1 MiB
    #   + out 2*0.5 MiB  ~= 31 MiB  < 48 MiB (v7x limit).

    return pl.pallas_call(
        _backbone_trans_kernel,
        out_shape=jax.ShapeDtypeStruct((m, TRANS_DIM), jnp.bfloat16),
        grid=grid,
        in_specs=[
            pl.BlockSpec((tm, tk), lambda i, k: (i, k)),
            pl.BlockSpec((tk, BACKBONE_DIM), lambda i, k: (k, 0)),
            pl.BlockSpec((1, BACKBONE_DIM), lambda i, k: (0, 0)),
            pl.BlockSpec((BACKBONE_DIM, TRANS_DIM), lambda i, k: (0, 0)),
            pl.BlockSpec((1, TRANS_DIM), lambda i, k: (0, 0)),
        ],
        out_specs=pl.BlockSpec((tm, TRANS_DIM), lambda i, k: (i, 0)),
        scratch_shapes=[pltpu.VMEM((tm, BACKBONE_DIM), jnp.float32)],
        compiler_params=pltpu.CompilerParams(
            dimension_semantics=("parallel", "arbitrary"),
            vmem_limit_bytes=_VMEM_LIMIT),
    )(frames, backbone_w, backbone_b.reshape(1, BACKBONE_DIM),
      trans_w, trans_b.reshape(1, TRANS_DIM))


# -----------------------------------------------------------------------------
# Temporal transformer encoder layer (single-head stand-in) + output projection
# to the embedding size.  Grid = (B,) marked "parallel": each program processes
# one video's (T, 256) rows, so both v7x TensorCores get work and inputs
# pipeline across videos.  q/k/v come from a single fused (D, 3D) matmul.
# When fuse_l2norm=True (eval path) the F.normalize(dim=-1) is fused here.
# -----------------------------------------------------------------------------
def _encoder_kernel(fuse_l2norm, x_ref, wqkv_ref, wo_ref,
                    ln1g_ref, ln1b_ref, w1_ref, b1_ref, w2_ref, b2_ref,
                    ln2g_ref, ln2b_ref, wout_ref, bout_ref, o_ref):
    xb = x_ref[0]                                     # (T, D) bf16
    x = xb.astype(jnp.float32)
    d = x.shape[-1]

    qkv = jnp.dot(xb, wqkv_ref[...], preferred_element_type=jnp.float32)  # (T, 3D)
    q = qkv[:, :d].astype(jnp.bfloat16)
    k = qkv[:, d:2 * d].astype(jnp.bfloat16)
    v = qkv[:, 2 * d:].astype(jnp.bfloat16)

    s = jnp.dot(q, k.T, preferred_element_type=jnp.float32)
    s = s * (1.0 / jnp.sqrt(jnp.float32(d)))
    s = s - jnp.max(s, axis=-1, keepdims=True)
    p = jnp.exp(s)
    p = p * pl.reciprocal(jnp.sum(p, axis=-1, keepdims=True), approx=True)

    attn = jnp.dot(p.astype(jnp.bfloat16), v, preferred_element_type=jnp.float32)
    attn = jnp.dot(attn.astype(jnp.bfloat16), wo_ref[...],
                   preferred_element_type=jnp.float32)

    # residual + LayerNorm 1 (f32)
    h = x + attn
    mu = jnp.mean(h, axis=-1, keepdims=True)
    var = jnp.mean((h - mu) ** 2, axis=-1, keepdims=True)
    h = (h - mu) * jax.lax.rsqrt(var + 1e-5) * ln1g_ref[...] + ln1b_ref[...]

    # feed-forward
    f = jnp.dot(h.astype(jnp.bfloat16), w1_ref[...],
                preferred_element_type=jnp.float32) + b1_ref[...]
    f = jnp.maximum(f, 0.0)
    f = jnp.dot(f.astype(jnp.bfloat16), w2_ref[...],
                preferred_element_type=jnp.float32) + b2_ref[...]

    # residual + LayerNorm 2 (f32)
    h2 = h + f
    mu2 = jnp.mean(h2, axis=-1, keepdims=True)
    var2 = jnp.mean((h2 - mu2) ** 2, axis=-1, keepdims=True)
    h2 = (h2 - mu2) * jax.lax.rsqrt(var2 + 1e-5) * ln2g_ref[...] + ln2b_ref[...]

    out = jnp.dot(h2.astype(jnp.bfloat16), wout_ref[...],
                  preferred_element_type=jnp.float32) + bout_ref[...]
    if fuse_l2norm:
        norm = jnp.sqrt(jnp.sum(out * out, axis=-1, keepdims=True))
        out = out / jnp.maximum(norm, 1e-12)
    o_ref[0] = out.astype(o_ref.dtype)


def pallas_encoder(x, p, B, T, out_dtype, fuse_l2norm):
    # x: (B*T, D) bf16 ; returns (B, T, EMBED_DIM) in out_dtype.
    D = x.shape[-1]
    F = FFN_DIM
    E = EMBED_DIM
    x3 = x.reshape(B, T, D)                  # free (leading-dim split)
    kernel = functools.partial(_encoder_kernel, fuse_l2norm)
    wspec = lambda shape: pl.BlockSpec(shape, lambda b: (0, 0))
    # TODO(synk): video_masks support omitted (None in this call path).
    # TODO(synk): Encoder dropout(0.1) runs in inference mode (identity).
    return pl.pallas_call(
        kernel,
        out_shape=jax.ShapeDtypeStruct((B, T, E), out_dtype),
        grid=(B,),
        in_specs=[
            pl.BlockSpec((1, T, D), lambda b: (b, 0, 0)),
            wspec((D, 3 * D)), wspec((D, D)),
            wspec((1, D)), wspec((1, D)),
            wspec((D, F)), wspec((1, F)),
            wspec((F, D)), wspec((1, D)),
            wspec((1, D)), wspec((1, D)),
            wspec((D, E)), wspec((1, E)),
        ],
        out_specs=pl.BlockSpec((1, T, E), lambda b: (b, 0, 0)),
        compiler_params=pltpu.CompilerParams(
            dimension_semantics=("parallel",),
            vmem_limit_bytes=_VMEM_LIMIT),
    )(x3,
      p["wqkv"], p["wo"],
      p["ln1g"].reshape(1, D), p["ln1b"].reshape(1, D),
      p["w1"], p["b1"].reshape(1, F),
      p["w2"], p["b2"].reshape(1, D),
      p["ln2g"].reshape(1, D), p["ln2b"].reshape(1, D),
      p["wout"], p["bout"].reshape(1, E))


# -----------------------------------------------------------------------------
# Fused projection head: Linear -> BatchNorm1d(batch stats, eps=1e-5) -> ReLU
# -> Linear -> F.normalize(dim=-1).  Kept as its own kernel because the BN
# batch statistics span ALL B*T rows (per-video-parallel encoder cannot see
# them).  The 64-lane intermediate stays in vregs; BN / normalize math is f32.
# -----------------------------------------------------------------------------
def _proj_head_kernel(x_ref, w1_ref, b1_ref, g_ref, be_ref, w2_ref, b2_ref, o_ref):
    x = x_ref[...]                                           # (M, E) bf16
    h = jnp.dot(x.astype(jnp.bfloat16), w1_ref[...],
                preferred_element_type=jnp.float32) + b1_ref[...]
    # BatchNorm1d, training-mode batch statistics (biased var, as PyTorch fwd).
    mu = jnp.mean(h, axis=0, keepdims=True)
    var = jnp.mean((h - mu) ** 2, axis=0, keepdims=True)
    h = (h - mu) * jax.lax.rsqrt(var + 1e-5) * g_ref[...] + be_ref[...]
    h = jnp.maximum(h, 0.0)
    y = jnp.dot(h.astype(jnp.bfloat16), w2_ref[...],
                preferred_element_type=jnp.float32) + b2_ref[...]
    # F.normalize(dim=-1): y / max(||y||_2, 1e-12)  (exact division).
    norm = jnp.sqrt(jnp.sum(y * y, axis=-1, keepdims=True))
    o_ref[...] = y / jnp.maximum(norm, 1e-12)


def pallas_projection_head(x, w1, b1, gamma, beta, w2, b2):
    m, e = x.shape
    hdim = w1.shape[1]
    full = lambda shape: pl.BlockSpec(shape, lambda i: (0, 0))
    return pl.pallas_call(
        _proj_head_kernel,
        out_shape=jax.ShapeDtypeStruct((m, e), jnp.float32),
        grid=(1,),
        in_specs=[
            full((m, e)),
            full((e, hdim)), full((1, hdim)),
            full((1, hdim)), full((1, hdim)),
            full((hdim, e)), full((1, e)),
        ],
        out_specs=full((m, e)),
        compiler_params=pltpu.CompilerParams(vmem_limit_bytes=_VMEM_LIMIT),
    )(x, w1, b1.reshape(1, hdim), gamma.reshape(1, hdim), beta.reshape(1, hdim),
      w2, b2.reshape(1, e))


# -----------------------------------------------------------------------------
# Parameter construction (deterministic) and full forward.
# -----------------------------------------------------------------------------
def _w(key, shape, scale=0.02):
    # Matmul weights are stored bf16 (native MXU input; halves weight DMA).
    return (scale * jax.random.normal(key, shape, jnp.float32)).astype(jnp.bfloat16)


def init_params(key, frame_feat_dim):
    ks = jax.random.split(key, 16)
    p = {}
    # backbone stand-in (frame features -> 2048)
    p["backbone_w"] = _w(ks[0], (frame_feat_dim, BACKBONE_DIM))
    p["backbone_b"] = jnp.zeros((BACKBONE_DIM,), jnp.float32)
    # Transformation stand-in (2048 -> 256)
    p["trans_w"] = _w(ks[1], (BACKBONE_DIM, TRANS_DIM))
    p["trans_b"] = jnp.zeros((TRANS_DIM,), jnp.float32)
    # Encoder (transformer layer + output head 256 -> EMBED_DIM)
    p["encoder"] = {
        "wqkv": _w(ks[2], (TRANS_DIM, 3 * TRANS_DIM)),   # fused q/k/v projection
        "wo": _w(ks[5], (TRANS_DIM, TRANS_DIM)),
        "ln1g": jnp.ones((TRANS_DIM,), jnp.float32),
        "ln1b": jnp.zeros((TRANS_DIM,), jnp.float32),
        "w1": _w(ks[6], (TRANS_DIM, FFN_DIM)),
        "b1": jnp.zeros((FFN_DIM,), jnp.float32),
        "w2": _w(ks[7], (FFN_DIM, TRANS_DIM)),
        "b2": jnp.zeros((TRANS_DIM,), jnp.float32),
        "ln2g": jnp.ones((TRANS_DIM,), jnp.float32),
        "ln2b": jnp.zeros((TRANS_DIM,), jnp.float32),
        "wout": _w(ks[8], (TRANS_DIM, EMBED_DIM)),
        "bout": jnp.zeros((EMBED_DIM,), jnp.float32),
    }
    # projection head: Linear -> BN -> ReLU -> Linear
    p["proj_w1"] = _w(ks[9], (EMBED_DIM, PROJ_HIDDEN))
    p["proj_b1"] = jnp.zeros((PROJ_HIDDEN,), jnp.float32)
    p["bn_gamma"] = jnp.ones((PROJ_HIDDEN,), jnp.float32)
    p["bn_beta"] = jnp.zeros((PROJ_HIDDEN,), jnp.float32)
    p["proj_w2"] = _w(ks[10], (PROJ_HIDDEN, EMBED_DIM))
    p["proj_b2"] = jnp.zeros((EMBED_DIM,), jnp.float32)
    return p


@functools.partial(jax.jit, static_argnames=("split",))
def carl_forward(x, params, split="train"):
    # x: (B, T, C, H, W); supply bf16 frames for best HBM efficiency (the
    # kernels accept f32 too and cast in-kernel, but that doubles frame DMA).
    B, T, C, H, W = x.shape
    M = B * T

    # --- fused backbone + Transformation: (B*T, C*H*W) -> (B*T, 256) --------
    frames = x.reshape(M, C * H * W)                           # free reshape
    trans = pallas_backbone_transformation(
        frames, params["backbone_w"], params["backbone_b"],
        params["trans_w"], params["trans_b"])                  # (M, 256) bf16

    # --- skeleton branch: disabled (cfg.DATA has no SKELETON) ----------------

    if split == "train":
        # --- Encoder (parallel over videos), bf16 handoff to the proj head --
        emb = pallas_encoder(trans, params["encoder"], B, T,
                             out_dtype=jnp.bfloat16,
                             fuse_l2norm=False)                # (B, T, 128) bf16
        # --- projection head + F.normalize (BN stats over ALL B*T rows) -----
        out = pallas_projection_head(
            emb.reshape(M, EMBED_DIM),
            params["proj_w1"], params["proj_b1"],
            params["bn_gamma"], params["bn_beta"],
            params["proj_w2"], params["proj_b2"])              # (M, 128) f32
        return out.reshape(B, T, EMBED_DIM)

    # cfg.MODEL.L2_NORMALIZE path: normalize fused into the encoder tail.
    return pallas_encoder(trans, params["encoder"], B, T,
                          out_dtype=jnp.float32, fuse_l2norm=True)


if __name__ == "__main__":
    key = jax.random.PRNGKey(0)
    k_x, k_p = jax.random.split(key)

    B, T, C, H, W = 2, 8, 3, 16, 16
    # Data pipeline delivers frames in bf16 (no separate cast pass needed;
    # halves the activation DMA of the dominant backbone kernel).
    x = jax.random.normal(k_x, (B, T, C, H, W), jnp.float32).astype(jnp.bfloat16)
    params = init_params(k_p, C * H * W)

    out = carl_forward(x, params, split="train")
    out = jax.block_until_ready(out)

    assert out.shape == (B, T, EMBED_DIM), out.shape
    # output is L2-normalized along the last axis
    norms = jnp.linalg.norm(out, axis=-1)
    assert jnp.allclose(norms, 1.0, atol=1e-3), norms
    assert bool(jnp.all(jnp.isfinite(out)))

    # exercise the eval / L2_NORMALIZE path (normalize fused in encoder tail)
    out_eval = jax.block_until_ready(carl_forward(x, params, split="eval"))
    assert out_eval.shape == (B, T, EMBED_DIM), out_eval.shape
    norms_eval = jnp.linalg.norm(out_eval, axis=-1)
    assert jnp.allclose(norms_eval, 1.0, atol=1e-3), norms_eval

    print("KERNEL_OK")
</pallas_src>

<mosaic_0001>
module attributes {stable_mosaic.version = 11 : i64} {
  func.func @_encoder_kernel(%arg0: i32, %arg1: memref<1x8x256xbf16, #tpu.memory_space<vmem>>, %arg2: memref<256x768xbf16, #tpu.memory_space<vmem>>, %arg3: memref<256x256xbf16, #tpu.memory_space<vmem>>, %arg4: memref<1x256xf32, #tpu.memory_space<vmem>>, %arg5: memref<1x256xf32, #tpu.memory_space<vmem>>, %arg6: memref<256x1024xbf16, #tpu.memory_space<vmem>>, %arg7: memref<1x1024xf32, #tpu.memory_space<vmem>>, %arg8: memref<1024x256xbf16, #tpu.memory_space<vmem>>, %arg9: memref<1x256xf32, #tpu.memory_space<vmem>>, %arg10: memref<1x256xf32, #tpu.memory_space<vmem>>, %arg11: memref<1x256xf32, #tpu.memory_space<vmem>>, %arg12: memref<256x128xbf16, #tpu.memory_space<vmem>>, %arg13: memref<1x128xf32, #tpu.memory_space<vmem>>, %arg14: memref<1x8x128xbf16, #tpu.memory_space<vmem>>) attributes {dimension_semantics = [#tpu.dimension_semantics<parallel>], iteration_bounds = array<i64: 2>, scalar_prefetch = 0 : i64, scratch_operands = 0 : i64, tpu.core_type = #tpu.core_type<tc>, window_params = [{transform_indices = @transform_0, window_bounds = array<i64: 1, 8, 256>}, {pipeline_mode = #tpu.pipeline_mode<synchronous>, transform_indices = @transform_1, window_bounds = array<i64: 256, 768>}, {pipeline_mode = #tpu.pipeline_mode<synchronous>, transform_indices = @transform_2, window_bounds = array<i64: 256, 256>}, {pipeline_mode = #tpu.pipeline_mode<synchronous>, transform_indices = @transform_3, window_bounds = array<i64: 1, 256>}, {pipeline_mode = #tpu.pipeline_mode<synchronous>, transform_indices = @transform_4, window_bounds = array<i64: 1, 256>}, {pipeline_mode = #tpu.pipeline_mode<synchronous>, transform_indices = @transform_5, window_bounds = array<i64: 256, 1024>}, {pipeline_mode = #tpu.pipeline_mode<synchronous>, transform_indices = @transform_6, window_bounds = array<i64: 1, 1024>}, {pipeline_mode = #tpu.pipeline_mode<synchronous>, transform_indices = @transform_7, window_bounds = array<i64: 1024, 256>}, {pipeline_mode = #tpu.pipeline_mode<synchronous>, transform_indices = @transform_8, window_bounds = array<i64: 1, 256>}, {pipeline_mode = #tpu.pipeline_mode<synchronous>, transform_indices = @transform_9, window_bounds = array<i64: 1, 256>}, {pipeline_mode = #tpu.pipeline_mode<synchronous>, transform_indices = @transform_10, window_bounds = array<i64: 1, 256>}, {pipeline_mode = #tpu.pipeline_mode<synchronous>, transform_indices = @transform_11, window_bounds = array<i64: 256, 128>}, {pipeline_mode = #tpu.pipeline_mode<synchronous>, transform_indices = @transform_12, window_bounds = array<i64: 1, 128>}, {transform_indices = @transform_13, window_bounds = array<i64: 1, 8, 128>}]} {
    %c0 = arith.constant 0 : index
    %c0_0 = arith.constant 0 : index
    %c0_1 = arith.constant 0 : index
    %0 = vector.load %arg1[%c0, %c0_0, %c0_1] : memref<1x8x256xbf16, #tpu.memory_space<vmem>>, vector<1x8x256xbf16>
    %1 = vector.shape_cast %0 : vector<1x8x256xbf16> to vector<8x256xbf16>
    %2 = arith.extf %1 : vector<8x256xbf16> to vector<8x256xf32>
    %c0_2 = arith.constant 0 : index
    %c0_3 = arith.constant 0 : index
    %3 = vector.load %arg2[%c0_2, %c0_3] : memref<256x768xbf16, #tpu.memory_space<vmem>>, vector<256x768xbf16>
    %cst = arith.constant dense<0.000000e+00> : vector<8x768xf32>
    %4 = tpu.matmul %1, %3, %cst {dimension_numbers = #tpu.dot_dimension_numbers<[1], [0], [0], [1], [0, 0, 1, 1], [], []>} : vector<8x256xbf16>, vector<256x768xbf16>, vector<8x768xf32> -> vector<8x768xf32>
    %5 = vector.extract_strided_slice %4 {offsets = [0, 0], sizes = [8, 256], strides = [1, 1]} : vector<8x768xf32> to vector<8x256xf32>
    %6 = arith.truncf %5 : vector<8x256xf32> to vector<8x256xbf16>
    %7 = vector.extract_strided_slice %4 {offsets = [0, 256], sizes = [8, 256], strides = [1, 1]} : vector<8x768xf32> to vector<8x256xf32>
    %8 = arith.truncf %7 : vector<8x256xf32> to vector<8x256xbf16>
    %9 = vector.extract_strided_slice %4 {offsets = [0, 512], sizes = [8, 256], strides = [1, 1]} : vector<8x768xf32> to vector<8x256xf32>
    %10 = arith.truncf %9 : vector<8x256xf32> to vector<8x256xbf16>
    %11 = tpu.transpose %8, [1, 0] : vector<8x256xbf16> -> vector<256x8xbf16>
    %cst_4 = arith.constant dense<0.000000e+00> : vector<8x8xf32>
    %12 = tpu.matmul %6, %11, %cst_4 {dimension_numbers = #tpu.dot_dimension_numbers<[1], [0], [0], [1], [0, 0, 1, 1], [], []>} : vector<8x256xbf16>, vector<256x8xbf16>, vector<8x8xf32> -> vector<8x8xf32>
    %cst_5 = arith.constant 2.560000e+02 : f32
    %13 = math.sqrt %cst_5 : f32
    %cst_6 = arith.constant 1.000000e+00 : f32
    %14 = arith.divf %cst_6, %13 : f32
    %15 = vector.broadcast %14 : f32 to vector<8x8xf32>
    %16 = arith.mulf %12, %15 : vector<8x8xf32>
    %cst_7 = arith.constant dense<0xFF800000> : vector<8xf32>
    %17 = vector.multi_reduction <maximumf>, %16, %cst_7 [1] : vector<8x8xf32> to vector<8xf32>
    %18 = vector.shape_cast %17 : vector<8xf32> to vector<8x1xf32>
    %19 = vector.broadcast %18 : vector<8x1xf32> to vector<8x8xf32>
    %20 = arith.subf %16, %19 : vector<8x8xf32>
    %21 = math.exp %20 : vector<8x8xf32>
    %cst_8 = arith.constant dense<0.000000e+00> : vector<8xf32>
    %22 = vector.multi_reduction <add>, %21, %cst_8 [1] : vector<8x8xf32> to vector<8xf32>
    %23 = vector.shape_cast %22 : vector<8xf32> to vector<8x1xf32>
    %24 = tpu.reciprocal %23 {approx = true} : vector<8x1xf32> -> vector<8x1xf32>
    %25 = vector.broadcast %24 : vector<8x1xf32> to vector<8x8xf32>
    %26 = arith.mulf %21, %25 : vector<8x8xf32>
    %27 = arith.truncf %26 : vector<8x8xf32> to vector<8x8xbf16>
    %cst_9 = arith.constant dense<0.000000e+00> : vector<8x256xf32>
    %28 = tpu.matmul %27, %10, %cst_9 {dimension_numbers = #tpu.dot_dimension_numbers<[1], [0], [0], [1], [0, 0, 1, 1], [], []>} : vector<8x8xbf16>, vector<8x256xbf16>, vector<8x256xf32> -> vector<8x256xf32>
    %29 = arith.truncf %28 : vector<8x256xf32> to vector<8x256xbf16>
    %c0_10 = arith.constant 0 : index
    %c0_11 = arith.constant 0 : index
    %30 = vector.load %arg3[%c0_10, %c0_11] : memref<256x256xbf16, #tpu.memory_space<vmem>>, vector<256x256xbf16>
    %cst_12 = arith.constant dense<0.000000e+00> : vector<8x256xf32>
    %31 = tpu.matmul %29, %30, %cst_12 {dimension_numbers = #tpu.dot_dimension_numbers<[1], [0], [0], [1], [0, 0, 1, 1], [], []>} : vector<8x256xbf16>, vector<256x256xbf16>, vector<8x256xf32> -> vector<8x256xf32>
    %32 = arith.addf %2, %31 : vector<8x256xf32>
    %cst_13 = arith.constant dense<0.000000e+00> : vector<8xf32>
    %33 = vector.multi_reduction <add>, %32, %cst_13 [1] : vector<8x256xf32> to vector<8xf32>
    %34 = vector.shape_cast %33 : vector<8xf32> to vector<8x1xf32>
    %cst_14 = arith.constant 2.560000e+02 : f32
    %35 = vector.broadcast %cst_14 : f32 to vector<8x1xf32>
    %36 = arith.divf %34, %35 : vector<8x1xf32>
    %37 = vector.broadcast %36 : vector<8x1xf32> to vector<8x256xf32>
    %38 = arith.subf %32, %37 : vector<8x256xf32>
    %39 = arith.mulf %38, %38 : vector<8x256xf32>
    %cst_15 = arith.constant dense<0.000000e+00> : vector<8xf32>
    %40 = vector.multi_reduction <add>, %39, %cst_15 [1] : vector<8x256xf32> to vector<8xf32>
    %41 = vector.shape_cast %40 : vector<8xf32> to vector<8x1xf32>
    %cst_16 = arith.constant 2.560000e+02 : f32
    %42 = vector.broadcast %cst_16 : f32 to vector<8x1xf32>
    %43 = arith.divf %41, %42 : vector<8x1xf32>
    %44 = vector.broadcast %36 : vector<8x1xf32> to vector<8x256xf32>
    %45 = arith.subf %32, %44 : vector<8x256xf32>
    %cst_17 = arith.constant 9.99999974E-6 : f32
    %46 = vector.broadcast %cst_17 : f32 to vector<8x1xf32>
    %47 = arith.addf %43, %46 : vector<8x1xf32>
    %48 = math.rsqrt %47 : vector<8x1xf32>
    %49 = vector.broadcast %48 : vector<8x1xf32> to vector<8x256xf32>
    %50 = arith.mulf %45, %49 : vector<8x256xf32>
    %c0_18 = arith.constant 0 : index
    %c0_19 = arith.constant 0 : index
    %51 = vector.load %arg4[%c0_18, %c0_19] : memref<1x256xf32, #tpu.memory_space<vmem>>, vector<1x256xf32>
    %52 = vector.broadcast %51 : vector<1x256xf32> to vector<8x256xf32>
    %53 = arith.mulf %50, %52 : vector<8x256xf32>
    %c0_20 = arith.constant 0 : index
    %c0_21 = arith.constant 0 : index
    %54 = vector.load %arg5[%c0_20, %c0_21] : memref<1x256xf32, #tpu.memory_space<vmem>>, vector<1x256xf32>
    %55 = vector.broadcast %54 : vector<1x256xf32> to vector<8x256xf32>
    %56 = arith.addf %53, %55 : vector<8x256xf32>
    %57 = arith.truncf %56 : vector<8x256xf32> to vector<8x256xbf16>
    %c0_22 = arith.constant 0 : index
    %c0_23 = arith.constant 0 : index
    %58 = vector.load %arg6[%c0_22, %c0_23] : memref<256x1024xbf16, #tpu.memory_space<vmem>>, vector<256x1024xbf16>
    %cst_24 = arith.constant dense<0.000000e+00> : vector<8x1024xf32>
    %59 = tpu.matmul %57, %58, %cst_24 {dimension_numbers = #tpu.dot_dimension_numbers<[1], [0], [0], [1], [0, 0, 1, 1], [], []>} : vector<8x256xbf16>, vector<256x1024xbf16>, vector<8x1024xf32> -> vector<8x1024xf32>
    %c0_25 = arith.constant 0 : index
    %c0_26 = arith.constant 0 : index
    %60 = vector.load %arg7[%c0_25, %c0_26] : memref<1x1024xf32, #tpu.memory_space<vmem>>, vector<1x1024xf32>
    %61 = vector.broadcast %60 : vector<1x1024xf32> to vector<8x1024xf32>
    %62 = arith.addf %59, %61 : vector<8x1024xf32>
    %cst_27 = arith.constant 0.000000e+00 : f32
    %63 = vector.broadcast %cst_27 : f32 to vector<8x1024xf32>
    %64 = arith.maximumf %62, %63 : vector<8x1024xf32>
    %65 = arith.truncf %64 : vector<8x1024xf32> to vector<8x1024xbf16>
    %c0_28 = arith.constant 0 : index
    %c0_29 = arith.constant 0 : index
    %66 = vector.load %arg8[%c0_28, %c0_29] : memref<1024x256xbf16, #tpu.memory_space<vmem>>, vector<1024x256xbf16>
    %cst_30 = arith.constant dense<0.000000e+00> : vector<8x256xf32>
    %67 = tpu.matmul %65, %66, %cst_30 {dimension_numbers = #tpu.dot_dimension_numbers<[1], [0], [0], [1], [0, 0, 1, 1], [], []>} : vector<8x1024xbf16>, vector<1024x256xbf16>, vector<8x256xf32> -> vector<8x256xf32>
    %c0_31 = arith.constant 0 : index
    %c0_32 = arith.constant 0 : index
    %68 = vector.load %arg9[%c0_31, %c0_32] : memref<1x256xf32, #tpu.memory_space<vmem>>, vector<1x256xf32>
    %69 = vector.broadcast %68 : vector<1x256xf32> to vector<8x256xf32>
    %70 = arith.addf %67, %69 : vector<8x256xf32>
    %71 = arith.addf %56, %70 : vector<8x256xf32>
    %cst_33 = arith.constant dense<0.000000e+00> : vector<8xf32>
    %72 = vector.multi_reduction <add>, %71, %cst_33 [1] : vector<8x256xf32> to vector<8xf32>
    %73 = vector.shape_cast %72 : vector<8xf32> to vector<8x1xf32>
    %cst_34 = arith.constant 2.560000e+02 : f32
    %74 = vector.broadcast %cst_34 : f32 to vector<8x1xf32>
    %75 = arith.divf %73, %74 : vector<8x1xf32>
    %76 = vector.broadcast %75 : vector<8x1xf32> to vector<8x256xf32>
    %77 = arith.subf %71, %76 : vector<8x256xf32>
    %78 = arith.mulf %77, %77 : vector<8x256xf32>
    %cst_35 = arith.constant dense<0.000000e+00> : vector<8xf32>
    %79 = vector.multi_reduction <add>, %78, %cst_35 [1] : vector<8x256xf32> to vector<8xf32>
    %80 = vector.shape_cast %79 : vector<8xf32> to vector<8x1xf32>
    %cst_36 = arith.constant 2.560000e+02 : f32
    %81 = vector.broadcast %cst_36 : f32 to vector<8x1xf32>
    %82 = arith.divf %80, %81 : vector<8x1xf32>
    %83 = vector.broadcast %75 : vector<8x1xf32> to vector<8x256xf32>
    %84 = arith.subf %71, %83 : vector<8x256xf32>
    %cst_37 = arith.constant 9.99999974E-6 : f32
    %85 = vector.broadcast %cst_37 : f32 to vector<8x1xf32>
    %86 = arith.addf %82, %85 : vector<8x1xf32>
    %87 = math.rsqrt %86 : vector<8x1xf32>
    %88 = vector.broadcast %87 : vector<8x1xf32> to vector<8x256xf32>
    %89 = arith.mulf %84, %88 : vector<8x256xf32>
    %c0_38 = arith.constant 0 : index
    %c0_39 = arith.constant 0 : index
    %90 = vector.load %arg10[%c0_38, %c0_39] : memref<1x256xf32, #tpu.memory_space<vmem>>, vector<1x256xf32>
    %91 = vector.broadcast %90 : vector<1x256xf32> to vector<8x256xf32>
    %92 = arith.mulf %89, %91 : vector<8x256xf32>
    %c0_40 = arith.constant 0 : index
    %c0_41 = arith.constant 0 : index
    %93 = vector.load %arg11[%c0_40, %c0_41] : memref<1x256xf32, #tpu.memory_space<vmem>>, vector<1x256xf32>
    %94 = vector.broadcast %93 : vector<1x256xf32> to vector<8x256xf32>
    %95 = arith.addf %92, %94 : vector<8x256xf32>
    %96 = arith.truncf %95 : vector<8x256xf32> to vector<8x256xbf16>
    %c0_42 = arith.constant 0 : index
    %c0_43 = arith.constant 0 : index
    %97 = vector.load %arg12[%c0_42, %c0_43] : memref<256x128xbf16, #tpu.memory_space<vmem>>, vector<256x128xbf16>
    %cst_44 = arith.constant dense<0.000000e+00> : vector<8x128xf32>
    %98 = tpu.matmul %96, %97, %cst_44 {dimension_numbers = #tpu.dot_dimension_numbers<[1], [0], [0], [1], [0, 0, 1, 1], [], []>} : vector<8x256xbf16>, vector<256x128xbf16>, vector<8x128xf32> -> vector<8x128xf32>
    %c0_45 = arith.constant 0 : index
    %c0_46 = arith.constant 0 : index
    %99 = vector.load %arg13[%c0_45, %c0_46] : memref<1x128xf32, #tpu.memory_space<vmem>>, vector<1x128xf32>
    %100 = vector.broadcast %99 : vector<1x128xf32> to vector<8x128xf32>
    %101 = arith.addf %98, %100 : vector<8x128xf32>
    %102 = arith.truncf %101 : vector<8x128xf32> to vector<8x128xbf16>
    %c0_47 = arith.constant 0 : index
    %c0_48 = arith.constant 0 : index
    %c0_49 = arith.constant 0 : index
    %103 = vector.load %arg14[%c0_47, %c0_48, %c0_49] : memref<1x8x128xbf16, #tpu.memory_space<vmem>>, vector<1x8x128xbf16>
    %104 = vector.shape_cast %103 : vector<1x8x128xbf16> to vector<8x128xbf16>
    %105 = vector.shape_cast %102 : vector<8x128xbf16> to vector<1x8x128xbf16>
    tpu.vector_store %arg14[%c0_47, %c0_48, %c0_49], %105 {strides = array<i32>} : memref<1x8x128xbf16, #tpu.memory_space<vmem>>, vector<1x8x128xbf16>,
    return
  }
  func.func @transform_0(%arg0: i32) -> (i32, i32, i32) {
    %c0_i32 = arith.constant 0 : i32
    %c0_i32_0 = arith.constant 0 : i32
    %c0_i32_1 = arith.constant 0 : i32
    return %arg0, %c0_i32, %c0_i32_0 : i32, i32, i32
  }
  func.func @transform_1(%arg0: i32) -> (i32, i32) {
    %c0_i32 = arith.constant 0 : i32
    %c0_i32_0 = arith.constant 0 : i32
    %c0_i32_1 = arith.constant 0 : i32
    return %c0_i32, %c0_i32_0 : i32, i32
  }
  func.func @transform_2(%arg0: i32) -> (i32, i32) {
    %c0_i32 = arith.constant 0 : i32
    %c0_i32_0 = arith.constant 0 : i32
    %c0_i32_1 = arith.constant 0 : i32
    return %c0_i32, %c0_i32_0 : i32, i32
  }
  func.func @transform_3(%arg0: i32) -> (i32, i32) {
    %c0_i32 = arith.constant 0 : i32
    %c0_i32_0 = arith.constant 0 : i32
    %c0_i32_1 = arith.constant 0 : i32
    return %c0_i32, %c0_i32_0 : i32, i32
  }
  func.func @transform_4(%arg0: i32) -> (i32, i32) {
    %c0_i32 = arith.constant 0 : i32
    %c0_i32_0 = arith.constant 0 : i32
    %c0_i32_1 = arith.constant 0 : i32
    return %c0_i32, %c0_i32_0 : i32, i32
  }
  func.func @transform_5(%arg0: i32) -> (i32, i32) {
    %c0_i32 = arith.constant 0 : i32
    %c0_i32_0 = arith.constant 0 : i32
    %c0_i32_1 = arith.constant 0 : i32
    return %c0_i32, %c0_i32_0 : i32, i32
  }
  func.func @transform_6(%arg0: i32) -> (i32, i32) {
    %c0_i32 = arith.constant 0 : i32
    %c0_i32_0 = arith.constant 0 : i32
    %c0_i32_1 = arith.constant 0 : i32
    return %c0_i32, %c0_i32_0 : i32, i32
  }
  func.func @transform_7(%arg0: i32) -> (i32, i32) {
    %c0_i32 = arith.constant 0 : i32
    %c0_i32_0 = arith.constant 0 : i32
    %c0_i32_1 = arith.constant 0 : i32
    return %c0_i32, %c0_i32_0 : i32, i32
  }
  func.func @transform_8(%arg0: i32) -> (i32, i32) {
    %c0_i32 = arith.constant 0 : i32
    %c0_i32_0 = arith.constant 0 : i32
    %c0_i32_1 = arith.constant 0 : i32
    return %c0_i32, %c0_i32_0 : i32, i32
  }
  func.func @transform_9(%arg0: i32) -> (i32, i32) {
    %c0_i32 = arith.constant 0 : i32
    %c0_i32_0 = arith.constant 0 : i32
    %c0_i32_1 = arith.constant 0 : i32
    return %c0_i32, %c0_i32_0 : i32, i32
  }
  func.func @transform_10(%arg0: i32) -> (i32, i32) {
    %c0_i32 = arith.constant 0 : i32
    %c0_i32_0 = arith.constant 0 : i32
    %c0_i32_1 = arith.constant 0 : i32
    return %c0_i32, %c0_i32_0 : i32, i32
  }
  func.func @transform_11(%arg0: i32) -> (i32, i32) {
    %c0_i32 = arith.constant 0 : i32
    %c0_i32_0 = arith.constant 0 : i32
    %c0_i32_1 = arith.constant 0 : i32
    return %c0_i32, %c0_i32_0 : i32, i32
  }
  func.func @transform_12(%arg0: i32) -> (i32, i32) {
    %c0_i32 = arith.constant 0 : i32
    %c0_i32_0 = arith.constant 0 : i32
    %c0_i32_1 = arith.constant 0 : i32
    return %c0_i32, %c0_i32_0 : i32, i32
  }
  func.func @transform_13(%arg0: i32) -> (i32, i32, i32) {
    %c0_i32 = arith.constant 0 : i32
    %c0_i32_0 = arith.constant 0 : i32
    %c0_i32_1 = arith.constant 0 : i32
    return %arg0, %c0_i32, %c0_i32_0 : i32, i32, i32
  }
}

module attributes {stable_mosaic.version = 11 : i64} {
  func.func @_backbone_trans_kernel(%arg0: i32, %arg1: i32, %arg2: memref<16x768xbf16, #tpu.memory_space<vmem>>, %arg3: memref<768x2048xbf16, #tpu.memory_space<vmem>>, %arg4: memref<1x2048xf32, #tpu.memory_space<vmem>>, %arg5: memref<2048x256xbf16, #tpu.memory_space<vmem>>, %arg6: memref<1x256xf32, #tpu.memory_space<vmem>>, %arg7: memref<16x256xbf16, #tpu.memory_space<vmem>>, %arg8: memref<16x2048xf32, #tpu.memory_space<vmem>>) attributes {dimension_semantics = [#tpu.dimension_semantics<parallel>, #tpu.dimension_semantics<arbitrary>], iteration_bounds = array<i64: 1, 1>, scalar_prefetch = 0 : i64, scratch_operands = 1 : i64, tpu.core_type = #tpu.core_type<tc>, window_params = [{transform_indices = @transform_0, window_bounds = array<i64: 16, 768>}, {transform_indices = @transform_1, window_bounds = array<i64: 768, 2048>}, {pipeline_mode = #tpu.pipeline_mode<synchronous>, transform_indices = @transform_2, window_bounds = array<i64: 1, 2048>}, {pipeline_mode = #tpu.pipeline_mode<synchronous>, transform_indices = @transform_3, window_bounds = array<i64: 2048, 256>}, {pipeline_mode = #tpu.pipeline_mode<synchronous>, transform_indices = @transform_4, window_bounds = array<i64: 1, 256>}, {transform_indices = @transform_5, window_bounds = array<i64: 16, 256>}]} {
    %c0_i32 = arith.constant 0 : i32
    %0 = arith.cmpi eq, %arg1, %c0_i32 : i32
    %1 = arith.extui %0 : i1 to i32
    %c0_i32_0 = arith.constant 0 : i32
    %2 = arith.cmpi ne, %1, %c0_i32_0 : i32
    scf.if %2 {
      %cst_10 = arith.constant 0.000000e+00 : f32
      %12 = vector.broadcast %cst_10 : f32 to vector<16x2048xf32>
      %c0_11 = arith.constant 0 : index
      %c0_12 = arith.constant 0 : index
      %13 = vector.load %arg8[%c0_11, %c0_12] : memref<16x2048xf32, #tpu.memory_space<vmem>>, vector<16x2048xf32>
      tpu.vector_store %arg8[%c0_11, %c0_12], %12 {strides = array<i32>} : memref<16x2048xf32, #tpu.memory_space<vmem>>, vector<16x2048xf32>,
    } else {
    }
    %c0 = arith.constant 0 : index
    %c0_1 = arith.constant 0 : index
    %3 = vector.load %arg8[%c0, %c0_1] : memref<16x2048xf32, #tpu.memory_space<vmem>>, vector<16x2048xf32>
    %c0_2 = arith.constant 0 : index
    %c0_3 = arith.constant 0 : index
    %4 = vector.load %arg2[%c0_2, %c0_3] : memref<16x768xbf16, #tpu.memory_space<vmem>>, vector<16x768xbf16>
    %c0_4 = arith.constant 0 : index
    %c0_5 = arith.constant 0 : index
    %5 = vector.load %arg3[%c0_4, %c0_5] : memref<768x2048xbf16, #tpu.memory_space<vmem>>, vector<768x2048xbf16>
    %cst = arith.constant dense<0.000000e+00> : vector<16x2048xf32>
    %6 = tpu.matmul %4, %5, %cst {dimension_numbers = #tpu.dot_dimension_numbers<[1], [0], [0], [1], [0, 0, 1, 1], [], []>} : vector<16x768xbf16>, vector<768x2048xbf16>, vector<16x2048xf32> -> vector<16x2048xf32>
    %7 = arith.addf %3, %6 : vector<16x2048xf32>
    %c0_6 = arith.constant 0 : index
    %c0_7 = arith.constant 0 : index
    %8 = vector.load %arg8[%c0_6, %c0_7] : memref<16x2048xf32, #tpu.memory_space<vmem>>, vector<16x2048xf32>
    tpu.vector_store %arg8[%c0_6, %c0_7], %7 {strides = array<i32>} : memref<16x2048xf32, #tpu.memory_space<vmem>>, vector<16x2048xf32>,
    %c0_i32_8 = arith.constant 0 : i32
    %9 = arith.cmpi eq, %arg1, %c0_i32_8 : i32
    %10 = arith.extui %9 : i1 to i32
    %c0_i32_9 = arith.constant 0 : i32
    %11 = arith.cmpi ne, %10, %c0_i32_9 : i32
    scf.if %11 {
      %c0_10 = arith.constant 0 : index
      %c0_11 = arith.constant 0 : index
      %12 = vector.load %arg8[%c0_10, %c0_11] : memref<16x2048xf32, #tpu.memory_space<vmem>>, vector<16x2048xf32>
      %c0_12 = arith.constant 0 : index
      %c0_13 = arith.constant 0 : index
      %13 = vector.load %arg4[%c0_12, %c0_13] : memref<1x2048xf32, #tpu.memory_space<vmem>>, vector<1x2048xf32>
      %14 = vector.broadcast %13 : vector<1x2048xf32> to vector<16x2048xf32>
      %15 = arith.addf %12, %14 : vector<16x2048xf32>
      %16 = arith.truncf %15 : vector<16x2048xf32> to vector<16x2048xbf16>
      %c0_14 = arith.constant 0 : index
      %c0_15 = arith.constant 0 : index
      %17 = vector.load %arg5[%c0_14, %c0_15] : memref<2048x256xbf16, #tpu.memory_space<vmem>>, vector<2048x256xbf16>
      %cst_16 = arith.constant dense<0.000000e+00> : vector<16x256xf32>
      %18 = tpu.matmul %16, %17, %cst_16 {dimension_numbers = #tpu.dot_dimension_numbers<[1], [0], [0], [1], [0, 0, 1, 1], [], []>} : vector<16x2048xbf16>, vector<2048x256xbf16>, vector<16x256xf32> -> vector<16x256xf32>
      %c0_17 = arith.constant 0 : index
      %c0_18 = arith.constant 0 : index
      %19 = vector.load %arg6[%c0_17, %c0_18] : memref<1x256xf32, #tpu.memory_space<vmem>>, vector<1x256xf32>
      %20 = vector.broadcast %19 : vector<1x256xf32> to vector<16x256xf32>
      %21 = arith.addf %18, %20 : vector<16x256xf32>
      %22 = arith.truncf %21 : vector<16x256xf32> to vector<16x256xbf16>
      %c0_19 = arith.constant 0 : index
      %c0_20 = arith.constant 0 : index
      %23 = vector.load %arg7[%c0_19, %c0_20] : memref<16x256xbf16, #tpu.memory_space<vmem>>, vector<16x256xbf16>
      tpu.vector_store %arg7[%c0_19, %c0_20], %22 {strides = array<i32>} : memref<16x256xbf16, #tpu.memory_space<vmem>>, vector<16x256xbf16>,
    } else {
    }
    return
  }
  func.func @transform_0(%arg0: i32, %arg1: i32) -> (i32, i32) {
    %c0_i32 = arith.constant 0 : i32
    return %arg0, %arg1 : i32, i32
  }
  func.func @transform_1(%arg0: i32, %arg1: i32) -> (i32, i32) {
    %c0_i32 = arith.constant 0 : i32
    %c0_i32_0 = arith.constant 0 : i32
    return %arg1, %c0_i32 : i32, i32
  }
  func.func @transform_2(%arg0: i32, %arg1: i32) -> (i32, i32) {
    %c0_i32 = arith.constant 0 : i32
    %c0_i32_0 = arith.constant 0 : i32
    %c0_i32_1 = arith.constant 0 : i32
    return %c0_i32, %c0_i32_0 : i32, i32
  }
  func.func @transform_3(%arg0: i32, %arg1: i32) -> (i32, i32) {
    %c0_i32 = arith.constant 0 : i32
    %c0_i32_0 = arith.constant 0 : i32
    %c0_i32_1 = arith.constant 0 : i32
    return %c0_i32, %c0_i32_0 : i32, i32
  }
  func.func @transform_4(%arg0: i32, %arg1: i32) -> (i32, i32) {
    %c0_i32 = arith.constant 0 : i32
    %c0_i32_0 = arith.constant 0 : i32
    %c0_i32_1 = arith.constant 0 : i32
    return %c0_i32, %c0_i32_0 : i32, i32
  }
  func.func @transform_5(%arg0: i32, %arg1: i32) -> (i32, i32) {
    %c0_i32 = arith.constant 0 : i32
    %c0_i32_0 = arith.constant 0 : i32
    return %arg0, %c0_i32 : i32, i32
  }
}

module attributes {stable_mosaic.version = 11 : i64} {
  func.func @_proj_head_kernel(%arg0: i32, %arg1: memref<16x128xbf16, #tpu.memory_space<vmem>>, %arg2: memref<128x64xbf16, #tpu.memory_space<vmem>>, %arg3: memref<1x64xf32, #tpu.memory_space<vmem>>, %arg4: memref<1x64xf32, #tpu.memory_space<vmem>>, %arg5: memref<1x64xf32, #tpu.memory_space<vmem>>, %arg6: memref<64x128xbf16, #tpu.memory_space<vmem>>, %arg7: memref<1x128xf32, #tpu.memory_space<vmem>>, %arg8: memref<16x128xf32, #tpu.memory_space<vmem>>) attributes {dimension_semantics = [#tpu.dimension_semantics<arbitrary>], iteration_bounds = array<i64: 1>, scalar_prefetch = 0 : i64, scratch_operands = 0 : i64, tpu.core_type = #tpu.core_type<tc>, window_params = [{pipeline_mode = #tpu.pipeline_mode<synchronous>, transform_indices = @transform_0, window_bounds = array<i64: 16, 128>}, {pipeline_mode = #tpu.pipeline_mode<synchronous>, transform_indices = @transform_1, window_bounds = array<i64: 128, 64>}, {pipeline_mode = #tpu.pipeline_mode<synchronous>, transform_indices = @transform_2, window_bounds = array<i64: 1, 64>}, {pipeline_mode = #tpu.pipeline_mode<synchronous>, transform_indices = @transform_3, window_bounds = array<i64: 1, 64>}, {pipeline_mode = #tpu.pipeline_mode<synchronous>, transform_indices = @transform_4, window_bounds = array<i64: 1, 64>}, {pipeline_mode = #tpu.pipeline_mode<synchronous>, transform_indices = @transform_5, window_bounds = array<i64: 64, 128>}, {pipeline_mode = #tpu.pipeline_mode<synchronous>, transform_indices = @transform_6, window_bounds = array<i64: 1, 128>}, {pipeline_mode = #tpu.pipeline_mode<synchronous>, transform_indices = @transform_7, window_bounds = array<i64: 16, 128>}]} {
    %c0 = arith.constant 0 : index
    %c0_0 = arith.constant 0 : index
    %0 = vector.load %arg1[%c0, %c0_0] : memref<16x128xbf16, #tpu.memory_space<vmem>>, vector<16x128xbf16>
    %c0_1 = arith.constant 0 : index
    %c0_2 = arith.constant 0 : index
    %1 = vector.load %arg2[%c0_1, %c0_2] : memref<128x64xbf16, #tpu.memory_space<vmem>>, vector<128x64xbf16>
    %cst = arith.constant dense<0.000000e+00> : vector<16x64xf32>
    %2 = tpu.matmul %0, %1, %cst {dimension_numbers = #tpu.dot_dimension_numbers<[1], [0], [0], [1], [0, 0, 1, 1], [], []>} : vector<16x128xbf16>, vector<128x64xbf16>, vector<16x64xf32> -> vector<16x64xf32>
    %c0_3 = arith.constant 0 : index
    %c0_4 = arith.constant 0 : index
    %3 = vector.load %arg3[%c0_3, %c0_4] : memref<1x64xf32, #tpu.memory_space<vmem>>, vector<1x64xf32>
    %4 = vector.broadcast %3 : vector<1x64xf32> to vector<16x64xf32>
    %5 = arith.addf %2, %4 : vector<16x64xf32>
    %cst_5 = arith.constant dense<0.000000e+00> : vector<64xf32>
    %6 = vector.multi_reduction <add>, %5, %cst_5 [0] : vector<16x64xf32> to vector<64xf32>
    %7 = vector.shape_cast %6 : vector<64xf32> to vector<1x64xf32>
    %cst_6 = arith.constant 1.600000e+01 : f32
    %8 = vector.broadcast %cst_6 : f32 to vector<1x64xf32>
    %9 = arith.divf %7, %8 : vector<1x64xf32>
    %10 = vector.broadcast %9 : vector<1x64xf32> to vector<16x64xf32>
    %11 = arith.subf %5, %10 : vector<16x64xf32>
    %12 = arith.mulf %11, %11 : vector<16x64xf32>
    %cst_7 = arith.constant dense<0.000000e+00> : vector<64xf32>
    %13 = vector.multi_reduction <add>, %12, %cst_7 [0] : vector<16x64xf32> to vector<64xf32>
    %14 = vector.shape_cast %13 : vector<64xf32> to vector<1x64xf32>
    %cst_8 = arith.constant 1.600000e+01 : f32
    %15 = vector.broadcast %cst_8 : f32 to vector<1x64xf32>
    %16 = arith.divf %14, %15 : vector<1x64xf32>
    %17 = vector.broadcast %9 : vector<1x64xf32> to vector<16x64xf32>
    %18 = arith.subf %5, %17 : vector<16x64xf32>
    %cst_9 = arith.constant 9.99999974E-6 : f32
    %19 = vector.broadcast %cst_9 : f32 to vector<1x64xf32>
    %20 = arith.addf %16, %19 : vector<1x64xf32>
    %21 = math.rsqrt %20 : vector<1x64xf32>
    %22 = vector.broadcast %21 : vector<1x64xf32> to vector<16x64xf32>
    %23 = arith.mulf %18, %22 : vector<16x64xf32>
    %c0_10 = arith.constant 0 : index
    %c0_11 = arith.constant 0 : index
    %24 = vector.load %arg4[%c0_10, %c0_11] : memref<1x64xf32, #tpu.memory_space<vmem>>, vector<1x64xf32>
    %25 = vector.broadcast %24 : vector<1x64xf32> to vector<16x64xf32>
    %26 = arith.mulf %23, %25 : vector<16x64xf32>
    %c0_12 = arith.constant 0 : index
    %c0_13 = arith.constant 0 : index
    %27 = vector.load %arg5[%c0_12, %c0_13] : memref<1x64xf32, #tpu.memory_space<vmem>>, vector<1x64xf32>
    %28 = vector.broadcast %27 : vector<1x64xf32> to vector<16x64xf32>
    %29 = arith.addf %26, %28 : vector<16x64xf32>
    %cst_14 = arith.constant 0.000000e+00 : f32
    %30 = vector.broadcast %cst_14 : f32 to vector<16x64xf32>
    %31 = arith.maximumf %29, %30 : vector<16x64xf32>
    %32 = arith.truncf %31 : vector<16x64xf32> to vector<16x64xbf16>
    %c0_15 = arith.constant 0 : index
    %c0_16 = arith.constant 0 : index
    %33 = vector.load %arg6[%c0_15, %c0_16] : memref<64x128xbf16, #tpu.memory_space<vmem>>, vector<64x128xbf16>
    %cst_17 = arith.constant dense<0.000000e+00> : vector<16x128xf32>
    %34 = tpu.matmul %32, %33, %cst_17 {dimension_numbers = #tpu.dot_dimension_numbers<[1], [0], [0], [1], [0, 0, 1, 1], [], []>} : vector<16x64xbf16>, vector<64x128xbf16>, vector<16x128xf32> -> vector<16x128xf32>
    %c0_18 = arith.constant 0 : index
    %c0_19 = arith.constant 0 : index
    %35 = vector.load %arg7[%c0_18, %c0_19] : memref<1x128xf32, #tpu.memory_space<vmem>>, vector<1x128xf32>
    %36 = vector.broadcast %35 : vector<1x128xf32> to vector<16x128xf32>
    %37 = arith.addf %34, %36 : vector<16x128xf32>
    %38 = arith.mulf %37, %37 : vector<16x128xf32>
    %cst_20 = arith.constant dense<0.000000e+00> : vector<16xf32>
    %39 = vector.multi_reduction <add>, %38, %cst_20 [1] : vector<16x128xf32> to vector<16xf32>
    %40 = vector.shape_cast %39 : vector<16xf32> to vector<16x1xf32>
    %41 = math.sqrt %40 : vector<16x1xf32>
    %cst_21 = arith.constant 9.99999996E-13 : f32
    %42 = vector.broadcast %cst_21 : f32 to vector<16x1xf32>
    %43 = arith.maximumf %41, %42 : vector<16x1xf32>
    %44 = vector.broadcast %43 : vector<16x1xf32> to vector<16x128xf32>
    %45 = arith.divf %37, %44 : vector<16x128xf32>
    %c0_22 = arith.constant 0 : index
    %c0_23 = arith.constant 0 : index
    %46 = vector.load %arg8[%c0_22, %c0_23] : memref<16x128xf32, #tpu.memory_space<vmem>>, vector<16x128xf32>
    tpu.vector_store %arg8[%c0_22, %c0_23], %45 {strides = array<i32>} : memref<16x128xf32, #tpu.memory_space<vmem>>, vector<16x128xf32>,
    return
  }
  func.func @transform_0(%arg0: i32) -> (i32, i32) {
    %c0_i32 = arith.constant 0 : i32
    %c0_i32_0 = arith.constant 0 : i32
    %c0_i32_1 = arith.constant 0 : i32
    return %c0_i32, %c0_i32_0 : i32, i32
  }
  func.func @transform_1(%arg0: i32) -> (i32, i32) {
    %c0_i32 = arith.constant 0 : i32
    %c0_i32_0 = arith.constant 0 : i32
    %c0_i32_1 = arith.constant 0 : i32
    return %c0_i32, %c0_i32_0 : i32, i32
  }
  func.func @transform_2(%arg0: i32) -> (i32, i32) {
    %c0_i32 = arith.constant 0 : i32
    %c0_i32_0 = arith.constant 0 : i32
    %c0_i32_1 = arith.constant 0 : i32
    return %c0_i32, %c0_i32_0 : i32, i32
  }
  func.func @transform_3(%arg0: i32) -> (i32, i32) {
    %c0_i32 = arith.constant 0 : i32
    %c0_i32_0 = arith.constant 0 : i32
    %c0_i32_1 = arith.constant 0 : i32
    return %c0_i32, %c0_i32_0 : i32, i32
  }
  func.func @transform_4(%arg0: i32) -> (i32, i32) {
    %c0_i32 = arith.constant 0 : i32
    %c0_i32_0 = arith.constant 0 : i32
    %c0_i32_1 = arith.constant 0 : i32
    return %c0_i32, %c0_i32_0 : i32, i32
  }
  func.func @transform_5(%arg0: i32) -> (i32, i32) {
    %c0_i32 = arith.constant 0 : i32
    %c0_i32_0 = arith.constant 0 : i32
    %c0_i32_1 = arith.constant 0 : i32
    return %c0_i32, %c0_i32_0 : i32, i32
  }
  func.func @transform_6(%arg0: i32) -> (i32, i32) {
    %c0_i32 = arith.constant 0 : i32
    %c0_i32_0 = arith.constant 0 : i32
    %c0_i32_1 = arith.constant 0 : i32
    return %c0_i32, %c0_i32_0 : i32, i32
  }
  func.func @transform_7(%arg0: i32) -> (i32, i32) {
    %c0_i32 = arith.constant 0 : i32
    %c0_i32_0 = arith.constant 0 : i32
    %c0_i32_1 = arith.constant 0 : i32
    return %c0_i32, %c0_i32_0 : i32, i32
  }
}

</mosaic_0001>

<llo_original>
// kernel: carl_forward.5
$region0: #{carl_forward.5}
  #allocation0 [shape = 'u32[]', space=smem, size = 0x4, offset = 0x4, fixed_abs, tag = 'smem constant byte address 0x4 - core index']
  #allocation1 [shape = 'u32[144,128]{1,0:T(1,128)}', space=vmem, size = 0x12000, scoped, tag = 'internal scratch']
  %s0 = inlined_call_operand.vmem [shape: bf16[16,128], index: 0, kind: input, shape index: {}]
  %s1 = inlined_call_operand.vmem [shape: bf16[128,64], index: 1, kind: input, shape index: {}]
  %s2 = inlined_call_operand.vmem [shape: f32[1,64], index: 2, kind: input, shape index: {}]
  %s3 = inlined_call_operand.vmem [shape: f32[1,64], index: 3, kind: input, shape index: {}]
  %s4 = inlined_call_operand.vmem [shape: f32[1,64], index: 4, kind: input, shape index: {}]
  %s5 = inlined_call_operand.vmem [shape: bf16[64,128], index: 5, kind: input, shape index: {}]
  %s6 = inlined_call_operand.vmem [shape: f32[1,128], index: 6, kind: input, shape index: {}]
  %s7 = inlined_call_operand.hbm [shape: f32[16,128], index: 7, kind: output, shape index: {}]
  %s8 = sld [smem:[#allocation0]]
  $region38: #{carl_forward.5} parent=0
    _
  %s10 = ssub.s32 1, %s8
  %s11 = scalar_select 0, %s10, %s8
  $region1: #{carl_forward.5} parent=0
    #allocation2 [shape = 'u8[8192]{0}', space=vmem, size = 0x2000, scoped, tag = 'output window, operand 0, single buffered']
    #allocation3 [shape = 's32[1]{0}', space=sflag, size = 0x4, scoped, tag = 'scoped memory for carl_forward.5']
    %12 = vsyncpa [#allocation3], 0
    // Predicated region
    $region2: #{carl_forward.5} parent=1 // pred_check
      _
    $region3: #{carl_forward.5} parent=1 // pred_check_branch
      %14 = sbr.rel (0) target = $region5
    $region4: #{carl_forward.5} parent=1 // pred_region
      _
    $region5: #{carl_forward.5} parent=1 // pred_fallthru
      _
    // Predicated region
    $region6: #{carl_forward.5} parent=1 // pred_check
      _
    $region7: #{carl_forward.5} parent=1 // pred_check_branch
      %16 = sbr.rel (0) target = $region9
    $region8: #{carl_forward.5} parent=1 // pred_region
      _
    $region9: #{carl_forward.5} parent=1 // pred_fallthru
      _
    // Predicated region
    $region10: #{carl_forward.5} parent=1 // pred_check
      _
    $region11: #{carl_forward.5} parent=1 // pred_check_branch
      %18 = sbr.rel (0) target = $region13
    $region12: #{carl_forward.5} parent=1 // pred_region
      _
    $region13: #{carl_forward.5} parent=1 // pred_fallthru
      _
    // Predicated region
    $region14: #{carl_forward.5} parent=1 // pred_check
      _
    $region15: #{carl_forward.5} parent=1 // pred_check_branch
      %20 = sbr.rel (0) target = $region17
    $region16: #{carl_forward.5} parent=1 // pred_region
      _
    $region17: #{carl_forward.5} parent=1 // pred_fallthru
      _
    // Predicated region
    $region18: #{carl_forward.5} parent=1 // pred_check
      _
    $region19: #{carl_forward.5} parent=1 // pred_check_branch
      %22 = sbr.rel (0) target = $region21
    $region20: #{carl_forward.5} parent=1 // pred_region
      _
    $region21: #{carl_forward.5} parent=1 // pred_fallthru
      _
    // Predicated region
    $region22: #{carl_forward.5} parent=1 // pred_check
      _
    $region23: #{carl_forward.5} parent=1 // pred_check_branch
      %24 = sbr.rel (0) target = $region25
    $region24: #{carl_forward.5} parent=1 // pred_region
      _
    $region25: #{carl_forward.5} parent=1 // pred_fallthru
      _
    // Predicated region
    $region26: #{carl_forward.5} parent=1 // pred_check
      _
    $region27: #{carl_forward.5} parent=1 // pred_check_branch
      %26 = sbr.rel (0) target = $region29
    $region28: #{carl_forward.5} parent=1 // pred_region
      _
    $region29: #{carl_forward.5} parent=1 // pred_fallthru
      _
    %v28 = vld [vmem:[%s0] sm:$0xf]
    %v29 = vld [vmem:[%s0 + $0x4] sm:$0xf]
    %v30 = vld [vmem:[%s1] sm:$0xf]
    %v31 = vld [vmem:[%s1 + $0x4] sm:$0xf]
    %v32 = vld [vmem:[%s1 + $0x8] sm:$0xf]
    %v33 = vld [vmem:[%s1 + $0xc] sm:$0xf]
    %v34 = vld [vmem:[%s1 + $0x10] sm:$0xf]
    %v35 = vld [vmem:[%s1 + $0x14] sm:$0xf]
    %v36 = vld [vmem:[%s1 + $0x18] sm:$0xf]
    %v37 = vld [vmem:[%s1 + $0x1c] sm:$0xf]
    %v38 = vld [vmem:[%s1 + $0x20] sm:$0xf]
    %v39 = vld [vmem:[%s1 + $0x24] sm:$0xf]
    %v40 = vld [vmem:[%s1 + $0x28] sm:$0xf]
    %v41 = vld [vmem:[%s1 + $0x2c] sm:$0xf]
    %v42 = vld [vmem:[%s1 + $0x30] sm:$0xf]
    %v43 = vld [vmem:[%s1 + $0x34] sm:$0xf]
    %v44 = vld [vmem:[%s1 + $0x38] sm:$0xf]
    %v45 = vld [vmem:[%s1 + $0x3c] sm:$0xf]
    %v46 = vld [vmem:[%s2] sm:$0x1]
    %v48 = vlaneseq
    %v49 = vshrl.u32 %v48, 7
    %v50 = vsub.s32 0, %v49
    %v51 = vrot.slane %v46, %v50
    %v55 = vunpack.c.l.b16 %v28
    %v56 = vunpack.c.l.b16 %v29
    %v57 = vpack.c.b16 %v56, %v55
    %v75 = vunpack.c.l.b16 %v30
    %v76 = vunpack.c.l.b16 %v31
    %v77 = vunpack.c.l.b16 %v32
    %v78 = vunpack.c.l.b16 %v33
    %v79 = vunpack.c.l.b16 %v34
    %v80 = vunpack.c.l.b16 %v35
    %v81 = vunpack.c.l.b16 %v36
    %v82 = vunpack.c.l.b16 %v37
    %v83 = vunpack.c.l.b16 %v38
    %v84 = vunpack.c.l.b16 %v39
    %v85 = vunpack.c.l.b16 %v40
    %v86 = vunpack.c.l.b16 %v41
    %v87 = vunpack.c.l.b16 %v42
    %v88 = vunpack.c.l.b16 %v43
    %v89 = vunpack.c.l.b16 %v44
    %v90 = vunpack.c.l.b16 %v45
    %v91 = vpack.c.b16 %v76, %v75
    %v92 = vpack.c.b16 %v78, %v77
    %v93 = vpack.c.b16 %v80, %v79
    %v94 = vpack.c.b16 %v82, %v81
    %v95 = vpack.c.b16 %v84, %v83
    %v96 = vpack.c.b16 %v86, %v85
    %v97 = vpack.c.b16 %v88, %v87
    %v98 = vpack.c.b16 %v90, %v89
    %107 = vmatprep.subr.bf16.mxu0 0
    %108 = vmatpush1.bf16.msra.mxu0 %v91
    %109 = vmatprep.subr.bf16.mxu0 0
    %110 = vmatpush1.bf16.msra.mxu0 %v92
    %111 = vmatprep.subr.bf16.mxu0 0
    %112 = vmatpush1.bf16.msra.mxu0 %v93
    %113 = vmatprep.subr.bf16.mxu0 0
    %114 = vmatpush1.bf16.msra.mxu0 %v94
    %115 = vmatprep.subr.bf16.mxu0 0
    %116 = vmatpush1.bf16.msra.mxu0 %v95
    %117 = vmatprep.subr.bf16.mxu0 0
    %118 = vmatpush1.bf16.msra.mxu0 %v96
    %119 = vmatprep.subr.bf16.mxu0 0
    %120 = vmatpush1.bf16.msra.mxu0 %v97
    %121 = vmatprep.subr.bf16.mxu0 0
    %122 = vmatpush1.bf16.msra.mxu0 %v98
    %123 = vmatprep.subr.bf16.mxu0 0
    %124 = vmatpush1.bf16.msra.mxu0 0
    %125 = vmatprep.subr.bf16.mxu0 0
    %126 = vmatpush1.bf16.msra.mxu0 0
    %127 = vmatprep.subr.bf16.mxu0 0
    %128 = vmatpush1.bf16.msra.mxu0 0
    %129 = vmatprep.subr.bf16.mxu0 0
    %130 = vmatpush1.bf16.msra.mxu0 0
    %131 = vmatprep.subr.bf16.mxu0 0
    %132 = vmatpush1.bf16.msra.mxu0 0
    %133 = vmatprep.subr.bf16.mxu0 0
    %134 = vmatpush1.bf16.msra.mxu0 0
    %135 = vmatprep.subr.bf16.mxu0 0
    %136 = vmatpush1.bf16.msra.mxu0 0
    %137 = vmatprep.subr.bf16.mxu0 0
    %138 = vmatpush1.bf16.msra.mxu0 0
    %139 = vmatprep.mubr.bf16.mxu0 0
    %140 = vmatmul.mubr.bf16.gmra.mrb[0].mxu0 %v57
    %v141 = vpop.f32.mrb[0].mxu0
    %v142 = vadd.f32 %v51, %v141
    %v143 = vpop.f32.mrb[0].mxu0
    %v144 = vpop.f32.mrb[0].mxu0
    %v145 = vadd.f32 %v51, %v144
    %v146 = vpop.f32.mrb[0].mxu0
    %147 = vdwg.mxu0
    %vm148 = vcmask 523264
    %v149 = vsel %vm148, %v142, 0.0
    %v150 = vsel %vm148, %v145, 0.0
    %v151 = vadd.f32 %v149, %v150
    %v152 = vrot.slane %v151, 4
    %v153 = vadd.f32 %v151, %v152
    %v154 = vrot.slane %v153, 2
    %v155 = vadd.f32 %v153, %v154
    %v156 = vrot.slane %v155, 1
    %v157 = vadd.f32 %v155, %v156
    %v158 = vrcp.pop 16.0
    %v159 = vmul.f32 %v157, %v158
    %v160 = vsub.f32 %v142, %v159
    %v161 = vsub.f32 %v145, %v159
    %v162 = vmul.f32 %v160, %v160
    %v163 = vmul.f32 %v161, %v161
    %v164 = vsel %vm148, %v162, 0.0
    %v165 = vsel %vm148, %v163, 0.0
    %v166 = vadd.f32 %v164, %v165
    %v167 = vrot.slane %v166, 4
    %v168 = vadd.f32 %v166, %v167
    %v169 = vrot.slane %v168, 2
    %v170 = vadd.f32 %v168, %v169
    %v171 = vrot.slane %v170, 1
    %v172 = vadd.f32 %v170, %v171
    %v173 = vmul.f32 %v172, %v158
    %v174 = vadd.f32 %v173, 1e-05
    %v175 = vrsqrt.pop %v174
    %v176 = vmul.f32 %v160, %v175
    %v177 = vmul.f32 %v161, %v175
    %v178 = vld [vmem:[%s3] sm:$0x1]
    %v180 = vlaneseq
    %v181 = vshrl.u32 %v180, 7
    %v182 = vsub.s32 0, %v181
    %v183 = vrot.slane %v178, %v182
    %v185 = vmul.f32 %v176, %v183
    %v186 = vmul.f32 %v177, %v183
    %v187 = vld [vmem:[%s4] sm:$0x1]
    %v189 = vlaneseq
    %v190 = vshrl.u32 %v189, 7
    %v191 = vsub.s32 0, %v190
    %v192 = vrot.slane %v187, %v191
    %v194 = vadd.f32 %v185, %v192
    %v195 = vadd.f32 %v186, %v192
    %v196 = vmax.f32 %v194, 0.0
    %v197 = vmax.f32 %v195, 0.0
    %v198 = vpack.c.bf16 %v197, %v196
    %v199 = vld [vmem:[%s5] sm:$0xf]
    %v200 = vld [vmem:[%s5 + $0x4] sm:$0xf]
    %v201 = vld [vmem:[%s5 + $0x8] sm:$0xf]
    %v202 = vld [vmem:[%s5 + $0xc] sm:$0xf]
    %v203 = vld [vmem:[%s5 + $0x10] sm:$0xf]
    %v204 = vld [vmem:[%s5 + $0x14] sm:$0xf]
    %v205 = vld [vmem:[%s5 + $0x18] sm:$0xf]
    %v206 = vld [vmem:[%s5 + $0x1c] sm:$0xf]
    %v207 = vld [vmem:[%s6] sm:$0x1]
    %v209 = vlaneseq
    %v210 = vshrl.u32 %v209, 7
    %v211 = vsub.s32 0, %v210
    %v212 = vrot.slane %v207, %v211
    %v222 = vunpack.c.l.b16 %v199
    %v223 = vunpack.c.l.b16 %v200
    %v224 = vunpack.c.l.b16 %v201
    %v225 = vunpack.c.l.b16 %v202
    %v226 = vunpack.c.l.b16 %v203
    %v227 = vunpack.c.l.b16 %v204
    %v228 = vunpack.c.l.b16 %v205
    %v229 = vunpack.c.l.b16 %v206
    %v230 = vpack.c.b16 %v223, %v222
    %v231 = vpack.c.b16 %v225, %v224
    %v232 = vpack.c.b16 %v227, %v226
    %v233 = vpack.c.b16 %v229, %v228
    %v239 = vsel %vm148, %v198, 0
    %241 = vmatprep.subr.bf16.mxu0 0
    %242 = vmatpush1.bf16.msra.mxu0 %v230
    %243 = vmatprep.subr.bf16.mxu0 0
    %244 = vmatpush1.bf16.msra.mxu0 %v231
    %245 = vmatprep.subr.bf16.mxu0 0
    %246 = vmatpush1.bf16.msra.mxu0 %v232
    %247 = vmatprep.subr.bf16.mxu0 0
    %248 = vmatpush1.bf16.msra.mxu0 %v233
    %249 = vmatprep.subr.bf16.mxu0 0
    %250 = vmatpush1.bf16.msra.mxu0 0
    %251 = vmatprep.subr.bf16.mxu0 0
    %252 = vmatpush1.bf16.msra.mxu0 0
    %253 = vmatprep.subr.bf16.mxu0 0
    %254 = vmatpush1.bf16.msra.mxu0 0
    %255 = vmatprep.subr.bf16.mxu0 0
    %256 = vmatpush1.bf16.msra.mxu0 0
    %257 = vmatprep.subr.bf16.mxu0 0
    %258 = vmatpush1.bf16.msra.mxu0 0
    %259 = vmatprep.subr.bf16.mxu0 0
    %260 = vmatpush1.bf16.msra.mxu0 0
    %261 = vmatprep.subr.bf16.mxu0 0
    %262 = vmatpush1.bf16.msra.mxu0 0
    %263 = vmatprep.subr.bf16.mxu0 0
    %264 = vmatpush1.bf16.msra.mxu0 0
    %265 = vmatprep.subr.bf16.mxu0 0
    %266 = vmatpush1.bf16.msra.mxu0 0
    %267 = vmatprep.subr.bf16.mxu0 0
    %268 = vmatpush1.bf16.msra.mxu0 0
    %269 = vmatprep.subr.bf16.mxu0 0
    %270 = vmatpush1.bf16.msra.mxu0 0
    %271 = vmatprep.subr.bf16.mxu0 0
    %272 = vmatpush1.bf16.msra.mxu0 0
    %273 = vmatprep.mubr.bf16.mxu0 0
    %274 = vmatmul.mubr.bf16.gmra.mrb[0].mxu0 %v239
    %v275 = vpop.f32.mrb[0].mxu0
    %v276 = vadd.f32 %v212, %v275
    %v277 = vpop.f32.mrb[0].mxu0
    %v278 = vpop.f32.mrb[0].mxu0
    %v279 = vadd.f32 %v212, %v278
    %v280 = vpop.f32.mrb[0].mxu0
    %281 = vdwg.mxu0
    %v282 = vmul.f32 %v276, %v276
    %v283 = vmul.f32 %v279, %v279
    %284 = vadd.xlane.f32.xlu0 %v282
    %v285 = vpop.xlane.xlu0 %284
    %286 = vadd.xlane.f32.xlu0 %v283
    %v287 = vpop.xlane.xlu0 %286
    %v288 = vrsqrt.pop %v285
    %v289 = vmul.f32 %v285, %v288
    %vm290 = vcmp.eq.f32.partialorder %v285, inf
    %v291 = vsel %vm290, %v285, %v289
    %vm292 = vcmp.eq.f32.partialorder %v285, 0.0
    %v293 = vand.u32 %v285, 2147483648
    %v294 = vsel %vm292, %v293, %v291
    %v295 = vrsqrt.pop %v287
    %v296 = vmul.f32 %v287, %v295
    %vm297 = vcmp.eq.f32.partialorder %v287, inf
    %v298 = vsel %vm297, %v287, %v296
    %vm299 = vcmp.eq.f32.partialorder %v287, 0.0
    %v300 = vand.u32 %v287, 2147483648
    %v301 = vsel %vm299, %v300, %v298
    %v302 = vmax.f32 %v294, 1e-12
    %v303 = vmax.f32 %v301, 1e-12
    %v304 = vrcp.pop %v302
    %v305 = vmul.f32 %v276, %v304
    %v306 = vrcp.pop %v303
    %v307 = vmul.f32 %v279, %v306
    %308 = vst [vmem:[#allocation2] sm:$0xff] %v305
    %309 = vst [vmem:[#allocation2 + $0x8] sm:$0xff] %v307
    // Predicated region
    $region30: #{carl_forward.5} parent=1 // pred_check
      _
    $region31: #{carl_forward.5} parent=1 // pred_check_branch
      %311 = sbr.rel (0) target = $region33
    $region32: #{carl_forward.5} parent=1 // pred_region
      %s313 = ssub.s32 256, 256
      %314 = vsyncadd [#allocation3], %s313
      %s315 = sshll.u32 [#allocation2], 4
      %s316 = int_to_ptr.vmem [resolvable:$true] %s315
      %321 = dma.vmem_to_hbm [thread:$0]  %s316, 256, %s7, [#allocation3], 128, 128, 8
    $region33: #{carl_forward.5} parent=1 // pred_fallthru
      _
    // Predicated region
    $region34: #{carl_forward.5} parent=1 // pred_check
      _
    $region35: #{carl_forward.5} parent=1 // pred_check_branch
      %323 = sbr.rel (0) target = $region37
    $region36: #{carl_forward.5} parent=1 // pred_region
      %324 = dma.done [#allocation3], 256
    $region37: #{carl_forward.5} parent=1 // pred_fallthru
      _
    %325 = vsyncpa [#allocation3], 1

// kernel: carl_forward.4
$region0: #{carl_forward.4}
  #allocation0 [shape = 'u32[]', space=smem, size = 0x4, offset = 0x4, fixed_abs, tag = 'smem constant byte address 0x4 - core index']
  #allocation1 [shape = 'u32[144,128]{1,0:T(1,128)}', space=vmem, size = 0x12000, scoped, tag = 'internal scratch']
  %s0 = inlined_call_operand.vmem [shape: bf16[2,8,256], index: 0, kind: input, shape index: {}]
  %s1 = inlined_call_operand.vmem [shape: bf16[256,768], index: 1, kind: input, shape index: {}]
  %s2 = inlined_call_operand.vmem [shape: bf16[256,256], index: 2, kind: input, shape index: {}]
  %s3 = inlined_call_operand.vmem [shape: f32[1,256], index: 3, kind: input, shape index: {}]
  %s4 = inlined_call_operand.vmem [shape: f32[1,256], index: 4, kind: input, shape index: {}]
  %s5 = inlined_call_operand.vmem [shape: bf16[256,1024], index: 5, kind: input, shape index: {}]
  %s6 = inlined_call_operand.vmem [shape: f32[1,1024], index: 6, kind: input, shape index: {}]
  %s7 = inlined_call_operand.vmem [shape: bf16[1024,256], index: 7, kind: input, shape index: {}]
  %s8 = inlined_call_operand.vmem [shape: f32[1,256], index: 8, kind: input, shape index: {}]
  %s9 = inlined_call_operand.vmem [shape: f32[1,256], index: 9, kind: input, shape index: {}]
  %s10 = inlined_call_operand.vmem [shape: f32[1,256], index: 10, kind: input, shape index: {}]
  %s11 = inlined_call_operand.vmem [shape: bf16[256,128], index: 11, kind: input, shape index: {}]
  %s12 = inlined_call_operand.vmem [shape: f32[1,128], index: 12, kind: input, shape index: {}]
  %s13 = inlined_call_operand.vmem [shape: bf16[2,8,128], index: 13, kind: output, shape index: {}]
  %s14 = sld [smem:[#allocation0]]
  $region85: #{carl_forward.4} parent=0
    _
  %s16 = ssub.s32 1, %s14
  %s17 = scalar_select 0, %s16, %s14
  loop: start=0, step=1, limit=4
  $region2: #{carl_forward.4} parent=0 // loop_pre_header
    _
  $region3: #{carl_forward.4} parent=0 // loop_header
    %s19 = sphi 0, %s23
    %p20 = scmp.ge.s32.totalorder %s19, 4
    %s29 = sphi 0, %s31
    %s32 = sphi 0, %s29
    %s33 = sphi 0, %s32
    %s49 = sphi 0, %s33
    %s53 = sphi 0, %s53
    %s55 = sphi 0, %s53
    %s56 = sphi 0, %s55
    %s70 = sphi 0, %s56
    %s74 = sphi 0, %s74
    %s76 = sphi 0, %s74
    %s77 = sphi 0, %s76
    %s91 = sphi 0, %s77
    %s95 = sphi 0, %s95
    %s97 = sphi 0, %s95
    %s98 = sphi 0, %s97
    %s112 = sphi 0, %s98
    %s116 = sphi 0, %s116
    %s118 = sphi 0, %s116
    %s119 = sphi 0, %s118
    %s133 = sphi 0, %s119
    %s137 = sphi 0, %s137
    %s139 = sphi 0, %s137
    %s140 = sphi 0, %s139
    %s154 = sphi 0, %s140
    %s158 = sphi 0, %s158
    %s160 = sphi 0, %s158
    %s161 = sphi 0, %s160
    %s175 = sphi 0, %s161
    %s179 = sphi 0, %s179
    %s181 = sphi 0, %s179
    %s182 = sphi 0, %s181
    %s196 = sphi 0, %s182
    %s200 = sphi 0, %s200
    %s202 = sphi 0, %s200
    %s203 = sphi 0, %s202
    %s217 = sphi 0, %s203
    %s221 = sphi 0, %s221
    %s223 = sphi 0, %s221
    %s224 = sphi 0, %s223
    %s238 = sphi 0, %s224
    %s242 = sphi 0, %s242
    %s244 = sphi 0, %s242
    %s245 = sphi 0, %s244
    %s259 = sphi 0, %s245
    %s263 = sphi 0, %s263
    %s265 = sphi 0, %s263
    %s266 = sphi 0, %s265
    %s280 = sphi 0, %s266
    %s284 = sphi 0, %s284
    %s286 = sphi 0, %s284
    %s287 = sphi 0, %s286
    %s301 = sphi 0, %s287
    %s307 = sphi 0, %s309
    %s310 = sphi 0, %s307
    %s311 = sphi 0, %s310
    %s327 = sphi 0, %s311
  $region4: #{carl_forward.4} parent=0 // loop_header_branch
    %22 = sbr.rel (%p20) target = $region8
  $region5: #{carl_forward.4} parent=0 // loop_body
    %s24 = ssub.s32 %s19, 1
    %s25 = ssub.s32 %s19, 2
    %s26 = sadd.s32 %s19, 1
    %s27 = ssub.s32 %s19, %s26
    %p28 = scmp.eq.s32.totalorder %s27, 0
    %s30 = sadd.s32 %s29, 1
    %s31 = scalar_select %p28, %s29, %s30
    %p34 = pneg %p28
    %p35 = scmp.eq.s32.totalorder %s19, 1
    %p36 = por %p34, %p35
    %p37 = scmp.ne.s32.totalorder %s29, %s32
    %p38 = scmp.eq.s32.totalorder %s19, 0
    %p39 = por %p37, %p38
    %p40 = scmp.ne.s32.totalorder %s29, %s32
    %p41 = scmp.eq.s32.totalorder %s24, 1
    %p42 = por %p40, %p41
    %p43 = scmp.ne.s32.totalorder %s32, %s33
    %p44 = scmp.eq.s32.totalorder %s24, 0
    %p45 = por %p43, %p44
    %p46 = scmp.ne.s32.totalorder %s32, %s33
    %p47 = scmp.eq.s32.totalorder %s25, 1
    %p48 = por %p46, %p47
    %p50 = scmp.ne.s32.totalorder %s33, %s49
    %p51 = scmp.eq.s32.totalorder %s25, 0
    %p52 = por %p50, %p51
    %s54 = sadd.s32 %s53, 1
    %p57 = scmp.eq.s32.totalorder %s19, 1
    %p58 = scmp.ne.s32.totalorder %s53, %s55
    %p59 = scmp.eq.s32.totalorder %s19, 0
    %p60 = por %p58, %p59
    %p61 = scmp.ne.s32.totalorder %s53, %s55
    %p62 = scmp.eq.s32.totalorder %s24, 1
    %p63 = por %p61, %p62
    %p64 = scmp.ne.s32.totalorder %s55, %s56
    %p65 = scmp.eq.s32.totalorder %s24, 0
    %p66 = por %p64, %p65
    %p67 = scmp.ne.s32.totalorder %s55, %s56
    %p68 = scmp.eq.s32.totalorder %s25, 1
    %p69 = por %p67, %p68
    %p71 = scmp.ne.s32.totalorder %s56, %s70
    %p72 = scmp.eq.s32.totalorder %s25, 0
    %p73 = por %p71, %p72
    %s75 = sadd.s32 %s74, 1
    %p78 = scmp.eq.s32.totalorder %s19, 1
    %p79 = scmp.ne.s32.totalorder %s74, %s76
    %p80 = scmp.eq.s32.totalorder %s19, 0
    %p81 = por %p79, %p80
    %p82 = scmp.ne.s32.totalorder %s74, %s76
    %p83 = scmp.eq.s32.totalorder %s24, 1
    %p84 = por %p82, %p83
    %p85 = scmp.ne.s32.totalorder %s76, %s77
    %p86 = scmp.eq.s32.totalorder %s24, 0
    %p87 = por %p85, %p86
    %p88 = scmp.ne.s32.totalorder %s76, %s77
    %p89 = scmp.eq.s32.totalorder %s25, 1
    %p90 = por %p88, %p89
    %p92 = scmp.ne.s32.totalorder %s77, %s91
    %p93 = scmp.eq.s32.totalorder %s25, 0
    %p94 = por %p92, %p93
    %s96 = sadd.s32 %s95, 1
    %p99 = scmp.eq.s32.totalorder %s19, 1
    %p100 = scmp.ne.s32.totalorder %s95, %s97
    %p101 = scmp.eq.s32.totalorder %s19, 0
    %p102 = por %p100, %p101
    %p103 = scmp.ne.s32.totalorder %s95, %s97
    %p104 = scmp.eq.s32.totalorder %s24, 1
    %p105 = por %p103, %p104
    %p106 = scmp.ne.s32.totalorder %s97, %s98
    %p107 = scmp.eq.s32.totalorder %s24, 0
    %p108 = por %p106, %p107
    %p109 = scmp.ne.s32.totalorder %s97, %s98
    %p110 = scmp.eq.s32.totalorder %s25, 1
    %p111 = por %p109, %p110
    %p113 = scmp.ne.s32.totalorder %s98, %s112
    %p114 = scmp.eq.s32.totalorder %s25, 0
    %p115 = por %p113, %p114
    %s117 = sadd.s32 %s116, 1
    %p120 = scmp.eq.s32.totalorder %s19, 1
    %p121 = scmp.ne.s32.totalorder %s116, %s118
    %p122 = scmp.eq.s32.totalorder %s19, 0
    %p123 = por %p121, %p122
    %p124 = scmp.ne.s32.totalorder %s116, %s118
    %p125 = scmp.eq.s32.totalorder %s24, 1
    %p126 = por %p124, %p125
    %p127 = scmp.ne.s32.totalorder %s118, %s119
    %p128 = scmp.eq.s32.totalorder %s24, 0
    %p129 = por %p127, %p128
    %p130 = scmp.ne.s32.totalorder %s118, %s119
    %p131 = scmp.eq.s32.totalorder %s25, 1
    %p132 = por %p130, %p131
    %p134 = scmp.ne.s32.totalorder %s119, %s133
    %p135 = scmp.eq.s32.totalorder %s25, 0
    %p136 = por %p134, %p135
    %s138 = sadd.s32 %s137, 1
    %p141 = scmp.eq.s32.totalorder %s19, 1
    %p142 = scmp.ne.s32.totalorder %s137, %s139
    %p143 = scmp.eq.s32.totalorder %s19, 0
    %p144 = por %p142, %p143
    %p145 = scmp.ne.s32.totalorder %s137, %s139
    %p146 = scmp.eq.s32.totalorder %s24, 1
    %p147 = por %p145, %p146
    %p148 = scmp.ne.s32.totalorder %s139, %s140
    %p149 = scmp.eq.s32.totalorder %s24, 0
    %p150 = por %p148, %p149
    %p151 = scmp.ne.s32.totalorder %s139, %s140
    %p152 = scmp.eq.s32.totalorder %s25, 1
    %p153 = por %p151, %p152
    %p155 = scmp.ne.s32.totalorder %s140, %s154
    %p156 = scmp.eq.s32.totalorder %s25, 0
    %p157 = por %p155, %p156
    %s159 = sadd.s32 %s158, 1
    %p162 = scmp.eq.s32.totalorder %s19, 1
    %p163 = scmp.ne.s32.totalorder %s158, %s160
    %p164 = scmp.eq.s32.totalorder %s19, 0
    %p165 = por %p163, %p164
    %p166 = scmp.ne.s32.totalorder %s158, %s160
    %p167 = scmp.eq.s32.totalorder %s24, 1
    %p168 = por %p166, %p167
    %p169 = scmp.ne.s32.totalorder %s160, %s161
    %p170 = scmp.eq.s32.totalorder %s24, 0
    %p171 = por %p169, %p170
    %p172 = scmp.ne.s32.totalorder %s160, %s161
    %p173 = scmp.eq.s32.totalorder %s25, 1
    %p174 = por %p172, %p173
    %p176 = scmp.ne.s32.totalorder %s161, %s175
    %p177 = scmp.eq.s32.totalorder %s25, 0
    %p178 = por %p176, %p177
    %s180 = sadd.s32 %s179, 1
    %p183 = scmp.eq.s32.totalorder %s19, 1
    %p184 = scmp.ne.s32.totalorder %s179, %s181
    %p185 = scmp.eq.s32.totalorder %s19, 0
    %p186 = por %p184, %p185
    %p187 = scmp.ne.s32.totalorder %s179, %s181
    %p188 = scmp.eq.s32.totalorder %s24, 1
    %p189 = por %p187, %p188
    %p190 = scmp.ne.s32.totalorder %s181, %s182
    %p191 = scmp.eq.s32.totalorder %s24, 0
    %p192 = por %p190, %p191
    %p193 = scmp.ne.s32.totalorder %s181, %s182
    %p194 = scmp.eq.s32.totalorder %s25, 1
    %p195 = por %p193, %p194
    %p197 = scmp.ne.s32.totalorder %s182, %s196
    %p198 = scmp.eq.s32.totalorder %s25, 0
    %p199 = por %p197, %p198
    %s201 = sadd.s32 %s200, 1
    %p204 = scmp.eq.s32.totalorder %s19, 1
    %p205 = scmp.ne.s32.totalorder %s200, %s202
    %p206 = scmp.eq.s32.totalorder %s19, 0
    %p207 = por %p205, %p206
    %p208 = scmp.ne.s32.totalorder %s200, %s202
    %p209 = scmp.eq.s32.totalorder %s24, 1
    %p210 = por %p208, %p209
    %p211 = scmp.ne.s32.totalorder %s202, %s203
    %p212 = scmp.eq.s32.totalorder %s24, 0
    %p213 = por %p211, %p212
    %p214 = scmp.ne.s32.totalorder %s202, %s203
    %p215 = scmp.eq.s32.totalorder %s25, 1
    %p216 = por %p214, %p215
    %p218 = scmp.ne.s32.totalorder %s203, %s217
    %p219 = scmp.eq.s32.totalorder %s25, 0
    %p220 = por %p218, %p219
    %s222 = sadd.s32 %s221, 1
    %p225 = scmp.eq.s32.totalorder %s19, 1
    %p226 = scmp.ne.s32.totalorder %s221, %s223
    %p227 = scmp.eq.s32.totalorder %s19, 0
    %p228 = por %p226, %p227
    %p229 = scmp.ne.s32.totalorder %s221, %s223
    %p230 = scmp.eq.s32.totalorder %s24, 1
    %p231 = por %p229, %p230
    %p232 = scmp.ne.s32.totalorder %s223, %s224
    %p233 = scmp.eq.s32.totalorder %s24, 0
    %p234 = por %p232, %p233
    %p235 = scmp.ne.s32.totalorder %s223, %s224
    %p236 = scmp.eq.s32.totalorder %s25, 1
    %p237 = por %p235, %p236
    %p239 = scmp.ne.s32.totalorder %s224, %s238
    %p240 = scmp.eq.s32.totalorder %s25, 0
    %p241 = por %p239, %p240
    %s243 = sadd.s32 %s242, 1
    %p246 = scmp.eq.s32.totalorder %s19, 1
    %p247 = scmp.ne.s32.totalorder %s242, %s244
    %p248 = scmp.eq.s32.totalorder %s19, 0
    %p249 = por %p247, %p248
    %p250 = scmp.ne.s32.totalorder %s242, %s244
    %p251 = scmp.eq.s32.totalorder %s24, 1
    %p252 = por %p250, %p251
    %p253 = scmp.ne.s32.totalorder %s244, %s245
    %p254 = scmp.eq.s32.totalorder %s24, 0
    %p255 = por %p253, %p254
    %p256 = scmp.ne.s32.totalorder %s244, %s245
    %p257 = scmp.eq.s32.totalorder %s25, 1
    %p258 = por %p256, %p257
    %p260 = scmp.ne.s32.totalorder %s245, %s259
    %p261 = scmp.eq.s32.totalorder %s25, 0
    %p262 = por %p260, %p261
    %s264 = sadd.s32 %s263, 1
    %p267 = scmp.eq.s32.totalorder %s19, 1
    %p268 = scmp.ne.s32.totalorder %s263, %s265
    %p269 = scmp.eq.s32.totalorder %s19, 0
    %p270 = por %p268, %p269
    %p271 = scmp.ne.s32.totalorder %s263, %s265
    %p272 = scmp.eq.s32.totalorder %s24, 1
    %p273 = por %p271, %p272
    %p274 = scmp.ne.s32.totalorder %s265, %s266
    %p275 = scmp.eq.s32.totalorder %s24, 0
    %p276 = por %p274, %p275
    %p277 = scmp.ne.s32.totalorder %s265, %s266
    %p278 = scmp.eq.s32.totalorder %s25, 1
    %p279 = por %p277, %p278
    %p281 = scmp.ne.s32.totalorder %s266, %s280
    %p282 = scmp.eq.s32.totalorder %s25, 0
    %p283 = por %p281, %p282
    %s285 = sadd.s32 %s284, 1
    %p288 = scmp.eq.s32.totalorder %s19, 1
    %p289 = scmp.ne.s32.totalorder %s284, %s286
    %p290 = scmp.eq.s32.totalorder %s19, 0
    %p291 = por %p289, %p290
    %p292 = scmp.ne.s32.totalorder %s284, %s286
    %p293 = scmp.eq.s32.totalorder %s24, 1
    %p294 = por %p292, %p293
    %p295 = scmp.ne.s32.totalorder %s286, %s287
    %p296 = scmp.eq.s32.totalorder %s24, 0
    %p297 = por %p295, %p296
    %p298 = scmp.ne.s32.totalorder %s286, %s287
    %p299 = scmp.eq.s32.totalorder %s25, 1
    %p300 = por %p298, %p299
    %p302 = scmp.ne.s32.totalorder %s287, %s301
    %p303 = scmp.eq.s32.totalorder %s25, 0
    %p304 = por %p302, %p303
    %s305 = ssub.s32 %s19, %s26
    %p306 = scmp.eq.s32.totalorder %s305, 0
    %s308 = sadd.s32 %s307, 1
    %s309 = scalar_select %p306, %s307, %s308
    %p312 = pneg %p306
    %p313 = scmp.eq.s32.totalorder %s19, 1
    %p314 = por %p312, %p313
    %p315 = scmp.ne.s32.totalorder %s307, %s310
    %p316 = scmp.eq.s32.totalorder %s19, 0
    %p317 = por %p315, %p316
    %p318 = scmp.ne.s32.totalorder %s307, %s310
    %p319 = scmp.eq.s32.totalorder %s24, 1
    %p320 = por %p318, %p319
    %p321 = scmp.ne.s32.totalorder %s310, %s311
    %p322 = scmp.eq.s32.totalorder %s24, 0
    %p323 = por %p321, %p322
    %p324 = scmp.ne.s32.totalorder %s310, %s311
    %p325 = scmp.eq.s32.totalorder %s25, 1
    %p326 = por %p324, %p325
    %p328 = scmp.ne.s32.totalorder %s311, %s327
    %p329 = scmp.eq.s32.totalorder %s25, 0
    %p330 = por %p328, %p329
    %p331 = scmp.le.s32.totalorder 1, %s19
    %p332 = scmp.lt.s32.totalorder %s19, 3
    %p333 = pnand %p331, %p332
    %p334 = pneg %p333
    // Predicated region
    $region9: #{carl_forward.4} parent=5 // pred_check
      _
    $region10: #{carl_forward.4} parent=5 // pred_check_branch
      %336 = sbr.rel (%p333) target = $region12
    $region11: #{carl_forward.4} parent=5 // pred_region
      %s337 = ssub.s32 %s19, 1
      // Predicated region
      $region13: #{carl_forward.4} parent=11 // pred_check
        %p338 = pneg %p66
      $region14: #{carl_forward.4} parent=11 // pred_check_branch
        %340 = sbr.rel (%p338) target = $region16
      $region15: #{carl_forward.4} parent=11 // pred_region
        _
      $region16: #{carl_forward.4} parent=11 // pred_fallthru
        _
      // Predicated region
      $region17: #{carl_forward.4} parent=11 // pred_check
        %p341 = pneg %p87
      $region18: #{carl_forward.4} parent=11 // pred_check_branch
        %343 = sbr.rel (%p341) target = $region20
      $region19: #{carl_forward.4} parent=11 // pred_region
        _
      $region20: #{carl_forward.4} parent=11 // pred_fallthru
        _
      // Predicated region
      $region21: #{carl_forward.4} parent=11 // pred_check
        %p344 = pneg %p108
      $region22: #{carl_forward.4} parent=11 // pred_check_branch
        %346 = sbr.rel (%p344) target = $region24
      $region23: #{carl_forward.4} parent=11 // pred_region
        _
      $region24: #{carl_forward.4} parent=11 // pred_fallthru
        _
      // Predicated region
      $region25: #{carl_forward.4} parent=11 // pred_check
        %p347 = pneg %p129
      $region26: #{carl_forward.4} parent=11 // pred_check_branch
        %349 = sbr.rel (%p347) target = $region28
      $region27: #{carl_forward.4} parent=11 // pred_region
        _
      $region28: #{carl_forward.4} parent=11 // pred_fallthru
        _
      // Predicated region
      $region29: #{carl_forward.4} parent=11 // pred_check
        %p350 = pneg %p150
      $region30: #{carl_forward.4} parent=11 // pred_check_branch
        %352 = sbr.rel (%p350) target = $region32
      $region31: #{carl_forward.4} parent=11 // pred_region
        _
      $region32: #{carl_forward.4} parent=11 // pred_fallthru
        _
      // Predicated region
      $region33: #{carl_forward.4} parent=11 // pred_check
        %p353 = pneg %p171
      $region34: #{carl_forward.4} parent=11 // pred_check_branch
        %355 = sbr.rel (%p353) target = $region36
      $region35: #{carl_forward.4} parent=11 // pred_region
        _
      $region36: #{carl_forward.4} parent=11 // pred_fallthru
        _
      // Predicated region
      $region37: #{carl_forward.4} parent=11 // pred_check
        %p356 = pneg %p192
      $region38: #{carl_forward.4} parent=11 // pred_check_branch
        %358 = sbr.rel (%p356) target = $region40
      $region39: #{carl_forward.4} parent=11 // pred_region
        _
      $region40: #{carl_forward.4} parent=11 // pred_fallthru
        _
      // Predicated region
      $region41: #{carl_forward.4} parent=11 // pred_check
        %p359 = pneg %p213
      $region42: #{carl_forward.4} parent=11 // pred_check_branch
        %361 = sbr.rel (%p359) target = $region44
      $region43: #{carl_forward.4} parent=11 // pred_region
        _
      $region44: #{carl_forward.4} parent=11 // pred_fallthru
        _
      // Predicated region
      $region45: #{carl_forward.4} parent=11 // pred_check
        %p362 = pneg %p234
      $region46: #{carl_forward.4} parent=11 // pred_check_branch
        %364 = sbr.rel (%p362) target = $region48
      $region47: #{carl_forward.4} parent=11 // pred_region
        _
      $region48: #{carl_forward.4} parent=11 // pred_fallthru
        _
      // Predicated region
      $region49: #{carl_forward.4} parent=11 // pred_check
        %p365 = pneg %p255
      $region50: #{carl_forward.4} parent=11 // pred_check_branch
        %367 = sbr.rel (%p365) target = $region52
      $region51: #{carl_forward.4} parent=11 // pred_region
        _
      $region52: #{carl_forward.4} parent=11 // pred_fallthru
        _
      // Predicated region
      $region53: #{carl_forward.4} parent=11 // pred_check
        %p368 = pneg %p276
      $region54: #{carl_forward.4} parent=11 // pred_check_branch
        %370 = sbr.rel (%p368) target = $region56
      $region55: #{carl_forward.4} parent=11 // pred_region
        _
      $region56: #{carl_forward.4} parent=11 // pred_fallthru
        _
      // Predicated region
      $region57: #{carl_forward.4} parent=11 // pred_check
        %p371 = pneg %p297
      $region58: #{carl_forward.4} parent=11 // pred_check_branch
        %373 = sbr.rel (%p371) target = $region60
      $region59: #{carl_forward.4} parent=11 // pred_region
        _
      $region60: #{carl_forward.4} parent=11 // pred_fallthru
        _
    $region12: #{carl_forward.4} parent=5 // pred_fallthru
      _
    %p374 = scmp.lt.s32.totalorder %s19, 2
    // Predicated region
    $region61: #{carl_forward.4} parent=5 // pred_check
      %p375 = pneg %p374
    $region62: #{carl_forward.4} parent=5 // pred_check_branch
      %377 = sbr.rel (%p375) target = $region64
    $region63: #{carl_forward.4} parent=5 // pred_region
      // Predicated region
      $region65: #{carl_forward.4} parent=63 // pred_check
        %p378 = pneg %p39
      $region66: #{carl_forward.4} parent=63 // pred_check_branch
        %380 = sbr.rel (%p378) target = $region68
      $region67: #{carl_forward.4} parent=63 // pred_region
        %p381 = scmp.lt.s32.totalorder %s19, 1
        %s382 = scalar_select %p381, %s19, 1
        %s383 = smul.addr %s382, 2
        %s384 = smul.addr %s383, 4
        %s385 = scalar_lea.vmem %s0, %s384
      $region68: #{carl_forward.4} parent=63 // pred_fallthru
        _
    $region64: #{carl_forward.4} parent=5 // pred_fallthru
      _
    %p386 = scmp.le.s32.totalorder 1, %s19
    %p387 = scmp.lt.s32.totalorder %s19, 3
    %p388 = pnand %p386, %p387
    %p389 = pneg %p388
    // Predicated region
    $region69: #{carl_forward.4} parent=5 // pred_check
      _
    $region70: #{carl_forward.4} parent=5 // pred_check_branch
      %391 = sbr.rel (%p388) target = $region72
    $region71: #{carl_forward.4} parent=5 // pred_region
      %s392 = ssub.s32 %s19, 1
      %p393 = scmp.lt.s32.totalorder %s24, 1
      %s394 = scalar_select %p393, %s24, 1
      %s395 = smul.addr %s394, 2
      %s396 = smul.addr %s395, 4
      %s397 = scalar_lea.vmem %s0, %s396
      %p398 = pneg %p45
      %p399 = pneg %p42
      %p400 = pneg %p66
      %p401 = pneg %p63
      %p402 = pneg %p87
      %p403 = pneg %p84
      %p404 = pneg %p108
      %p405 = pneg %p105
      %p406 = pneg %p129
      %p407 = pneg %p126
      %p408 = pneg %p150
      %p409 = pneg %p147
      %p410 = pneg %p171
      %p411 = pneg %p168
      %p412 = pneg %p192
      %p413 = pneg %p189
      %p414 = pneg %p213
      %p415 = pneg %p210
      %p416 = pneg %p234
      %p417 = pneg %p231
      %p418 = pneg %p255
      %p419 = pneg %p252
      %p420 = pneg %p276
      %p421 = pneg %p273
      %p422 = pneg %p297
      %p423 = pneg %p294
      %p424 = pneg %p323
      %p425 = pneg %p320
      %p426 = scmp.lt.s32.totalorder %s24, 1
      %s427 = scalar_select %p426, %s24, 1
      %s428 = smul.addr %s427, 4
      %s429 = scalar_lea.vmem %s13, %s428
      %p430 = scmp.lt.s32.totalorder %s24, 1
      %s431 = scalar_select %p430, %s24, 1
      %s432 = smul.addr %s431, 2
      %s433 = smul.addr %s432, 4
      %s434 = scalar_lea.vmem %s0, %s433
      %p435 = scmp.lt.s32.totalorder %s24, 1
      %s436 = scalar_select %p435, %s24, 1
      %s437 = smul.addr %s436, 4
      %s438 = scalar_lea.vmem %s13, %s437
      %v440 = vld [vmem:[%s434] sm:$0xff]
      %v441 = vunpack.c.l.bf16 %v440
      %v442 = vunpack.c.h.bf16 %v440
      %v443 = vld [vmem:[%s1] sm:$0xff]
      %v444 = vld [vmem:[%s1 + $0x8] sm:$0xff]
      %v445 = vld [vmem:[%s1 + $0x10] sm:$0xff]
      %v446 = vld [vmem:[%s1 + $0x18] sm:$0xff]
      %v447 = vld [vmem:[%s1 + $0x20] sm:$0xff]
      %v448 = vld [vmem:[%s1 + $0x28] sm:$0xff]
      %v449 = vld [vmem:[%s1 + $0x30] sm:$0xff]
      %v450 = vld [vmem:[%s1 + $0x38] sm:$0xff]
      %v451 = vld [vmem:[%s1 + $0x40] sm:$0xff]
      %v452 = vld [vmem:[%s1 + $0x48] sm:$0xff]
      %v453 = vld [vmem:[%s1 + $0x50] sm:$0xff]
      %v454 = vld [vmem:[%s1 + $0x58] sm:$0xff]
      %v455 = vld [vmem:[%s1 + $0x60] sm:$0xff]
      %v456 = vld [vmem:[%s1 + $0x68] sm:$0xff]
      %v457 = vld [vmem:[%s1 + $0x70] sm:$0xff]
      %v458 = vld [vmem:[%s1 + $0x78] sm:$0xff]
      %v459 = vld [vmem:[%s1 + $0x80] sm:$0xff]
      %v460 = vld [vmem:[%s1 + $0x88] sm:$0xff]
      %v461 = vld [vmem:[%s1 + $0x90] sm:$0xff]
      %v462 = vld [vmem:[%s1 + $0x98] sm:$0xff]
      %v463 = vld [vmem:[%s1 + $0xa0] sm:$0xff]
      %v464 = vld [vmem:[%s1 + $0xa8] sm:$0xff]
      %v465 = vld [vmem:[%s1 + $0xb0] sm:$0xff]
      %v466 = vld [vmem:[%s1 + $0xb8] sm:$0xff]
      %v467 = vld [vmem:[%s1 + $0xc0] sm:$0xff]
      %v468 = vld [vmem:[%s1 + $0xc8] sm:$0xff]
      %v469 = vld [vmem:[%s1 + $0xd0] sm:$0xff]
      %v470 = vld [vmem:[%s1 + $0xd8] sm:$0xff]
      %v471 = vld [vmem:[%s1 + $0xe0] sm:$0xff]
      %v472 = vld [vmem:[%s1 + $0xe8] sm:$0xff]
      %v473 = vld [vmem:[%s1 + $0xf0] sm:$0xff]
      %v474 = vld [vmem:[%s1 + $0xf8] sm:$0xff]
      %v475 = vld [vmem:[%s1 + $0x100] sm:$0xff]
      %v476 = vld [vmem:[%s1 + $0x108] sm:$0xff]
      %v477 = vld [vmem:[%s1 + $0x110] sm:$0xff]
      %v478 = vld [vmem:[%s1 + $0x118] sm:$0xff]
      %v479 = vld [vmem:[%s1 + $0x120] sm:$0xff]
      %v480 = vld [vmem:[%s1 + $0x128] sm:$0xff]
      %v481 = vld [vmem:[%s1 + $0x130] sm:$0xff]
      %v482 = vld [vmem:[%s1 + $0x138] sm:$0xff]
      %v483 = vld [vmem:[%s1 + $0x140] sm:$0xff]
      %v484 = vld [vmem:[%s1 + $0x148] sm:$0xff]
      %v485 = vld [vmem:[%s1 + $0x150] sm:$0xff]
      %v486 = vld [vmem:[%s1 + $0x158] sm:$0xff]
      %v487 = vld [vmem:[%s1 + $0x160] sm:$0xff]
      %v488 = vld [vmem:[%s1 + $0x168] sm:$0xff]
      %v489 = vld [vmem:[%s1 + $0x170] sm:$0xff]
      %v490 = vld [vmem:[%s1 + $0x178] sm:$0xff]
      %v491 = vld [vmem:[%s1 + $0x180] sm:$0xff]
      %v492 = vld [vmem:[%s1 + $0x188] sm:$0xff]
      %v493 = vld [vmem:[%s1 + $0x190] sm:$0xff]
      %v494 = vld [vmem:[%s1 + $0x198] sm:$0xff]
      %v495 = vld [vmem:[%s1 + $0x1a0] sm:$0xff]
      %v496 = vld [vmem:[%s1 + $0x1a8] sm:$0xff]
      %v497 = vld [vmem:[%s1 + $0x1b0] sm:$0xff]
      %v498 = vld [vmem:[%s1 + $0x1b8] sm:$0xff]
      %v499 = vld [vmem:[%s1 + $0x1c0] sm:$0xff]
      %v500 = vld [vmem:[%s1 + $0x1c8] sm:$0xff]
      %v501 = vld [vmem:[%s1 + $0x1d0] sm:$0xff]
      %v502 = vld [vmem:[%s1 + $0x1d8] sm:$0xff]
      %v503 = vld [vmem:[%s1 + $0x1e0] sm:$0xff]
      %v504 = vld [vmem:[%s1 + $0x1e8] sm:$0xff]
      %v505 = vld [vmem:[%s1 + $0x1f0] sm:$0xff]
      %v506 = vld [vmem:[%s1 + $0x1f8] sm:$0xff]
      %v507 = vld [vmem:[%s1 + $0x200] sm:$0xff]
      %v508 = vld [vmem:[%s1 + $0x208] sm:$0xff]
      %v509 = vld [vmem:[%s1 + $0x210] sm:$0xff]
      %v510 = vld [vmem:[%s1 + $0x218] sm:$0xff]
      %v511 = vld [vmem:[%s1 + $0x220] sm:$0xff]
      %v512 = vld [vmem:[%s1 + $0x228] sm:$0xff]
      %v513 = vld [vmem:[%s1 + $0x230] sm:$0xff]
      %v514 = vld [vmem:[%s1 + $0x238] sm:$0xff]
      %v515 = vld [vmem:[%s1 + $0x240] sm:$0xff]
      %v516 = vld [vmem:[%s1 + $0x248] sm:$0xff]
      %v517 = vld [vmem:[%s1 + $0x250] sm:$0xff]
      %v518 = vld [vmem:[%s1 + $0x258] sm:$0xff]
      %v519 = vld [vmem:[%s1 + $0x260] sm:$0xff]
      %v520 = vld [vmem:[%s1 + $0x268] sm:$0xff]
      %v521 = vld [vmem:[%s1 + $0x270] sm:$0xff]
      %v522 = vld [vmem:[%s1 + $0x278] sm:$0xff]
      %v523 = vld [vmem:[%s1 + $0x280] sm:$0xff]
      %v524 = vld [vmem:[%s1 + $0x288] sm:$0xff]
      %v525 = vld [vmem:[%s1 + $0x290] sm:$0xff]
      %v526 = vld [vmem:[%s1 + $0x298] sm:$0xff]
      %v527 = vld [vmem:[%s1 + $0x2a0] sm:$0xff]
      %v528 = vld [vmem:[%s1 + $0x2a8] sm:$0xff]
      %v529 = vld [vmem:[%s1 + $0x2b0] sm:$0xff]
      %v530 = vld [vmem:[%s1 + $0x2b8] sm:$0xff]
      %v531 = vld [vmem:[%s1 + $0x2c0] sm:$0xff]
      %v532 = vld [vmem:[%s1 + $0x2c8] sm:$0xff]
      %v533 = vld [vmem:[%s1 + $0x2d0] sm:$0xff]
      %v534 = vld [vmem:[%s1 + $0x2d8] sm:$0xff]
      %v535 = vld [vmem:[%s1 + $0x2e0] sm:$0xff]
      %v536 = vld [vmem:[%s1 + $0x2e8] sm:$0xff]
      %v537 = vld [vmem:[%s1 + $0x2f0] sm:$0xff]
      %v538 = vld [vmem:[%s1 + $0x2f8] sm:$0xff]
      %v540 = vunpack.c.l.b16 %v440
      %v541 = vunpack.c.h.b16 %v440
      %v542 = vpack.c.b16 %v540, %v540
      %v543 = vpack.c.b16 %v541, %v541
      %v642 = vunpack.c.l.b16 %v443
      %v643 = vunpack.c.h.b16 %v443
      %v644 = vunpack.c.l.b16 %v444
      %v645 = vunpack.c.h.b16 %v444
      %v646 = vunpack.c.l.b16 %v445
      %v647 = vunpack.c.h.b16 %v445
      %v648 = vunpack.c.l.b16 %v446
      %v649 = vunpack.c.h.b16 %v446
      %v650 = vunpack.c.l.b16 %v447
      %v651 = vunpack.c.h.b16 %v447
      %v652 = vunpack.c.l.b16 %v448
      %v653 = vunpack.c.h.b16 %v448
      %v654 = vunpack.c.l.b16 %v449
      %v655 = vunpack.c.h.b16 %v449
      %v656 = vunpack.c.l.b16 %v450
      %v657 = vunpack.c.h.b16 %v450
      %v658 = vunpack.c.l.b16 %v451
      %v659 = vunpack.c.h.b16 %v451
      %v660 = vunpack.c.l.b16 %v452
      %v661 = vunpack.c.h.b16 %v452
      %v662 = vunpack.c.l.b16 %v453
      %v663 = vunpack.c.h.b16 %v453
      %v664 = vunpack.c.l.b16 %v454
      %v665 = vunpack.c.h.b16 %v454
      %v666 = vunpack.c.l.b16 %v455
      %v667 = vunpack.c.h.b16 %v455
      %v668 = vunpack.c.l.b16 %v456
      %v669 = vunpack.c.h.b16 %v456
      %v670 = vunpack.c.l.b16 %v457
      %v671 = vunpack.c.h.b16 %v457
      %v672 = vunpack.c.l.b16 %v458
      %v673 = vunpack.c.h.b16 %v458
      %v674 = vunpack.c.l.b16 %v459
      %v675 = vunpack.c.h.b16 %v459
      %v676 = vunpack.c.l.b16 %v460
      %v677 = vunpack.c.h.b16 %v460
      %v678 = vunpack.c.l.b16 %v461
      %v679 = vunpack.c.h.b16 %v461
      %v680 = vunpack.c.l.b16 %v462
      %v681 = vunpack.c.h.b16 %v462
      %v682 = vunpack.c.l.b16 %v463
      %v683 = vunpack.c.h.b16 %v463
      %v684 = vunpack.c.l.b16 %v464
      %v685 = vunpack.c.h.b16 %v464
      %v686 = vunpack.c.l.b16 %v465
      %v687 = vunpack.c.h.b16 %v465
      %v688 = vunpack.c.l.b16 %v466
      %v689 = vunpack.c.h.b16 %v466
      %v690 = vunpack.c.l.b16 %v467
      %v691 = vunpack.c.h.b16 %v467
      %v692 = vunpack.c.l.b16 %v468
      %v693 = vunpack.c.h.b16 %v468
      %v694 = vunpack.c.l.b16 %v469
      %v695 = vunpack.c.h.b16 %v469
      %v696 = vunpack.c.l.b16 %v470
      %v697 = vunpack.c.h.b16 %v470
      %v698 = vunpack.c.l.b16 %v471
      %v699 = vunpack.c.h.b16 %v471
      %v700 = vunpack.c.l.b16 %v472
      %v701 = vunpack.c.h.b16 %v472
      %v702 = vunpack.c.l.b16 %v473
      %v703 = vunpack.c.h.b16 %v473
      %v704 = vunpack.c.l.b16 %v474
      %v705 = vunpack.c.h.b16 %v474
      %v706 = vunpack.c.l.b16 %v475
      %v707 = vunpack.c.h.b16 %v475
      %v708 = vunpack.c.l.b16 %v476
      %v709 = vunpack.c.h.b16 %v476
      %v710 = vunpack.c.l.b16 %v477
      %v711 = vunpack.c.h.b16 %v477
      %v712 = vunpack.c.l.b16 %v478
      %v713 = vunpack.c.h.b16 %v478
      %v714 = vunpack.c.l.b16 %v479
      %v715 = vunpack.c.h.b16 %v479
      %v716 = vunpack.c.l.b16 %v480
      %v717 = vunpack.c.h.b16 %v480
      %v718 = vunpack.c.l.b16 %v481
      %v719 = vunpack.c.h.b16 %v481
      %v720 = vunpack.c.l.b16 %v482
      %v721 = vunpack.c.h.b16 %v482
      %v722 = vunpack.c.l.b16 %v483
      %v723 = vunpack.c.h.b16 %v483
      %v724 = vunpack.c.l.b16 %v484
      %v725 = vunpack.c.h.b16 %v484
      %v726 = vunpack.c.l.b16 %v485
      %v727 = vunpack.c.h.b16 %v485
      %v728 = vunpack.c.l.b16 %v486
      %v729 = vunpack.c.h.b16 %v486
      %v730 = vunpack.c.l.b16 %v487
      %v731 = vunpack.c.h.b16 %v487
      %v732 = vunpack.c.l.b16 %v488
      %v733 = vunpack.c.h.b16 %v488
      %v734 = vunpack.c.l.b16 %v489
      %v735 = vunpack.c.h.b16 %v489
      %v736 = vunpack.c.l.b16 %v490
      %v737 = vunpack.c.h.b16 %v490
      %v738 = vunpack.c.l.b16 %v491
      %v739 = vunpack.c.h.b16 %v491
      %v740 = vunpack.c.l.b16 %v492
      %v741 = vunpack.c.h.b16 %v492
      %v742 = vunpack.c.l.b16 %v493
      %v743 = vunpack.c.h.b16 %v493
      %v744 = vunpack.c.l.b16 %v494
      %v745 = vunpack.c.h.b16 %v494
      %v746 = vunpack.c.l.b16 %v495
      %v747 = vunpack.c.h.b16 %v495
      %v748 = vunpack.c.l.b16 %v496
      %v749 = vunpack.c.h.b16 %v496
      %v750 = vunpack.c.l.b16 %v497
      %v751 = vunpack.c.h.b16 %v497
      %v752 = vunpack.c.l.b16 %v498
      %v753 = vunpack.c.h.b16 %v498
      %v754 = vunpack.c.l.b16 %v499
      %v755 = vunpack.c.h.b16 %v499
      %v756 = vunpack.c.l.b16 %v500
      %v757 = vunpack.c.h.b16 %v500
      %v758 = vunpack.c.l.b16 %v501
      %v759 = vunpack.c.h.b16 %v501
      %v760 = vunpack.c.l.b16 %v502
      %v761 = vunpack.c.h.b16 %v502
      %v762 = vunpack.c.l.b16 %v503
      %v763 = vunpack.c.h.b16 %v503
      %v764 = vunpack.c.l.b16 %v504
      %v765 = vunpack.c.h.b16 %v504
      %v766 = vunpack.c.l.b16 %v505
      %v767 = vunpack.c.h.b16 %v505
      %v768 = vunpack.c.l.b16 %v506
      %v769 = vunpack.c.h.b16 %v506
      %v770 = vunpack.c.l.b16 %v507
      %v771 = vunpack.c.h.b16 %v507
      %v772 = vunpack.c.l.b16 %v508
      %v773 = vunpack.c.h.b16 %v508
      %v774 = vunpack.c.l.b16 %v509
      %v775 = vunpack.c.h.b16 %v509
      %v776 = vunpack.c.l.b16 %v510
      %v777 = vunpack.c.h.b16 %v510
      %v778 = vunpack.c.l.b16 %v511
      %v779 = vunpack.c.h.b16 %v511
      %v780 = vunpack.c.l.b16 %v512
      %v781 = vunpack.c.h.b16 %v512
      %v782 = vunpack.c.l.b16 %v513
      %v783 = vunpack.c.h.b16 %v513
      %v784 = vunpack.c.l.b16 %v514
      %v785 = vunpack.c.h.b16 %v514
      %v786 = vunpack.c.l.b16 %v515
      %v787 = vunpack.c.h.b16 %v515
      %v788 = vunpack.c.l.b16 %v516
      %v789 = vunpack.c.h.b16 %v516
      %v790 = vunpack.c.l.b16 %v517
      %v791 = vunpack.c.h.b16 %v517
      %v792 = vunpack.c.l.b16 %v518
      %v793 = vunpack.c.h.b16 %v518
      %v794 = vunpack.c.l.b16 %v519
      %v795 = vunpack.c.h.b16 %v519
      %v796 = vunpack.c.l.b16 %v520
      %v797 = vunpack.c.h.b16 %v520
      %v798 = vunpack.c.l.b16 %v521
      %v799 = vunpack.c.h.b16 %v521
      %v800 = vunpack.c.l.b16 %v522
      %v801 = vunpack.c.h.b16 %v522
      %v802 = vunpack.c.l.b16 %v523
      %v803 = vunpack.c.h.b16 %v523
      %v804 = vunpack.c.l.b16 %v524
      %v805 = vunpack.c.h.b16 %v524
      %v806 = vunpack.c.l.b16 %v525
      %v807 = vunpack.c.h.b16 %v525
      %v808 = vunpack.c.l.b16 %v526
      %v809 = vunpack.c.h.b16 %v526
      %v810 = vunpack.c.l.b16 %v527
      %v811 = vunpack.c.h.b16 %v527
      %v812 = vunpack.c.l.b16 %v528
      %v813 = vunpack.c.h.b16 %v528
      %v814 = vunpack.c.l.b16 %v529
      %v815 = vunpack.c.h.b16 %v529
      %v816 = vunpack.c.l.b16 %v530
      %v817 = vunpack.c.h.b16 %v530
      %v818 = vunpack.c.l.b16 %v531
      %v819 = vunpack.c.h.b16 %v531
      %v820 = vunpack.c.l.b16 %v532
      %v821 = vunpack.c.h.b16 %v532
      %v822 = vunpack.c.l.b16 %v533
      %v823 = vunpack.c.h.b16 %v533
      %v824 = vunpack.c.l.b16 %v534
      %v825 = vunpack.c.h.b16 %v534
      %v826 = vunpack.c.l.b16 %v535
      %v827 = vunpack.c.h.b16 %v535
      %v828 = vunpack.c.l.b16 %v536
      %v829 = vunpack.c.h.b16 %v536
      %v830 = vunpack.c.l.b16 %v537
      %v831 = vunpack.c.h.b16 %v537
      %v832 = vunpack.c.l.b16 %v538
      %v833 = vunpack.c.h.b16 %v538
      %v834 = vpack.c.b16 %v648, %v642
      %v835 = vpack.c.b16 %v649, %v643
      %v836 = vpack.c.b16 %v650, %v644
      %v837 = vpack.c.b16 %v651, %v645
      %v838 = vpack.c.b16 %v652, %v646
      %v839 = vpack.c.b16 %v653, %v647
      %v840 = vpack.c.b16 %v660, %v654
      %v841 = vpack.c.b16 %v661, %v655
      %v842 = vpack.c.b16 %v662, %v656
      %v843 = vpack.c.b16 %v663, %v657
      %v844 = vpack.c.b16 %v664, %v658
      %v845 = vpack.c.b16 %v665, %v659
      %v846 = vpack.c.b16 %v672, %v666
      %v847 = vpack.c.b16 %v673, %v667
      %v848 = vpack.c.b16 %v674, %v668
      %v849 = vpack.c.b16 %v675, %v669
      %v850 = vpack.c.b16 %v676, %v670
      %v851 = vpack.c.b16 %v677, %v671
      %v852 = vpack.c.b16 %v684, %v678
      %v853 = vpack.c.b16 %v685, %v679
      %v854 = vpack.c.b16 %v686, %v680
      %v855 = vpack.c.b16 %v687, %v681
      %v856 = vpack.c.b16 %v688, %v682
      %v857 = vpack.c.b16 %v689, %v683
      %v858 = vpack.c.b16 %v696, %v690
      %v859 = vpack.c.b16 %v697, %v691
      %v860 = vpack.c.b16 %v698, %v692
      %v861 = vpack.c.b16 %v699, %v693
      %v862 = vpack.c.b16 %v700, %v694
      %v863 = vpack.c.b16 %v701, %v695
      %v864 = vpack.c.b16 %v708, %v702
      %v865 = vpack.c.b16 %v709, %v703
      %v866 = vpack.c.b16 %v710, %v704
      %v867 = vpack.c.b16 %v711, %v705
      %v868 = vpack.c.b16 %v712, %v706
      %v869 = vpack.c.b16 %v713, %v707
      %v870 = vpack.c.b16 %v720, %v714
      %v871 = vpack.c.b16 %v721, %v715
      %v872 = vpack.c.b16 %v722, %v716
      %v873 = vpack.c.b16 %v723, %v717
      %v874 = vpack.c.b16 %v724, %v718
      %v875 = vpack.c.b16 %v725, %v719
      %v876 = vpack.c.b16 %v732, %v726
      %v877 = vpack.c.b16 %v733, %v727
      %v878 = vpack.c.b16 %v734, %v728
      %v879 = vpack.c.b16 %v735, %v729
      %v880 = vpack.c.b16 %v736, %v730
      %v881 = vpack.c.b16 %v737, %v731
      %v882 = vpack.c.b16 %v744, %v738
      %v883 = vpack.c.b16 %v745, %v739
      %v884 = vpack.c.b16 %v746, %v740
      %v885 = vpack.c.b16 %v747, %v741
      %v886 = vpack.c.b16 %v748, %v742
      %v887 = vpack.c.b16 %v749, %v743
      %v888 = vpack.c.b16 %v756, %v750
      %v889 = vpack.c.b16 %v757, %v751
      %v890 = vpack.c.b16 %v758, %v752
      %v891 = vpack.c.b16 %v759, %v753
      %v892 = vpack.c.b16 %v760, %v754
      %v893 = vpack.c.b16 %v761, %v755
      %v894 = vpack.c.b16 %v768, %v762
      %v895 = vpack.c.b16 %v769, %v763
      %v896 = vpack.c.b16 %v770, %v764
      %v897 = vpack.c.b16 %v771, %v765
      %v898 = vpack.c.b16 %v772, %v766
      %v899 = vpack.c.b16 %v773, %v767
      %v900 = vpack.c.b16 %v780, %v774
      %v901 = vpack.c.b16 %v781, %v775
      %v902 = vpack.c.b16 %v782, %v776
      %v903 = vpack.c.b16 %v783, %v777
      %v904 = vpack.c.b16 %v784, %v778
      %v905 = vpack.c.b16 %v785, %v779
      %v906 = vpack.c.b16 %v792, %v786
      %v907 = vpack.c.b16 %v793, %v787
      %v908 = vpack.c.b16 %v794, %v788
      %v909 = vpack.c.b16 %v795, %v789
      %v910 = vpack.c.b16 %v796, %v790
      %v911 = vpack.c.b16 %v797, %v791
      %v912 = vpack.c.b16 %v804, %v798
      %v913 = vpack.c.b16 %v805, %v799
      %v914 = vpack.c.b16 %v806, %v800
      %v915 = vpack.c.b16 %v807, %v801
      %v916 = vpack.c.b16 %v808, %v802
      %v917 = vpack.c.b16 %v809, %v803
      %v918 = vpack.c.b16 %v816, %v810
      %v919 = vpack.c.b16 %v817, %v811
      %v920 = vpack.c.b16 %v818, %v812
      %v921 = vpack.c.b16 %v819, %v813
      %v922 = vpack.c.b16 %v820, %v814
      %v923 = vpack.c.b16 %v821, %v815
      %v924 = vpack.c.b16 %v828, %v822
      %v925 = vpack.c.b16 %v829, %v823
      %v926 = vpack.c.b16 %v830, %v824
      %v927 = vpack.c.b16 %v831, %v825
      %v928 = vpack.c.b16 %v832, %v826
      %v929 = vpack.c.b16 %v833, %v827
      %1026 = vmatprep.subr.bf16.mxu0 %v835
      %1027 = vmatpush1.bf16.msra.mxu0 %v834
      %1028 = vmatprep.subr.bf16.mxu0 %v841
      %1029 = vmatpush1.bf16.msra.mxu0 %v840
      %1030 = vmatprep.subr.bf16.mxu0 %v847
      %1031 = vmatpush1.bf16.msra.mxu0 %v846
      %1032 = vmatprep.subr.bf16.mxu0 %v853
      %1033 = vmatpush1.bf16.msra.mxu0 %v852
      %1034 = vmatprep.subr.bf16.mxu0 %v859
      %1035 = vmatpush1.bf16.msra.mxu0 %v858
      %1036 = vmatprep.subr.bf16.mxu0 %v865
      %1037 = vmatpush1.bf16.msra.mxu0 %v864
      %1038 = vmatprep.subr.bf16.mxu0 %v871
      %1039 = vmatpush1.bf16.msra.mxu0 %v870
      %1040 = vmatprep.subr.bf16.mxu0 %v877
      %1041 = vmatpush1.bf16.msra.mxu0 %v876
      %1042 = vmatprep.subr.bf16.mxu0 %v883
      %1043 = vmatpush1.bf16.msra.mxu0 %v882
      %1044 = vmatprep.subr.bf16.mxu0 %v889
      %1045 = vmatpush1.bf16.msra.mxu0 %v888
      %1046 = vmatprep.subr.bf16.mxu0 %v895
      %1047 = vmatpush1.bf16.msra.mxu0 %v894
      %1048 = vmatprep.subr.bf16.mxu0 %v901
      %1049 = vmatpush1.bf16.msra.mxu0 %v900
      %1050 = vmatprep.subr.bf16.mxu0 %v907
      %1051 = vmatpush1.bf16.msra.mxu0 %v906
      %1052 = vmatprep.subr.bf16.mxu0 %v913
      %1053 = vmatpush1.bf16.msra.mxu0 %v912
      %1054 = vmatprep.subr.bf16.mxu0 %v919
      %1055 = vmatpush1.bf16.msra.mxu0 %v918
      %1056 = vmatprep.subr.bf16.mxu0 %v925
      %1057 = vmatpush1.bf16.msra.mxu0 %v924
      %1058 = vmatprep.mubr.bf16.mxu0 %v543
      %1059 = vmatmul.mubr.bf16.gmra.mrb[0].mxu0 %v542
      %v1060 = vpop.f32.mrb[0].mxu0
      %v1061 = vadd.f32 0.0, %v1060
      %v1062 = vpop.f32.mrb[0].mxu0
      %v1063 = vadd.f32 0.0, %v1062
      %v1064 = vpop.f32.mrb[0].mxu0
      %v1065 = vpop.f32.mrb[0].mxu0
      %1066 = vdwg.mxu0
      %1067 = vmatprep.subr.bf16.mxu0 %v837
      %1068 = vmatpush1.bf16.msra.mxu0 %v836
      %1069 = vmatprep.subr.bf16.mxu0 %v843
      %1070 = vmatpush1.bf16.msra.mxu0 %v842
      %1071 = vmatprep.subr.bf16.mxu0 %v849
      %1072 = vmatpush1.bf16.msra.mxu0 %v848
      %1073 = vmatprep.subr.bf16.mxu0 %v855
      %1074 = vmatpush1.bf16.msra.mxu0 %v854
      %1075 = vmatprep.subr.bf16.mxu0 %v861
      %1076 = vmatpush1.bf16.msra.mxu0 %v860
      %1077 = vmatprep.subr.bf16.mxu0 %v867
      %1078 = vmatpush1.bf16.msra.mxu0 %v866
      %1079 = vmatprep.subr.bf16.mxu0 %v873
      %1080 = vmatpush1.bf16.msra.mxu0 %v872
      %1081 = vmatprep.subr.bf16.mxu0 %v879
      %1082 = vmatpush1.bf16.msra.mxu0 %v878
      %1083 = vmatprep.subr.bf16.mxu0 %v885
      %1084 = vmatpush1.bf16.msra.mxu0 %v884
      %1085 = vmatprep.subr.bf16.mxu0 %v891
      %1086 = vmatpush1.bf16.msra.mxu0 %v890
      %1087 = vmatprep.subr.bf16.mxu0 %v897
      %1088 = vmatpush1.bf16.msra.mxu0 %v896
      %1089 = vmatprep.subr.bf16.mxu0 %v903
      %1090 = vmatpush1.bf16.msra.mxu0 %v902
      %1091 = vmatprep.subr.bf16.mxu0 %v909
      %1092 = vmatpush1.bf16.msra.mxu0 %v908
      %1093 = vmatprep.subr.bf16.mxu0 %v915
      %1094 = vmatpush1.bf16.msra.mxu0 %v914
      %1095 = vmatprep.subr.bf16.mxu0 %v921
      %1096 = vmatpush1.bf16.msra.mxu0 %v920
      %1097 = vmatprep.subr.bf16.mxu0 %v927
      %1098 = vmatpush1.bf16.msra.mxu0 %v926
      %1099 = vmatprep.mubr.bf16.mxu0 %v543
      %1100 = vmatmul.mubr.bf16.gmra.mrb[0].mxu0 %v542
      %v1101 = vpop.f32.mrb[0].mxu0
      %v1102 = vadd.f32 0.0, %v1101
      %v1103 = vpop.f32.mrb[0].mxu0
      %v1104 = vadd.f32 0.0, %v1103
      %v1105 = vpop.f32.mrb[0].mxu0
      %v1106 = vpop.f32.mrb[0].mxu0
      %1107 = vdwg.mxu0
      %1108 = vmatprep.subr.bf16.mxu0 %v839
      %1109 = vmatpush1.bf16.msra.mxu0 %v838
      %1110 = vmatprep.subr.bf16.mxu0 %v845
      %1111 = vmatpush1.bf16.msra.mxu0 %v844
      %1112 = vmatprep.subr.bf16.mxu0 %v851
      %1113 = vmatpush1.bf16.msra.mxu0 %v850
      %1114 = vmatprep.subr.bf16.mxu0 %v857
      %1115 = vmatpush1.bf16.msra.mxu0 %v856
      %1116 = vmatprep.subr.bf16.mxu0 %v863
      %1117 = vmatpush1.bf16.msra.mxu0 %v862
      %1118 = vmatprep.subr.bf16.mxu0 %v869
      %1119 = vmatpush1.bf16.msra.mxu0 %v868
      %1120 = vmatprep.subr.bf16.mxu0 %v875
      %1121 = vmatpush1.bf16.msra.mxu0 %v874
      %1122 = vmatprep.subr.bf16.mxu0 %v881
      %1123 = vmatpush1.bf16.msra.mxu0 %v880
      %1124 = vmatprep.subr.bf16.mxu0 %v887
      %1125 = vmatpush1.bf16.msra.mxu0 %v886
      %1126 = vmatprep.subr.bf16.mxu0 %v893
      %1127 = vmatpush1.bf16.msra.mxu0 %v892
      %1128 = vmatprep.subr.bf16.mxu0 %v899
      %1129 = vmatpush1.bf16.msra.mxu0 %v898
      %1130 = vmatprep.subr.bf16.mxu0 %v905
      %1131 = vmatpush1.bf16.msra.mxu0 %v904
      %1132 = vmatprep.subr.bf16.mxu0 %v911
      %1133 = vmatpush1.bf16.msra.mxu0 %v910
      %1134 = vmatprep.subr.bf16.mxu0 %v917
      %1135 = vmatpush1.bf16.msra.mxu0 %v916
      %1136 = vmatprep.subr.bf16.mxu0 %v923
      %1137 = vmatpush1.bf16.msra.mxu0 %v922
      %1138 = vmatprep.subr.bf16.mxu0 %v929
      %1139 = vmatpush1.bf16.msra.mxu0 %v928
      %1140 = vmatprep.mubr.bf16.mxu0 %v543
      %1141 = vmatmul.mubr.bf16.gmra.mrb[0].mxu0 %v542
      %v1142 = vpop.f32.mrb[0].mxu0
      %v1143 = vadd.f32 0.0, %v1142
      %v1144 = vpop.f32.mrb[0].mxu0
      %v1145 = vadd.f32 0.0, %v1144
      %v1146 = vpop.f32.mrb[0].mxu0
      %v1147 = vpop.f32.mrb[0].mxu0
      %1148 = vdwg.mxu0
      %v1149 = vpack.c.bf16 %v1061, %v1061
      %v1150 = vpack.c.bf16 %v1063, %v1063
      %v1151 = vpack.c.bf16 %v1102, %v1102
      %v1152 = vpack.c.bf16 %v1104, %v1104
      %v1153 = vpack.c.bf16 %v1143, %v1143
      %v1154 = vpack.c.bf16 %v1145, %v1145
      %1155 = vmatprep.subr.bf16.mxu0 %v1152
      %1156 = vmatpush1.bf16.xpose.msra.mxu0 %v1151
      %1157 = vmatprep.subr.bf16.mxu0 0
      %1158 = vmatpush1.bf16.xpose.msra.mxu0 0
      %1159 = vmatprep.subr.bf16.mxu0 0
      %1160 = vmatpush1.bf16.xpose.msra.mxu0 0
      %1161 = vmatprep.subr.bf16.mxu0 0
      %1162 = vmatpush1.bf16.xpose.msra.mxu0 0
      %1163 = vmatprep.subr.bf16.mxu0 0
      %1164 = vmatpush1.bf16.xpose.msra.mxu0 0
      %1165 = vmatprep.subr.bf16.mxu0 0
      %1166 = vmatpush1.bf16.xpose.msra.mxu0 0
      %1167 = vmatprep.subr.bf16.mxu0 0
      %1168 = vmatpush1.bf16.xpose.msra.mxu0 0
      %1169 = vmatprep.subr.bf16.mxu0 0
      %1170 = vmatpush1.bf16.xpose.msra.mxu0 0
      %1171 = vmatprep.subr.bf16.mxu0 0
      %1172 = vmatpush1.bf16.xpose.msra.mxu0 0
      %1173 = vmatprep.subr.bf16.mxu0 0
      %1174 = vmatpush1.bf16.xpose.msra.mxu0 0
      %1175 = vmatprep.subr.bf16.mxu0 0
      %1176 = vmatpush1.bf16.xpose.msra.mxu0 0
      %1177 = vmatprep.subr.bf16.mxu0 0
      %1178 = vmatpush1.bf16.xpose.msra.mxu0 0
      %1179 = vmatprep.subr.bf16.mxu0 0
      %1180 = vmatpush1.bf16.xpose.msra.mxu0 0
      %1181 = vmatprep.subr.bf16.mxu0 0
      %1182 = vmatpush1.bf16.xpose.msra.mxu0 0
      %1183 = vmatprep.subr.bf16.mxu0 0
      %1184 = vmatpush1.bf16.xpose.msra.mxu0 0
      %1185 = vmatprep.subr.bf16.mxu0 0
      %1186 = vmatpush1.bf16.xpose.msra.mxu0 0
      %1187 = vmatprep.mubr.bf16.mxu0 %v1150
      %1188 = vmatmul.mubr.bf16.gmra.mrb[0].mxu0 %v1149
      %v1189 = vpop.f32.mrb[0].mxu0
      %v1190 = vadd.f32 0.0, %v1189
      %v1191 = vpop.f32.mrb[0].mxu0
      %v1192 = vpop.f32.mrb[0].mxu0
      %v1193 = vpop.f32.mrb[0].mxu0
      %1194 = vdwg.mxu0
      %v1195 = vmul.f32 %v1190, 0.0625
      %vm1196 = vcmask 64512
      %v1197 = vsel %vm1196, %v1195, -inf
      %1198 = vmax.xlane.f32.xlu0 %v1197
      %v1199 = vpop.xlane.xlu0 %1198
      %v1200 = vsub.f32 %v1195, %v1199
      %v1201 = vmul.f32 %v1200, 1.442695
      %v1202 = vpow.pop %v1201
      %v1203 = vsel %vm1196, %v1202, 0.0
      %1204 = vadd.xlane.f32.xlu0 %v1203
      %v1205 = vpop.xlane.xlu0 %1204
      %v1206 = vrcp.pop %v1205
      %v1207 = vmul.f32 %v1202, %v1206
      %v1208 = vpack.c.bf16 %v1207, %v1207
      %v1210 = vsel %vm1196, %v1208, 0
      %vm1212 = vcmask 1043456
      %v1214 = vsel %vm1212, %v1153, 0
      %v1217 = vsel %vm1212, %v1154, 0
      %1219 = vmatprep.subr.bf16.mxu0 %v1217
      %1220 = vmatpush1.bf16.msra.mxu0 %v1214
      %1221 = vmatprep.subr.bf16.mxu0 0
      %1222 = vmatpush1.bf16.msra.mxu0 0
      %1223 = vmatprep.subr.bf16.mxu0 0
      %1224 = vmatpush1.bf16.msra.mxu0 0
      %1225 = vmatprep.subr.bf16.mxu0 0
      %1226 = vmatpush1.bf16.msra.mxu0 0
      %1227 = vmatprep.subr.bf16.mxu0 0
      %1228 = vmatpush1.bf16.msra.mxu0 0
      %1229 = vmatprep.subr.bf16.mxu0 0
      %1230 = vmatpush1.bf16.msra.mxu0 0
      %1231 = vmatprep.subr.bf16.mxu0 0
      %1232 = vmatpush1.bf16.msra.mxu0 0
      %1233 = vmatprep.subr.bf16.mxu0 0
      %1234 = vmatpush1.bf16.msra.mxu0 0
      %1235 = vmatprep.subr.bf16.mxu0 0
      %1236 = vmatpush1.bf16.msra.mxu0 0
      %1237 = vmatprep.subr.bf16.mxu0 0
      %1238 = vmatpush1.bf16.msra.mxu0 0
      %1239 = vmatprep.subr.bf16.mxu0 0
      %1240 = vmatpush1.bf16.msra.mxu0 0
      %1241 = vmatprep.subr.bf16.mxu0 0
      %1242 = vmatpush1.bf16.msra.mxu0 0
      %1243 = vmatprep.subr.bf16.mxu0 0
      %1244 = vmatpush1.bf16.msra.mxu0 0
      %1245 = vmatprep.subr.bf16.mxu0 0
      %1246 = vmatpush1.bf16.msra.mxu0 0
      %1247 = vmatprep.subr.bf16.mxu0 0
      %1248 = vmatpush1.bf16.msra.mxu0 0
      %1249 = vmatprep.subr.bf16.mxu0 0
      %1250 = vmatpush1.bf16.msra.mxu0 0
      %1251 = vmatprep.mubr.bf16.mxu0 0
      %1252 = vmatmul.mubr.bf16.gmra.mrb[0].mxu0 %v1210
      %v1253 = vpop.f32.mrb[0].mxu0
      %v1254 = vadd.f32 0.0, %v1253
      %v1255 = vpop.f32.mrb[0].mxu0
      %v1256 = vadd.f32 0.0, %v1255
      %v1257 = vpop.f32.mrb[0].mxu0
      %v1258 = vpop.f32.mrb[0].mxu0
      %1259 = vdwg.mxu0
      %v1260 = vpack.c.bf16 %v1254, %v1254
      %v1261 = vpack.c.bf16 %v1256, %v1256
      %v1262 = vld [vmem:[%s2] sm:$0xff]
      %v1263 = vld [vmem:[%s2 + $0x8] sm:$0xff]
      %v1264 = vld [vmem:[%s2 + $0x10] sm:$0xff]
      %v1265 = vld [vmem:[%s2 + $0x18] sm:$0xff]
      %v1266 = vld [vmem:[%s2 + $0x20] sm:$0xff]
      %v1267 = vld [vmem:[%s2 + $0x28] sm:$0xff]
      %v1268 = vld [vmem:[%s2 + $0x30] sm:$0xff]
      %v1269 = vld [vmem:[%s2 + $0x38] sm:$0xff]
      %v1270 = vld [vmem:[%s2 + $0x40] sm:$0xff]
      %v1271 = vld [vmem:[%s2 + $0x48] sm:$0xff]
      %v1272 = vld [vmem:[%s2 + $0x50] sm:$0xff]
      %v1273 = vld [vmem:[%s2 + $0x58] sm:$0xff]
      %v1274 = vld [vmem:[%s2 + $0x60] sm:$0xff]
      %v1275 = vld [vmem:[%s2 + $0x68] sm:$0xff]
      %v1276 = vld [vmem:[%s2 + $0x70] sm:$0xff]
      %v1277 = vld [vmem:[%s2 + $0x78] sm:$0xff]
      %v1278 = vld [vmem:[%s2 + $0x80] sm:$0xff]
      %v1279 = vld [vmem:[%s2 + $0x88] sm:$0xff]
      %v1280 = vld [vmem:[%s2 + $0x90] sm:$0xff]
      %v1281 = vld [vmem:[%s2 + $0x98] sm:$0xff]
      %v1282 = vld [vmem:[%s2 + $0xa0] sm:$0xff]
      %v1283 = vld [vmem:[%s2 + $0xa8] sm:$0xff]
      %v1284 = vld [vmem:[%s2 + $0xb0] sm:$0xff]
      %v1285 = vld [vmem:[%s2 + $0xb8] sm:$0xff]
      %v1286 = vld [vmem:[%s2 + $0xc0] sm:$0xff]
      %v1287 = vld [vmem:[%s2 + $0xc8] sm:$0xff]
      %v1288 = vld [vmem:[%s2 + $0xd0] sm:$0xff]
      %v1289 = vld [vmem:[%s2 + $0xd8] sm:$0xff]
      %v1290 = vld [vmem:[%s2 + $0xe0] sm:$0xff]
      %v1291 = vld [vmem:[%s2 + $0xe8] sm:$0xff]
      %v1292 = vld [vmem:[%s2 + $0xf0] sm:$0xff]
      %v1293 = vld [vmem:[%s2 + $0xf8] sm:$0xff]
      %v1326 = vunpack.c.l.b16 %v1262
      %v1327 = vunpack.c.h.b16 %v1262
      %v1328 = vunpack.c.l.b16 %v1263
      %v1329 = vunpack.c.h.b16 %v1263
      %v1330 = vunpack.c.l.b16 %v1264
      %v1331 = vunpack.c.h.b16 %v1264
      %v1332 = vunpack.c.l.b16 %v1265
      %v1333 = vunpack.c.h.b16 %v1265
      %v1334 = vunpack.c.l.b16 %v1266
      %v1335 = vunpack.c.h.b16 %v1266
      %v1336 = vunpack.c.l.b16 %v1267
      %v1337 = vunpack.c.h.b16 %v1267
      %v1338 = vunpack.c.l.b16 %v1268
      %v1339 = vunpack.c.h.b16 %v1268
      %v1340 = vunpack.c.l.b16 %v1269
      %v1341 = vunpack.c.h.b16 %v1269
      %v1342 = vunpack.c.l.b16 %v1270
      %v1343 = vunpack.c.h.b16 %v1270
      %v1344 = vunpack.c.l.b16 %v1271
      %v1345 = vunpack.c.h.b16 %v1271
      %v1346 = vunpack.c.l.b16 %v1272
      %v1347 = vunpack.c.h.b16 %v1272
      %v1348 = vunpack.c.l.b16 %v1273
      %v1349 = vunpack.c.h.b16 %v1273
      %v1350 = vunpack.c.l.b16 %v1274
      %v1351 = vunpack.c.h.b16 %v1274
      %v1352 = vunpack.c.l.b16 %v1275
      %v1353 = vunpack.c.h.b16 %v1275
      %v1354 = vunpack.c.l.b16 %v1276
      %v1355 = vunpack.c.h.b16 %v1276
      %v1356 = vunpack.c.l.b16 %v1277
      %v1357 = vunpack.c.h.b16 %v1277
      %v1358 = vunpack.c.l.b16 %v1278
      %v1359 = vunpack.c.h.b16 %v1278
      %v1360 = vunpack.c.l.b16 %v1279
      %v1361 = vunpack.c.h.b16 %v1279
      %v1362 = vunpack.c.l.b16 %v1280
      %v1363 = vunpack.c.h.b16 %v1280
      %v1364 = vunpack.c.l.b16 %v1281
      %v1365 = vunpack.c.h.b16 %v1281
      %v1366 = vunpack.c.l.b16 %v1282
      %v1367 = vunpack.c.h.b16 %v1282
      %v1368 = vunpack.c.l.b16 %v1283
      %v1369 = vunpack.c.h.b16 %v1283
      %v1370 = vunpack.c.l.b16 %v1284
      %v1371 = vunpack.c.h.b16 %v1284
      %v1372 = vunpack.c.l.b16 %v1285
      %v1373 = vunpack.c.h.b16 %v1285
      %v1374 = vunpack.c.l.b16 %v1286
      %v1375 = vunpack.c.h.b16 %v1286
      %v1376 = vunpack.c.l.b16 %v1287
      %v1377 = vunpack.c.h.b16 %v1287
      %v1378 = vunpack.c.l.b16 %v1288
      %v1379 = vunpack.c.h.b16 %v1288
      %v1380 = vunpack.c.l.b16 %v1289
      %v1381 = vunpack.c.h.b16 %v1289
      %v1382 = vunpack.c.l.b16 %v1290
      %v1383 = vunpack.c.h.b16 %v1290
      %v1384 = vunpack.c.l.b16 %v1291
      %v1385 = vunpack.c.h.b16 %v1291
      %v1386 = vunpack.c.l.b16 %v1292
      %v1387 = vunpack.c.h.b16 %v1292
      %v1388 = vunpack.c.l.b16 %v1293
      %v1389 = vunpack.c.h.b16 %v1293
      %v1390 = vpack.c.b16 %v1328, %v1326
      %v1391 = vpack.c.b16 %v1329, %v1327
      %v1392 = vpack.c.b16 %v1332, %v1330
      %v1393 = vpack.c.b16 %v1333, %v1331
      %v1394 = vpack.c.b16 %v1336, %v1334
      %v1395 = vpack.c.b16 %v1337, %v1335
      %v1396 = vpack.c.b16 %v1340, %v1338
      %v1397 = vpack.c.b16 %v1341, %v1339
      %v1398 = vpack.c.b16 %v1344, %v1342
      %v1399 = vpack.c.b16 %v1345, %v1343
      %v1400 = vpack.c.b16 %v1348, %v1346
      %v1401 = vpack.c.b16 %v1349, %v1347
      %v1402 = vpack.c.b16 %v1352, %v1350
      %v1403 = vpack.c.b16 %v1353, %v1351
      %v1404 = vpack.c.b16 %v1356, %v1354
      %v1405 = vpack.c.b16 %v1357, %v1355
      %v1406 = vpack.c.b16 %v1360, %v1358
      %v1407 = vpack.c.b16 %v1361, %v1359
      %v1408 = vpack.c.b16 %v1364, %v1362
      %v1409 = vpack.c.b16 %v1365, %v1363
      %v1410 = vpack.c.b16 %v1368, %v1366
      %v1411 = vpack.c.b16 %v1369, %v1367
      %v1412 = vpack.c.b16 %v1372, %v1370
      %v1413 = vpack.c.b16 %v1373, %v1371
      %v1414 = vpack.c.b16 %v1376, %v1374
      %v1415 = vpack.c.b16 %v1377, %v1375
      %v1416 = vpack.c.b16 %v1380, %v1378
      %v1417 = vpack.c.b16 %v1381, %v1379
      %v1418 = vpack.c.b16 %v1384, %v1382
      %v1419 = vpack.c.b16 %v1385, %v1383
      %v1420 = vpack.c.b16 %v1388, %v1386
      %v1421 = vpack.c.b16 %v1389, %v1387
      %1454 = vmatprep.subr.bf16.mxu0 %v1391
      %1455 = vmatpush1.bf16.msra.mxu0 %v1390
      %1456 = vmatprep.subr.bf16.mxu0 %v1393
      %1457 = vmatpush1.bf16.msra.mxu0 %v1392
      %1458 = vmatprep.subr.bf16.mxu0 %v1395
      %1459 = vmatpush1.bf16.msra.mxu0 %v1394
      %1460 = vmatprep.subr.bf16.mxu0 %v1397
      %1461 = vmatpush1.bf16.msra.mxu0 %v1396
      %1462 = vmatprep.subr.bf16.mxu0 %v1399
      %1463 = vmatpush1.bf16.msra.mxu0 %v1398
      %1464 = vmatprep.subr.bf16.mxu0 %v1401
      %1465 = vmatpush1.bf16.msra.mxu0 %v1400
      %1466 = vmatprep.subr.bf16.mxu0 %v1403
      %1467 = vmatpush1.bf16.msra.mxu0 %v1402
      %1468 = vmatprep.subr.bf16.mxu0 %v1405
      %1469 = vmatpush1.bf16.msra.mxu0 %v1404
      %1470 = vmatprep.subr.bf16.mxu0 %v1407
      %1471 = vmatpush1.bf16.msra.mxu0 %v1406
      %1472 = vmatprep.subr.bf16.mxu0 %v1409
      %1473 = vmatpush1.bf16.msra.mxu0 %v1408
      %1474 = vmatprep.subr.bf16.mxu0 %v1411
      %1475 = vmatpush1.bf16.msra.mxu0 %v1410
      %1476 = vmatprep.subr.bf16.mxu0 %v1413
      %1477 = vmatpush1.bf16.msra.mxu0 %v1412
      %1478 = vmatprep.subr.bf16.mxu0 %v1415
      %1479 = vmatpush1.bf16.msra.mxu0 %v1414
      %1480 = vmatprep.subr.bf16.mxu0 %v1417
      %1481 = vmatpush1.bf16.msra.mxu0 %v1416
      %1482 = vmatprep.subr.bf16.mxu0 %v1419
      %1483 = vmatpush1.bf16.msra.mxu0 %v1418
      %1484 = vmatprep.subr.bf16.mxu0 %v1421
      %1485 = vmatpush1.bf16.msra.mxu0 %v1420
      %1486 = vmatprep.mubr.bf16.mxu0 %v1261
      %1487 = vmatmul.mubr.bf16.gmra.mrb[0].mxu0 %v1260
      %v1488 = vpop.f32.mrb[0].mxu0
      %v1489 = vadd.f32 0.0, %v1488
      %v1490 = vpop.f32.mrb[0].mxu0
      %v1491 = vadd.f32 0.0, %v1490
      %v1492 = vpop.f32.mrb[0].mxu0
      %v1493 = vpop.f32.mrb[0].mxu0
      %1494 = vdwg.mxu0
      %v1495 = vadd.f32 %v441, %v1489
      %v1496 = vadd.f32 %v442, %v1491
      %v1497 = vadd.f32 %v1495, %v1496
      %1498 = vadd.xlane.f32.xlu0 %v1497
      %v1499 = vpop.xlane.xlu0 %1498
      %v1500 = vrcp.pop 256.0
      %v1501 = vmul.f32 %v1499, %v1500
      %v1502 = vsub.f32 %v1495, %v1501
      %v1503 = vsub.f32 %v1496, %v1501
      %v1504 = vmul.f32 %v1502, %v1502
      %v1505 = vmul.f32 %v1503, %v1503
      %v1506 = vadd.f32 %v1504, %v1505
      %1507 = vadd.xlane.f32.xlu0 %v1506
      %v1508 = vpop.xlane.xlu0 %1507
      %v1509 = vmul.f32 %v1508, %v1500
      %v1510 = vadd.f32 %v1509, 1e-05
      %v1511 = vrsqrt.pop %v1510
      %v1512 = vmul.f32 %v1502, %v1511
      %v1513 = vmul.f32 %v1503, %v1511
      %v1514 = vld [vmem:[%s3] sm:$0x3]
      %v1516 = vlaneseq
      %v1517 = vshrl.u32 %v1516, 7
      %v1518 = vsub.s32 0, %v1517
      %v1519 = vrot.slane %v1514, %v1518
      %v1520 = vlaneseq
      %v1521 = vshrl.u32 %v1520, 7
      %v1522 = vsub.s32 1, %v1521
      %v1523 = vrot.slane %v1514, %v1522
      %v1526 = vmul.f32 %v1512, %v1519
      %v1527 = vmul.f32 %v1513, %v1523
      %v1528 = vld [vmem:[%s4] sm:$0x3]
      %v1530 = vlaneseq
      %v1531 = vshrl.u32 %v1530, 7
      %v1532 = vsub.s32 0, %v1531
      %v1533 = vrot.slane %v1528, %v1532
      %v1534 = vlaneseq
      %v1535 = vshrl.u32 %v1534, 7
      %v1536 = vsub.s32 1, %v1535
      %v1537 = vrot.slane %v1528, %v1536
      %v1540 = vadd.f32 %v1526, %v1533
      %v1541 = vadd.f32 %v1527, %v1537
      %v1542 = vpack.c.bf16 %v1540, %v1540
      %v1543 = vpack.c.bf16 %v1541, %v1541
      %v1544 = vld [vmem:[%s5] sm:$0xff]
      %v1545 = vld [vmem:[%s5 + $0x8] sm:$0xff]
      %v1546 = vld [vmem:[%s5 + $0x10] sm:$0xff]
      %v1547 = vld [vmem:[%s5 + $0x18] sm:$0xff]
      %v1548 = vld [vmem:[%s5 + $0x20] sm:$0xff]
      %v1549 = vld [vmem:[%s5 + $0x28] sm:$0xff]
      %v1550 = vld [vmem:[%s5 + $0x30] sm:$0xff]
      %v1551 = vld [vmem:[%s5 + $0x38] sm:$0xff]
      %v1552 = vld [vmem:[%s5 + $0x40] sm:$0xff]
      %v1553 = vld [vmem:[%s5 + $0x48] sm:$0xff]
      %v1554 = vld [vmem:[%s5 + $0x50] sm:$0xff]
      %v1555 = vld [vmem:[%s5 + $0x58] sm:$0xff]
      %v1556 = vld [vmem:[%s5 + $0x60] sm:$0xff]
      %v1557 = vld [vmem:[%s5 + $0x68] sm:$0xff]
      %v1558 = vld [vmem:[%s5 + $0x70] sm:$0xff]
      %v1559 = vld [vmem:[%s5 + $0x78] sm:$0xff]
      %v1560 = vld [vmem:[%s5 + $0x80] sm:$0xff]
      %v1561 = vld [vmem:[%s5 + $0x88] sm:$0xff]
      %v1562 = vld [vmem:[%s5 + $0x90] sm:$0xff]
      %v1563 = vld [vmem:[%s5 + $0x98] sm:$0xff]
      %v1564 = vld [vmem:[%s5 + $0xa0] sm:$0xff]
      %v1565 = vld [vmem:[%s5 + $0xa8] sm:$0xff]
      %v1566 = vld [vmem:[%s5 + $0xb0] sm:$0xff]
      %v1567 = vld [vmem:[%s5 + $0xb8] sm:$0xff]
      %v1568 = vld [vmem:[%s5 + $0xc0] sm:$0xff]
      %v1569 = vld [vmem:[%s5 + $0xc8] sm:$0xff]
      %v1570 = vld [vmem:[%s5 + $0xd0] sm:$0xff]
      %v1571 = vld [vmem:[%s5 + $0xd8] sm:$0xff]
      %v1572 = vld [vmem:[%s5 + $0xe0] sm:$0xff]
      %v1573 = vld [vmem:[%s5 + $0xe8] sm:$0xff]
      %v1574 = vld [vmem:[%s5 + $0xf0] sm:$0xff]
      %v1575 = vld [vmem:[%s5 + $0xf8] sm:$0xff]
      %v1576 = vld [vmem:[%s5 + $0x100] sm:$0xff]
      %v1577 = vld [vmem:[%s5 + $0x108] sm:$0xff]
      %v1578 = vld [vmem:[%s5 + $0x110] sm:$0xff]
      %v1579 = vld [vmem:[%s5 + $0x118] sm:$0xff]
      %v1580 = vld [vmem:[%s5 + $0x120] sm:$0xff]
      %v1581 = vld [vmem:[%s5 + $0x128] sm:$0xff]
      %v1582 = vld [vmem:[%s5 + $0x130] sm:$0xff]
      %v1583 = vld [vmem:[%s5 + $0x138] sm:$0xff]
      %v1584 = vld [vmem:[%s5 + $0x140] sm:$0xff]
      %v1585 = vld [vmem:[%s5 + $0x148] sm:$0xff]
      %v1586 = vld [vmem:[%s5 + $0x150] sm:$0xff]
      %v1587 = vld [vmem:[%s5 + $0x158] sm:$0xff]
      %v1588 = vld [vmem:[%s5 + $0x160] sm:$0xff]
      %v1589 = vld [vmem:[%s5 + $0x168] sm:$0xff]
      %v1590 = vld [vmem:[%s5 + $0x170] sm:$0xff]
      %v1591 = vld [vmem:[%s5 + $0x178] sm:$0xff]
      %v1592 = vld [vmem:[%s5 + $0x180] sm:$0xff]
      %v1593 = vld [vmem:[%s5 + $0x188] sm:$0xff]
      %v1594 = vld [vmem:[%s5 + $0x190] sm:$0xff]
      %v1595 = vld [vmem:[%s5 + $0x198] sm:$0xff]
      %v1596 = vld [vmem:[%s5 + $0x1a0] sm:$0xff]
      %v1597 = vld [vmem:[%s5 + $0x1a8] sm:$0xff]
      %v1598 = vld [vmem:[%s5 + $0x1b0] sm:$0xff]
      %v1599 = vld [vmem:[%s5 + $0x1b8] sm:$0xff]
      %v1600 = vld [vmem:[%s5 + $0x1c0] sm:$0xff]
      %v1601 = vld [vmem:[%s5 + $0x1c8] sm:$0xff]
      %v1602 = vld [vmem:[%s5 + $0x1d0] sm:$0xff]
      %v1603 = vld [vmem:[%s5 + $0x1d8] sm:$0xff]
      %v1604 = vld [vmem:[%s5 + $0x1e0] sm:$0xff]
      %v1605 = vld [vmem:[%s5 + $0x1e8] sm:$0xff]
      %v1606 = vld [vmem:[%s5 + $0x1f0] sm:$0xff]
      %v1607 = vld [vmem:[%s5 + $0x1f8] sm:$0xff]
      %v1608 = vld [vmem:[%s5 + $0x200] sm:$0xff]
      %v1609 = vld [vmem:[%s5 + $0x208] sm:$0xff]
      %v1610 = vld [vmem:[%s5 + $0x210] sm:$0xff]
      %v1611 = vld [vmem:[%s5 + $0x218] sm:$0xff]
      %v1612 = vld [vmem:[%s5 + $0x220] sm:$0xff]
      %v1613 = vld [vmem:[%s5 + $0x228] sm:$0xff]
      %v1614 = vld [vmem:[%s5 + $0x230] sm:$0xff]
      %v1615 = vld [vmem:[%s5 + $0x238] sm:$0xff]
      %v1616 = vld [vmem:[%s5 + $0x240] sm:$0xff]
      %v1617 = vld [vmem:[%s5 + $0x248] sm:$0xff]
      %v1618 = vld [vmem:[%s5 + $0x250] sm:$0xff]
      %v1619 = vld [vmem:[%s5 + $0x258] sm:$0xff]
      %v1620 = vld [vmem:[%s5 + $0x260] sm:$0xff]
      %v1621 = vld [vmem:[%s5 + $0x268] sm:$0xff]
      %v1622 = vld [vmem:[%s5 + $0x270] sm:$0xff]
      %v1623 = vld [vmem:[%s5 + $0x278] sm:$0xff]
      %v1624 = vld [vmem:[%s5 + $0x280] sm:$0xff]
      %v1625 = vld [vmem:[%s5 + $0x288] sm:$0xff]
      %v1626 = vld [vmem:[%s5 + $0x290] sm:$0xff]
      %v1627 = vld [vmem:[%s5 + $0x298] sm:$0xff]
      %v1628 = vld [vmem:[%s5 + $0x2a0] sm:$0xff]
      %v1629 = vld [vmem:[%s5 + $0x2a8] sm:$0xff]
      %v1630 = vld [vmem:[%s5 + $0x2b0] sm:$0xff]
      %v1631 = vld [vmem:[%s5 + $0x2b8] sm:$0xff]
      %v1632 = vld [vmem:[%s5 + $0x2c0] sm:$0xff]
      %v1633 = vld [vmem:[%s5 + $0x2c8] sm:$0xff]
      %v1634 = vld [vmem:[%s5 + $0x2d0] sm:$0xff]
      %v1635 = vld [vmem:[%s5 + $0x2d8] sm:$0xff]
      %v1636 = vld [vmem:[%s5 + $0x2e0] sm:$0xff]
      %v1637 = vld [vmem:[%s5 + $0x2e8] sm:$0xff]
      %v1638 = vld [vmem:[%s5 + $0x2f0] sm:$0xff]
      %v1639 = vld [vmem:[%s5 + $0x2f8] sm:$0xff]
      %v1640 = vld [vmem:[%s5 + $0x300] sm:$0xff]
      %v1641 = vld [vmem:[%s5 + $0x308] sm:$0xff]
      %v1642 = vld [vmem:[%s5 + $0x310] sm:$0xff]
      %v1643 = vld [vmem:[%s5 + $0x318] sm:$0xff]
      %v1644 = vld [vmem:[%s5 + $0x320] sm:$0xff]
      %v1645 = vld [vmem:[%s5 + $0x328] sm:$0xff]
      %v1646 = vld [vmem:[%s5 + $0x330] sm:$0xff]
      %v1647 = vld [vmem:[%s5 + $0x338] sm:$0xff]
      %v1648 = vld [vmem:[%s5 + $0x340] sm:$0xff]
      %v1649 = vld [vmem:[%s5 + $0x348] sm:$0xff]
      %v1650 = vld [vmem:[%s5 + $0x350] sm:$0xff]
      %v1651 = vld [vmem:[%s5 + $0x358] sm:$0xff]
      %v1652 = vld [vmem:[%s5 + $0x360] sm:$0xff]
      %v1653 = vld [vmem:[%s5 + $0x368] sm:$0xff]
      %v1654 = vld [vmem:[%s5 + $0x370] sm:$0xff]
      %v1655 = vld [vmem:[%s5 + $0x378] sm:$0xff]
      %v1656 = vld [vmem:[%s5 + $0x380] sm:$0xff]
      %v1657 = vld [vmem:[%s5 + $0x388] sm:$0xff]
      %v1658 = vld [vmem:[%s5 + $0x390] sm:$0xff]
      %v1659 = vld [vmem:[%s5 + $0x398] sm:$0xff]
      %v1660 = vld [vmem:[%s5 + $0x3a0] sm:$0xff]
      %v1661 = vld [vmem:[%s5 + $0x3a8] sm:$0xff]
      %v1662 = vld [vmem:[%s5 + $0x3b0] sm:$0xff]
      %v1663 = vld [vmem:[%s5 + $0x3b8] sm:$0xff]
      %v1664 = vld [vmem:[%s5 + $0x3c0] sm:$0xff]
      %v1665 = vld [vmem:[%s5 + $0x3c8] sm:$0xff]
      %v1666 = vld [vmem:[%s5 + $0x3d0] sm:$0xff]
      %v1667 = vld [vmem:[%s5 + $0x3d8] sm:$0xff]
      %v1668 = vld [vmem:[%s5 + $0x3e0] sm:$0xff]
      %v1669 = vld [vmem:[%s5 + $0x3e8] sm:$0xff]
      %v1670 = vld [vmem:[%s5 + $0x3f0] sm:$0xff]
      %v1671 = vld [vmem:[%s5 + $0x3f8] sm:$0xff]
      %v1672 = vld [vmem:[%s6] sm:$0xff]
      %v1674 = vlaneseq
      %v1675 = vshrl.u32 %v1674, 7
      %v1676 = vsub.s32 0, %v1675
      %v1677 = vrot.slane %v1672, %v1676
      %v1678 = vlaneseq
      %v1679 = vshrl.u32 %v1678, 7
      %v1680 = vsub.s32 1, %v1679
      %v1681 = vrot.slane %v1672, %v1680
      %v1682 = vlaneseq
      %v1683 = vshrl.u32 %v1682, 7
      %v1684 = vsub.s32 2, %v1683
      %v1685 = vrot.slane %v1672, %v1684
      %v1686 = vlaneseq
      %v1687 = vshrl.u32 %v1686, 7
      %v1688 = vsub.s32 3, %v1687
      %v1689 = vrot.slane %v1672, %v1688
      %v1690 = vlaneseq
      %v1691 = vshrl.u32 %v1690, 7
      %v1692 = vsub.s32 4, %v1691
      %v1693 = vrot.slane %v1672, %v1692
      %v1694 = vlaneseq
      %v1695 = vshrl.u32 %v1694, 7
      %v1696 = vsub.s32 5, %v1695
      %v1697 = vrot.slane %v1672, %v1696
      %v1698 = vlaneseq
      %v1699 = vshrl.u32 %v1698, 7
      %v1700 = vsub.s32 6, %v1699
      %v1701 = vrot.slane %v1672, %v1700
      %v1702 = vlaneseq
      %v1703 = vshrl.u32 %v1702, 7
      %v1704 = vsub.s32 7, %v1703
      %v1705 = vrot.slane %v1672, %v1704
      %v1842 = vunpack.c.l.b16 %v1544
      %v1843 = vunpack.c.h.b16 %v1544
      %v1844 = vunpack.c.l.b16 %v1545
      %v1845 = vunpack.c.h.b16 %v1545
      %v1846 = vunpack.c.l.b16 %v1546
      %v1847 = vunpack.c.h.b16 %v1546
      %v1848 = vunpack.c.l.b16 %v1547
      %v1849 = vunpack.c.h.b16 %v1547
      %v1850 = vunpack.c.l.b16 %v1548
      %v1851 = vunpack.c.h.b16 %v1548
      %v1852 = vunpack.c.l.b16 %v1549
      %v1853 = vunpack.c.h.b16 %v1549
      %v1854 = vunpack.c.l.b16 %v1550
      %v1855 = vunpack.c.h.b16 %v1550
      %v1856 = vunpack.c.l.b16 %v1551
      %v1857 = vunpack.c.h.b16 %v1551
      %v1858 = vunpack.c.l.b16 %v1552
      %v1859 = vunpack.c.h.b16 %v1552
      %v1860 = vunpack.c.l.b16 %v1553
      %v1861 = vunpack.c.h.b16 %v1553
      %v1862 = vunpack.c.l.b16 %v1554
      %v1863 = vunpack.c.h.b16 %v1554
      %v1864 = vunpack.c.l.b16 %v1555
      %v1865 = vunpack.c.h.b16 %v1555
      %v1866 = vunpack.c.l.b16 %v1556
      %v1867 = vunpack.c.h.b16 %v1556
      %v1868 = vunpack.c.l.b16 %v1557
      %v1869 = vunpack.c.h.b16 %v1557
      %v1870 = vunpack.c.l.b16 %v1558
      %v1871 = vunpack.c.h.b16 %v1558
      %v1872 = vunpack.c.l.b16 %v1559
      %v1873 = vunpack.c.h.b16 %v1559
      %v1874 = vunpack.c.l.b16 %v1560
      %v1875 = vunpack.c.h.b16 %v1560
      %v1876 = vunpack.c.l.b16 %v1561
      %v1877 = vunpack.c.h.b16 %v1561
      %v1878 = vunpack.c.l.b16 %v1562
      %v1879 = vunpack.c.h.b16 %v1562
      %v1880 = vunpack.c.l.b16 %v1563
      %v1881 = vunpack.c.h.b16 %v1563
      %v1882 = vunpack.c.l.b16 %v1564
      %v1883 = vunpack.c.h.b16 %v1564
      %v1884 = vunpack.c.l.b16 %v1565
      %v1885 = vunpack.c.h.b16 %v1565
      %v1886 = vunpack.c.l.b16 %v1566
      %v1887 = vunpack.c.h.b16 %v1566
      %v1888 = vunpack.c.l.b16 %v1567
      %v1889 = vunpack.c.h.b16 %v1567
      %v1890 = vunpack.c.l.b16 %v1568
      %v1891 = vunpack.c.h.b16 %v1568
      %v1892 = vunpack.c.l.b16 %v1569
      %v1893 = vunpack.c.h.b16 %v1569
      %v1894 = vunpack.c.l.b16 %v1570
      %v1895 = vunpack.c.h.b16 %v1570
      %v1896 = vunpack.c.l.b16 %v1571
      %v1897 = vunpack.c.h.b16 %v1571
      %v1898 = vunpack.c.l.b16 %v1572
      %v1899 = vunpack.c.h.b16 %v1572
      %v1900 = vunpack.c.l.b16 %v1573
      %v1901 = vunpack.c.h.b16 %v1573
      %v1902 = vunpack.c.l.b16 %v1574
      %v1903 = vunpack.c.h.b16 %v1574
      %v1904 = vunpack.c.l.b16 %v1575
      %v1905 = vunpack.c.h.b16 %v1575
      %v1906 = vunpack.c.l.b16 %v1576
      %v1907 = vunpack.c.h.b16 %v1576
      %v1908 = vunpack.c.l.b16 %v1577
      %v1909 = vunpack.c.h.b16 %v1577
      %v1910 = vunpack.c.l.b16 %v1578
      %v1911 = vunpack.c.h.b16 %v1578
      %v1912 = vunpack.c.l.b16 %v1579
      %v1913 = vunpack.c.h.b16 %v1579
      %v1914 = vunpack.c.l.b16 %v1580
      %v1915 = vunpack.c.h.b16 %v1580
      %v1916 = vunpack.c.l.b16 %v1581
      %v1917 = vunpack.c.h.b16 %v1581
      %v1918 = vunpack.c.l.b16 %v1582
      %v1919 = vunpack.c.h.b16 %v1582
      %v1920 = vunpack.c.l.b16 %v1583
      %v1921 = vunpack.c.h.b16 %v1583
      %v1922 = vunpack.c.l.b16 %v1584
      %v1923 = vunpack.c.h.b16 %v1584
      %v1924 = vunpack.c.l.b16 %v1585
      %v1925 = vunpack.c.h.b16 %v1585
      %v1926 = vunpack.c.l.b16 %v1586
      %v1927 = vunpack.c.h.b16 %v1586
      %v1928 = vunpack.c.l.b16 %v1587
      %v1929 = vunpack.c.h.b16 %v1587
      %v1930 = vunpack.c.l.b16 %v1588
      %v1931 = vunpack.c.h.b16 %v1588
      %v1932 = vunpack.c.l.b16 %v1589
      %v1933 = vunpack.c.h.b16 %v1589
      %v1934 = vunpack.c.l.b16 %v1590
      %v1935 = vunpack.c.h.b16 %v1590
      %v1936 = vunpack.c.l.b16 %v1591
      %v1937 = vunpack.c.h.b16 %v1591
      %v1938 = vunpack.c.l.b16 %v1592
      %v1939 = vunpack.c.h.b16 %v1592
      %v1940 = vunpack.c.l.b16 %v1593
      %v1941 = vunpack.c.h.b16 %v1593
      %v1942 = vunpack.c.l.b16 %v1594
      %v1943 = vunpack.c.h.b16 %v1594
      %v1944 = vunpack.c.l.b16 %v1595
      %v1945 = vunpack.c.h.b16 %v1595
      %v1946 = vunpack.c.l.b16 %v1596
      %v1947 = vunpack.c.h.b16 %v1596
      %v1948 = vunpack.c.l.b16 %v1597
      %v1949 = vunpack.c.h.b16 %v1597
      %v1950 = vunpack.c.l.b16 %v1598
      %v1951 = vunpack.c.h.b16 %v1598
      %v1952 = vunpack.c.l.b16 %v1599
      %v1953 = vunpack.c.h.b16 %v1599
      %v1954 = vunpack.c.l.b16 %v1600
      %v1955 = vunpack.c.h.b16 %v1600
      %v1956 = vunpack.c.l.b16 %v1601
      %v1957 = vunpack.c.h.b16 %v1601
      %v1958 = vunpack.c.l.b16 %v1602
      %v1959 = vunpack.c.h.b16 %v1602
      %v1960 = vunpack.c.l.b16 %v1603
      %v1961 = vunpack.c.h.b16 %v1603
      %v1962 = vunpack.c.l.b16 %v1604
      %v1963 = vunpack.c.h.b16 %v1604
      %v1964 = vunpack.c.l.b16 %v1605
      %v1965 = vunpack.c.h.b16 %v1605
      %v1966 = vunpack.c.l.b16 %v1606
      %v1967 = vunpack.c.h.b16 %v1606
      %v1968 = vunpack.c.l.b16 %v1607
      %v1969 = vunpack.c.h.b16 %v1607
      %v1970 = vunpack.c.l.b16 %v1608
      %v1971 = vunpack.c.h.b16 %v1608
      %v1972 = vunpack.c.l.b16 %v1609
      %v1973 = vunpack.c.h.b16 %v1609
      %v1974 = vunpack.c.l.b16 %v1610
      %v1975 = vunpack.c.h.b16 %v1610
      %v1976 = vunpack.c.l.b16 %v1611
      %v1977 = vunpack.c.h.b16 %v1611
      %v1978 = vunpack.c.l.b16 %v1612
      %v1979 = vunpack.c.h.b16 %v1612
      %v1980 = vunpack.c.l.b16 %v1613
      %v1981 = vunpack.c.h.b16 %v1613
      %v1982 = vunpack.c.l.b16 %v1614
      %v1983 = vunpack.c.h.b16 %v1614
      %v1984 = vunpack.c.l.b16 %v1615
      %v1985 = vunpack.c.h.b16 %v1615
      %v1986 = vunpack.c.l.b16 %v1616
      %v1987 = vunpack.c.h.b16 %v1616
      %v1988 = vunpack.c.l.b16 %v1617
      %v1989 = vunpack.c.h.b16 %v1617
      %v1990 = vunpack.c.l.b16 %v1618
      %v1991 = vunpack.c.h.b16 %v1618
      %v1992 = vunpack.c.l.b16 %v1619
      %v1993 = vunpack.c.h.b16 %v1619
      %v1994 = vunpack.c.l.b16 %v1620
      %v1995 = vunpack.c.h.b16 %v1620
      %v1996 = vunpack.c.l.b16 %v1621
      %v1997 = vunpack.c.h.b16 %v1621
      %v1998 = vunpack.c.l.b16 %v1622
      %v1999 = vunpack.c.h.b16 %v1622
      %v2000 = vunpack.c.l.b16 %v1623
      %v2001 = vunpack.c.h.b16 %v1623
      %v2002 = vunpack.c.l.b16 %v1624
      %v2003 = vunpack.c.h.b16 %v1624
      %v2004 = vunpack.c.l.b16 %v1625
      %v2005 = vunpack.c.h.b16 %v1625
      %v2006 = vunpack.c.l.b16 %v1626
      %v2007 = vunpack.c.h.b16 %v1626
      %v2008 = vunpack.c.l.b16 %v1627
      %v2009 = vunpack.c.h.b16 %v1627
      %v2010 = vunpack.c.l.b16 %v1628
      %v2011 = vunpack.c.h.b16 %v1628
      %v2012 = vunpack.c.l.b16 %v1629
      %v2013 = vunpack.c.h.b16 %v1629
      %v2014 = vunpack.c.l.b16 %v1630
      %v2015 = vunpack.c.h.b16 %v1630
      %v2016 = vunpack.c.l.b16 %v1631
      %v2017 = vunpack.c.h.b16 %v1631
      %v2018 = vunpack.c.l.b16 %v1632
      %v2019 = vunpack.c.h.b16 %v1632
      %v2020 = vunpack.c.l.b16 %v1633
      %v2021 = vunpack.c.h.b16 %v1633
      %v2022 = vunpack.c.l.b16 %v1634
      %v2023 = vunpack.c.h.b16 %v1634
      %v2024 = vunpack.c.l.b16 %v1635
      %v2025 = vunpack.c.h.b16 %v1635
      %v2026 = vunpack.c.l.b16 %v1636
      %v2027 = vunpack.c.h.b16 %v1636
      %v2028 = vunpack.c.l.b16 %v1637
      %v2029 = vunpack.c.h.b16 %v1637
      %v2030 = vunpack.c.l.b16 %v1638
      %v2031 = vunpack.c.h.b16 %v1638
      %v2032 = vunpack.c.l.b16 %v1639
      %v2033 = vunpack.c.h.b16 %v1639
      %v2034 = vunpack.c.l.b16 %v1640
      %v2035 = vunpack.c.h.b16 %v1640
      %v2036 = vunpack.c.l.b16 %v1641
      %v2037 = vunpack.c.h.b16 %v1641
      %v2038 = vunpack.c.l.b16 %v1642
      %v2039 = vunpack.c.h.b16 %v1642
      %v2040 = vunpack.c.l.b16 %v1643
      %v2041 = vunpack.c.h.b16 %v1643
      %v2042 = vunpack.c.l.b16 %v1644
      %v2043 = vunpack.c.h.b16 %v1644
      %v2044 = vunpack.c.l.b16 %v1645
      %v2045 = vunpack.c.h.b16 %v1645
      %v2046 = vunpack.c.l.b16 %v1646
      %v2047 = vunpack.c.h.b16 %v1646
      %v2048 = vunpack.c.l.b16 %v1647
      %v2049 = vunpack.c.h.b16 %v1647
      %v2050 = vunpack.c.l.b16 %v1648
      %v2051 = vunpack.c.h.b16 %v1648
      %v2052 = vunpack.c.l.b16 %v1649
      %v2053 = vunpack.c.h.b16 %v1649
      %v2054 = vunpack.c.l.b16 %v1650
      %v2055 = vunpack.c.h.b16 %v1650
      %v2056 = vunpack.c.l.b16 %v1651
      %v2057 = vunpack.c.h.b16 %v1651
      %v2058 = vunpack.c.l.b16 %v1652
      %v2059 = vunpack.c.h.b16 %v1652
      %v2060 = vunpack.c.l.b16 %v1653
      %v2061 = vunpack.c.h.b16 %v1653
      %v2062 = vunpack.c.l.b16 %v1654
      %v2063 = vunpack.c.h.b16 %v1654
      %v2064 = vunpack.c.l.b16 %v1655
      %v2065 = vunpack.c.h.b16 %v1655
      %v2066 = vunpack.c.l.b16 %v1656
      %v2067 = vunpack.c.h.b16 %v1656
      %v2068 = vunpack.c.l.b16 %v1657
      %v2069 = vunpack.c.h.b16 %v1657
      %v2070 = vunpack.c.l.b16 %v1658
      %v2071 = vunpack.c.h.b16 %v1658
      %v2072 = vunpack.c.l.b16 %v1659
      %v2073 = vunpack.c.h.b16 %v1659
      %v2074 = vunpack.c.l.b16 %v1660
      %v2075 = vunpack.c.h.b16 %v1660
      %v2076 = vunpack.c.l.b16 %v1661
      %v2077 = vunpack.c.h.b16 %v1661
      %v2078 = vunpack.c.l.b16 %v1662
      %v2079 = vunpack.c.h.b16 %v1662
      %v2080 = vunpack.c.l.b16 %v1663
      %v2081 = vunpack.c.h.b16 %v1663
      %v2082 = vunpack.c.l.b16 %v1664
      %v2083 = vunpack.c.h.b16 %v1664
      %v2084 = vunpack.c.l.b16 %v1665
      %v2085 = vunpack.c.h.b16 %v1665
      %v2086 = vunpack.c.l.b16 %v1666
      %v2087 = vunpack.c.h.b16 %v1666
      %v2088 = vunpack.c.l.b16 %v1667
      %v2089 = vunpack.c.h.b16 %v1667
      %v2090 = vunpack.c.l.b16 %v1668
      %v2091 = vunpack.c.h.b16 %v1668
      %v2092 = vunpack.c.l.b16 %v1669
      %v2093 = vunpack.c.h.b16 %v1669
      %v2094 = vunpack.c.l.b16 %v1670
      %v2095 = vunpack.c.h.b16 %v1670
      %v2096 = vunpack.c.l.b16 %v1671
      %v2097 = vunpack.c.h.b16 %v1671
      %v2098 = vpack.c.b16 %v1850, %v1842
      %v2099 = vpack.c.b16 %v1851, %v1843
      %v2100 = vpack.c.b16 %v1852, %v1844
      %v2101 = vpack.c.b16 %v1853, %v1845
      %v2102 = vpack.c.b16 %v1854, %v1846
      %v2103 = vpack.c.b16 %v1855, %v1847
      %v2104 = vpack.c.b16 %v1856, %v1848
      %v2105 = vpack.c.b16 %v1857, %v1849
      %v2106 = vpack.c.b16 %v1866, %v1858
      %v2107 = vpack.c.b16 %v1867, %v1859
      %v2108 = vpack.c.b16 %v1868, %v1860
      %v2109 = vpack.c.b16 %v1869, %v1861
      %v2110 = vpack.c.b16 %v1870, %v1862
      %v2111 = vpack.c.b16 %v1871, %v1863
      %v2112 = vpack.c.b16 %v1872, %v1864
      %v2113 = vpack.c.b16 %v1873, %v1865
      %v2114 = vpack.c.b16 %v1882, %v1874
      %v2115 = vpack.c.b16 %v1883, %v1875
      %v2116 = vpack.c.b16 %v1884, %v1876
      %v2117 = vpack.c.b16 %v1885, %v1877
      %v2118 = vpack.c.b16 %v1886, %v1878
      %v2119 = vpack.c.b16 %v1887, %v1879
      %v2120 = vpack.c.b16 %v1888, %v1880
      %v2121 = vpack.c.b16 %v1889, %v1881
      %v2122 = vpack.c.b16 %v1898, %v1890
      %v2123 = vpack.c.b16 %v1899, %v1891
      %v2124 = vpack.c.b16 %v1900, %v1892
      %v2125 = vpack.c.b16 %v1901, %v1893
      %v2126 = vpack.c.b16 %v1902, %v1894
      %v2127 = vpack.c.b16 %v1903, %v1895
      %v2128 = vpack.c.b16 %v1904, %v1896
      %v2129 = vpack.c.b16 %v1905, %v1897
      %v2130 = vpack.c.b16 %v1914, %v1906
      %v2131 = vpack.c.b16 %v1915, %v1907
      %v2132 = vpack.c.b16 %v1916, %v1908
      %v2133 = vpack.c.b16 %v1917, %v1909
      %v2134 = vpack.c.b16 %v1918, %v1910
      %v2135 = vpack.c.b16 %v1919, %v1911
      %v2136 = vpack.c.b16 %v1920, %v1912
      %v2137 = vpack.c.b16 %v1921, %v1913
      %v2138 = vpack.c.b16 %v1930, %v1922
      %v2139 = vpack.c.b16 %v1931, %v1923
      %v2140 = vpack.c.b16 %v1932, %v1924
      %v2141 = vpack.c.b16 %v1933, %v1925
      %v2142 = vpack.c.b16 %v1934, %v1926
      %v2143 = vpack.c.b16 %v1935, %v1927
      %v2144 = vpack.c.b16 %v1936, %v1928
      %v2145 = vpack.c.b16 %v1937, %v1929
      %v2146 = vpack.c.b16 %v1946, %v1938
      %v2147 = vpack.c.b16 %v1947, %v1939
      %v2148 = vpack.c.b16 %v1948, %v1940
      %v2149 = vpack.c.b16 %v1949, %v1941
      %v2150 = vpack.c.b16 %v1950, %v1942
      %v2151 = vpack.c.b16 %v1951, %v1943
      %v2152 = vpack.c.b16 %v1952, %v1944
      %v2153 = vpack.c.b16 %v1953, %v1945
      %v2154 = vpack.c.b16 %v1962, %v1954
      %v2155 = vpack.c.b16 %v1963, %v1955
      %v2156 = vpack.c.b16 %v1964, %v1956
      %v2157 = vpack.c.b16 %v1965, %v1957
      %v2158 = vpack.c.b16 %v1966, %v1958
      %v2159 = vpack.c.b16 %v1967, %v1959
      %v2160 = vpack.c.b16 %v1968, %v1960
      %v2161 = vpack.c.b16 %v1969, %v1961
      %v2162 = vpack.c.b16 %v1978, %v1970
      %v2163 = vpack.c.b16 %v1979, %v1971
      %v2164 = vpack.c.b16 %v1980, %v1972
      %v2165 = vpack.c.b16 %v1981, %v1973
      %v2166 = vpack.c.b16 %v1982, %v1974
      %v2167 = vpack.c.b16 %v1983, %v1975
      %v2168 = vpack.c.b16 %v1984, %v1976
      %v2169 = vpack.c.b16 %v1985, %v1977
      %v2170 = vpack.c.b16 %v1994, %v1986
      %v2171 = vpack.c.b16 %v1995, %v1987
      %v2172 = vpack.c.b16 %v1996, %v1988
      %v2173 = vpack.c.b16 %v1997, %v1989
      %v2174 = vpack.c.b16 %v1998, %v1990
      %v2175 = vpack.c.b16 %v1999, %v1991
      %v2176 = vpack.c.b16 %v2000, %v1992
      %v2177 = vpack.c.b16 %v2001, %v1993
      %v2178 = vpack.c.b16 %v2010, %v2002
      %v2179 = vpack.c.b16 %v2011, %v2003
      %v2180 = vpack.c.b16 %v2012, %v2004
      %v2181 = vpack.c.b16 %v2013, %v2005
      %v2182 = vpack.c.b16 %v2014, %v2006
      %v2183 = vpack.c.b16 %v2015, %v2007
      %v2184 = vpack.c.b16 %v2016, %v2008
      %v2185 = vpack.c.b16 %v2017, %v2009
      %v2186 = vpack.c.b16 %v2026, %v2018
      %v2187 = vpack.c.b16 %v2027, %v2019
      %v2188 = vpack.c.b16 %v2028, %v2020
      %v2189 = vpack.c.b16 %v2029, %v2021
      %v2190 = vpack.c.b16 %v2030, %v2022
      %v2191 = vpack.c.b16 %v2031, %v2023
      %v2192 = vpack.c.b16 %v2032, %v2024
      %v2193 = vpack.c.b16 %v2033, %v2025
      %v2194 = vpack.c.b16 %v2042, %v2034
      %v2195 = vpack.c.b16 %v2043, %v2035
      %v2196 = vpack.c.b16 %v2044, %v2036
      %v2197 = vpack.c.b16 %v2045, %v2037
      %v2198 = vpack.c.b16 %v2046, %v2038
      %v2199 = vpack.c.b16 %v2047, %v2039
      %v2200 = vpack.c.b16 %v2048, %v2040
      %v2201 = vpack.c.b16 %v2049, %v2041
      %v2202 = vpack.c.b16 %v2058, %v2050
      %v2203 = vpack.c.b16 %v2059, %v2051
      %v2204 = vpack.c.b16 %v2060, %v2052
      %v2205 = vpack.c.b16 %v2061, %v2053
      %v2206 = vpack.c.b16 %v2062, %v2054
      %v2207 = vpack.c.b16 %v2063, %v2055
      %v2208 = vpack.c.b16 %v2064, %v2056
      %v2209 = vpack.c.b16 %v2065, %v2057
      %v2210 = vpack.c.b16 %v2074, %v2066
      %v2211 = vpack.c.b16 %v2075, %v2067
      %v2212 = vpack.c.b16 %v2076, %v2068
      %v2213 = vpack.c.b16 %v2077, %v2069
      %v2214 = vpack.c.b16 %v2078, %v2070
      %v2215 = vpack.c.b16 %v2079, %v2071
      %v2216 = vpack.c.b16 %v2080, %v2072
      %v2217 = vpack.c.b16 %v2081, %v2073
      %v2218 = vpack.c.b16 %v2090, %v2082
      %v2219 = vpack.c.b16 %v2091, %v2083
      %v2220 = vpack.c.b16 %v2092, %v2084
      %v2221 = vpack.c.b16 %v2093, %v2085
      %v2222 = vpack.c.b16 %v2094, %v2086
      %v2223 = vpack.c.b16 %v2095, %v2087
      %v2224 = vpack.c.b16 %v2096, %v2088
      %v2225 = vpack.c.b16 %v2097, %v2089
      %2354 = vmatprep.subr.bf16.mxu0 %v2099
      %2355 = vmatpush1.bf16.msra.mxu0 %v2098
      %2356 = vmatprep.subr.bf16.mxu0 %v2107
      %2357 = vmatpush1.bf16.msra.mxu0 %v2106
      %2358 = vmatprep.subr.bf16.mxu0 %v2115
      %2359 = vmatpush1.bf16.msra.mxu0 %v2114
      %2360 = vmatprep.subr.bf16.mxu0 %v2123
      %2361 = vmatpush1.bf16.msra.mxu0 %v2122
      %2362 = vmatprep.subr.bf16.mxu0 %v2131
      %2363 = vmatpush1.bf16.msra.mxu0 %v2130
      %2364 = vmatprep.subr.bf16.mxu0 %v2139
      %2365 = vmatpush1.bf16.msra.mxu0 %v2138
      %2366 = vmatprep.subr.bf16.mxu0 %v2147
      %2367 = vmatpush1.bf16.msra.mxu0 %v2146
      %2368 = vmatprep.subr.bf16.mxu0 %v2155
      %2369 = vmatpush1.bf16.msra.mxu0 %v2154
      %2370 = vmatprep.subr.bf16.mxu0 %v2163
      %2371 = vmatpush1.bf16.msra.mxu0 %v2162
      %2372 = vmatprep.subr.bf16.mxu0 %v2171
      %2373 = vmatpush1.bf16.msra.mxu0 %v2170
      %2374 = vmatprep.subr.bf16.mxu0 %v2179
      %2375 = vmatpush1.bf16.msra.mxu0 %v2178
      %2376 = vmatprep.subr.bf16.mxu0 %v2187
      %2377 = vmatpush1.bf16.msra.mxu0 %v2186
      %2378 = vmatprep.subr.bf16.mxu0 %v2195
      %2379 = vmatpush1.bf16.msra.mxu0 %v2194
      %2380 = vmatprep.subr.bf16.mxu0 %v2203
      %2381 = vmatpush1.bf16.msra.mxu0 %v2202
      %2382 = vmatprep.subr.bf16.mxu0 %v2211
      %2383 = vmatpush1.bf16.msra.mxu0 %v2210
      %2384 = vmatprep.subr.bf16.mxu0 %v2219
      %2385 = vmatpush1.bf16.msra.mxu0 %v2218
      %2386 = vmatprep.mubr.bf16.mxu0 %v1543
      %2387 = vmatmul.mubr.bf16.gmra.mrb[0].mxu0 %v1542
      %v2388 = vpop.f32.mrb[0].mxu0
      %v2389 = vadd.f32 %v1677, %v2388
      %v2390 = vpop.f32.mrb[0].mxu0
      %v2391 = vadd.f32 %v1681, %v2390
      %v2392 = vpop.f32.mrb[0].mxu0
      %v2393 = vpop.f32.mrb[0].mxu0
      %2394 = vdwg.mxu0
      %2395 = vmatprep.subr.bf16.mxu0 %v2101
      %2396 = vmatpush1.bf16.msra.mxu0 %v2100
      %2397 = vmatprep.subr.bf16.mxu0 %v2109
      %2398 = vmatpush1.bf16.msra.mxu0 %v2108
      %2399 = vmatprep.subr.bf16.mxu0 %v2117
      %2400 = vmatpush1.bf16.msra.mxu0 %v2116
      %2401 = vmatprep.subr.bf16.mxu0 %v2125
      %2402 = vmatpush1.bf16.msra.mxu0 %v2124
      %2403 = vmatprep.subr.bf16.mxu0 %v2133
      %2404 = vmatpush1.bf16.msra.mxu0 %v2132
      %2405 = vmatprep.subr.bf16.mxu0 %v2141
      %2406 = vmatpush1.bf16.msra.mxu0 %v2140
      %2407 = vmatprep.subr.bf16.mxu0 %v2149
      %2408 = vmatpush1.bf16.msra.mxu0 %v2148
      %2409 = vmatprep.subr.bf16.mxu0 %v2157
      %2410 = vmatpush1.bf16.msra.mxu0 %v2156
      %2411 = vmatprep.subr.bf16.mxu0 %v2165
      %2412 = vmatpush1.bf16.msra.mxu0 %v2164
      %2413 = vmatprep.subr.bf16.mxu0 %v2173
      %2414 = vmatpush1.bf16.msra.mxu0 %v2172
      %2415 = vmatprep.subr.bf16.mxu0 %v2181
      %2416 = vmatpush1.bf16.msra.mxu0 %v2180
      %2417 = vmatprep.subr.bf16.mxu0 %v2189
      %2418 = vmatpush1.bf16.msra.mxu0 %v2188
      %2419 = vmatprep.subr.bf16.mxu0 %v2197
      %2420 = vmatpush1.bf16.msra.mxu0 %v2196
      %2421 = vmatprep.subr.bf16.mxu0 %v2205
      %2422 = vmatpush1.bf16.msra.mxu0 %v2204
      %2423 = vmatprep.subr.bf16.mxu0 %v2213
      %2424 = vmatpush1.bf16.msra.mxu0 %v2212
      %2425 = vmatprep.subr.bf16.mxu0 %v2221
      %2426 = vmatpush1.bf16.msra.mxu0 %v2220
      %2427 = vmatprep.mubr.bf16.mxu0 %v1543
      %2428 = vmatmul.mubr.bf16.gmra.mrb[0].mxu0 %v1542
      %v2429 = vpop.f32.mrb[0].mxu0
      %v2430 = vadd.f32 %v1685, %v2429
      %v2431 = vpop.f32.mrb[0].mxu0
      %v2432 = vadd.f32 %v1689, %v2431
      %v2433 = vpop.f32.mrb[0].mxu0
      %v2434 = vpop.f32.mrb[0].mxu0
      %2435 = vdwg.mxu0
      %2436 = vmatprep.subr.bf16.mxu0 %v2103
      %2437 = vmatpush1.bf16.msra.mxu0 %v2102
      %2438 = vmatprep.subr.bf16.mxu0 %v2111
      %2439 = vmatpush1.bf16.msra.mxu0 %v2110
      %2440 = vmatprep.subr.bf16.mxu0 %v2119
      %2441 = vmatpush1.bf16.msra.mxu0 %v2118
      %2442 = vmatprep.subr.bf16.mxu0 %v2127
      %2443 = vmatpush1.bf16.msra.mxu0 %v2126
      %2444 = vmatprep.subr.bf16.mxu0 %v2135
      %2445 = vmatpush1.bf16.msra.mxu0 %v2134
      %2446 = vmatprep.subr.bf16.mxu0 %v2143
      %2447 = vmatpush1.bf16.msra.mxu0 %v2142
      %2448 = vmatprep.subr.bf16.mxu0 %v2151
      %2449 = vmatpush1.bf16.msra.mxu0 %v2150
      %2450 = vmatprep.subr.bf16.mxu0 %v2159
      %2451 = vmatpush1.bf16.msra.mxu0 %v2158
      %2452 = vmatprep.subr.bf16.mxu0 %v2167
      %2453 = vmatpush1.bf16.msra.mxu0 %v2166
      %2454 = vmatprep.subr.bf16.mxu0 %v2175
      %2455 = vmatpush1.bf16.msra.mxu0 %v2174
      %2456 = vmatprep.subr.bf16.mxu0 %v2183
      %2457 = vmatpush1.bf16.msra.mxu0 %v2182
      %2458 = vmatprep.subr.bf16.mxu0 %v2191
      %2459 = vmatpush1.bf16.msra.mxu0 %v2190
      %2460 = vmatprep.subr.bf16.mxu0 %v2199
      %2461 = vmatpush1.bf16.msra.mxu0 %v2198
      %2462 = vmatprep.subr.bf16.mxu0 %v2207
      %2463 = vmatpush1.bf16.msra.mxu0 %v2206
      %2464 = vmatprep.subr.bf16.mxu0 %v2215
      %2465 = vmatpush1.bf16.msra.mxu0 %v2214
      %2466 = vmatprep.subr.bf16.mxu0 %v2223
      %2467 = vmatpush1.bf16.msra.mxu0 %v2222
      %2468 = vmatprep.mubr.bf16.mxu0 %v1543
      %2469 = vmatmul.mubr.bf16.gmra.mrb[0].mxu0 %v1542
      %v2470 = vpop.f32.mrb[0].mxu0
      %v2471 = vadd.f32 %v1693, %v2470
      %v2472 = vpop.f32.mrb[0].mxu0
      %v2473 = vadd.f32 %v1697, %v2472
      %v2474 = vpop.f32.mrb[0].mxu0
      %v2475 = vpop.f32.mrb[0].mxu0
      %2476 = vdwg.mxu0
      %2477 = vmatprep.subr.bf16.mxu0 %v2105
      %2478 = vmatpush1.bf16.msra.mxu0 %v2104
      %2479 = vmatprep.subr.bf16.mxu0 %v2113
      %2480 = vmatpush1.bf16.msra.mxu0 %v2112
      %2481 = vmatprep.subr.bf16.mxu0 %v2121
      %2482 = vmatpush1.bf16.msra.mxu0 %v2120
      %2483 = vmatprep.subr.bf16.mxu0 %v2129
      %2484 = vmatpush1.bf16.msra.mxu0 %v2128
      %2485 = vmatprep.subr.bf16.mxu0 %v2137
      %2486 = vmatpush1.bf16.msra.mxu0 %v2136
      %2487 = vmatprep.subr.bf16.mxu0 %v2145
      %2488 = vmatpush1.bf16.msra.mxu0 %v2144
      %2489 = vmatprep.subr.bf16.mxu0 %v2153
      %2490 = vmatpush1.bf16.msra.mxu0 %v2152
      %2491 = vmatprep.subr.bf16.mxu0 %v2161
      %2492 = vmatpush1.bf16.msra.mxu0 %v2160
      %2493 = vmatprep.subr.bf16.mxu0 %v2169
      %2494 = vmatpush1.bf16.msra.mxu0 %v2168
      %2495 = vmatprep.subr.bf16.mxu0 %v2177
      %2496 = vmatpush1.bf16.msra.mxu0 %v2176
      %2497 = vmatprep.subr.bf16.mxu0 %v2185
      %2498 = vmatpush1.bf16.msra.mxu0 %v2184
      %2499 = vmatprep.subr.bf16.mxu0 %v2193
      %2500 = vmatpush1.bf16.msra.mxu0 %v2192
      %2501 = vmatprep.subr.bf16.mxu0 %v2201
      %2502 = vmatpush1.bf16.msra.mxu0 %v2200
      %2503 = vmatprep.subr.bf16.mxu0 %v2209
      %2504 = vmatpush1.bf16.msra.mxu0 %v2208
      %2505 = vmatprep.subr.bf16.mxu0 %v2217
      %2506 = vmatpush1.bf16.msra.mxu0 %v2216
      %2507 = vmatprep.subr.bf16.mxu0 %v2225
      %2508 = vmatpush1.bf16.msra.mxu0 %v2224
      %2509 = vmatprep.mubr.bf16.mxu0 %v1543
      %2510 = vmatmul.mubr.bf16.gmra.mrb[0].mxu0 %v1542
      %v2511 = vpop.f32.mrb[0].mxu0
      %v2512 = vadd.f32 %v1701, %v2511
      %v2513 = vpop.f32.mrb[0].mxu0
      %v2514 = vadd.f32 %v1705, %v2513
      %v2515 = vpop.f32.mrb[0].mxu0
      %v2516 = vpop.f32.mrb[0].mxu0
      %2517 = vdwg.mxu0
      %v2518 = vmax.f32 %v2389, 0.0
      %v2519 = vmax.f32 %v2391, 0.0
      %v2520 = vmax.f32 %v2430, 0.0
      %v2521 = vmax.f32 %v2432, 0.0
      %v2522 = vmax.f32 %v2471, 0.0
      %v2523 = vmax.f32 %v2473, 0.0
      %v2524 = vmax.f32 %v2512, 0.0
      %v2525 = vmax.f32 %v2514, 0.0
      %v2526 = vpack.c.bf16 %v2518, %v2518
      %v2527 = vpack.c.bf16 %v2519, %v2519
      %v2528 = vpack.c.bf16 %v2520, %v2520
      %v2529 = vpack.c.bf16 %v2521, %v2521
      %v2530 = vpack.c.bf16 %v2522, %v2522
      %v2531 = vpack.c.bf16 %v2523, %v2523
      %v2532 = vpack.c.bf16 %v2524, %v2524
      %v2533 = vpack.c.bf16 %v2525, %v2525
      %v2534 = vld [vmem:[%s7] sm:$0xff]
      %v2535 = vld [vmem:[%s7 + $0x8] sm:$0xff]
      %v2536 = vld [vmem:[%s7 + $0x10] sm:$0xff]
      %v2537 = vld [vmem:[%s7 + $0x18] sm:$0xff]
      %v2538 = vld [vmem:[%s7 + $0x20] sm:$0xff]
      %v2539 = vld [vmem:[%s7 + $0x28] sm:$0xff]
      %v2540 = vld [vmem:[%s7 + $0x30] sm:$0xff]
      %v2541 = vld [vmem:[%s7 + $0x38] sm:$0xff]
      %v2542 = vld [vmem:[%s7 + $0x40] sm:$0xff]
      %v2543 = vld [vmem:[%s7 + $0x48] sm:$0xff]
      %v2544 = vld [vmem:[%s7 + $0x50] sm:$0xff]
      %v2545 = vld [vmem:[%s7 + $0x58] sm:$0xff]
      %v2546 = vld [vmem:[%s7 + $0x60] sm:$0xff]
      %v2547 = vld [vmem:[%s7 + $0x68] sm:$0xff]
      %v2548 = vld [vmem:[%s7 + $0x70] sm:$0xff]
      %v2549 = vld [vmem:[%s7 + $0x78] sm:$0xff]
      %v2550 = vld [vmem:[%s7 + $0x80] sm:$0xff]
      %v2551 = vld [vmem:[%s7 + $0x88] sm:$0xff]
      %v2552 = vld [vmem:[%s7 + $0x90] sm:$0xff]
      %v2553 = vld [vmem:[%s7 + $0x98] sm:$0xff]
      %v2554 = vld [vmem:[%s7 + $0xa0] sm:$0xff]
      %v2555 = vld [vmem:[%s7 + $0xa8] sm:$0xff]
      %v2556 = vld [vmem:[%s7 + $0xb0] sm:$0xff]
      %v2557 = vld [vmem:[%s7 + $0xb8] sm:$0xff]
      %v2558 = vld [vmem:[%s7 + $0xc0] sm:$0xff]
      %v2559 = vld [vmem:[%s7 + $0xc8] sm:$0xff]
      %v2560 = vld [vmem:[%s7 + $0xd0] sm:$0xff]
      %v2561 = vld [vmem:[%s7 + $0xd8] sm:$0xff]
      %v2562 = vld [vmem:[%s7 + $0xe0] sm:$0xff]
      %v2563 = vld [vmem:[%s7 + $0xe8] sm:$0xff]
      %v2564 = vld [vmem:[%s7 + $0xf0] sm:$0xff]
      %v2565 = vld [vmem:[%s7 + $0xf8] sm:$0xff]
      %v2566 = vld [vmem:[%s7 + $0x100] sm:$0xff]
      %v2567 = vld [vmem:[%s7 + $0x108] sm:$0xff]
      %v2568 = vld [vmem:[%s7 + $0x110] sm:$0xff]
      %v2569 = vld [vmem:[%s7 + $0x118] sm:$0xff]
      %v2570 = vld [vmem:[%s7 + $0x120] sm:$0xff]
      %v2571 = vld [vmem:[%s7 + $0x128] sm:$0xff]
      %v2572 = vld [vmem:[%s7 + $0x130] sm:$0xff]
      %v2573 = vld [vmem:[%s7 + $0x138] sm:$0xff]
      %v2574 = vld [vmem:[%s7 + $0x140] sm:$0xff]
      %v2575 = vld [vmem:[%s7 + $0x148] sm:$0xff]
      %v2576 = vld [vmem:[%s7 + $0x150] sm:$0xff]
      %v2577 = vld [vmem:[%s7 + $0x158] sm:$0xff]
      %v2578 = vld [vmem:[%s7 + $0x160] sm:$0xff]
      %v2579 = vld [vmem:[%s7 + $0x168] sm:$0xff]
      %v2580 = vld [vmem:[%s7 + $0x170] sm:$0xff]
      %v2581 = vld [vmem:[%s7 + $0x178] sm:$0xff]
      %v2582 = vld [vmem:[%s7 + $0x180] sm:$0xff]
      %v2583 = vld [vmem:[%s7 + $0x188] sm:$0xff]
      %v2584 = vld [vmem:[%s7 + $0x190] sm:$0xff]
      %v2585 = vld [vmem:[%s7 + $0x198] sm:$0xff]
      %v2586 = vld [vmem:[%s7 + $0x1a0] sm:$0xff]
      %v2587 = vld [vmem:[%s7 + $0x1a8] sm:$0xff]
      %v2588 = vld [vmem:[%s7 + $0x1b0] sm:$0xff]
      %v2589 = vld [vmem:[%s7 + $0x1b8] sm:$0xff]
      %v2590 = vld [vmem:[%s7 + $0x1c0] sm:$0xff]
      %v2591 = vld [vmem:[%s7 + $0x1c8] sm:$0xff]
      %v2592 = vld [vmem:[%s7 + $0x1d0] sm:$0xff]
      %v2593 = vld [vmem:[%s7 + $0x1d8] sm:$0xff]
      %v2594 = vld [vmem:[%s7 + $0x1e0] sm:$0xff]
      %v2595 = vld [vmem:[%s7 + $0x1e8] sm:$0xff]
      %v2596 = vld [vmem:[%s7 + $0x1f0] sm:$0xff]
      %v2597 = vld [vmem:[%s7 + $0x1f8] sm:$0xff]
      %v2598 = vld [vmem:[%s7 + $0x200] sm:$0xff]
      %v2599 = vld [vmem:[%s7 + $0x208] sm:$0xff]
      %v2600 = vld [vmem:[%s7 + $0x210] sm:$0xff]
      %v2601 = vld [vmem:[%s7 + $0x218] sm:$0xff]
      %v2602 = vld [vmem:[%s7 + $0x220] sm:$0xff]
      %v2603 = vld [vmem:[%s7 + $0x228] sm:$0xff]
      %v2604 = vld [vmem:[%s7 + $0x230] sm:$0xff]
      %v2605 = vld [vmem:[%s7 + $0x238] sm:$0xff]
      %v2606 = vld [vmem:[%s7 + $0x240] sm:$0xff]
      %v2607 = vld [vmem:[%s7 + $0x248] sm:$0xff]
      %v2608 = vld [vmem:[%s7 + $0x250] sm:$0xff]
      %v2609 = vld [vmem:[%s7 + $0x258] sm:$0xff]
      %v2610 = vld [vmem:[%s7 + $0x260] sm:$0xff]
      %v2611 = vld [vmem:[%s7 + $0x268] sm:$0xff]
      %v2612 = vld [vmem:[%s7 + $0x270] sm:$0xff]
      %v2613 = vld [vmem:[%s7 + $0x278] sm:$0xff]
      %v2614 = vld [vmem:[%s7 + $0x280] sm:$0xff]
      %v2615 = vld [vmem:[%s7 + $0x288] sm:$0xff]
      %v2616 = vld [vmem:[%s7 + $0x290] sm:$0xff]
      %v2617 = vld [vmem:[%s7 + $0x298] sm:$0xff]
      %v2618 = vld [vmem:[%s7 + $0x2a0] sm:$0xff]
      %v2619 = vld [vmem:[%s7 + $0x2a8] sm:$0xff]
      %v2620 = vld [vmem:[%s7 + $0x2b0] sm:$0xff]
      %v2621 = vld [vmem:[%s7 + $0x2b8] sm:$0xff]
      %v2622 = vld [vmem:[%s7 + $0x2c0] sm:$0xff]
      %v2623 = vld [vmem:[%s7 + $0x2c8] sm:$0xff]
      %v2624 = vld [vmem:[%s7 + $0x2d0] sm:$0xff]
      %v2625 = vld [vmem:[%s7 + $0x2d8] sm:$0xff]
      %v2626 = vld [vmem:[%s7 + $0x2e0] sm:$0xff]
      %v2627 = vld [vmem:[%s7 + $0x2e8] sm:$0xff]
      %v2628 = vld [vmem:[%s7 + $0x2f0] sm:$0xff]
      %v2629 = vld [vmem:[%s7 + $0x2f8] sm:$0xff]
      %v2630 = vld [vmem:[%s7 + $0x300] sm:$0xff]
      %v2631 = vld [vmem:[%s7 + $0x308] sm:$0xff]
      %v2632 = vld [vmem:[%s7 + $0x310] sm:$0xff]
      %v2633 = vld [vmem:[%s7 + $0x318] sm:$0xff]
      %v2634 = vld [vmem:[%s7 + $0x320] sm:$0xff]
      %v2635 = vld [vmem:[%s7 + $0x328] sm:$0xff]
      %v2636 = vld [vmem:[%s7 + $0x330] sm:$0xff]
      %v2637 = vld [vmem:[%s7 + $0x338] sm:$0xff]
      %v2638 = vld [vmem:[%s7 + $0x340] sm:$0xff]
      %v2639 = vld [vmem:[%s7 + $0x348] sm:$0xff]
      %v2640 = vld [vmem:[%s7 + $0x350] sm:$0xff]
      %v2641 = vld [vmem:[%s7 + $0x358] sm:$0xff]
      %v2642 = vld [vmem:[%s7 + $0x360] sm:$0xff]
      %v2643 = vld [vmem:[%s7 + $0x368] sm:$0xff]
      %v2644 = vld [vmem:[%s7 + $0x370] sm:$0xff]
      %v2645 = vld [vmem:[%s7 + $0x378] sm:$0xff]
      %v2646 = vld [vmem:[%s7 + $0x380] sm:$0xff]
      %v2647 = vld [vmem:[%s7 + $0x388] sm:$0xff]
      %v2648 = vld [vmem:[%s7 + $0x390] sm:$0xff]
      %v2649 = vld [vmem:[%s7 + $0x398] sm:$0xff]
      %v2650 = vld [vmem:[%s7 + $0x3a0] sm:$0xff]
      %v2651 = vld [vmem:[%s7 + $0x3a8] sm:$0xff]
      %v2652 = vld [vmem:[%s7 + $0x3b0] sm:$0xff]
      %v2653 = vld [vmem:[%s7 + $0x3b8] sm:$0xff]
      %v2654 = vld [vmem:[%s7 + $0x3c0] sm:$0xff]
      %v2655 = vld [vmem:[%s7 + $0x3c8] sm:$0xff]
      %v2656 = vld [vmem:[%s7 + $0x3d0] sm:$0xff]
      %v2657 = vld [vmem:[%s7 + $0x3d8] sm:$0xff]
      %v2658 = vld [vmem:[%s7 + $0x3e0] sm:$0xff]
      %v2659 = vld [vmem:[%s7 + $0x3e8] sm:$0xff]
      %v2660 = vld [vmem:[%s7 + $0x3f0] sm:$0xff]
      %v2661 = vld [vmem:[%s7 + $0x3f8] sm:$0xff]
      %v2662 = vld [vmem:[%s8] sm:$0x3]
      %v2664 = vlaneseq
      %v2665 = vshrl.u32 %v2664, 7
      %v2666 = vsub.s32 0, %v2665
      %v2667 = vrot.slane %v2662, %v2666
      %v2668 = vlaneseq
      %v2669 = vshrl.u32 %v2668, 7
      %v2670 = vsub.s32 1, %v2669
      %v2671 = vrot.slane %v2662, %v2670
      %v2802 = vunpack.c.l.b16 %v2534
      %v2803 = vunpack.c.h.b16 %v2534
      %v2804 = vunpack.c.l.b16 %v2535
      %v2805 = vunpack.c.h.b16 %v2535
      %v2806 = vunpack.c.l.b16 %v2536
      %v2807 = vunpack.c.h.b16 %v2536
      %v2808 = vunpack.c.l.b16 %v2537
      %v2809 = vunpack.c.h.b16 %v2537
      %v2810 = vunpack.c.l.b16 %v2538
      %v2811 = vunpack.c.h.b16 %v2538
      %v2812 = vunpack.c.l.b16 %v2539
      %v2813 = vunpack.c.h.b16 %v2539
      %v2814 = vunpack.c.l.b16 %v2540
      %v2815 = vunpack.c.h.b16 %v2540
      %v2816 = vunpack.c.l.b16 %v2541
      %v2817 = vunpack.c.h.b16 %v2541
      %v2818 = vunpack.c.l.b16 %v2542
      %v2819 = vunpack.c.h.b16 %v2542
      %v2820 = vunpack.c.l.b16 %v2543
      %v2821 = vunpack.c.h.b16 %v2543
      %v2822 = vunpack.c.l.b16 %v2544
      %v2823 = vunpack.c.h.b16 %v2544
      %v2824 = vunpack.c.l.b16 %v2545
      %v2825 = vunpack.c.h.b16 %v2545
      %v2826 = vunpack.c.l.b16 %v2546
      %v2827 = vunpack.c.h.b16 %v2546
      %v2828 = vunpack.c.l.b16 %v2547
      %v2829 = vunpack.c.h.b16 %v2547
      %v2830 = vunpack.c.l.b16 %v2548
      %v2831 = vunpack.c.h.b16 %v2548
      %v2832 = vunpack.c.l.b16 %v2549
      %v2833 = vunpack.c.h.b16 %v2549
      %v2834 = vunpack.c.l.b16 %v2550
      %v2835 = vunpack.c.h.b16 %v2550
      %v2836 = vunpack.c.l.b16 %v2551
      %v2837 = vunpack.c.h.b16 %v2551
      %v2838 = vunpack.c.l.b16 %v2552
      %v2839 = vunpack.c.h.b16 %v2552
      %v2840 = vunpack.c.l.b16 %v2553
      %v2841 = vunpack.c.h.b16 %v2553
      %v2842 = vunpack.c.l.b16 %v2554
      %v2843 = vunpack.c.h.b16 %v2554
      %v2844 = vunpack.c.l.b16 %v2555
      %v2845 = vunpack.c.h.b16 %v2555
      %v2846 = vunpack.c.l.b16 %v2556
      %v2847 = vunpack.c.h.b16 %v2556
      %v2848 = vunpack.c.l.b16 %v2557
      %v2849 = vunpack.c.h.b16 %v2557
      %v2850 = vunpack.c.l.b16 %v2558
      %v2851 = vunpack.c.h.b16 %v2558
      %v2852 = vunpack.c.l.b16 %v2559
      %v2853 = vunpack.c.h.b16 %v2559
      %v2854 = vunpack.c.l.b16 %v2560
      %v2855 = vunpack.c.h.b16 %v2560
      %v2856 = vunpack.c.l.b16 %v2561
      %v2857 = vunpack.c.h.b16 %v2561
      %v2858 = vunpack.c.l.b16 %v2562
      %v2859 = vunpack.c.h.b16 %v2562
      %v2860 = vunpack.c.l.b16 %v2563
      %v2861 = vunpack.c.h.b16 %v2563
      %v2862 = vunpack.c.l.b16 %v2564
      %v2863 = vunpack.c.h.b16 %v2564
      %v2864 = vunpack.c.l.b16 %v2565
      %v2865 = vunpack.c.h.b16 %v2565
      %v2866 = vunpack.c.l.b16 %v2566
      %v2867 = vunpack.c.h.b16 %v2566
      %v2868 = vunpack.c.l.b16 %v2567
      %v2869 = vunpack.c.h.b16 %v2567
      %v2870 = vunpack.c.l.b16 %v2568
      %v2871 = vunpack.c.h.b16 %v2568
      %v2872 = vunpack.c.l.b16 %v2569
      %v2873 = vunpack.c.h.b16 %v2569
      %v2874 = vunpack.c.l.b16 %v2570
      %v2875 = vunpack.c.h.b16 %v2570
      %v2876 = vunpack.c.l.b16 %v2571
      %v2877 = vunpack.c.h.b16 %v2571
      %v2878 = vunpack.c.l.b16 %v2572
      %v2879 = vunpack.c.h.b16 %v2572
      %v2880 = vunpack.c.l.b16 %v2573
      %v2881 = vunpack.c.h.b16 %v2573
      %v2882 = vunpack.c.l.b16 %v2574
      %v2883 = vunpack.c.h.b16 %v2574
      %v2884 = vunpack.c.l.b16 %v2575
      %v2885 = vunpack.c.h.b16 %v2575
      %v2886 = vunpack.c.l.b16 %v2576
      %v2887 = vunpack.c.h.b16 %v2576
      %v2888 = vunpack.c.l.b16 %v2577
      %v2889 = vunpack.c.h.b16 %v2577
      %v2890 = vunpack.c.l.b16 %v2578
      %v2891 = vunpack.c.h.b16 %v2578
      %v2892 = vunpack.c.l.b16 %v2579
      %v2893 = vunpack.c.h.b16 %v2579
      %v2894 = vunpack.c.l.b16 %v2580
      %v2895 = vunpack.c.h.b16 %v2580
      %v2896 = vunpack.c.l.b16 %v2581
      %v2897 = vunpack.c.h.b16 %v2581
      %v2898 = vunpack.c.l.b16 %v2582
      %v2899 = vunpack.c.h.b16 %v2582
      %v2900 = vunpack.c.l.b16 %v2583
      %v2901 = vunpack.c.h.b16 %v2583
      %v2902 = vunpack.c.l.b16 %v2584
      %v2903 = vunpack.c.h.b16 %v2584
      %v2904 = vunpack.c.l.b16 %v2585
      %v2905 = vunpack.c.h.b16 %v2585
      %v2906 = vunpack.c.l.b16 %v2586
      %v2907 = vunpack.c.h.b16 %v2586
      %v2908 = vunpack.c.l.b16 %v2587
      %v2909 = vunpack.c.h.b16 %v2587
      %v2910 = vunpack.c.l.b16 %v2588
      %v2911 = vunpack.c.h.b16 %v2588
      %v2912 = vunpack.c.l.b16 %v2589
      %v2913 = vunpack.c.h.b16 %v2589
      %v2914 = vunpack.c.l.b16 %v2590
      %v2915 = vunpack.c.h.b16 %v2590
      %v2916 = vunpack.c.l.b16 %v2591
      %v2917 = vunpack.c.h.b16 %v2591
      %v2918 = vunpack.c.l.b16 %v2592
      %v2919 = vunpack.c.h.b16 %v2592
      %v2920 = vunpack.c.l.b16 %v2593
      %v2921 = vunpack.c.h.b16 %v2593
      %v2922 = vunpack.c.l.b16 %v2594
      %v2923 = vunpack.c.h.b16 %v2594
      %v2924 = vunpack.c.l.b16 %v2595
      %v2925 = vunpack.c.h.b16 %v2595
      %v2926 = vunpack.c.l.b16 %v2596
      %v2927 = vunpack.c.h.b16 %v2596
      %v2928 = vunpack.c.l.b16 %v2597
      %v2929 = vunpack.c.h.b16 %v2597
      %v2930 = vunpack.c.l.b16 %v2598
      %v2931 = vunpack.c.h.b16 %v2598
      %v2932 = vunpack.c.l.b16 %v2599
      %v2933 = vunpack.c.h.b16 %v2599
      %v2934 = vunpack.c.l.b16 %v2600
      %v2935 = vunpack.c.h.b16 %v2600
      %v2936 = vunpack.c.l.b16 %v2601
      %v2937 = vunpack.c.h.b16 %v2601
      %v2938 = vunpack.c.l.b16 %v2602
      %v2939 = vunpack.c.h.b16 %v2602
      %v2940 = vunpack.c.l.b16 %v2603
      %v2941 = vunpack.c.h.b16 %v2603
      %v2942 = vunpack.c.l.b16 %v2604
      %v2943 = vunpack.c.h.b16 %v2604
      %v2944 = vunpack.c.l.b16 %v2605
      %v2945 = vunpack.c.h.b16 %v2605
      %v2946 = vunpack.c.l.b16 %v2606
      %v2947 = vunpack.c.h.b16 %v2606
      %v2948 = vunpack.c.l.b16 %v2607
      %v2949 = vunpack.c.h.b16 %v2607
      %v2950 = vunpack.c.l.b16 %v2608
      %v2951 = vunpack.c.h.b16 %v2608
      %v2952 = vunpack.c.l.b16 %v2609
      %v2953 = vunpack.c.h.b16 %v2609
      %v2954 = vunpack.c.l.b16 %v2610
      %v2955 = vunpack.c.h.b16 %v2610
      %v2956 = vunpack.c.l.b16 %v2611
      %v2957 = vunpack.c.h.b16 %v2611
      %v2958 = vunpack.c.l.b16 %v2612
      %v2959 = vunpack.c.h.b16 %v2612
      %v2960 = vunpack.c.l.b16 %v2613
      %v2961 = vunpack.c.h.b16 %v2613
      %v2962 = vunpack.c.l.b16 %v2614
      %v2963 = vunpack.c.h.b16 %v2614
      %v2964 = vunpack.c.l.b16 %v2615
      %v2965 = vunpack.c.h.b16 %v2615
      %v2966 = vunpack.c.l.b16 %v2616
      %v2967 = vunpack.c.h.b16 %v2616
      %v2968 = vunpack.c.l.b16 %v2617
      %v2969 = vunpack.c.h.b16 %v2617
      %v2970 = vunpack.c.l.b16 %v2618
      %v2971 = vunpack.c.h.b16 %v2618
      %v2972 = vunpack.c.l.b16 %v2619
      %v2973 = vunpack.c.h.b16 %v2619
      %v2974 = vunpack.c.l.b16 %v2620
      %v2975 = vunpack.c.h.b16 %v2620
      %v2976 = vunpack.c.l.b16 %v2621
      %v2977 = vunpack.c.h.b16 %v2621
      %v2978 = vunpack.c.l.b16 %v2622
      %v2979 = vunpack.c.h.b16 %v2622
      %v2980 = vunpack.c.l.b16 %v2623
      %v2981 = vunpack.c.h.b16 %v2623
      %v2982 = vunpack.c.l.b16 %v2624
      %v2983 = vunpack.c.h.b16 %v2624
      %v2984 = vunpack.c.l.b16 %v2625
      %v2985 = vunpack.c.h.b16 %v2625
      %v2986 = vunpack.c.l.b16 %v2626
      %v2987 = vunpack.c.h.b16 %v2626
      %v2988 = vunpack.c.l.b16 %v2627
      %v2989 = vunpack.c.h.b16 %v2627
      %v2990 = vunpack.c.l.b16 %v2628
      %v2991 = vunpack.c.h.b16 %v2628
      %v2992 = vunpack.c.l.b16 %v2629
      %v2993 = vunpack.c.h.b16 %v2629
      %v2994 = vunpack.c.l.b16 %v2630
      %v2995 = vunpack.c.h.b16 %v2630
      %v2996 = vunpack.c.l.b16 %v2631
      %v2997 = vunpack.c.h.b16 %v2631
      %v2998 = vunpack.c.l.b16 %v2632
      %v2999 = vunpack.c.h.b16 %v2632
      %v3000 = vunpack.c.l.b16 %v2633
      %v3001 = vunpack.c.h.b16 %v2633
      %v3002 = vunpack.c.l.b16 %v2634
      %v3003 = vunpack.c.h.b16 %v2634
      %v3004 = vunpack.c.l.b16 %v2635
      %v3005 = vunpack.c.h.b16 %v2635
      %v3006 = vunpack.c.l.b16 %v2636
      %v3007 = vunpack.c.h.b16 %v2636
      %v3008 = vunpack.c.l.b16 %v2637
      %v3009 = vunpack.c.h.b16 %v2637
      %v3010 = vunpack.c.l.b16 %v2638
      %v3011 = vunpack.c.h.b16 %v2638
      %v3012 = vunpack.c.l.b16 %v2639
      %v3013 = vunpack.c.h.b16 %v2639
      %v3014 = vunpack.c.l.b16 %v2640
      %v3015 = vunpack.c.h.b16 %v2640
      %v3016 = vunpack.c.l.b16 %v2641
      %v3017 = vunpack.c.h.b16 %v2641
      %v3018 = vunpack.c.l.b16 %v2642
      %v3019 = vunpack.c.h.b16 %v2642
      %v3020 = vunpack.c.l.b16 %v2643
      %v3021 = vunpack.c.h.b16 %v2643
      %v3022 = vunpack.c.l.b16 %v2644
      %v3023 = vunpack.c.h.b16 %v2644
      %v3024 = vunpack.c.l.b16 %v2645
      %v3025 = vunpack.c.h.b16 %v2645
      %v3026 = vunpack.c.l.b16 %v2646
      %v3027 = vunpack.c.h.b16 %v2646
      %v3028 = vunpack.c.l.b16 %v2647
      %v3029 = vunpack.c.h.b16 %v2647
      %v3030 = vunpack.c.l.b16 %v2648
      %v3031 = vunpack.c.h.b16 %v2648
      %v3032 = vunpack.c.l.b16 %v2649
      %v3033 = vunpack.c.h.b16 %v2649
      %v3034 = vunpack.c.l.b16 %v2650
      %v3035 = vunpack.c.h.b16 %v2650
      %v3036 = vunpack.c.l.b16 %v2651
      %v3037 = vunpack.c.h.b16 %v2651
      %v3038 = vunpack.c.l.b16 %v2652
      %v3039 = vunpack.c.h.b16 %v2652
      %v3040 = vunpack.c.l.b16 %v2653
      %v3041 = vunpack.c.h.b16 %v2653
      %v3042 = vunpack.c.l.b16 %v2654
      %v3043 = vunpack.c.h.b16 %v2654
      %v3044 = vunpack.c.l.b16 %v2655
      %v3045 = vunpack.c.h.b16 %v2655
      %v3046 = vunpack.c.l.b16 %v2656
      %v3047 = vunpack.c.h.b16 %v2656
      %v3048 = vunpack.c.l.b16 %v2657
      %v3049 = vunpack.c.h.b16 %v2657
      %v3050 = vunpack.c.l.b16 %v2658
      %v3051 = vunpack.c.h.b16 %v2658
      %v3052 = vunpack.c.l.b16 %v2659
      %v3053 = vunpack.c.h.b16 %v2659
      %v3054 = vunpack.c.l.b16 %v2660
      %v3055 = vunpack.c.h.b16 %v2660
      %v3056 = vunpack.c.l.b16 %v2661
      %v3057 = vunpack.c.h.b16 %v2661
      %v3058 = vpack.c.b16 %v2804, %v2802
      %v3059 = vpack.c.b16 %v2805, %v2803
      %v3060 = vpack.c.b16 %v2808, %v2806
      %v3061 = vpack.c.b16 %v2809, %v2807
      %v3062 = vpack.c.b16 %v2812, %v2810
      %v3063 = vpack.c.b16 %v2813, %v2811
      %v3064 = vpack.c.b16 %v2816, %v2814
      %v3065 = vpack.c.b16 %v2817, %v2815
      %v3066 = vpack.c.b16 %v2820, %v2818
      %v3067 = vpack.c.b16 %v2821, %v2819
      %v3068 = vpack.c.b16 %v2824, %v2822
      %v3069 = vpack.c.b16 %v2825, %v2823
      %v3070 = vpack.c.b16 %v2828, %v2826
      %v3071 = vpack.c.b16 %v2829, %v2827
      %v3072 = vpack.c.b16 %v2832, %v2830
      %v3073 = vpack.c.b16 %v2833, %v2831
      %v3074 = vpack.c.b16 %v2836, %v2834
      %v3075 = vpack.c.b16 %v2837, %v2835
      %v3076 = vpack.c.b16 %v2840, %v2838
      %v3077 = vpack.c.b16 %v2841, %v2839
      %v3078 = vpack.c.b16 %v2844, %v2842
      %v3079 = vpack.c.b16 %v2845, %v2843
      %v3080 = vpack.c.b16 %v2848, %v2846
      %v3081 = vpack.c.b16 %v2849, %v2847
      %v3082 = vpack.c.b16 %v2852, %v2850
      %v3083 = vpack.c.b16 %v2853, %v2851
      %v3084 = vpack.c.b16 %v2856, %v2854
      %v3085 = vpack.c.b16 %v2857, %v2855
      %v3086 = vpack.c.b16 %v2860, %v2858
      %v3087 = vpack.c.b16 %v2861, %v2859
      %v3088 = vpack.c.b16 %v2864, %v2862
      %v3089 = vpack.c.b16 %v2865, %v2863
      %v3090 = vpack.c.b16 %v2868, %v2866
      %v3091 = vpack.c.b16 %v2869, %v2867
      %v3092 = vpack.c.b16 %v2872, %v2870
      %v3093 = vpack.c.b16 %v2873, %v2871
      %v3094 = vpack.c.b16 %v2876, %v2874
      %v3095 = vpack.c.b16 %v2877, %v2875
      %v3096 = vpack.c.b16 %v2880, %v2878
      %v3097 = vpack.c.b16 %v2881, %v2879
      %v3098 = vpack.c.b16 %v2884, %v2882
      %v3099 = vpack.c.b16 %v2885, %v2883
      %v3100 = vpack.c.b16 %v2888, %v2886
      %v3101 = vpack.c.b16 %v2889, %v2887
      %v3102 = vpack.c.b16 %v2892, %v2890
      %v3103 = vpack.c.b16 %v2893, %v2891
      %v3104 = vpack.c.b16 %v2896, %v2894
      %v3105 = vpack.c.b16 %v2897, %v2895
      %v3106 = vpack.c.b16 %v2900, %v2898
      %v3107 = vpack.c.b16 %v2901, %v2899
      %v3108 = vpack.c.b16 %v2904, %v2902
      %v3109 = vpack.c.b16 %v2905, %v2903
      %v3110 = vpack.c.b16 %v2908, %v2906
      %v3111 = vpack.c.b16 %v2909, %v2907
      %v3112 = vpack.c.b16 %v2912, %v2910
      %v3113 = vpack.c.b16 %v2913, %v2911
      %v3114 = vpack.c.b16 %v2916, %v2914
      %v3115 = vpack.c.b16 %v2917, %v2915
      %v3116 = vpack.c.b16 %v2920, %v2918
      %v3117 = vpack.c.b16 %v2921, %v2919
      %v3118 = vpack.c.b16 %v2924, %v2922
      %v3119 = vpack.c.b16 %v2925, %v2923
      %v3120 = vpack.c.b16 %v2928, %v2926
      %v3121 = vpack.c.b16 %v2929, %v2927
      %v3122 = vpack.c.b16 %v2932, %v2930
      %v3123 = vpack.c.b16 %v2933, %v2931
      %v3124 = vpack.c.b16 %v2936, %v2934
      %v3125 = vpack.c.b16 %v2937, %v2935
      %v3126 = vpack.c.b16 %v2940, %v2938
      %v3127 = vpack.c.b16 %v2941, %v2939
      %v3128 = vpack.c.b16 %v2944, %v2942
      %v3129 = vpack.c.b16 %v2945, %v2943
      %v3130 = vpack.c.b16 %v2948, %v2946
      %v3131 = vpack.c.b16 %v2949, %v2947
      %v3132 = vpack.c.b16 %v2952, %v2950
      %v3133 = vpack.c.b16 %v2953, %v2951
      %v3134 = vpack.c.b16 %v2956, %v2954
      %v3135 = vpack.c.b16 %v2957, %v2955
      %v3136 = vpack.c.b16 %v2960, %v2958
      %v3137 = vpack.c.b16 %v2961, %v2959
      %v3138 = vpack.c.b16 %v2964, %v2962
      %v3139 = vpack.c.b16 %v2965, %v2963
      %v3140 = vpack.c.b16 %v2968, %v2966
      %v3141 = vpack.c.b16 %v2969, %v2967
      %v3142 = vpack.c.b16 %v2972, %v2970
      %v3143 = vpack.c.b16 %v2973, %v2971
      %v3144 = vpack.c.b16 %v2976, %v2974
      %v3145 = vpack.c.b16 %v2977, %v2975
      %v3146 = vpack.c.b16 %v2980, %v2978
      %v3147 = vpack.c.b16 %v2981, %v2979
      %v3148 = vpack.c.b16 %v2984, %v2982
      %v3149 = vpack.c.b16 %v2985, %v2983
      %v3150 = vpack.c.b16 %v2988, %v2986
      %v3151 = vpack.c.b16 %v2989, %v2987
      %v3152 = vpack.c.b16 %v2992, %v2990
      %v3153 = vpack.c.b16 %v2993, %v2991
      %v3154 = vpack.c.b16 %v2996, %v2994
      %v3155 = vpack.c.b16 %v2997, %v2995
      %v3156 = vpack.c.b16 %v3000, %v2998
      %v3157 = vpack.c.b16 %v3001, %v2999
      %v3158 = vpack.c.b16 %v3004, %v3002
      %v3159 = vpack.c.b16 %v3005, %v3003
      %v3160 = vpack.c.b16 %v3008, %v3006
      %v3161 = vpack.c.b16 %v3009, %v3007
      %v3162 = vpack.c.b16 %v3012, %v3010
      %v3163 = vpack.c.b16 %v3013, %v3011
      %v3164 = vpack.c.b16 %v3016, %v3014
      %v3165 = vpack.c.b16 %v3017, %v3015
      %v3166 = vpack.c.b16 %v3020, %v3018
      %v3167 = vpack.c.b16 %v3021, %v3019
      %v3168 = vpack.c.b16 %v3024, %v3022
      %v3169 = vpack.c.b16 %v3025, %v3023
      %v3170 = vpack.c.b16 %v3028, %v3026
      %v3171 = vpack.c.b16 %v3029, %v3027
      %v3172 = vpack.c.b16 %v3032, %v3030
      %v3173 = vpack.c.b16 %v3033, %v3031
      %v3174 = vpack.c.b16 %v3036, %v3034
      %v3175 = vpack.c.b16 %v3037, %v3035
      %v3176 = vpack.c.b16 %v3040, %v3038
      %v3177 = vpack.c.b16 %v3041, %v3039
      %v3178 = vpack.c.b16 %v3044, %v3042
      %v3179 = vpack.c.b16 %v3045, %v3043
      %v3180 = vpack.c.b16 %v3048, %v3046
      %v3181 = vpack.c.b16 %v3049, %v3047
      %v3182 = vpack.c.b16 %v3052, %v3050
      %v3183 = vpack.c.b16 %v3053, %v3051
      %v3184 = vpack.c.b16 %v3056, %v3054
      %v3185 = vpack.c.b16 %v3057, %v3055
      %3314 = vmatprep.subr.bf16.mxu0 %v3059
      %3315 = vmatpush1.bf16.msra.mxu0 %v3058
      %3316 = vmatprep.subr.bf16.mxu0 %v3061
      %3317 = vmatpush1.bf16.msra.mxu0 %v3060
      %3318 = vmatprep.subr.bf16.mxu0 %v3063
      %3319 = vmatpush1.bf16.msra.mxu0 %v3062
      %3320 = vmatprep.subr.bf16.mxu0 %v3065
      %3321 = vmatpush1.bf16.msra.mxu0 %v3064
      %3322 = vmatprep.subr.bf16.mxu0 %v3067
      %3323 = vmatpush1.bf16.msra.mxu0 %v3066
      %3324 = vmatprep.subr.bf16.mxu0 %v3069
      %3325 = vmatpush1.bf16.msra.mxu0 %v3068
      %3326 = vmatprep.subr.bf16.mxu0 %v3071
      %3327 = vmatpush1.bf16.msra.mxu0 %v3070
      %3328 = vmatprep.subr.bf16.mxu0 %v3073
      %3329 = vmatpush1.bf16.msra.mxu0 %v3072
      %3330 = vmatprep.subr.bf16.mxu0 %v3075
      %3331 = vmatpush1.bf16.msra.mxu0 %v3074
      %3332 = vmatprep.subr.bf16.mxu0 %v3077
      %3333 = vmatpush1.bf16.msra.mxu0 %v3076
      %3334 = vmatprep.subr.bf16.mxu0 %v3079
      %3335 = vmatpush1.bf16.msra.mxu0 %v3078
      %3336 = vmatprep.subr.bf16.mxu0 %v3081
      %3337 = vmatpush1.bf16.msra.mxu0 %v3080
      %3338 = vmatprep.subr.bf16.mxu0 %v3083
      %3339 = vmatpush1.bf16.msra.mxu0 %v3082
      %3340 = vmatprep.subr.bf16.mxu0 %v3085
      %3341 = vmatpush1.bf16.msra.mxu0 %v3084
      %3342 = vmatprep.subr.bf16.mxu0 %v3087
      %3343 = vmatpush1.bf16.msra.mxu0 %v3086
      %3344 = vmatprep.subr.bf16.mxu0 %v3089
      %3345 = vmatpush1.bf16.msra.mxu0 %v3088
      %3346 = vmatprep.mubr.bf16.mxu0 %v2527
      %3347 = vmatmul.mubr.bf16.gmra.mrb[0].mxu0 %v2526
      %v3348 = vpop.f32.mrb[0].mxu0
      %v3349 = vadd.f32 %v2667, %v3348
      %v3350 = vpop.f32.mrb[0].mxu0
      %v3351 = vadd.f32 %v2671, %v3350
      %v3352 = vpop.f32.mrb[0].mxu0
      %v3353 = vpop.f32.mrb[0].mxu0
      %3354 = vdwg.mxu0
      %3355 = vmatprep.subr.bf16.mxu0 %v3091
      %3356 = vmatpush1.bf16.msra.mxu0 %v3090
      %3357 = vmatprep.subr.bf16.mxu0 %v3093
      %3358 = vmatpush1.bf16.msra.mxu0 %v3092
      %3359 = vmatprep.subr.bf16.mxu0 %v3095
      %3360 = vmatpush1.bf16.msra.mxu0 %v3094
      %3361 = vmatprep.subr.bf16.mxu0 %v3097
      %3362 = vmatpush1.bf16.msra.mxu0 %v3096
      %3363 = vmatprep.subr.bf16.mxu0 %v3099
      %3364 = vmatpush1.bf16.msra.mxu0 %v3098
      %3365 = vmatprep.subr.bf16.mxu0 %v3101
      %3366 = vmatpush1.bf16.msra.mxu0 %v3100
      %3367 = vmatprep.subr.bf16.mxu0 %v3103
      %3368 = vmatpush1.bf16.msra.mxu0 %v3102
      %3369 = vmatprep.subr.bf16.mxu0 %v3105
      %3370 = vmatpush1.bf16.msra.mxu0 %v3104
      %3371 = vmatprep.subr.bf16.mxu0 %v3107
      %3372 = vmatpush1.bf16.msra.mxu0 %v3106
      %3373 = vmatprep.subr.bf16.mxu0 %v3109
      %3374 = vmatpush1.bf16.msra.mxu0 %v3108
      %3375 = vmatprep.subr.bf16.mxu0 %v3111
      %3376 = vmatpush1.bf16.msra.mxu0 %v3110
      %3377 = vmatprep.subr.bf16.mxu0 %v3113
      %3378 = vmatpush1.bf16.msra.mxu0 %v3112
      %3379 = vmatprep.subr.bf16.mxu0 %v3115
      %3380 = vmatpush1.bf16.msra.mxu0 %v3114
      %3381 = vmatprep.subr.bf16.mxu0 %v3117
      %3382 = vmatpush1.bf16.msra.mxu0 %v3116
      %3383 = vmatprep.subr.bf16.mxu0 %v3119
      %3384 = vmatpush1.bf16.msra.mxu0 %v3118
      %3385 = vmatprep.subr.bf16.mxu0 %v3121
      %3386 = vmatpush1.bf16.msra.mxu0 %v3120
      %3387 = vmatprep.mubr.bf16.mxu0 %v2529
      %3388 = vmatmul.mubr.bf16.gmra.mrb[0].mxu0 %v2528
      %v3389 = vpop.f32.mrb[0].mxu0
      %v3390 = vadd.f32 %v3349, %v3389
      %v3391 = vpop.f32.mrb[0].mxu0
      %v3392 = vadd.f32 %v3351, %v3391
      %v3393 = vpop.f32.mrb[0].mxu0
      %v3394 = vpop.f32.mrb[0].mxu0
      %3395 = vdwg.mxu0
      %3396 = vmatprep.subr.bf16.mxu0 %v3123
      %3397 = vmatpush1.bf16.msra.mxu0 %v3122
      %3398 = vmatprep.subr.bf16.mxu0 %v3125
      %3399 = vmatpush1.bf16.msra.mxu0 %v3124
      %3400 = vmatprep.subr.bf16.mxu0 %v3127
      %3401 = vmatpush1.bf16.msra.mxu0 %v3126
      %3402 = vmatprep.subr.bf16.mxu0 %v3129
      %3403 = vmatpush1.bf16.msra.mxu0 %v3128
      %3404 = vmatprep.subr.bf16.mxu0 %v3131
      %3405 = vmatpush1.bf16.msra.mxu0 %v3130
      %3406 = vmatprep.subr.bf16.mxu0 %v3133
      %3407 = vmatpush1.bf16.msra.mxu0 %v3132
      %3408 = vmatprep.subr.bf16.mxu0 %v3135
      %3409 = vmatpush1.bf16.msra.mxu0 %v3134
      %3410 = vmatprep.subr.bf16.mxu0 %v3137
      %3411 = vmatpush1.bf16.msra.mxu0 %v3136
      %3412 = vmatprep.subr.bf16.mxu0 %v3139
      %3413 = vmatpush1.bf16.msra.mxu0 %v3138
      %3414 = vmatprep.subr.bf16.mxu0 %v3141
      %3415 = vmatpush1.bf16.msra.mxu0 %v3140
      %3416 = vmatprep.subr.bf16.mxu0 %v3143
      %3417 = vmatpush1.bf16.msra.mxu0 %v3142
      %3418 = vmatprep.subr.bf16.mxu0 %v3145
      %3419 = vmatpush1.bf16.msra.mxu0 %v3144
      %3420 = vmatprep.subr.bf16.mxu0 %v3147
      %3421 = vmatpush1.bf16.msra.mxu0 %v3146
      %3422 = vmatprep.subr.bf16.mxu0 %v3149
      %3423 = vmatpush1.bf16.msra.mxu0 %v3148
      %3424 = vmatprep.subr.bf16.mxu0 %v3151
      %3425 = vmatpush1.bf16.msra.mxu0 %v3150
      %3426 = vmatprep.subr.bf16.mxu0 %v3153
      %3427 = vmatpush1.bf16.msra.mxu0 %v3152
      %3428 = vmatprep.mubr.bf16.mxu0 %v2531
      %3429 = vmatmul.mubr.bf16.gmra.mrb[0].mxu0 %v2530
      %v3430 = vpop.f32.mrb[0].mxu0
      %v3431 = vadd.f32 %v3390, %v3430
      %v3432 = vpop.f32.mrb[0].mxu0
      %v3433 = vadd.f32 %v3392, %v3432
      %v3434 = vpop.f32.mrb[0].mxu0
      %v3435 = vpop.f32.mrb[0].mxu0
      %3436 = vdwg.mxu0
      %3437 = vmatprep.subr.bf16.mxu0 %v3155
      %3438 = vmatpush1.bf16.msra.mxu0 %v3154
      %3439 = vmatprep.subr.bf16.mxu0 %v3157
      %3440 = vmatpush1.bf16.msra.mxu0 %v3156
      %3441 = vmatprep.subr.bf16.mxu0 %v3159
      %3442 = vmatpush1.bf16.msra.mxu0 %v3158
      %3443 = vmatprep.subr.bf16.mxu0 %v3161
      %3444 = vmatpush1.bf16.msra.mxu0 %v3160
      %3445 = vmatprep.subr.bf16.mxu0 %v3163
      %3446 = vmatpush1.bf16.msra.mxu0 %v3162
      %3447 = vmatprep.subr.bf16.mxu0 %v3165
      %3448 = vmatpush1.bf16.msra.mxu0 %v3164
      %3449 = vmatprep.subr.bf16.mxu0 %v3167
      %3450 = vmatpush1.bf16.msra.mxu0 %v3166
      %3451 = vmatprep.subr.bf16.mxu0 %v3169
      %3452 = vmatpush1.bf16.msra.mxu0 %v3168
      %3453 = vmatprep.subr.bf16.mxu0 %v3171
      %3454 = vmatpush1.bf16.msra.mxu0 %v3170
      %3455 = vmatprep.subr.bf16.mxu0 %v3173
      %3456 = vmatpush1.bf16.msra.mxu0 %v3172
      %3457 = vmatprep.subr.bf16.mxu0 %v3175
      %3458 = vmatpush1.bf16.msra.mxu0 %v3174
      %3459 = vmatprep.subr.bf16.mxu0 %v3177
      %3460 = vmatpush1.bf16.msra.mxu0 %v3176
      %3461 = vmatprep.subr.bf16.mxu0 %v3179
      %3462 = vmatpush1.bf16.msra.mxu0 %v3178
      %3463 = vmatprep.subr.bf16.mxu0 %v3181
      %3464 = vmatpush1.bf16.msra.mxu0 %v3180
      %3465 = vmatprep.subr.bf16.mxu0 %v3183
      %3466 = vmatpush1.bf16.msra.mxu0 %v3182
      %3467 = vmatprep.subr.bf16.mxu0 %v3185
      %3468 = vmatpush1.bf16.msra.mxu0 %v3184
      %3469 = vmatprep.mubr.bf16.mxu0 %v2533
      %3470 = vmatmul.mubr.bf16.gmra.mrb[0].mxu0 %v2532
      %v3471 = vpop.f32.mrb[0].mxu0
      %v3472 = vadd.f32 %v3431, %v3471
      %v3473 = vpop.f32.mrb[0].mxu0
      %v3474 = vadd.f32 %v3433, %v3473
      %v3475 = vpop.f32.mrb[0].mxu0
      %v3476 = vpop.f32.mrb[0].mxu0
      %3477 = vdwg.mxu0
      %v3478 = vadd.f32 %v1540, %v3472
      %v3479 = vadd.f32 %v1541, %v3474
      %v3480 = vadd.f32 %v3478, %v3479
      %3481 = vadd.xlane.f32.xlu0 %v3480
      %v3482 = vpop.xlane.xlu0 %3481
      %v3483 = vmul.f32 %v3482, %v1500
      %v3484 = vsub.f32 %v3478, %v3483
      %v3485 = vsub.f32 %v3479, %v3483
      %v3486 = vmul.f32 %v3484, %v3484
      %v3487 = vmul.f32 %v3485, %v3485
      %v3488 = vadd.f32 %v3486, %v3487
      %3489 = vadd.xlane.f32.xlu0 %v3488
      %v3490 = vpop.xlane.xlu0 %3489
      %v3491 = vmul.f32 %v3490, %v1500
      %v3492 = vadd.f32 %v3491, 1e-05
      %v3493 = vrsqrt.pop %v3492
      %v3494 = vmul.f32 %v3484, %v3493
      %v3495 = vmul.f32 %v3485, %v3493
      %v3496 = vld [vmem:[%s9] sm:$0x3]
      %v3498 = vlaneseq
      %v3499 = vshrl.u32 %v3498, 7
      %v3500 = vsub.s32 0, %v3499
      %v3501 = vrot.slane %v3496, %v3500
      %v3502 = vlaneseq
      %v3503 = vshrl.u32 %v3502, 7
      %v3504 = vsub.s32 1, %v3503
      %v3505 = vrot.slane %v3496, %v3504
      %v3508 = vmul.f32 %v3494, %v3501
      %v3509 = vmul.f32 %v3495, %v3505
      %v3510 = vld [vmem:[%s10] sm:$0x3]
      %v3512 = vlaneseq
      %v3513 = vshrl.u32 %v3512, 7
      %v3514 = vsub.s32 0, %v3513
      %v3515 = vrot.slane %v3510, %v3514
      %v3516 = vlaneseq
      %v3517 = vshrl.u32 %v3516, 7
      %v3518 = vsub.s32 1, %v3517
      %v3519 = vrot.slane %v3510, %v3518
      %v3522 = vadd.f32 %v3508, %v3515
      %v3523 = vadd.f32 %v3509, %v3519
      %v3524 = vpack.c.bf16 %v3522, %v3522
      %v3525 = vpack.c.bf16 %v3523, %v3523
      %v3526 = vld [vmem:[%s11] sm:$0xf]
      %v3527 = vld [vmem:[%s11 + $0x4] sm:$0xf]
      %v3528 = vld [vmem:[%s11 + $0x8] sm:$0xf]
      %v3529 = vld [vmem:[%s11 + $0xc] sm:$0xf]
      %v3530 = vld [vmem:[%s11 + $0x10] sm:$0xf]
      %v3531 = vld [vmem:[%s11 + $0x14] sm:$0xf]
      %v3532 = vld [vmem:[%s11 + $0x18] sm:$0xf]
      %v3533 = vld [vmem:[%s11 + $0x1c] sm:$0xf]
      %v3534 = vld [vmem:[%s11 + $0x20] sm:$0xf]
      %v3535 = vld [vmem:[%s11 + $0x24] sm:$0xf]
      %v3536 = vld [vmem:[%s11 + $0x28] sm:$0xf]
      %v3537 = vld [vmem:[%s11 + $0x2c] sm:$0xf]
      %v3538 = vld [vmem:[%s11 + $0x30] sm:$0xf]
      %v3539 = vld [vmem:[%s11 + $0x34] sm:$0xf]
      %v3540 = vld [vmem:[%s11 + $0x38] sm:$0xf]
      %v3541 = vld [vmem:[%s11 + $0x3c] sm:$0xf]
      %v3542 = vld [vmem:[%s11 + $0x40] sm:$0xf]
      %v3543 = vld [vmem:[%s11 + $0x44] sm:$0xf]
      %v3544 = vld [vmem:[%s11 + $0x48] sm:$0xf]
      %v3545 = vld [vmem:[%s11 + $0x4c] sm:$0xf]
      %v3546 = vld [vmem:[%s11 + $0x50] sm:$0xf]
      %v3547 = vld [vmem:[%s11 + $0x54] sm:$0xf]
      %v3548 = vld [vmem:[%s11 + $0x58] sm:$0xf]
      %v3549 = vld [vmem:[%s11 + $0x5c] sm:$0xf]
      %v3550 = vld [vmem:[%s11 + $0x60] sm:$0xf]
      %v3551 = vld [vmem:[%s11 + $0x64] sm:$0xf]
      %v3552 = vld [vmem:[%s11 + $0x68] sm:$0xf]
      %v3553 = vld [vmem:[%s11 + $0x6c] sm:$0xf]
      %v3554 = vld [vmem:[%s11 + $0x70] sm:$0xf]
      %v3555 = vld [vmem:[%s11 + $0x74] sm:$0xf]
      %v3556 = vld [vmem:[%s11 + $0x78] sm:$0xf]
      %v3557 = vld [vmem:[%s11 + $0x7c] sm:$0xf]
      %v3558 = vld [vmem:[%s12] sm:$0x1]
      %v3560 = vlaneseq
      %v3561 = vshrl.u32 %v3560, 7
      %v3562 = vsub.s32 0, %v3561
      %v3563 = vrot.slane %v3558, %v3562
      %v3597 = vunpack.c.l.b16 %v3526
      %v3598 = vunpack.c.l.b16 %v3527
      %v3599 = vunpack.c.l.b16 %v3528
      %v3600 = vunpack.c.l.b16 %v3529
      %v3601 = vunpack.c.l.b16 %v3530
      %v3602 = vunpack.c.l.b16 %v3531
      %v3603 = vunpack.c.l.b16 %v3532
      %v3604 = vunpack.c.l.b16 %v3533
      %v3605 = vunpack.c.l.b16 %v3534
      %v3606 = vunpack.c.l.b16 %v3535
      %v3607 = vunpack.c.l.b16 %v3536
      %v3608 = vunpack.c.l.b16 %v3537
      %v3609 = vunpack.c.l.b16 %v3538
      %v3610 = vunpack.c.l.b16 %v3539
      %v3611 = vunpack.c.l.b16 %v3540
      %v3612 = vunpack.c.l.b16 %v3541
      %v3613 = vunpack.c.l.b16 %v3542
      %v3614 = vunpack.c.l.b16 %v3543
      %v3615 = vunpack.c.l.b16 %v3544
      %v3616 = vunpack.c.l.b16 %v3545
      %v3617 = vunpack.c.l.b16 %v3546
      %v3618 = vunpack.c.l.b16 %v3547
      %v3619 = vunpack.c.l.b16 %v3548
      %v3620 = vunpack.c.l.b16 %v3549
      %v3621 = vunpack.c.l.b16 %v3550
      %v3622 = vunpack.c.l.b16 %v3551
      %v3623 = vunpack.c.l.b16 %v3552
      %v3624 = vunpack.c.l.b16 %v3553
      %v3625 = vunpack.c.l.b16 %v3554
      %v3626 = vunpack.c.l.b16 %v3555
      %v3627 = vunpack.c.l.b16 %v3556
      %v3628 = vunpack.c.l.b16 %v3557
      %v3629 = vpack.c.b16 %v3598, %v3597
      %v3630 = vpack.c.b16 %v3600, %v3599
      %v3631 = vpack.c.b16 %v3602, %v3601
      %v3632 = vpack.c.b16 %v3604, %v3603
      %v3633 = vpack.c.b16 %v3606, %v3605
      %v3634 = vpack.c.b16 %v3608, %v3607
      %v3635 = vpack.c.b16 %v3610, %v3609
      %v3636 = vpack.c.b16 %v3612, %v3611
      %v3637 = vpack.c.b16 %v3614, %v3613
      %v3638 = vpack.c.b16 %v3616, %v3615
      %v3639 = vpack.c.b16 %v3618, %v3617
      %v3640 = vpack.c.b16 %v3620, %v3619
      %v3641 = vpack.c.b16 %v3622, %v3621
      %v3642 = vpack.c.b16 %v3624, %v3623
      %v3643 = vpack.c.b16 %v3626, %v3625
      %v3644 = vpack.c.b16 %v3628, %v3627
      %3661 = vmatprep.subr.bf16.mxu0 0
      %3662 = vmatpush1.bf16.msra.mxu0 %v3629
      %3663 = vmatprep.subr.bf16.mxu0 0
      %3664 = vmatpush1.bf16.msra.mxu0 %v3630
      %3665 = vmatprep.subr.bf16.mxu0 0
      %3666 = vmatpush1.bf16.msra.mxu0 %v3631
      %3667 = vmatprep.subr.bf16.mxu0 0
      %3668 = vmatpush1.bf16.msra.mxu0 %v3632
      %3669 = vmatprep.subr.bf16.mxu0 0
      %3670 = vmatpush1.bf16.msra.mxu0 %v3633
      %3671 = vmatprep.subr.bf16.mxu0 0
      %3672 = vmatpush1.bf16.msra.mxu0 %v3634
      %3673 = vmatprep.subr.bf16.mxu0 0
      %3674 = vmatpush1.bf16.msra.mxu0 %v3635
      %3675 = vmatprep.subr.bf16.mxu0 0
      %3676 = vmatpush1.bf16.msra.mxu0 %v3636
      %3677 = vmatprep.subr.bf16.mxu0 0
      %3678 = vmatpush1.bf16.msra.mxu0 %v3637
      %3679 = vmatprep.subr.bf16.mxu0 0
      %3680 = vmatpush1.bf16.msra.mxu0 %v3638
      %3681 = vmatprep.subr.bf16.mxu0 0
      %3682 = vmatpush1.bf16.msra.mxu0 %v3639
      %3683 = vmatprep.subr.bf16.mxu0 0
      %3684 = vmatpush1.bf16.msra.mxu0 %v3640
      %3685 = vmatprep.subr.bf16.mxu0 0
      %3686 = vmatpush1.bf16.msra.mxu0 %v3641
      %3687 = vmatprep.subr.bf16.mxu0 0
      %3688 = vmatpush1.bf16.msra.mxu0 %v3642
      %3689 = vmatprep.subr.bf16.mxu0 0
      %3690 = vmatpush1.bf16.msra.mxu0 %v3643
      %3691 = vmatprep.subr.bf16.mxu0 0
      %3692 = vmatpush1.bf16.msra.mxu0 %v3644
      %3693 = vmatprep.mubr.bf16.mxu0 %v3525
      %3694 = vmatmul.mubr.bf16.gmra.mrb[0].mxu0 %v3524
      %v3695 = vpop.f32.mrb[0].mxu0
      %v3696 = vadd.f32 %v3563, %v3695
      %v3697 = vpop.f32.mrb[0].mxu0
      %v3698 = vpop.f32.mrb[0].mxu0
      %v3699 = vpop.f32.mrb[0].mxu0
      %3700 = vdwg.mxu0
      %v3701 = vpack.c.bf16 %v3696, %v3696
      %3702 = vst [vmem:[%s438] sm:$0xf] %v3701
      %p3703 = scmp.lt.s32.totalorder %s24, 1
      %s3704 = scalar_select %p3703, %s24, 1
      %s3705 = smul.addr %s3704, 4
      %s3706 = scalar_lea.vmem %s13, %s3705
      // Predicated region
      $region73: #{carl_forward.4} parent=71 // pred_check
        %p3707 = pneg %p320
      $region74: #{carl_forward.4} parent=71 // pred_check_branch
        %3709 = sbr.rel (%p3707) target = $region76
      $region75: #{carl_forward.4} parent=71 // pred_region
        _
      $region76: #{carl_forward.4} parent=71 // pred_fallthru
        _
    $region72: #{carl_forward.4} parent=5 // pred_fallthru
      _
    %p3710 = scmp.le.s32.totalorder 2, %s19
    // Predicated region
    $region77: #{carl_forward.4} parent=5 // pred_check
      %p3711 = pneg %p3710
    $region78: #{carl_forward.4} parent=5 // pred_check_branch
      %3713 = sbr.rel (%p3711) target = $region80
    $region79: #{carl_forward.4} parent=5 // pred_region
      %s3714 = ssub.s32 %s19, 2
      // Predicated region
      $region81: #{carl_forward.4} parent=79 // pred_check
        %p3715 = pneg %p326
      $region82: #{carl_forward.4} parent=79 // pred_check_branch
        %3717 = sbr.rel (%p3715) target = $region84
      $region83: #{carl_forward.4} parent=79 // pred_region
        %p3718 = scmp.lt.s32.totalorder %s25, 1
        %s3719 = scalar_select %p3718, %s25, 1
        %s3720 = smul.addr %s3719, 4
        %s3721 = scalar_lea.vmem %s13, %s3720
      $region84: #{carl_forward.4} parent=79 // pred_fallthru
        _
    $region80: #{carl_forward.4} parent=5 // pred_fallthru
      _
  $region6: #{carl_forward.4} parent=0 // loop_footer
    %s23 = sadd.s32 1, %s19
  $region7: #{carl_forward.4} parent=0 // loop_footer_branch
    %18 = sbr.rel target = $region3
  $region8: #{carl_forward.4} parent=0 // loop_exit
    _

// kernel: carl_forward.3
$region0: #{carl_forward.3}
  #allocation0 [shape = 'u32[]', space=smem, size = 0x4, offset = 0x4, fixed_abs, tag = 'smem constant byte address 0x4 - core index']
  #allocation1 [shape = 'u32[144,128]{1,0:T(1,128)}', space=vmem, size = 0x12000, scoped, tag = 'internal scratch']
  #allocation2 [shape = 'f32[16,2048]{1,0:T(8,128)}', space=vmem, size = 0x20000, scoped, tag = 'scratch operand']
  %s0 = inlined_call_operand.vmem [shape: bf16[16,768], index: 0, kind: input, shape index: {}]
  %s1 = inlined_call_operand.hbm [shape: bf16[768,2048], index: 1, kind: input, shape index: {}]
  %s2 = inlined_call_operand.hbm [shape: f32[1,2048], index: 2, kind: input, shape index: {}]
  %s3 = inlined_call_operand.hbm [shape: bf16[2048,256], index: 3, kind: input, shape index: {}]
  %s4 = inlined_call_operand.hbm [shape: f32[1,256], index: 4, kind: input, shape index: {}]
  %s5 = inlined_call_operand.vmem [shape: bf16[16,256], index: 5, kind: output, shape index: {}]
  %s6 = sld [smem:[#allocation0]]
  $region54: #{carl_forward.3} parent=0
    _
  %s8 = ssub.s32 1, %s6
  %s9 = scalar_select 0, %s8, %s6
  $region1: #{carl_forward.3} parent=0
    #allocation3 [shape = 'u8[3145728]{0}', space=vmem, size = 0x300000, scoped, tag = 'input window, operand 1, single buffered']
    #allocation4 [shape = 's32[1]{0}', space=sflag, size = 0x4, scoped, tag = 'scoped memory for carl_forward.3']
    #allocation5 [shape = 'u8[8192]{0}', space=vmem, size = 0x2000, scoped, tag = 'input window, operand 2, single buffered']
    #allocation6 [shape = 's32[1]{0}', space=sflag, size = 0x4, scoped, tag = 'scoped memory for carl_forward.3']
    #allocation7 [shape = 'u8[1048576]{0}', space=vmem, size = 0x100000, scoped, tag = 'input window, operand 3, single buffered']
    #allocation8 [shape = 'u8[1024]{0}', space=vmem, size = 0x400, scoped, tag = 'input window, operand 4, single buffered']
    #allocation9 [shape = 's32[1]{0}', space=sflag, size = 0x4, scoped, tag = 'scoped memory for carl_forward.3']
    %10 = vsyncpa [#allocation4], 0
    %11 = vsyncpa [#allocation6], 0
    %12 = vsyncpa [#allocation9], 0
    // Predicated region
    $region2: #{carl_forward.3} parent=1 // pred_check
      _
    $region3: #{carl_forward.3} parent=1 // pred_check_branch
      %14 = sbr.rel (0) target = $region5
    $region4: #{carl_forward.3} parent=1 // pred_region
      _
    $region5: #{carl_forward.3} parent=1 // pred_fallthru
      _
    // Predicated region
    $region6: #{carl_forward.3} parent=1 // pred_check
      _
    $region7: #{carl_forward.3} parent=1 // pred_check_branch
      %16 = sbr.rel (0) target = $region9
    $region8: #{carl_forward.3} parent=1 // pred_region
      %s18 = ssub.s32 98304, 98304
      %19 = vsyncadd [#allocation4], %s18
      %s20 = sshll.u32 [#allocation3], 4
      %s21 = int_to_ptr.vmem [resolvable:$true] %s20
      %26 = dma.hbm_to_vmem [thread:$0]  %s1, 98304, %s21, [#allocation4], 1024, 1024, 64
    $region9: #{carl_forward.3} parent=1 // pred_fallthru
      _
    // Predicated region
    $region10: #{carl_forward.3} parent=1 // pred_check
      _
    $region11: #{carl_forward.3} parent=1 // pred_check_branch
      %28 = sbr.rel (0) target = $region13
    $region12: #{carl_forward.3} parent=1 // pred_region
      %s30 = ssub.s32 256, 256
      %31 = vsyncadd [#allocation6], %s30
      %s33 = sshll.u32 [#allocation5], 4
      %s34 = int_to_ptr.vmem [resolvable:$true] %s33
      %36 = dma.hbm_to_vmem [thread:$0]  %s2, 256, %s34, [#allocation6]
    $region13: #{carl_forward.3} parent=1 // pred_fallthru
      _
    // Predicated region
    $region14: #{carl_forward.3} parent=1 // pred_check
      _
    $region15: #{carl_forward.3} parent=1 // pred_check_branch
      %38 = sbr.rel (0) target = $region17
    $region16: #{carl_forward.3} parent=1 // pred_region
      %s40 = ssub.s32 32768, 32768
      %41 = vsyncadd [#allocation6], %s40
      %s42 = sshll.u32 [#allocation7], 4
      %s43 = int_to_ptr.vmem [resolvable:$true] %s42
      %48 = dma.hbm_to_vmem [thread:$0]  %s3, 32768, %s43, [#allocation6], 128, 128, 8
    $region17: #{carl_forward.3} parent=1 // pred_fallthru
      _
    // Predicated region
    $region18: #{carl_forward.3} parent=1 // pred_check
      _
    $region19: #{carl_forward.3} parent=1 // pred_check_branch
      %50 = sbr.rel (0) target = $region21
    $region20: #{carl_forward.3} parent=1 // pred_region
      %s52 = ssub.s32 32, 32
      %53 = vsyncadd [#allocation9], %s52
      %s55 = sshll.u32 [#allocation8], 4
      %s56 = int_to_ptr.vmem [resolvable:$true] %s55
      %58 = dma.hbm_to_vmem [thread:$0]  %s4, 32, %s56, [#allocation9]
    $region21: #{carl_forward.3} parent=1 // pred_fallthru
      _
    // Predicated region
    $region22: #{carl_forward.3} parent=1 // pred_check
      _
    $region23: #{carl_forward.3} parent=1 // pred_check_branch
      %60 = sbr.rel (0) target = $region25
    $region24: #{carl_forward.3} parent=1 // pred_region
      %61 = dma.done [#allocation4], 98304
    $region25: #{carl_forward.3} parent=1 // pred_fallthru
      _
    // Predicated region
    $region26: #{carl_forward.3} parent=1 // pred_check
      _
    $region27: #{carl_forward.3} parent=1 // pred_check_branch
      %63 = sbr.rel (0) target = $region29
    $region28: #{carl_forward.3} parent=1 // pred_region
      %64 = dma.done [#allocation6], 256
    $region29: #{carl_forward.3} parent=1 // pred_fallthru
      _
    // Predicated region
    $region30: #{carl_forward.3} parent=1 // pred_check
      _
    $region31: #{carl_forward.3} parent=1 // pred_check_branch
      %66 = sbr.rel (0) target = $region33
    $region32: #{carl_forward.3} parent=1 // pred_region
      %67 = dma.done [#allocation6], 32768
    $region33: #{carl_forward.3} parent=1 // pred_fallthru
      _
    // Predicated region
    $region34: #{carl_forward.3} parent=1 // pred_check
      _
    $region35: #{carl_forward.3} parent=1 // pred_check_branch
      %69 = sbr.rel (0) target = $region37
    $region36: #{carl_forward.3} parent=1 // pred_region
      %70 = dma.done [#allocation9], 32
    $region37: #{carl_forward.3} parent=1 // pred_fallthru
      _
    %p71 = scmp.eq.s32.totalorder 0, 0
    // Predicated region
    $region38: #{carl_forward.3} parent=1 // pred_check
      %p72 = pneg %p71
    $region39: #{carl_forward.3} parent=1 // pred_check_branch
      %74 = sbr.rel (%p72) target = $region41
    $region40: #{carl_forward.3} parent=1 // pred_region
      %75 = vst [vmem:[#allocation2] sm:$0xff] 0.0
      %76 = vst [vmem:[#allocation2 + $0x8] sm:$0xff] 0.0
      %77 = vst [vmem:[#allocation2 + $0x10] sm:$0xff] 0.0
      %78 = vst [vmem:[#allocation2 + $0x18] sm:$0xff] 0.0
      %79 = vst [vmem:[#allocation2 + $0x20] sm:$0xff] 0.0
      %80 = vst [vmem:[#allocation2 + $0x28] sm:$0xff] 0.0
      %81 = vst [vmem:[#allocation2 + $0x30] sm:$0xff] 0.0
      %82 = vst [vmem:[#allocation2 + $0x38] sm:$0xff] 0.0
      %83 = vst [vmem:[#allocation2 + $0x40] sm:$0xff] 0.0
      %84 = vst [vmem:[#allocation2 + $0x48] sm:$0xff] 0.0
      %85 = vst [vmem:[#allocation2 + $0x50] sm:$0xff] 0.0
      %86 = vst [vmem:[#allocation2 + $0x58] sm:$0xff] 0.0
      %87 = vst [vmem:[#allocation2 + $0x60] sm:$0xff] 0.0
      %88 = vst [vmem:[#allocation2 + $0x68] sm:$0xff] 0.0
      %89 = vst [vmem:[#allocation2 + $0x70] sm:$0xff] 0.0
      %90 = vst [vmem:[#allocation2 + $0x78] sm:$0xff] 0.0
      %91 = vst [vmem:[#allocation2 + $0x80] sm:$0xff] 0.0
      %92 = vst [vmem:[#allocation2 + $0x88] sm:$0xff] 0.0
      %93 = vst [vmem:[#allocation2 + $0x90] sm:$0xff] 0.0
      %94 = vst [vmem:[#allocation2 + $0x98] sm:$0xff] 0.0
      %95 = vst [vmem:[#allocation2 + $0xa0] sm:$0xff] 0.0
      %96 = vst [vmem:[#allocation2 + $0xa8] sm:$0xff] 0.0
      %97 = vst [vmem:[#allocation2 + $0xb0] sm:$0xff] 0.0
      %98 = vst [vmem:[#allocation2 + $0xb8] sm:$0xff] 0.0
      %99 = vst [vmem:[#allocation2 + $0xc0] sm:$0xff] 0.0
      %100 = vst [vmem:[#allocation2 + $0xc8] sm:$0xff] 0.0
      %101 = vst [vmem:[#allocation2 + $0xd0] sm:$0xff] 0.0
      %102 = vst [vmem:[#allocation2 + $0xd8] sm:$0xff] 0.0
      %103 = vst [vmem:[#allocation2 + $0xe0] sm:$0xff] 0.0
      %104 = vst [vmem:[#allocation2 + $0xe8] sm:$0xff] 0.0
      %105 = vst [vmem:[#allocation2 + $0xf0] sm:$0xff] 0.0
      %106 = vst [vmem:[#allocation2 + $0xf8] sm:$0xff] 0.0
    $region41: #{carl_forward.3} parent=1 // pred_fallthru
      _
    %v107 = vld [vmem:[#allocation2] sm:$0xff]
    %v108 = vld [vmem:[#allocation2 + $0x8] sm:$0xff]
    %v109 = vld [vmem:[#allocation2 + $0x10] sm:$0xff]
    %v110 = vld [vmem:[#allocation2 + $0x18] sm:$0xff]
    %v111 = vld [vmem:[#allocation2 + $0x20] sm:$0xff]
    %v112 = vld [vmem:[#allocation2 + $0x28] sm:$0xff]
    %v113 = vld [vmem:[#allocation2 + $0x30] sm:$0xff]
    %v114 = vld [vmem:[#allocation2 + $0x38] sm:$0xff]
    %v115 = vld [vmem:[#allocation2 + $0x40] sm:$0xff]
    %v116 = vld [vmem:[#allocation2 + $0x48] sm:$0xff]
    %v117 = vld [vmem:[#allocation2 + $0x50] sm:$0xff]
    %v118 = vld [vmem:[#allocation2 + $0x58] sm:$0xff]
    %v119 = vld [vmem:[#allocation2 + $0x60] sm:$0xff]
    %v120 = vld [vmem:[#allocation2 + $0x68] sm:$0xff]
    %v121 = vld [vmem:[#allocation2 + $0x70] sm:$0xff]
    %v122 = vld [vmem:[#allocation2 + $0x78] sm:$0xff]
    %v123 = vld [vmem:[#allocation2 + $0x80] sm:$0xff]
    %v124 = vld [vmem:[#allocation2 + $0x88] sm:$0xff]
    %v125 = vld [vmem:[#allocation2 + $0x90] sm:$0xff]
    %v126 = vld [vmem:[#allocation2 + $0x98] sm:$0xff]
    %v127 = vld [vmem:[#allocation2 + $0xa0] sm:$0xff]
    %v128 = vld [vmem:[#allocation2 + $0xa8] sm:$0xff]
    %v129 = vld [vmem:[#allocation2 + $0xb0] sm:$0xff]
    %v130 = vld [vmem:[#allocation2 + $0xb8] sm:$0xff]
    %v131 = vld [vmem:[#allocation2 + $0xc0] sm:$0xff]
    %v132 = vld [vmem:[#allocation2 + $0xc8] sm:$0xff]
    %v133 = vld [vmem:[#allocation2 + $0xd0] sm:$0xff]
    %v134 = vld [vmem:[#allocation2 + $0xd8] sm:$0xff]
    %v135 = vld [vmem:[#allocation2 + $0xe0] sm:$0xff]
    %v136 = vld [vmem:[#allocation2 + $0xe8] sm:$0xff]
    %v137 = vld [vmem:[#allocation2 + $0xf0] sm:$0xff]
    %v138 = vld [vmem:[#allocation2 + $0xf8] sm:$0xff]
    %v139 = vld [vmem:[%s0] sm:$0xff]
    %v140 = vld [vmem:[%s0 + $0x8] sm:$0xff]
    %v141 = vld [vmem:[%s0 + $0x10] sm:$0xff]
    %v142 = vld [vmem:[%s0 + $0x18] sm:$0xff]
    %v143 = vld [vmem:[%s0 + $0x20] sm:$0xff]
    %v144 = vld [vmem:[%s0 + $0x28] sm:$0xff]
    %v145 = vld [vmem:[#allocation3] sm:$0xff]
    %v146 = vld [vmem:[#allocation3 + $0x8] sm:$0xff]
    %v147 = vld [vmem:[#allocation3 + $0x10] sm:$0xff]
    %v148 = vld [vmem:[#allocation3 + $0x18] sm:$0xff]
    %v149 = vld [vmem:[#allocation3 + $0x20] sm:$0xff]
    %v150 = vld [vmem:[#allocation3 + $0x28] sm:$0xff]
    %v151 = vld [vmem:[#allocation3 + $0x30] sm:$0xff]
    %v152 = vld [vmem:[#allocation3 + $0x38] sm:$0xff]
    %v153 = vld [vmem:[#allocation3 + $0x40] sm:$0xff]
    %v154 = vld [vmem:[#allocation3 + $0x48] sm:$0xff]
    %v155 = vld [vmem:[#allocation3 + $0x50] sm:$0xff]
    %v156 = vld [vmem:[#allocation3 + $0x58] sm:$0xff]
    %v157 = vld [vmem:[#allocation3 + $0x60] sm:$0xff]
    %v158 = vld [vmem:[#allocation3 + $0x68] sm:$0xff]
    %v159 = vld [vmem:[#allocation3 + $0x70] sm:$0xff]
    %v160 = vld [vmem:[#allocation3 + $0x78] sm:$0xff]
    %v161 = vld [vmem:[#allocation3 + $0x80] sm:$0xff]
    %v162 = vld [vmem:[#allocation3 + $0x88] sm:$0xff]
    %v163 = vld [vmem:[#allocation3 + $0x90] sm:$0xff]
    %v164 = vld [vmem:[#allocation3 + $0x98] sm:$0xff]
    %v165 = vld [vmem:[#allocation3 + $0xa0] sm:$0xff]
    %v166 = vld [vmem:[#allocation3 + $0xa8] sm:$0xff]
    %v167 = vld [vmem:[#allocation3 + $0xb0] sm:$0xff]
    %v168 = vld [vmem:[#allocation3 + $0xb8] sm:$0xff]
    %v169 = vld [vmem:[#allocation3 + $0xc0] sm:$0xff]
    %v170 = vld [vmem:[#allocation3 + $0xc8] sm:$0xff]
    %v171 = vld [vmem:[#allocation3 + $0xd0] sm:$0xff]
    %v172 = vld [vmem:[#allocation3 + $0xd8] sm:$0xff]
    %v173 = vld [vmem:[#allocation3 + $0xe0] sm:$0xff]
    %v174 = vld [vmem:[#allocation3 + $0xe8] sm:$0xff]
    %v175 = vld [vmem:[#allocation3 + $0xf0] sm:$0xff]
    %v176 = vld [vmem:[#allocation3 + $0xf8] sm:$0xff]
    %v177 = vld [vmem:[#allocation3 + $0x100] sm:$0xff]
    %v178 = vld [vmem:[#allocation3 + $0x108] sm:$0xff]
    %v179 = vld [vmem:[#allocation3 + $0x110] sm:$0xff]
    %v180 = vld [vmem:[#allocation3 + $0x118] sm:$0xff]
    %v181 = vld [vmem:[#allocation3 + $0x120] sm:$0xff]
    %v182 = vld [vmem:[#allocation3 + $0x128] sm:$0xff]
    %v183 = vld [vmem:[#allocation3 + $0x130] sm:$0xff]
    %v184 = vld [vmem:[#allocation3 + $0x138] sm:$0xff]
    %v185 = vld [vmem:[#allocation3 + $0x140] sm:$0xff]
    %v186 = vld [vmem:[#allocation3 + $0x148] sm:$0xff]
    %v187 = vld [vmem:[#allocation3 + $0x150] sm:$0xff]
    %v188 = vld [vmem:[#allocation3 + $0x158] sm:$0xff]
    %v189 = vld [vmem:[#allocation3 + $0x160] sm:$0xff]
    %v190 = vld [vmem:[#allocation3 + $0x168] sm:$0xff]
    %v191 = vld [vmem:[#allocation3 + $0x170] sm:$0xff]
    %v192 = vld [vmem:[#allocation3 + $0x178] sm:$0xff]
    %v193 = vld [vmem:[#allocation3 + $0x180] sm:$0xff]
    %v194 = vld [vmem:[#allocation3 + $0x188] sm:$0xff]
    %v195 = vld [vmem:[#allocation3 + $0x190] sm:$0xff]
    %v196 = vld [vmem:[#allocation3 + $0x198] sm:$0xff]
    %v197 = vld [vmem:[#allocation3 + $0x1a0] sm:$0xff]
    %v198 = vld [vmem:[#allocation3 + $0x1a8] sm:$0xff]
    %v199 = vld [vmem:[#allocation3 + $0x1b0] sm:$0xff]
    %v200 = vld [vmem:[#allocation3 + $0x1b8] sm:$0xff]
    %v201 = vld [vmem:[#allocation3 + $0x1c0] sm:$0xff]
    %v202 = vld [vmem:[#allocation3 + $0x1c8] sm:$0xff]
    %v203 = vld [vmem:[#allocation3 + $0x1d0] sm:$0xff]
    %v204 = vld [vmem:[#allocation3 + $0x1d8] sm:$0xff]
    %v205 = vld [vmem:[#allocation3 + $0x1e0] sm:$0xff]
    %v206 = vld [vmem:[#allocation3 + $0x1e8] sm:$0xff]
    %v207 = vld [vmem:[#allocation3 + $0x1f0] sm:$0xff]
    %v208 = vld [vmem:[#allocation3 + $0x1f8] sm:$0xff]
    %v209 = vld [vmem:[#allocation3 + $0x200] sm:$0xff]
    %v210 = vld [vmem:[#allocation3 + $0x208] sm:$0xff]
    %v211 = vld [vmem:[#allocation3 + $0x210] sm:$0xff]
    %v212 = vld [vmem:[#allocation3 + $0x218] sm:$0xff]
    %v213 = vld [vmem:[#allocation3 + $0x220] sm:$0xff]
    %v214 = vld [vmem:[#allocation3 + $0x228] sm:$0xff]
    %v215 = vld [vmem:[#allocation3 + $0x230] sm:$0xff]
    %v216 = vld [vmem:[#allocation3 + $0x238] sm:$0xff]
    %v217 = vld [vmem:[#allocation3 + $0x240] sm:$0xff]
    %v218 = vld [vmem:[#allocation3 + $0x248] sm:$0xff]
    %v219 = vld [vmem:[#allocation3 + $0x250] sm:$0xff]
    %v220 = vld [vmem:[#allocation3 + $0x258] sm:$0xff]
    %v221 = vld [vmem:[#allocation3 + $0x260] sm:$0xff]
    %v222 = vld [vmem:[#allocation3 + $0x268] sm:$0xff]
    %v223 = vld [vmem:[#allocation3 + $0x270] sm:$0xff]
    %v224 = vld [vmem:[#allocation3 + $0x278] sm:$0xff]
    %v225 = vld [vmem:[#allocation3 + $0x280] sm:$0xff]
    %v226 = vld [vmem:[#allocation3 + $0x288] sm:$0xff]
    %v227 = vld [vmem:[#allocation3 + $0x290] sm:$0xff]
    %v228 = vld [vmem:[#allocation3 + $0x298] sm:$0xff]
    %v229 = vld [vmem:[#allocation3 + $0x2a0] sm:$0xff]
    %v230 = vld [vmem:[#allocation3 + $0x2a8] sm:$0xff]
    %v231 = vld [vmem:[#allocation3 + $0x2b0] sm:$0xff]
    %v232 = vld [vmem:[#allocation3 + $0x2b8] sm:$0xff]
    %v233 = vld [vmem:[#allocation3 + $0x2c0] sm:$0xff]
    %v234 = vld [vmem:[#allocation3 + $0x2c8] sm:$0xff]
    %v235 = vld [vmem:[#allocation3 + $0x2d0] sm:$0xff]
    %v236 = vld [vmem:[#allocation3 + $0x2d8] sm:$0xff]
    %v237 = vld [vmem:[#allocation3 + $0x2e0] sm:$0xff]
    %v238 = vld [vmem:[#allocation3 + $0x2e8] sm:$0xff]
    %v239 = vld [vmem:[#allocation3 + $0x2f0] sm:$0xff]
    %v240 = vld [vmem:[#allocation3 + $0x2f8] sm:$0xff]
    %v241 = vld [vmem:[#allocation3 + $0x300] sm:$0xff]
    %v242 = vld [vmem:[#allocation3 + $0x308] sm:$0xff]
    %v243 = vld [vmem:[#allocation3 + $0x310] sm:$0xff]
    %v244 = vld [vmem:[#allocation3 + $0x318] sm:$0xff]
    %v245 = vld [vmem:[#allocation3 + $0x320] sm:$0xff]
    %v246 = vld [vmem:[#allocation3 + $0x328] sm:$0xff]
    %v247 = vld [vmem:[#allocation3 + $0x330] sm:$0xff]
    %v248 = vld [vmem:[#allocation3 + $0x338] sm:$0xff]
    %v249 = vld [vmem:[#allocation3 + $0x340] sm:$0xff]
    %v250 = vld [vmem:[#allocation3 + $0x348] sm:$0xff]
    %v251 = vld [vmem:[#allocation3 + $0x350] sm:$0xff]
    %v252 = vld [vmem:[#allocation3 + $0x358] sm:$0xff]
    %v253 = vld [vmem:[#allocation3 + $0x360] sm:$0xff]
    %v254 = vld [vmem:[#allocation3 + $0x368] sm:$0xff]
    %v255 = vld [vmem:[#allocation3 + $0x370] sm:$0xff]
    %v256 = vld [vmem:[#allocation3 + $0x378] sm:$0xff]
    %v257 = vld [vmem:[#allocation3 + $0x380] sm:$0xff]
    %v258 = vld [vmem:[#allocation3 + $0x388] sm:$0xff]
    %v259 = vld [vmem:[#allocation3 + $0x390] sm:$0xff]
    %v260 = vld [vmem:[#allocation3 + $0x398] sm:$0xff]
    %v261 = vld [vmem:[#allocation3 + $0x3a0] sm:$0xff]
    %v262 = vld [vmem:[#allocation3 + $0x3a8] sm:$0xff]
    %v263 = vld [vmem:[#allocation3 + $0x3b0] sm:$0xff]
    %v264 = vld [vmem:[#allocation3 + $0x3b8] sm:$0xff]
    %v265 = vld [vmem:[#allocation3 + $0x3c0] sm:$0xff]
    %v266 = vld [vmem:[#allocation3 + $0x3c8] sm:$0xff]
    %v267 = vld [vmem:[#allocation3 + $0x3d0] sm:$0xff]
    %v268 = vld [vmem:[#allocation3 + $0x3d8] sm:$0xff]
    %v269 = vld [vmem:[#allocation3 + $0x3e0] sm:$0xff]
    %v270 = vld [vmem:[#allocation3 + $0x3e8] sm:$0xff]
    %v271 = vld [vmem:[#allocation3 + $0x3f0] sm:$0xff]
    %v272 = vld [vmem:[#allocation3 + $0x3f8] sm:$0xff]
    %v273 = vld [vmem:[#allocation3 + $0x400] sm:$0xff]
    %v274 = vld [vmem:[#allocation3 + $0x408] sm:$0xff]
    %v275 = vld [vmem:[#allocation3 + $0x410] sm:$0xff]
    %v276 = vld [vmem:[#allocation3 + $0x418] sm:$0xff]
    %v277 = vld [vmem:[#allocation3 + $0x420] sm:$0xff]
    %v278 = vld [vmem:[#allocation3 + $0x428] sm:$0xff]
    %v279 = vld [vmem:[#allocation3 + $0x430] sm:$0xff]
    %v280 = vld [vmem:[#allocation3 + $0x438] sm:$0xff]
    %v281 = vld [vmem:[#allocation3 + $0x440] sm:$0xff]
    %v282 = vld [vmem:[#allocation3 + $0x448] sm:$0xff]
    %v283 = vld [vmem:[#allocation3 + $0x450] sm:$0xff]
    %v284 = vld [vmem:[#allocation3 + $0x458] sm:$0xff]
    %v285 = vld [vmem:[#allocation3 + $0x460] sm:$0xff]
    %v286 = vld [vmem:[#allocation3 + $0x468] sm:$0xff]
    %v287 = vld [vmem:[#allocation3 + $0x470] sm:$0xff]
    %v288 = vld [vmem:[#allocation3 + $0x478] sm:$0xff]
    %v289 = vld [vmem:[#allocation3 + $0x480] sm:$0xff]
    %v290 = vld [vmem:[#allocation3 + $0x488] sm:$0xff]
    %v291 = vld [vmem:[#allocation3 + $0x490] sm:$0xff]
    %v292 = vld [vmem:[#allocation3 + $0x498] sm:$0xff]
    %v293 = vld [vmem:[#allocation3 + $0x4a0] sm:$0xff]
    %v294 = vld [vmem:[#allocation3 + $0x4a8] sm:$0xff]
    %v295 = vld [vmem:[#allocation3 + $0x4b0] sm:$0xff]
    %v296 = vld [vmem:[#allocation3 + $0x4b8] sm:$0xff]
    %v297 = vld [vmem:[#allocation3 + $0x4c0] sm:$0xff]
    %v298 = vld [vmem:[#allocation3 + $0x4c8] sm:$0xff]
    %v299 = vld [vmem:[#allocation3 + $0x4d0] sm:$0xff]
    %v300 = vld [vmem:[#allocation3 + $0x4d8] sm:$0xff]
    %v301 = vld [vmem:[#allocation3 + $0x4e0] sm:$0xff]
    %v302 = vld [vmem:[#allocation3 + $0x4e8] sm:$0xff]
    %v303 = vld [vmem:[#allocation3 + $0x4f0] sm:$0xff]
    %v304 = vld [vmem:[#allocation3 + $0x4f8] sm:$0xff]
    %v305 = vld [vmem:[#allocation3 + $0x500] sm:$0xff]
    %v306 = vld [vmem:[#allocation3 + $0x508] sm:$0xff]
    %v307 = vld [vmem:[#allocation3 + $0x510] sm:$0xff]
    %v308 = vld [vmem:[#allocation3 + $0x518] sm:$0xff]
    %v309 = vld [vmem:[#allocation3 + $0x520] sm:$0xff]
    %v310 = vld [vmem:[#allocation3 + $0x528] sm:$0xff]
    %v311 = vld [vmem:[#allocation3 + $0x530] sm:$0xff]
    %v312 = vld [vmem:[#allocation3 + $0x538] sm:$0xff]
    %v313 = vld [vmem:[#allocation3 + $0x540] sm:$0xff]
    %v314 = vld [vmem:[#allocation3 + $0x548] sm:$0xff]
    %v315 = vld [vmem:[#allocation3 + $0x550] sm:$0xff]
    %v316 = vld [vmem:[#allocation3 + $0x558] sm:$0xff]
    %v317 = vld [vmem:[#allocation3 + $0x560] sm:$0xff]
    %v318 = vld [vmem:[#allocation3 + $0x568] sm:$0xff]
    %v319 = vld [vmem:[#allocation3 + $0x570] sm:$0xff]
    %v320 = vld [vmem:[#allocation3 + $0x578] sm:$0xff]
    %v321 = vld [vmem:[#allocation3 + $0x580] sm:$0xff]
    %v322 = vld [vmem:[#allocation3 + $0x588] sm:$0xff]
    %v323 = vld [vmem:[#allocation3 + $0x590] sm:$0xff]
    %v324 = vld [vmem:[#allocation3 + $0x598] sm:$0xff]
    %v325 = vld [vmem:[#allocation3 + $0x5a0] sm:$0xff]
    %v326 = vld [vmem:[#allocation3 + $0x5a8] sm:$0xff]
    %v327 = vld [vmem:[#allocation3 + $0x5b0] sm:$0xff]
    %v328 = vld [vmem:[#allocation3 + $0x5b8] sm:$0xff]
    %v329 = vld [vmem:[#allocation3 + $0x5c0] sm:$0xff]
    %v330 = vld [vmem:[#allocation3 + $0x5c8] sm:$0xff]
    %v331 = vld [vmem:[#allocation3 + $0x5d0] sm:$0xff]
    %v332 = vld [vmem:[#allocation3 + $0x5d8] sm:$0xff]
    %v333 = vld [vmem:[#allocation3 + $0x5e0] sm:$0xff]
    %v334 = vld [vmem:[#allocation3 + $0x5e8] sm:$0xff]
    %v335 = vld [vmem:[#allocation3 + $0x5f0] sm:$0xff]
    %v336 = vld [vmem:[#allocation3 + $0x5f8] sm:$0xff]
    %v337 = vld [vmem:[#allocation3 + $0x600] sm:$0xff]
    %v338 = vld [vmem:[#allocation3 + $0x608] sm:$0xff]
    %v339 = vld [vmem:[#allocation3 + $0x610] sm:$0xff]
    %v340 = vld [vmem:[#allocation3 + $0x618] sm:$0xff]
    %v341 = vld [vmem:[#allocation3 + $0x620] sm:$0xff]
    %v342 = vld [vmem:[#allocation3 + $0x628] sm:$0xff]
    %v343 = vld [vmem:[#allocation3 + $0x630] sm:$0xff]
    %v344 = vld [vmem:[#allocation3 + $0x638] sm:$0xff]
    %v345 = vld [vmem:[#allocation3 + $0x640] sm:$0xff]
    %v346 = vld [vmem:[#allocation3 + $0x648] sm:$0xff]
    %v347 = vld [vmem:[#allocation3 + $0x650] sm:$0xff]
    %v348 = vld [vmem:[#allocation3 + $0x658] sm:$0xff]
    %v349 = vld [vmem:[#allocation3 + $0x660] sm:$0xff]
    %v350 = vld [vmem:[#allocation3 + $0x668] sm:$0xff]
    %v351 = vld [vmem:[#allocation3 + $0x670] sm:$0xff]
    %v352 = vld [vmem:[#allocation3 + $0x678] sm:$0xff]
    %v353 = vld [vmem:[#allocation3 + $0x680] sm:$0xff]
    %v354 = vld [vmem:[#allocation3 + $0x688] sm:$0xff]
    %v355 = vld [vmem:[#allocation3 + $0x690] sm:$0xff]
    %v356 = vld [vmem:[#allocation3 + $0x698] sm:$0xff]
    %v357 = vld [vmem:[#allocation3 + $0x6a0] sm:$0xff]
    %v358 = vld [vmem:[#allocation3 + $0x6a8] sm:$0xff]
    %v359 = vld [vmem:[#allocation3 + $0x6b0] sm:$0xff]
    %v360 = vld [vmem:[#allocation3 + $0x6b8] sm:$0xff]
    %v361 = vld [vmem:[#allocation3 + $0x6c0] sm:$0xff]
    %v362 = vld [vmem:[#allocation3 + $0x6c8] sm:$0xff]
    %v363 = vld [vmem:[#allocation3 + $0x6d0] sm:$0xff]
    %v364 = vld [vmem:[#allocation3 + $0x6d8] sm:$0xff]
    %v365 = vld [vmem:[#allocation3 + $0x6e0] sm:$0xff]
    %v366 = vld [vmem:[#allocation3 + $0x6e8] sm:$0xff]
    %v367 = vld [vmem:[#allocation3 + $0x6f0] sm:$0xff]
    %v368 = vld [vmem:[#allocation3 + $0x6f8] sm:$0xff]
    %v369 = vld [vmem:[#allocation3 + $0x700] sm:$0xff]
    %v370 = vld [vmem:[#allocation3 + $0x708] sm:$0xff]
    %v371 = vld [vmem:[#allocation3 + $0x710] sm:$0xff]
    %v372 = vld [vmem:[#allocation3 + $0x718] sm:$0xff]
    %v373 = vld [vmem:[#allocation3 + $0x720] sm:$0xff]
    %v374 = vld [vmem:[#allocation3 + $0x728] sm:$0xff]
    %v375 = vld [vmem:[#allocation3 + $0x730] sm:$0xff]
    %v376 = vld [vmem:[#allocation3 + $0x738] sm:$0xff]
    %v377 = vld [vmem:[#allocation3 + $0x740] sm:$0xff]
    %v378 = vld [vmem:[#allocation3 + $0x748] sm:$0xff]
    %v379 = vld [vmem:[#allocation3 + $0x750] sm:$0xff]
    %v380 = vld [vmem:[#allocation3 + $0x758] sm:$0xff]
    %v381 = vld [vmem:[#allocation3 + $0x760] sm:$0xff]
    %v382 = vld [vmem:[#allocation3 + $0x768] sm:$0xff]
    %v383 = vld [vmem:[#allocation3 + $0x770] sm:$0xff]
    %v384 = vld [vmem:[#allocation3 + $0x778] sm:$0xff]
    %v385 = vld [vmem:[#allocation3 + $0x780] sm:$0xff]
    %v386 = vld [vmem:[#allocation3 + $0x788] sm:$0xff]
    %v387 = vld [vmem:[#allocation3 + $0x790] sm:$0xff]
    %v388 = vld [vmem:[#allocation3 + $0x798] sm:$0xff]
    %v389 = vld [vmem:[#allocation3 + $0x7a0] sm:$0xff]
    %v390 = vld [vmem:[#allocation3 + $0x7a8] sm:$0xff]
    %v391 = vld [vmem:[#allocation3 + $0x7b0] sm:$0xff]
    %v392 = vld [vmem:[#allocation3 + $0x7b8] sm:$0xff]
    %v393 = vld [vmem:[#allocation3 + $0x7c0] sm:$0xff]
    %v394 = vld [vmem:[#allocation3 + $0x7c8] sm:$0xff]
    %v395 = vld [vmem:[#allocation3 + $0x7d0] sm:$0xff]
    %v396 = vld [vmem:[#allocation3 + $0x7d8] sm:$0xff]
    %v397 = vld [vmem:[#allocation3 + $0x7e0] sm:$0xff]
    %v398 = vld [vmem:[#allocation3 + $0x7e8] sm:$0xff]
    %v399 = vld [vmem:[#allocation3 + $0x7f0] sm:$0xff]
    %v400 = vld [vmem:[#allocation3 + $0x7f8] sm:$0xff]
    %v401 = vld [vmem:[#allocation3 + $0x800] sm:$0xff]
    %v402 = vld [vmem:[#allocation3 + $0x808] sm:$0xff]
    %v403 = vld [vmem:[#allocation3 + $0x810] sm:$0xff]
    %v404 = vld [vmem:[#allocation3 + $0x818] sm:$0xff]
    %v405 = vld [vmem:[#allocation3 + $0x820] sm:$0xff]
    %v406 = vld [vmem:[#allocation3 + $0x828] sm:$0xff]
    %v407 = vld [vmem:[#allocation3 + $0x830] sm:$0xff]
    %v408 = vld [vmem:[#allocation3 + $0x838] sm:$0xff]
    %v409 = vld [vmem:[#allocation3 + $0x840] sm:$0xff]
    %v410 = vld [vmem:[#allocation3 + $0x848] sm:$0xff]
    %v411 = vld [vmem:[#allocation3 + $0x850] sm:$0xff]
    %v412 = vld [vmem:[#allocation3 + $0x858] sm:$0xff]
    %v413 = vld [vmem:[#allocation3 + $0x860] sm:$0xff]
    %v414 = vld [vmem:[#allocation3 + $0x868] sm:$0xff]
    %v415 = vld [vmem:[#allocation3 + $0x870] sm:$0xff]
    %v416 = vld [vmem:[#allocation3 + $0x878] sm:$0xff]
    %v417 = vld [vmem:[#allocation3 + $0x880] sm:$0xff]
    %v418 = vld [vmem:[#allocation3 + $0x888] sm:$0xff]
    %v419 = vld [vmem:[#allocation3 + $0x890] sm:$0xff]
    %v420 = vld [vmem:[#allocation3 + $0x898] sm:$0xff]
    %v421 = vld [vmem:[#allocation3 + $0x8a0] sm:$0xff]
    %v422 = vld [vmem:[#allocation3 + $0x8a8] sm:$0xff]
    %v423 = vld [vmem:[#allocation3 + $0x8b0] sm:$0xff]
    %v424 = vld [vmem:[#allocation3 + $0x8b8] sm:$0xff]
    %v425 = vld [vmem:[#allocation3 + $0x8c0] sm:$0xff]
    %v426 = vld [vmem:[#allocation3 + $0x8c8] sm:$0xff]
    %v427 = vld [vmem:[#allocation3 + $0x8d0] sm:$0xff]
    %v428 = vld [vmem:[#allocation3 + $0x8d8] sm:$0xff]
    %v429 = vld [vmem:[#allocation3 + $0x8e0] sm:$0xff]
    %v430 = vld [vmem:[#allocation3 + $0x8e8] sm:$0xff]
    %v431 = vld [vmem:[#allocation3 + $0x8f0] sm:$0xff]
    %v432 = vld [vmem:[#allocation3 + $0x8f8] sm:$0xff]
    %v433 = vld [vmem:[#allocation3 + $0x900] sm:$0xff]
    %v434 = vld [vmem:[#allocation3 + $0x908] sm:$0xff]
    %v435 = vld [vmem:[#allocation3 + $0x910] sm:$0xff]
    %v436 = vld [vmem:[#allocation3 + $0x918] sm:$0xff]
    %v437 = vld [vmem:[#allocation3 + $0x920] sm:$0xff]
    %v438 = vld [vmem:[#allocation3 + $0x928] sm:$0xff]
    %v439 = vld [vmem:[#allocation3 + $0x930] sm:$0xff]
    %v440 = vld [vmem:[#allocation3 + $0x938] sm:$0xff]
    %v441 = vld [vmem:[#allocation3 + $0x940] sm:$0xff]
    %v442 = vld [vmem:[#allocation3 + $0x948] sm:$0xff]
    %v443 = vld [vmem:[#allocation3 + $0x950] sm:$0xff]
    %v444 = vld [vmem:[#allocation3 + $0x958] sm:$0xff]
    %v445 = vld [vmem:[#allocation3 + $0x960] sm:$0xff]
    %v446 = vld [vmem:[#allocation3 + $0x968] sm:$0xff]
    %v447 = vld [vmem:[#allocation3 + $0x970] sm:$0xff]
    %v448 = vld [vmem:[#allocation3 + $0x978] sm:$0xff]
    %v449 = vld [vmem:[#allocation3 + $0x980] sm:$0xff]
    %v450 = vld [vmem:[#allocation3 + $0x988] sm:$0xff]
    %v451 = vld [vmem:[#allocation3 + $0x990] sm:$0xff]
    %v452 = vld [vmem:[#allocation3 + $0x998] sm:$0xff]
    %v453 = vld [vmem:[#allocation3 + $0x9a0] sm:$0xff]
    %v454 = vld [vmem:[#allocation3 + $0x9a8] sm:$0xff]
    %v455 = vld [vmem:[#allocation3 + $0x9b0] sm:$0xff]
    %v456 = vld [vmem:[#allocation3 + $0x9b8] sm:$0xff]
    %v457 = vld [vmem:[#allocation3 + $0x9c0] sm:$0xff]
    %v458 = vld [vmem:[#allocation3 + $0x9c8] sm:$0xff]
    %v459 = vld [vmem:[#allocation3 + $0x9d0] sm:$0xff]
    %v460 = vld [vmem:[#allocation3 + $0x9d8] sm:$0xff]
    %v461 = vld [vmem:[#allocation3 + $0x9e0] sm:$0xff]
    %v462 = vld [vmem:[#allocation3 + $0x9e8] sm:$0xff]
    %v463 = vld [vmem:[#allocation3 + $0x9f0] sm:$0xff]
    %v464 = vld [vmem:[#allocation3 + $0x9f8] sm:$0xff]
    %v465 = vld [vmem:[#allocation3 + $0xa00] sm:$0xff]
    %v466 = vld [vmem:[#allocation3 + $0xa08] sm:$0xff]
    %v467 = vld [vmem:[#allocation3 + $0xa10] sm:$0xff]
    %v468 = vld [vmem:[#allocation3 + $0xa18] sm:$0xff]
    %v469 = vld [vmem:[#allocation3 + $0xa20] sm:$0xff]
    %v470 = vld [vmem:[#allocation3 + $0xa28] sm:$0xff]
    %v471 = vld [vmem:[#allocation3 + $0xa30] sm:$0xff]
    %v472 = vld [vmem:[#allocation3 + $0xa38] sm:$0xff]
    %v473 = vld [vmem:[#allocation3 + $0xa40] sm:$0xff]
    %v474 = vld [vmem:[#allocation3 + $0xa48] sm:$0xff]
    %v475 = vld [vmem:[#allocation3 + $0xa50] sm:$0xff]
    %v476 = vld [vmem:[#allocation3 + $0xa58] sm:$0xff]
    %v477 = vld [vmem:[#allocation3 + $0xa60] sm:$0xff]
    %v478 = vld [vmem:[#allocation3 + $0xa68] sm:$0xff]
    %v479 = vld [vmem:[#allocation3 + $0xa70] sm:$0xff]
    %v480 = vld [vmem:[#allocation3 + $0xa78] sm:$0xff]
    %v481 = vld [vmem:[#allocation3 + $0xa80] sm:$0xff]
    %v482 = vld [vmem:[#allocation3 + $0xa88] sm:$0xff]
    %v483 = vld [vmem:[#allocation3 + $0xa90] sm:$0xff]
    %v484 = vld [vmem:[#allocation3 + $0xa98] sm:$0xff]
    %v485 = vld [vmem:[#allocation3 + $0xaa0] sm:$0xff]
    %v486 = vld [vmem:[#allocation3 + $0xaa8] sm:$0xff]
    %v487 = vld [vmem:[#allocation3 + $0xab0] sm:$0xff]
    %v488 = vld [vmem:[#allocation3 + $0xab8] sm:$0xff]
    %v489 = vld [vmem:[#allocation3 + $0xac0] sm:$0xff]
    %v490 = vld [vmem:[#allocation3 + $0xac8] sm:$0xff]
    %v491 = vld [vmem:[#allocation3 + $0xad0] sm:$0xff]
    %v492 = vld [vmem:[#allocation3 + $0xad8] sm:$0xff]
    %v493 = vld [vmem:[#allocation3 + $0xae0] sm:$0xff]
    %v494 = vld [vmem:[#allocation3 + $0xae8] sm:$0xff]
    %v495 = vld [vmem:[#allocation3 + $0xaf0] sm:$0xff]
    %v496 = vld [vmem:[#allocation3 + $0xaf8] sm:$0xff]
    %v497 = vld [vmem:[#allocation3 + $0xb00] sm:$0xff]
    %v498 = vld [vmem:[#allocation3 + $0xb08] sm:$0xff]
    %v499 = vld [vmem:[#allocation3 + $0xb10] sm:$0xff]
    %v500 = vld [vmem:[#allocation3 + $0xb18] sm:$0xff]
    %v501 = vld [vmem:[#allocation3 + $0xb20] sm:$0xff]
    %v502 = vld [vmem:[#allocation3 + $0xb28] sm:$0xff]
    %v503 = vld [vmem:[#allocation3 + $0xb30] sm:$0xff]
    %v504 = vld [vmem:[#allocation3 + $0xb38] sm:$0xff]
    %v505 = vld [vmem:[#allocation3 + $0xb40] sm:$0xff]
    %v506 = vld [vmem:[#allocation3 + $0xb48] sm:$0xff]
    %v507 = vld [vmem:[#allocation3 + $0xb50] sm:$0xff]
    %v508 = vld [vmem:[#allocation3 + $0xb58] sm:$0xff]
    %v509 = vld [vmem:[#allocation3 + $0xb60] sm:$0xff]
    %v510 = vld [vmem:[#allocation3 + $0xb68] sm:$0xff]
    %v511 = vld [vmem:[#allocation3 + $0xb70] sm:$0xff]
    %v512 = vld [vmem:[#allocation3 + $0xb78] sm:$0xff]
    %v513 = vld [vmem:[#allocation3 + $0xb80] sm:$0xff]
    %v514 = vld [vmem:[#allocation3 + $0xb88] sm:$0xff]
    %v515 = vld [vmem:[#allocation3 + $0xb90] sm:$0xff]
    %v516 = vld [vmem:[#allocation3 + $0xb98] sm:$0xff]
    %v517 = vld [vmem:[#allocation3 + $0xba0] sm:$0xff]
    %v518 = vld [vmem:[#allocation3 + $0xba8] sm:$0xff]
    %v519 = vld [vmem:[#allocation3 + $0xbb0] sm:$0xff]
    %v520 = vld [vmem:[#allocation3 + $0xbb8] sm:$0xff]
    %v521 = vld [vmem:[#allocation3 + $0xbc0] sm:$0xff]
    %v522 = vld [vmem:[#allocation3 + $0xbc8] sm:$0xff]
    %v523 = vld [vmem:[#allocation3 + $0xbd0] sm:$0xff]
    %v524 = vld [vmem:[#allocation3 + $0xbd8] sm:$0xff]
    %v525 = vld [vmem:[#allocation3 + $0xbe0] sm:$0xff]
    %v526 = vld [vmem:[#allocation3 + $0xbe8] sm:$0xff]
    %v527 = vld [vmem:[#allocation3 + $0xbf0] sm:$0xff]
    %v528 = vld [vmem:[#allocation3 + $0xbf8] sm:$0xff]
    %v529 = vld [vmem:[#allocation3 + $0xc00] sm:$0xff]
    %v530 = vld [vmem:[#allocation3 + $0xc08] sm:$0xff]
    %v531 = vld [vmem:[#allocation3 + $0xc10] sm:$0xff]
    %v532 = vld [vmem:[#allocation3 + $0xc18] sm:$0xff]
    %v533 = vld [vmem:[#allocation3 + $0xc20] sm:$0xff]
    %v534 = vld [vmem:[#allocation3 + $0xc28] sm:$0xff]
    %v535 = vld [vmem:[#allocation3 + $0xc30] sm:$0xff]
    %v536 = vld [vmem:[#allocation3 + $0xc38] sm:$0xff]
    %v537 = vld [vmem:[#allocation3 + $0xc40] sm:$0xff]
    %v538 = vld [vmem:[#allocation3 + $0xc48] sm:$0xff]
    %v539 = vld [vmem:[#allocation3 + $0xc50] sm:$0xff]
    %v540 = vld [vmem:[#allocation3 + $0xc58] sm:$0xff]
    %v541 = vld [vmem:[#allocation3 + $0xc60] sm:$0xff]
    %v542 = vld [vmem:[#allocation3 + $0xc68] sm:$0xff]
    %v543 = vld [vmem:[#allocation3 + $0xc70] sm:$0xff]
    %v544 = vld [vmem:[#allocation3 + $0xc78] sm:$0xff]
    %v545 = vld [vmem:[#allocation3 + $0xc80] sm:$0xff]
    %v546 = vld [vmem:[#allocation3 + $0xc88] sm:$0xff]
    %v547 = vld [vmem:[#allocation3 + $0xc90] sm:$0xff]
    %v548 = vld [vmem:[#allocation3 + $0xc98] sm:$0xff]
    %v549 = vld [vmem:[#allocation3 + $0xca0] sm:$0xff]
    %v550 = vld [vmem:[#allocation3 + $0xca8] sm:$0xff]
    %v551 = vld [vmem:[#allocation3 + $0xcb0] sm:$0xff]
    %v552 = vld [vmem:[#allocation3 + $0xcb8] sm:$0xff]
    %v553 = vld [vmem:[#allocation3 + $0xcc0] sm:$0xff]
    %v554 = vld [vmem:[#allocation3 + $0xcc8] sm:$0xff]
    %v555 = vld [vmem:[#allocation3 + $0xcd0] sm:$0xff]
    %v556 = vld [vmem:[#allocation3 + $0xcd8] sm:$0xff]
    %v557 = vld [vmem:[#allocation3 + $0xce0] sm:$0xff]
    %v558 = vld [vmem:[#allocation3 + $0xce8] sm:$0xff]
    %v559 = vld [vmem:[#allocation3 + $0xcf0] sm:$0xff]
    %v560 = vld [vmem:[#allocation3 + $0xcf8] sm:$0xff]
    %v561 = vld [vmem:[#allocation3 + $0xd00] sm:$0xff]
    %v562 = vld [vmem:[#allocation3 + $0xd08] sm:$0xff]
    %v563 = vld [vmem:[#allocation3 + $0xd10] sm:$0xff]
    %v564 = vld [vmem:[#allocation3 + $0xd18] sm:$0xff]
    %v565 = vld [vmem:[#allocation3 + $0xd20] sm:$0xff]
    %v566 = vld [vmem:[#allocation3 + $0xd28] sm:$0xff]
    %v567 = vld [vmem:[#allocation3 + $0xd30] sm:$0xff]
    %v568 = vld [vmem:[#allocation3 + $0xd38] sm:$0xff]
    %v569 = vld [vmem:[#allocation3 + $0xd40] sm:$0xff]
    %v570 = vld [vmem:[#allocation3 + $0xd48] sm:$0xff]
    %v571 = vld [vmem:[#allocation3 + $0xd50] sm:$0xff]
    %v572 = vld [vmem:[#allocation3 + $0xd58] sm:$0xff]
    %v573 = vld [vmem:[#allocation3 + $0xd60] sm:$0xff]
    %v574 = vld [vmem:[#allocation3 + $0xd68] sm:$0xff]
    %v575 = vld [vmem:[#allocation3 + $0xd70] sm:$0xff]
    %v576 = vld [vmem:[#allocation3 + $0xd78] sm:$0xff]
    %v577 = vld [vmem:[#allocation3 + $0xd80] sm:$0xff]
    %v578 = vld [vmem:[#allocation3 + $0xd88] sm:$0xff]
    %v579 = vld [vmem:[#allocation3 + $0xd90] sm:$0xff]
    %v580 = vld [vmem:[#allocation3 + $0xd98] sm:$0xff]
    %v581 = vld [vmem:[#allocation3 + $0xda0] sm:$0xff]
    %v582 = vld [vmem:[#allocation3 + $0xda8] sm:$0xff]
    %v583 = vld [vmem:[#allocation3 + $0xdb0] sm:$0xff]
    %v584 = vld [vmem:[#allocation3 + $0xdb8] sm:$0xff]
    %v585 = vld [vmem:[#allocation3 + $0xdc0] sm:$0xff]
    %v586 = vld [vmem:[#allocation3 + $0xdc8] sm:$0xff]
    %v587 = vld [vmem:[#allocation3 + $0xdd0] sm:$0xff]
    %v588 = vld [vmem:[#allocation3 + $0xdd8] sm:$0xff]
    %v589 = vld [vmem:[#allocation3 + $0xde0] sm:$0xff]
    %v590 = vld [vmem:[#allocation3 + $0xde8] sm:$0xff]
    %v591 = vld [vmem:[#allocation3 + $0xdf0] sm:$0xff]
    %v592 = vld [vmem:[#allocation3 + $0xdf8] sm:$0xff]
    %v593 = vld [vmem:[#allocation3 + $0xe00] sm:$0xff]
    %v594 = vld [vmem:[#allocation3 + $0xe08] sm:$0xff]
    %v595 = vld [vmem:[#allocation3 + $0xe10] sm:$0xff]
    %v596 = vld [vmem:[#allocation3 + $0xe18] sm:$0xff]
    %v597 = vld [vmem:[#allocation3 + $0xe20] sm:$0xff]
    %v598 = vld [vmem:[#allocation3 + $0xe28] sm:$0xff]
    %v599 = vld [vmem:[#allocation3 + $0xe30] sm:$0xff]
    %v600 = vld [vmem:[#allocation3 + $0xe38] sm:$0xff]
    %v601 = vld [vmem:[#allocation3 + $0xe40] sm:$0xff]
    %v602 = vld [vmem:[#allocation3 + $0xe48] sm:$0xff]
    %v603 = vld [vmem:[#allocation3 + $0xe50] sm:$0xff]
    %v604 = vld [vmem:[#allocation3 + $0xe58] sm:$0xff]
    %v605 = vld [vmem:[#allocation3 + $0xe60] sm:$0xff]
    %v606 = vld [vmem:[#allocation3 + $0xe68] sm:$0xff]
    %v607 = vld [vmem:[#allocation3 + $0xe70] sm:$0xff]
    %v608 = vld [vmem:[#allocation3 + $0xe78] sm:$0xff]
    %v609 = vld [vmem:[#allocation3 + $0xe80] sm:$0xff]
    %v610 = vld [vmem:[#allocation3 + $0xe88] sm:$0xff]
    %v611 = vld [vmem:[#allocation3 + $0xe90] sm:$0xff]
    %v612 = vld [vmem:[#allocation3 + $0xe98] sm:$0xff]
    %v613 = vld [vmem:[#allocation3 + $0xea0] sm:$0xff]
    %v614 = vld [vmem:[#allocation3 + $0xea8] sm:$0xff]
    %v615 = vld [vmem:[#allocation3 + $0xeb0] sm:$0xff]
    %v616 = vld [vmem:[#allocation3 + $0xeb8] sm:$0xff]
    %v617 = vld [vmem:[#allocation3 + $0xec0] sm:$0xff]
    %v618 = vld [vmem:[#allocation3 + $0xec8] sm:$0xff]
    %v619 = vld [vmem:[#allocation3 + $0xed0] sm:$0xff]
    %v620 = vld [vmem:[#allocation3 + $0xed8] sm:$0xff]
    %v621 = vld [vmem:[#allocation3 + $0xee0] sm:$0xff]
    %v622 = vld [vmem:[#allocation3 + $0xee8] sm:$0xff]
    %v623 = vld [vmem:[#allocation3 + $0xef0] sm:$0xff]
    %v624 = vld [vmem:[#allocation3 + $0xef8] sm:$0xff]
    %v625 = vld [vmem:[#allocation3 + $0xf00] sm:$0xff]
    %v626 = vld [vmem:[#allocation3 + $0xf08] sm:$0xff]
    %v627 = vld [vmem:[#allocation3 + $0xf10] sm:$0xff]
    %v628 = vld [vmem:[#allocation3 + $0xf18] sm:$0xff]
    %v629 = vld [vmem:[#allocation3 + $0xf20] sm:$0xff]
    %v630 = vld [vmem:[#allocation3 + $0xf28] sm:$0xff]
    %v631 = vld [vmem:[#allocation3 + $0xf30] sm:$0xff]
    %v632 = vld [vmem:[#allocation3 + $0xf38] sm:$0xff]
    %v633 = vld [vmem:[#allocation3 + $0xf40] sm:$0xff]
    %v634 = vld [vmem:[#allocation3 + $0xf48] sm:$0xff]
    %v635 = vld [vmem:[#allocation3 + $0xf50] sm:$0xff]
    %v636 = vld [vmem:[#allocation3 + $0xf58] sm:$0xff]
    %v637 = vld [vmem:[#allocation3 + $0xf60] sm:$0xff]
    %v638 = vld [vmem:[#allocation3 + $0xf68] sm:$0xff]
    %v639 = vld [vmem:[#allocation3 + $0xf70] sm:$0xff]
    %v640 = vld [vmem:[#allocation3 + $0xf78] sm:$0xff]
    %v641 = vld [vmem:[#allocation3 + $0xf80] sm:$0xff]
    %v642 = vld [vmem:[#allocation3 + $0xf88] sm:$0xff]
    %v643 = vld [vmem:[#allocation3 + $0xf90] sm:$0xff]
    %v644 = vld [vmem:[#allocation3 + $0xf98] sm:$0xff]
    %v645 = vld [vmem:[#allocation3 + $0xfa0] sm:$0xff]
    %v646 = vld [vmem:[#allocation3 + $0xfa8] sm:$0xff]
    %v647 = vld [vmem:[#allocation3 + $0xfb0] sm:$0xff]
    %v648 = vld [vmem:[#allocation3 + $0xfb8] sm:$0xff]
    %v649 = vld [vmem:[#allocation3 + $0xfc0] sm:$0xff]
    %v650 = vld [vmem:[#allocation3 + $0xfc8] sm:$0xff]
    %v651 = vld [vmem:[#allocation3 + $0xfd0] sm:$0xff]
    %v652 = vld [vmem:[#allocation3 + $0xfd8] sm:$0xff]
    %v653 = vld [vmem:[#allocation3 + $0xfe0] sm:$0xff]
    %v654 = vld [vmem:[#allocation3 + $0xfe8] sm:$0xff]
    %v655 = vld [vmem:[#allocation3 + $0xff0] sm:$0xff]
    %v656 = vld [vmem:[#allocation3 + $0xff8] sm:$0xff]
    %v657 = vld [vmem:[#allocation3 + $0x1000] sm:$0xff]
    %v658 = vld [vmem:[#allocation3 + $0x1008] sm:$0xff]
    %v659 = vld [vmem:[#allocation3 + $0x1010] sm:$0xff]
    %v660 = vld [vmem:[#allocation3 + $0x1018] sm:$0xff]
    %v661 = vld [vmem:[#allocation3 + $0x1020] sm:$0xff]
    %v662 = vld [vmem:[#allocation3 + $0x1028] sm:$0xff]
    %v663 = vld [vmem:[#allocation3 + $0x1030] sm:$0xff]
    %v664 = vld [vmem:[#allocation3 + $0x1038] sm:$0xff]
    %v665 = vld [vmem:[#allocation3 + $0x1040] sm:$0xff]
    %v666 = vld [vmem:[#allocation3 + $0x1048] sm:$0xff]
    %v667 = vld [vmem:[#allocation3 + $0x1050] sm:$0xff]
    %v668 = vld [vmem:[#allocation3 + $0x1058] sm:$0xff]
    %v669 = vld [vmem:[#allocation3 + $0x1060] sm:$0xff]
    %v670 = vld [vmem:[#allocation3 + $0x1068] sm:$0xff]
    %v671 = vld [vmem:[#allocation3 + $0x1070] sm:$0xff]
    %v672 = vld [vmem:[#allocation3 + $0x1078] sm:$0xff]
    %v673 = vld [vmem:[#allocation3 + $0x1080] sm:$0xff]
    %v674 = vld [vmem:[#allocation3 + $0x1088] sm:$0xff]
    %v675 = vld [vmem:[#allocation3 + $0x1090] sm:$0xff]
    %v676 = vld [vmem:[#allocation3 + $0x1098] sm:$0xff]
    %v677 = vld [vmem:[#allocation3 + $0x10a0] sm:$0xff]
    %v678 = vld [vmem:[#allocation3 + $0x10a8] sm:$0xff]
    %v679 = vld [vmem:[#allocation3 + $0x10b0] sm:$0xff]
    %v680 = vld [vmem:[#allocation3 + $0x10b8] sm:$0xff]
    %v681 = vld [vmem:[#allocation3 + $0x10c0] sm:$0xff]
    %v682 = vld [vmem:[#allocation3 + $0x10c8] sm:$0xff]
    %v683 = vld [vmem:[#allocation3 + $0x10d0] sm:$0xff]
    %v684 = vld [vmem:[#allocation3 + $0x10d8] sm:$0xff]
    %v685 = vld [vmem:[#allocation3 + $0x10e0] sm:$0xff]
    %v686 = vld [vmem:[#allocation3 + $0x10e8] sm:$0xff]
    %v687 = vld [vmem:[#allocation3 + $0x10f0] sm:$0xff]
    %v688 = vld [vmem:[#allocation3 + $0x10f8] sm:$0xff]
    %v689 = vld [vmem:[#allocation3 + $0x1100] sm:$0xff]
    %v690 = vld [vmem:[#allocation3 + $0x1108] sm:$0xff]
    %v691 = vld [vmem:[#allocation3 + $0x1110] sm:$0xff]
    %v692 = vld [vmem:[#allocation3 + $0x1118] sm:$0xff]
    %v693 = vld [vmem:[#allocation3 + $0x1120] sm:$0xff]
    %v694 = vld [vmem:[#allocation3 + $0x1128] sm:$0xff]
    %v695 = vld [vmem:[#allocation3 + $0x1130] sm:$0xff]
    %v696 = vld [vmem:[#allocation3 + $0x1138] sm:$0xff]
    %v697 = vld [vmem:[#allocation3 + $0x1140] sm:$0xff]
    %v698 = vld [vmem:[#allocation3 + $0x1148] sm:$0xff]
    %v699 = vld [vmem:[#allocation3 + $0x1150] sm:$0xff]
    %v700 = vld [vmem:[#allocation3 + $0x1158] sm:$0xff]
    %v701 = vld [vmem:[#allocation3 + $0x1160] sm:$0xff]
    %v702 = vld [vmem:[#allocation3 + $0x1168] sm:$0xff]
    %v703 = vld [vmem:[#allocation3 + $0x1170] sm:$0xff]
    %v704 = vld [vmem:[#allocation3 + $0x1178] sm:$0xff]
    %v705 = vld [vmem:[#allocation3 + $0x1180] sm:$0xff]
    %v706 = vld [vmem:[#allocation3 + $0x1188] sm:$0xff]
    %v707 = vld [vmem:[#allocation3 + $0x1190] sm:$0xff]
    %v708 = vld [vmem:[#allocation3 + $0x1198] sm:$0xff]
    %v709 = vld [vmem:[#allocation3 + $0x11a0] sm:$0xff]
    %v710 = vld [vmem:[#allocation3 + $0x11a8] sm:$0xff]
    %v711 = vld [vmem:[#allocation3 + $0x11b0] sm:$0xff]
    %v712 = vld [vmem:[#allocation3 + $0x11b8] sm:$0xff]
    %v713 = vld [vmem:[#allocation3 + $0x11c0] sm:$0xff]
    %v714 = vld [vmem:[#allocation3 + $0x11c8] sm:$0xff]
    %v715 = vld [vmem:[#allocation3 + $0x11d0] sm:$0xff]
    %v716 = vld [vmem:[#allocation3 + $0x11d8] sm:$0xff]
    %v717 = vld [vmem:[#allocation3 + $0x11e0] sm:$0xff]
    %v718 = vld [vmem:[#allocation3 + $0x11e8] sm:$0xff]
    %v719 = vld [vmem:[#allocation3 + $0x11f0] sm:$0xff]
    %v720 = vld [vmem:[#allocation3 + $0x11f8] sm:$0xff]
    %v721 = vld [vmem:[#allocation3 + $0x1200] sm:$0xff]
    %v722 = vld [vmem:[#allocation3 + $0x1208] sm:$0xff]
    %v723 = vld [vmem:[#allocation3 + $0x1210] sm:$0xff]
    %v724 = vld [vmem:[#allocation3 + $0x1218] sm:$0xff]
    %v725 = vld [vmem:[#allocation3 + $0x1220] sm:$0xff]
    %v726 = vld [vmem:[#allocation3 + $0x1228] sm:$0xff]
    %v727 = vld [vmem:[#allocation3 + $0x1230] sm:$0xff]
    %v728 = vld [vmem:[#allocation3 + $0x1238] sm:$0xff]
    %v729 = vld [vmem:[#allocation3 + $0x1240] sm:$0xff]
    %v730 = vld [vmem:[#allocation3 + $0x1248] sm:$0xff]
    %v731 = vld [vmem:[#allocation3 + $0x1250] sm:$0xff]
    %v732 = vld [vmem:[#allocation3 + $0x1258] sm:$0xff]
    %v733 = vld [vmem:[#allocation3 + $0x1260] sm:$0xff]
    %v734 = vld [vmem:[#allocation3 + $0x1268] sm:$0xff]
    %v735 = vld [vmem:[#allocation3 + $0x1270] sm:$0xff]
    %v736 = vld [vmem:[#allocation3 + $0x1278] sm:$0xff]
    %v737 = vld [vmem:[#allocation3 + $0x1280] sm:$0xff]
    %v738 = vld [vmem:[#allocation3 + $0x1288] sm:$0xff]
    %v739 = vld [vmem:[#allocation3 + $0x1290] sm:$0xff]
    %v740 = vld [vmem:[#allocation3 + $0x1298] sm:$0xff]
    %v741 = vld [vmem:[#allocation3 + $0x12a0] sm:$0xff]
    %v742 = vld [vmem:[#allocation3 + $0x12a8] sm:$0xff]
    %v743 = vld [vmem:[#allocation3 + $0x12b0] sm:$0xff]
    %v744 = vld [vmem:[#allocation3 + $0x12b8] sm:$0xff]
    %v745 = vld [vmem:[#allocation3 + $0x12c0] sm:$0xff]
    %v746 = vld [vmem:[#allocation3 + $0x12c8] sm:$0xff]
    %v747 = vld [vmem:[#allocation3 + $0x12d0] sm:$0xff]
    %v748 = vld [vmem:[#allocation3 + $0x12d8] sm:$0xff]
    %v749 = vld [vmem:[#allocation3 + $0x12e0] sm:$0xff]
    %v750 = vld [vmem:[#allocation3 + $0x12e8] sm:$0xff]
    %v751 = vld [vmem:[#allocation3 + $0x12f0] sm:$0xff]
    %v752 = vld [vmem:[#allocation3 + $0x12f8] sm:$0xff]
    %v753 = vld [vmem:[#allocation3 + $0x1300] sm:$0xff]
    %v754 = vld [vmem:[#allocation3 + $0x1308] sm:$0xff]
    %v755 = vld [vmem:[#allocation3 + $0x1310] sm:$0xff]
    %v756 = vld [vmem:[#allocation3 + $0x1318] sm:$0xff]
    %v757 = vld [vmem:[#allocation3 + $0x1320] sm:$0xff]
    %v758 = vld [vmem:[#allocation3 + $0x1328] sm:$0xff]
    %v759 = vld [vmem:[#allocation3 + $0x1330] sm:$0xff]
    %v760 = vld [vmem:[#allocation3 + $0x1338] sm:$0xff]
    %v761 = vld [vmem:[#allocation3 + $0x1340] sm:$0xff]
    %v762 = vld [vmem:[#allocation3 + $0x1348] sm:$0xff]
    %v763 = vld [vmem:[#allocation3 + $0x1350] sm:$0xff]
    %v764 = vld [vmem:[#allocation3 + $0x1358] sm:$0xff]
    %v765 = vld [vmem:[#allocation3 + $0x1360] sm:$0xff]
    %v766 = vld [vmem:[#allocation3 + $0x1368] sm:$0xff]
    %v767 = vld [vmem:[#allocation3 + $0x1370] sm:$0xff]
    %v768 = vld [vmem:[#allocation3 + $0x1378] sm:$0xff]
    %v769 = vld [vmem:[#allocation3 + $0x1380] sm:$0xff]
    %v770 = vld [vmem:[#allocation3 + $0x1388] sm:$0xff]
    %v771 = vld [vmem:[#allocation3 + $0x1390] sm:$0xff]
    %v772 = vld [vmem:[#allocation3 + $0x1398] sm:$0xff]
    %v773 = vld [vmem:[#allocation3 + $0x13a0] sm:$0xff]
    %v774 = vld [vmem:[#allocation3 + $0x13a8] sm:$0xff]
    %v775 = vld [vmem:[#allocation3 + $0x13b0] sm:$0xff]
    %v776 = vld [vmem:[#allocation3 + $0x13b8] sm:$0xff]
    %v777 = vld [vmem:[#allocation3 + $0x13c0] sm:$0xff]
    %v778 = vld [vmem:[#allocation3 + $0x13c8] sm:$0xff]
    %v779 = vld [vmem:[#allocation3 + $0x13d0] sm:$0xff]
    %v780 = vld [vmem:[#allocation3 + $0x13d8] sm:$0xff]
    %v781 = vld [vmem:[#allocation3 + $0x13e0] sm:$0xff]
    %v782 = vld [vmem:[#allocation3 + $0x13e8] sm:$0xff]
    %v783 = vld [vmem:[#allocation3 + $0x13f0] sm:$0xff]
    %v784 = vld [vmem:[#allocation3 + $0x13f8] sm:$0xff]
    %v785 = vld [vmem:[#allocation3 + $0x1400] sm:$0xff]
    %v786 = vld [vmem:[#allocation3 + $0x1408] sm:$0xff]
    %v787 = vld [vmem:[#allocation3 + $0x1410] sm:$0xff]
    %v788 = vld [vmem:[#allocation3 + $0x1418] sm:$0xff]
    %v789 = vld [vmem:[#allocation3 + $0x1420] sm:$0xff]
    %v790 = vld [vmem:[#allocation3 + $0x1428] sm:$0xff]
    %v791 = vld [vmem:[#allocation3 + $0x1430] sm:$0xff]
    %v792 = vld [vmem:[#allocation3 + $0x1438] sm:$0xff]
    %v793 = vld [vmem:[#allocation3 + $0x1440] sm:$0xff]
    %v794 = vld [vmem:[#allocation3 + $0x1448] sm:$0xff]
    %v795 = vld [vmem:[#allocation3 + $0x1450] sm:$0xff]
    %v796 = vld [vmem:[#allocation3 + $0x1458] sm:$0xff]
    %v797 = vld [vmem:[#allocation3 + $0x1460] sm:$0xff]
    %v798 = vld [vmem:[#allocation3 + $0x1468] sm:$0xff]
    %v799 = vld [vmem:[#allocation3 + $0x1470] sm:$0xff]
    %v800 = vld [vmem:[#allocation3 + $0x1478] sm:$0xff]
    %v801 = vld [vmem:[#allocation3 + $0x1480] sm:$0xff]
    %v802 = vld [vmem:[#allocation3 + $0x1488] sm:$0xff]
    %v803 = vld [vmem:[#allocation3 + $0x1490] sm:$0xff]
    %v804 = vld [vmem:[#allocation3 + $0x1498] sm:$0xff]
    %v805 = vld [vmem:[#allocation3 + $0x14a0] sm:$0xff]
    %v806 = vld [vmem:[#allocation3 + $0x14a8] sm:$0xff]
    %v807 = vld [vmem:[#allocation3 + $0x14b0] sm:$0xff]
    %v808 = vld [vmem:[#allocation3 + $0x14b8] sm:$0xff]
    %v809 = vld [vmem:[#allocation3 + $0x14c0] sm:$0xff]
    %v810 = vld [vmem:[#allocation3 + $0x14c8] sm:$0xff]
    %v811 = vld [vmem:[#allocation3 + $0x14d0] sm:$0xff]
    %v812 = vld [vmem:[#allocation3 + $0x14d8] sm:$0xff]
    %v813 = vld [vmem:[#allocation3 + $0x14e0] sm:$0xff]
    %v814 = vld [vmem:[#allocation3 + $0x14e8] sm:$0xff]
    %v815 = vld [vmem:[#allocation3 + $0x14f0] sm:$0xff]
    %v816 = vld [vmem:[#allocation3 + $0x14f8] sm:$0xff]
    %v817 = vld [vmem:[#allocation3 + $0x1500] sm:$0xff]
    %v818 = vld [vmem:[#allocation3 + $0x1508] sm:$0xff]
    %v819 = vld [vmem:[#allocation3 + $0x1510] sm:$0xff]
    %v820 = vld [vmem:[#allocation3 + $0x1518] sm:$0xff]
    %v821 = vld [vmem:[#allocation3 + $0x1520] sm:$0xff]
    %v822 = vld [vmem:[#allocation3 + $0x1528] sm:$0xff]
    %v823 = vld [vmem:[#allocation3 + $0x1530] sm:$0xff]
    %v824 = vld [vmem:[#allocation3 + $0x1538] sm:$0xff]
    %v825 = vld [vmem:[#allocation3 + $0x1540] sm:$0xff]
    %v826 = vld [vmem:[#allocation3 + $0x1548] sm:$0xff]
    %v827 = vld [vmem:[#allocation3 + $0x1550] sm:$0xff]
    %v828 = vld [vmem:[#allocation3 + $0x1558] sm:$0xff]
    %v829 = vld [vmem:[#allocation3 + $0x1560] sm:$0xff]
    %v830 = vld [vmem:[#allocation3 + $0x1568] sm:$0xff]
    %v831 = vld [vmem:[#allocation3 + $0x1570] sm:$0xff]
    %v832 = vld [vmem:[#allocation3 + $0x1578] sm:$0xff]
    %v833 = vld [vmem:[#allocation3 + $0x1580] sm:$0xff]
    %v834 = vld [vmem:[#allocation3 + $0x1588] sm:$0xff]
    %v835 = vld [vmem:[#allocation3 + $0x1590] sm:$0xff]
    %v836 = vld [vmem:[#allocation3 + $0x1598] sm:$0xff]
    %v837 = vld [vmem:[#allocation3 + $0x15a0] sm:$0xff]
    %v838 = vld [vmem:[#allocation3 + $0x15a8] sm:$0xff]
    %v839 = vld [vmem:[#allocation3 + $0x15b0] sm:$0xff]
    %v840 = vld [vmem:[#allocation3 + $0x15b8] sm:$0xff]
    %v841 = vld [vmem:[#allocation3 + $0x15c0] sm:$0xff]
    %v842 = vld [vmem:[#allocation3 + $0x15c8] sm:$0xff]
    %v843 = vld [vmem:[#allocation3 + $0x15d0] sm:$0xff]
    %v844 = vld [vmem:[#allocation3 + $0x15d8] sm:$0xff]
    %v845 = vld [vmem:[#allocation3 + $0x15e0] sm:$0xff]
    %v846 = vld [vmem:[#allocation3 + $0x15e8] sm:$0xff]
    %v847 = vld [vmem:[#allocation3 + $0x15f0] sm:$0xff]
    %v848 = vld [vmem:[#allocation3 + $0x15f8] sm:$0xff]
    %v849 = vld [vmem:[#allocation3 + $0x1600] sm:$0xff]
    %v850 = vld [vmem:[#allocation3 + $0x1608] sm:$0xff]
    %v851 = vld [vmem:[#allocation3 + $0x1610] sm:$0xff]
    %v852 = vld [vmem:[#allocation3 + $0x1618] sm:$0xff]
    %v853 = vld [vmem:[#allocation3 + $0x1620] sm:$0xff]
    %v854 = vld [vmem:[#allocation3 + $0x1628] sm:$0xff]
    %v855 = vld [vmem:[#allocation3 + $0x1630] sm:$0xff]
    %v856 = vld [vmem:[#allocation3 + $0x1638] sm:$0xff]
    %v857 = vld [vmem:[#allocation3 + $0x1640] sm:$0xff]
    %v858 = vld [vmem:[#allocation3 + $0x1648] sm:$0xff]
    %v859 = vld [vmem:[#allocation3 + $0x1650] sm:$0xff]
    %v860 = vld [vmem:[#allocation3 + $0x1658] sm:$0xff]
    %v861 = vld [vmem:[#allocation3 + $0x1660] sm:$0xff]
    %v862 = vld [vmem:[#allocation3 + $0x1668] sm:$0xff]
    %v863 = vld [vmem:[#allocation3 + $0x1670] sm:$0xff]
    %v864 = vld [vmem:[#allocation3 + $0x1678] sm:$0xff]
    %v865 = vld [vmem:[#allocation3 + $0x1680] sm:$0xff]
    %v866 = vld [vmem:[#allocation3 + $0x1688] sm:$0xff]
    %v867 = vld [vmem:[#allocation3 + $0x1690] sm:$0xff]
    %v868 = vld [vmem:[#allocation3 + $0x1698] sm:$0xff]
    %v869 = vld [vmem:[#allocation3 + $0x16a0] sm:$0xff]
    %v870 = vld [vmem:[#allocation3 + $0x16a8] sm:$0xff]
    %v871 = vld [vmem:[#allocation3 + $0x16b0] sm:$0xff]
    %v872 = vld [vmem:[#allocation3 + $0x16b8] sm:$0xff]
    %v873 = vld [vmem:[#allocation3 + $0x16c0] sm:$0xff]
    %v874 = vld [vmem:[#allocation3 + $0x16c8] sm:$0xff]
    %v875 = vld [vmem:[#allocation3 + $0x16d0] sm:$0xff]
    %v876 = vld [vmem:[#allocation3 + $0x16d8] sm:$0xff]
    %v877 = vld [vmem:[#allocation3 + $0x16e0] sm:$0xff]
    %v878 = vld [vmem:[#allocation3 + $0x16e8] sm:$0xff]
    %v879 = vld [vmem:[#allocation3 + $0x16f0] sm:$0xff]
    %v880 = vld [vmem:[#allocation3 + $0x16f8] sm:$0xff]
    %v881 = vld [vmem:[#allocation3 + $0x1700] sm:$0xff]
    %v882 = vld [vmem:[#allocation3 + $0x1708] sm:$0xff]
    %v883 = vld [vmem:[#allocation3 + $0x1710] sm:$0xff]
    %v884 = vld [vmem:[#allocation3 + $0x1718] sm:$0xff]
    %v885 = vld [vmem:[#allocation3 + $0x1720] sm:$0xff]
    %v886 = vld [vmem:[#allocation3 + $0x1728] sm:$0xff]
    %v887 = vld [vmem:[#allocation3 + $0x1730] sm:$0xff]
    %v888 = vld [vmem:[#allocation3 + $0x1738] sm:$0xff]
    %v889 = vld [vmem:[#allocation3 + $0x1740] sm:$0xff]
    %v890 = vld [vmem:[#allocation3 + $0x1748] sm:$0xff]
    %v891 = vld [vmem:[#allocation3 + $0x1750] sm:$0xff]
    %v892 = vld [vmem:[#allocation3 + $0x1758] sm:$0xff]
    %v893 = vld [vmem:[#allocation3 + $0x1760] sm:$0xff]
    %v894 = vld [vmem:[#allocation3 + $0x1768] sm:$0xff]
    %v895 = vld [vmem:[#allocation3 + $0x1770] sm:$0xff]
    %v896 = vld [vmem:[#allocation3 + $0x1778] sm:$0xff]
    %v897 = vld [vmem:[#allocation3 + $0x1780] sm:$0xff]
    %v898 = vld [vmem:[#allocation3 + $0x1788] sm:$0xff]
    %v899 = vld [vmem:[#allocation3 + $0x1790] sm:$0xff]
    %v900 = vld [vmem:[#allocation3 + $0x1798] sm:$0xff]
    %v901 = vld [vmem:[#allocation3 + $0x17a0] sm:$0xff]
    %v902 = vld [vmem:[#allocation3 + $0x17a8] sm:$0xff]
    %v903 = vld [vmem:[#allocation3 + $0x17b0] sm:$0xff]
    %v904 = vld [vmem:[#allocation3 + $0x17b8] sm:$0xff]
    %v905 = vld [vmem:[#allocation3 + $0x17c0] sm:$0xff]
    %v906 = vld [vmem:[#allocation3 + $0x17c8] sm:$0xff]
    %v907 = vld [vmem:[#allocation3 + $0x17d0] sm:$0xff]
    %v908 = vld [vmem:[#allocation3 + $0x17d8] sm:$0xff]
    %v909 = vld [vmem:[#allocation3 + $0x17e0] sm:$0xff]
    %v910 = vld [vmem:[#allocation3 + $0x17e8] sm:$0xff]
    %v911 = vld [vmem:[#allocation3 + $0x17f0] sm:$0xff]
    %v912 = vld [vmem:[#allocation3 + $0x17f8] sm:$0xff]
    %v919 = vunpack.c.l.b16 %v139
    %v920 = vunpack.c.h.b16 %v139
    %v921 = vunpack.c.l.b16 %v140
    %v922 = vunpack.c.h.b16 %v140
    %v923 = vunpack.c.l.b16 %v141
    %v924 = vunpack.c.h.b16 %v141
    %v925 = vunpack.c.l.b16 %v142
    %v926 = vunpack.c.h.b16 %v142
    %v927 = vunpack.c.l.b16 %v143
    %v928 = vunpack.c.h.b16 %v143
    %v929 = vunpack.c.l.b16 %v144
    %v930 = vunpack.c.h.b16 %v144
    %v931 = vpack.c.b16 %v925, %v919
    %v932 = vpack.c.b16 %v926, %v920
    %v933 = vpack.c.b16 %v927, %v921
    %v934 = vpack.c.b16 %v928, %v922
    %v935 = vpack.c.b16 %v929, %v923
    %v936 = vpack.c.b16 %v930, %v924
    %v1711 = vunpack.c.l.b16 %v145
    %v1712 = vunpack.c.h.b16 %v145
    %v1713 = vunpack.c.l.b16 %v146
    %v1714 = vunpack.c.h.b16 %v146
    %v1715 = vunpack.c.l.b16 %v147
    %v1716 = vunpack.c.h.b16 %v147
    %v1717 = vunpack.c.l.b16 %v148
    %v1718 = vunpack.c.h.b16 %v148
    %v1719 = vunpack.c.l.b16 %v149
    %v1720 = vunpack.c.h.b16 %v149
    %v1721 = vunpack.c.l.b16 %v150
    %v1722 = vunpack.c.h.b16 %v150
    %v1723 = vunpack.c.l.b16 %v151
    %v1724 = vunpack.c.h.b16 %v151
    %v1725 = vunpack.c.l.b16 %v152
    %v1726 = vunpack.c.h.b16 %v152
    %v1727 = vunpack.c.l.b16 %v153
    %v1728 = vunpack.c.h.b16 %v153
    %v1729 = vunpack.c.l.b16 %v154
    %v1730 = vunpack.c.h.b16 %v154
    %v1731 = vunpack.c.l.b16 %v155
    %v1732 = vunpack.c.h.b16 %v155
    %v1733 = vunpack.c.l.b16 %v156
    %v1734 = vunpack.c.h.b16 %v156
    %v1735 = vunpack.c.l.b16 %v157
    %v1736 = vunpack.c.h.b16 %v157
    %v1737 = vunpack.c.l.b16 %v158
    %v1738 = vunpack.c.h.b16 %v158
    %v1739 = vunpack.c.l.b16 %v159
    %v1740 = vunpack.c.h.b16 %v159
    %v1741 = vunpack.c.l.b16 %v160
    %v1742 = vunpack.c.h.b16 %v160
    %v1743 = vunpack.c.l.b16 %v161
    %v1744 = vunpack.c.h.b16 %v161
    %v1745 = vunpack.c.l.b16 %v162
    %v1746 = vunpack.c.h.b16 %v162
    %v1747 = vunpack.c.l.b16 %v163
    %v1748 = vunpack.c.h.b16 %v163
    %v1749 = vunpack.c.l.b16 %v164
    %v1750 = vunpack.c.h.b16 %v164
    %v1751 = vunpack.c.l.b16 %v165
    %v1752 = vunpack.c.h.b16 %v165
    %v1753 = vunpack.c.l.b16 %v166
    %v1754 = vunpack.c.h.b16 %v166
    %v1755 = vunpack.c.l.b16 %v167
    %v1756 = vunpack.c.h.b16 %v167
    %v1757 = vunpack.c.l.b16 %v168
    %v1758 = vunpack.c.h.b16 %v168
    %v1759 = vunpack.c.l.b16 %v169
    %v1760 = vunpack.c.h.b16 %v169
    %v1761 = vunpack.c.l.b16 %v170
    %v1762 = vunpack.c.h.b16 %v170
    %v1763 = vunpack.c.l.b16 %v171
    %v1764 = vunpack.c.h.b16 %v171
    %v1765 = vunpack.c.l.b16 %v172
    %v1766 = vunpack.c.h.b16 %v172
    %v1767 = vunpack.c.l.b16 %v173
    %v1768 = vunpack.c.h.b16 %v173
    %v1769 = vunpack.c.l.b16 %v174
    %v1770 = vunpack.c.h.b16 %v174
    %v1771 = vunpack.c.l.b16 %v175
    %v1772 = vunpack.c.h.b16 %v175
    %v1773 = vunpack.c.l.b16 %v176
    %v1774 = vunpack.c.h.b16 %v176
    %v1775 = vunpack.c.l.b16 %v177
    %v1776 = vunpack.c.h.b16 %v177
    %v1777 = vunpack.c.l.b16 %v178
    %v1778 = vunpack.c.h.b16 %v178
    %v1779 = vunpack.c.l.b16 %v179
    %v1780 = vunpack.c.h.b16 %v179
    %v1781 = vunpack.c.l.b16 %v180
    %v1782 = vunpack.c.h.b16 %v180
    %v1783 = vunpack.c.l.b16 %v181
    %v1784 = vunpack.c.h.b16 %v181
    %v1785 = vunpack.c.l.b16 %v182
    %v1786 = vunpack.c.h.b16 %v182
    %v1787 = vunpack.c.l.b16 %v183
    %v1788 = vunpack.c.h.b16 %v183
    %v1789 = vunpack.c.l.b16 %v184
    %v1790 = vunpack.c.h.b16 %v184
    %v1791 = vunpack.c.l.b16 %v185
    %v1792 = vunpack.c.h.b16 %v185
    %v1793 = vunpack.c.l.b16 %v186
    %v1794 = vunpack.c.h.b16 %v186
    %v1795 = vunpack.c.l.b16 %v187
    %v1796 = vunpack.c.h.b16 %v187
    %v1797 = vunpack.c.l.b16 %v188
    %v1798 = vunpack.c.h.b16 %v188
    %v1799 = vunpack.c.l.b16 %v189
    %v1800 = vunpack.c.h.b16 %v189
    %v1801 = vunpack.c.l.b16 %v190
    %v1802 = vunpack.c.h.b16 %v190
    %v1803 = vunpack.c.l.b16 %v191
    %v1804 = vunpack.c.h.b16 %v191
    %v1805 = vunpack.c.l.b16 %v192
    %v1806 = vunpack.c.h.b16 %v192
    %v1807 = vunpack.c.l.b16 %v193
    %v1808 = vunpack.c.h.b16 %v193
    %v1809 = vunpack.c.l.b16 %v194
    %v1810 = vunpack.c.h.b16 %v194
    %v1811 = vunpack.c.l.b16 %v195
    %v1812 = vunpack.c.h.b16 %v195
    %v1813 = vunpack.c.l.b16 %v196
    %v1814 = vunpack.c.h.b16 %v196
    %v1815 = vunpack.c.l.b16 %v197
    %v1816 = vunpack.c.h.b16 %v197
    %v1817 = vunpack.c.l.b16 %v198
    %v1818 = vunpack.c.h.b16 %v198
    %v1819 = vunpack.c.l.b16 %v199
    %v1820 = vunpack.c.h.b16 %v199
    %v1821 = vunpack.c.l.b16 %v200
    %v1822 = vunpack.c.h.b16 %v200
    %v1823 = vunpack.c.l.b16 %v201
    %v1824 = vunpack.c.h.b16 %v201
    %v1825 = vunpack.c.l.b16 %v202
    %v1826 = vunpack.c.h.b16 %v202
    %v1827 = vunpack.c.l.b16 %v203
    %v1828 = vunpack.c.h.b16 %v203
    %v1829 = vunpack.c.l.b16 %v204
    %v1830 = vunpack.c.h.b16 %v204
    %v1831 = vunpack.c.l.b16 %v205
    %v1832 = vunpack.c.h.b16 %v205
    %v1833 = vunpack.c.l.b16 %v206
    %v1834 = vunpack.c.h.b16 %v206
    %v1835 = vunpack.c.l.b16 %v207
    %v1836 = vunpack.c.h.b16 %v207
    %v1837 = vunpack.c.l.b16 %v208
    %v1838 = vunpack.c.h.b16 %v208
    %v1839 = vunpack.c.l.b16 %v209
    %v1840 = vunpack.c.h.b16 %v209
    %v1841 = vunpack.c.l.b16 %v210
    %v1842 = vunpack.c.h.b16 %v210
    %v1843 = vunpack.c.l.b16 %v211
    %v1844 = vunpack.c.h.b16 %v211
    %v1845 = vunpack.c.l.b16 %v212
    %v1846 = vunpack.c.h.b16 %v212
    %v1847 = vunpack.c.l.b16 %v213
    %v1848 = vunpack.c.h.b16 %v213
    %v1849 = vunpack.c.l.b16 %v214
    %v1850 = vunpack.c.h.b16 %v214
    %v1851 = vunpack.c.l.b16 %v215
    %v1852 = vunpack.c.h.b16 %v215
    %v1853 = vunpack.c.l.b16 %v216
    %v1854 = vunpack.c.h.b16 %v216
    %v1855 = vunpack.c.l.b16 %v217
    %v1856 = vunpack.c.h.b16 %v217
    %v1857 = vunpack.c.l.b16 %v218
    %v1858 = vunpack.c.h.b16 %v218
    %v1859 = vunpack.c.l.b16 %v219
    %v1860 = vunpack.c.h.b16 %v219
    %v1861 = vunpack.c.l.b16 %v220
    %v1862 = vunpack.c.h.b16 %v220
    %v1863 = vunpack.c.l.b16 %v221
    %v1864 = vunpack.c.h.b16 %v221
    %v1865 = vunpack.c.l.b16 %v222
    %v1866 = vunpack.c.h.b16 %v222
    %v1867 = vunpack.c.l.b16 %v223
    %v1868 = vunpack.c.h.b16 %v223
    %v1869 = vunpack.c.l.b16 %v224
    %v1870 = vunpack.c.h.b16 %v224
    %v1871 = vunpack.c.l.b16 %v225
    %v1872 = vunpack.c.h.b16 %v225
    %v1873 = vunpack.c.l.b16 %v226
    %v1874 = vunpack.c.h.b16 %v226
    %v1875 = vunpack.c.l.b16 %v227
    %v1876 = vunpack.c.h.b16 %v227
    %v1877 = vunpack.c.l.b16 %v228
    %v1878 = vunpack.c.h.b16 %v228
    %v1879 = vunpack.c.l.b16 %v229
    %v1880 = vunpack.c.h.b16 %v229
    %v1881 = vunpack.c.l.b16 %v230
    %v1882 = vunpack.c.h.b16 %v230
    %v1883 = vunpack.c.l.b16 %v231
    %v1884 = vunpack.c.h.b16 %v231
    %v1885 = vunpack.c.l.b16 %v232
    %v1886 = vunpack.c.h.b16 %v232
    %v1887 = vunpack.c.l.b16 %v233
    %v1888 = vunpack.c.h.b16 %v233
    %v1889 = vunpack.c.l.b16 %v234
    %v1890 = vunpack.c.h.b16 %v234
    %v1891 = vunpack.c.l.b16 %v235
    %v1892 = vunpack.c.h.b16 %v235
    %v1893 = vunpack.c.l.b16 %v236
    %v1894 = vunpack.c.h.b16 %v236
    %v1895 = vunpack.c.l.b16 %v237
    %v1896 = vunpack.c.h.b16 %v237
    %v1897 = vunpack.c.l.b16 %v238
    %v1898 = vunpack.c.h.b16 %v238
    %v1899 = vunpack.c.l.b16 %v239
    %v1900 = vunpack.c.h.b16 %v239
    %v1901 = vunpack.c.l.b16 %v240
    %v1902 = vunpack.c.h.b16 %v240
    %v1903 = vunpack.c.l.b16 %v241
    %v1904 = vunpack.c.h.b16 %v241
    %v1905 = vunpack.c.l.b16 %v242
    %v1906 = vunpack.c.h.b16 %v242
    %v1907 = vunpack.c.l.b16 %v243
    %v1908 = vunpack.c.h.b16 %v243
    %v1909 = vunpack.c.l.b16 %v244
    %v1910 = vunpack.c.h.b16 %v244
    %v1911 = vunpack.c.l.b16 %v245
    %v1912 = vunpack.c.h.b16 %v245
    %v1913 = vunpack.c.l.b16 %v246
    %v1914 = vunpack.c.h.b16 %v246
    %v1915 = vunpack.c.l.b16 %v247
    %v1916 = vunpack.c.h.b16 %v247
    %v1917 = vunpack.c.l.b16 %v248
    %v1918 = vunpack.c.h.b16 %v248
    %v1919 = vunpack.c.l.b16 %v249
    %v1920 = vunpack.c.h.b16 %v249
    %v1921 = vunpack.c.l.b16 %v250
    %v1922 = vunpack.c.h.b16 %v250
    %v1923 = vunpack.c.l.b16 %v251
    %v1924 = vunpack.c.h.b16 %v251
    %v1925 = vunpack.c.l.b16 %v252
    %v1926 = vunpack.c.h.b16 %v252
    %v1927 = vunpack.c.l.b16 %v253
    %v1928 = vunpack.c.h.b16 %v253
    %v1929 = vunpack.c.l.b16 %v254
    %v1930 = vunpack.c.h.b16 %v254
    %v1931 = vunpack.c.l.b16 %v255
    %v1932 = vunpack.c.h.b16 %v255
    %v1933 = vunpack.c.l.b16 %v256
    %v1934 = vunpack.c.h.b16 %v256
    %v1935 = vunpack.c.l.b16 %v257
    %v1936 = vunpack.c.h.b16 %v257
    %v1937 = vunpack.c.l.b16 %v258
    %v1938 = vunpack.c.h.b16 %v258
    %v1939 = vunpack.c.l.b16 %v259
    %v1940 = vunpack.c.h.b16 %v259
    %v1941 = vunpack.c.l.b16 %v260
    %v1942 = vunpack.c.h.b16 %v260
    %v1943 = vunpack.c.l.b16 %v261
    %v1944 = vunpack.c.h.b16 %v261
    %v1945 = vunpack.c.l.b16 %v262
    %v1946 = vunpack.c.h.b16 %v262
    %v1947 = vunpack.c.l.b16 %v263
    %v1948 = vunpack.c.h.b16 %v263
    %v1949 = vunpack.c.l.b16 %v264
    %v1950 = vunpack.c.h.b16 %v264
    %v1951 = vunpack.c.l.b16 %v265
    %v1952 = vunpack.c.h.b16 %v265
    %v1953 = vunpack.c.l.b16 %v266
    %v1954 = vunpack.c.h.b16 %v266
    %v1955 = vunpack.c.l.b16 %v267
    %v1956 = vunpack.c.h.b16 %v267
    %v1957 = vunpack.c.l.b16 %v268
    %v1958 = vunpack.c.h.b16 %v268
    %v1959 = vunpack.c.l.b16 %v269
    %v1960 = vunpack.c.h.b16 %v269
    %v1961 = vunpack.c.l.b16 %v270
    %v1962 = vunpack.c.h.b16 %v270
    %v1963 = vunpack.c.l.b16 %v271
    %v1964 = vunpack.c.h.b16 %v271
    %v1965 = vunpack.c.l.b16 %v272
    %v1966 = vunpack.c.h.b16 %v272
    %v1967 = vunpack.c.l.b16 %v273
    %v1968 = vunpack.c.h.b16 %v273
    %v1969 = vunpack.c.l.b16 %v274
    %v1970 = vunpack.c.h.b16 %v274
    %v1971 = vunpack.c.l.b16 %v275
    %v1972 = vunpack.c.h.b16 %v275
    %v1973 = vunpack.c.l.b16 %v276
    %v1974 = vunpack.c.h.b16 %v276
    %v1975 = vunpack.c.l.b16 %v277
    %v1976 = vunpack.c.h.b16 %v277
    %v1977 = vunpack.c.l.b16 %v278
    %v1978 = vunpack.c.h.b16 %v278
    %v1979 = vunpack.c.l.b16 %v279
    %v1980 = vunpack.c.h.b16 %v279
    %v1981 = vunpack.c.l.b16 %v280
    %v1982 = vunpack.c.h.b16 %v280
    %v1983 = vunpack.c.l.b16 %v281
    %v1984 = vunpack.c.h.b16 %v281
    %v1985 = vunpack.c.l.b16 %v282
    %v1986 = vunpack.c.h.b16 %v282
    %v1987 = vunpack.c.l.b16 %v283
    %v1988 = vunpack.c.h.b16 %v283
    %v1989 = vunpack.c.l.b16 %v284
    %v1990 = vunpack.c.h.b16 %v284
    %v1991 = vunpack.c.l.b16 %v285
    %v1992 = vunpack.c.h.b16 %v285
    %v1993 = vunpack.c.l.b16 %v286
    %v1994 = vunpack.c.h.b16 %v286
    %v1995 = vunpack.c.l.b16 %v287
    %v1996 = vunpack.c.h.b16 %v287
    %v1997 = vunpack.c.l.b16 %v288
    %v1998 = vunpack.c.h.b16 %v288
    %v1999 = vunpack.c.l.b16 %v289
    %v2000 = vunpack.c.h.b16 %v289
    %v2001 = vunpack.c.l.b16 %v290
    %v2002 = vunpack.c.h.b16 %v290
    %v2003 = vunpack.c.l.b16 %v291
    %v2004 = vunpack.c.h.b16 %v291
    %v2005 = vunpack.c.l.b16 %v292
    %v2006 = vunpack.c.h.b16 %v292
    %v2007 = vunpack.c.l.b16 %v293
    %v2008 = vunpack.c.h.b16 %v293
    %v2009 = vunpack.c.l.b16 %v294
    %v2010 = vunpack.c.h.b16 %v294
    %v2011 = vunpack.c.l.b16 %v295
    %v2012 = vunpack.c.h.b16 %v295
    %v2013 = vunpack.c.l.b16 %v296
    %v2014 = vunpack.c.h.b16 %v296
    %v2015 = vunpack.c.l.b16 %v297
    %v2016 = vunpack.c.h.b16 %v297
    %v2017 = vunpack.c.l.b16 %v298
    %v2018 = vunpack.c.h.b16 %v298
    %v2019 = vunpack.c.l.b16 %v299
    %v2020 = vunpack.c.h.b16 %v299
    %v2021 = vunpack.c.l.b16 %v300
    %v2022 = vunpack.c.h.b16 %v300
    %v2023 = vunpack.c.l.b16 %v301
    %v2024 = vunpack.c.h.b16 %v301
    %v2025 = vunpack.c.l.b16 %v302
    %v2026 = vunpack.c.h.b16 %v302
    %v2027 = vunpack.c.l.b16 %v303
    %v2028 = vunpack.c.h.b16 %v303
    %v2029 = vunpack.c.l.b16 %v304
    %v2030 = vunpack.c.h.b16 %v304
    %v2031 = vunpack.c.l.b16 %v305
    %v2032 = vunpack.c.h.b16 %v305
    %v2033 = vunpack.c.l.b16 %v306
    %v2034 = vunpack.c.h.b16 %v306
    %v2035 = vunpack.c.l.b16 %v307
    %v2036 = vunpack.c.h.b16 %v307
    %v2037 = vunpack.c.l.b16 %v308
    %v2038 = vunpack.c.h.b16 %v308
    %v2039 = vunpack.c.l.b16 %v309
    %v2040 = vunpack.c.h.b16 %v309
    %v2041 = vunpack.c.l.b16 %v310
    %v2042 = vunpack.c.h.b16 %v310
    %v2043 = vunpack.c.l.b16 %v311
    %v2044 = vunpack.c.h.b16 %v311
    %v2045 = vunpack.c.l.b16 %v312
    %v2046 = vunpack.c.h.b16 %v312
    %v2047 = vunpack.c.l.b16 %v313
    %v2048 = vunpack.c.h.b16 %v313
    %v2049 = vunpack.c.l.b16 %v314
    %v2050 = vunpack.c.h.b16 %v314
    %v2051 = vunpack.c.l.b16 %v315
    %v2052 = vunpack.c.h.b16 %v315
    %v2053 = vunpack.c.l.b16 %v316
    %v2054 = vunpack.c.h.b16 %v316
    %v2055 = vunpack.c.l.b16 %v317
    %v2056 = vunpack.c.h.b16 %v317
    %v2057 = vunpack.c.l.b16 %v318
    %v2058 = vunpack.c.h.b16 %v318
    %v2059 = vunpack.c.l.b16 %v319
    %v2060 = vunpack.c.h.b16 %v319
    %v2061 = vunpack.c.l.b16 %v320
    %v2062 = vunpack.c.h.b16 %v320
    %v2063 = vunpack.c.l.b16 %v321
    %v2064 = vunpack.c.h.b16 %v321
    %v2065 = vunpack.c.l.b16 %v322
    %v2066 = vunpack.c.h.b16 %v322
    %v2067 = vunpack.c.l.b16 %v323
    %v2068 = vunpack.c.h.b16 %v323
    %v2069 = vunpack.c.l.b16 %v324
    %v2070 = vunpack.c.h.b16 %v324
    %v2071 = vunpack.c.l.b16 %v325
    %v2072 = vunpack.c.h.b16 %v325
    %v2073 = vunpack.c.l.b16 %v326
    %v2074 = vunpack.c.h.b16 %v326
    %v2075 = vunpack.c.l.b16 %v327
    %v2076 = vunpack.c.h.b16 %v327
    %v2077 = vunpack.c.l.b16 %v328
    %v2078 = vunpack.c.h.b16 %v328
    %v2079 = vunpack.c.l.b16 %v329
    %v2080 = vunpack.c.h.b16 %v329
    %v2081 = vunpack.c.l.b16 %v330
    %v2082 = vunpack.c.h.b16 %v330
    %v2083 = vunpack.c.l.b16 %v331
    %v2084 = vunpack.c.h.b16 %v331
    %v2085 = vunpack.c.l.b16 %v332
    %v2086 = vunpack.c.h.b16 %v332
    %v2087 = vunpack.c.l.b16 %v333
    %v2088 = vunpack.c.h.b16 %v333
    %v2089 = vunpack.c.l.b16 %v334
    %v2090 = vunpack.c.h.b16 %v334
    %v2091 = vunpack.c.l.b16 %v335
    %v2092 = vunpack.c.h.b16 %v335
    %v2093 = vunpack.c.l.b16 %v336
    %v2094 = vunpack.c.h.b16 %v336
    %v2095 = vunpack.c.l.b16 %v337
    %v2096 = vunpack.c.h.b16 %v337
    %v2097 = vunpack.c.l.b16 %v338
    %v2098 = vunpack.c.h.b16 %v338
    %v2099 = vunpack.c.l.b16 %v339
    %v2100 = vunpack.c.h.b16 %v339
    %v2101 = vunpack.c.l.b16 %v340
    %v2102 = vunpack.c.h.b16 %v340
    %v2103 = vunpack.c.l.b16 %v341
    %v2104 = vunpack.c.h.b16 %v341
    %v2105 = vunpack.c.l.b16 %v342
    %v2106 = vunpack.c.h.b16 %v342
    %v2107 = vunpack.c.l.b16 %v343
    %v2108 = vunpack.c.h.b16 %v343
    %v2109 = vunpack.c.l.b16 %v344
    %v2110 = vunpack.c.h.b16 %v344
    %v2111 = vunpack.c.l.b16 %v345
    %v2112 = vunpack.c.h.b16 %v345
    %v2113 = vunpack.c.l.b16 %v346
    %v2114 = vunpack.c.h.b16 %v346
    %v2115 = vunpack.c.l.b16 %v347
    %v2116 = vunpack.c.h.b16 %v347
    %v2117 = vunpack.c.l.b16 %v348
    %v2118 = vunpack.c.h.b16 %v348
    %v2119 = vunpack.c.l.b16 %v349
    %v2120 = vunpack.c.h.b16 %v349
    %v2121 = vunpack.c.l.b16 %v350
    %v2122 = vunpack.c.h.b16 %v350
    %v2123 = vunpack.c.l.b16 %v351
    %v2124 = vunpack.c.h.b16 %v351
    %v2125 = vunpack.c.l.b16 %v352
    %v2126 = vunpack.c.h.b16 %v352
    %v2127 = vunpack.c.l.b16 %v353
    %v2128 = vunpack.c.h.b16 %v353
    %v2129 = vunpack.c.l.b16 %v354
    %v2130 = vunpack.c.h.b16 %v354
    %v2131 = vunpack.c.l.b16 %v355
    %v2132 = vunpack.c.h.b16 %v355
    %v2133 = vunpack.c.l.b16 %v356
    %v2134 = vunpack.c.h.b16 %v356
    %v2135 = vunpack.c.l.b16 %v357
    %v2136 = vunpack.c.h.b16 %v357
    %v2137 = vunpack.c.l.b16 %v358
    %v2138 = vunpack.c.h.b16 %v358
    %v2139 = vunpack.c.l.b16 %v359
    %v2140 = vunpack.c.h.b16 %v359
    %v2141 = vunpack.c.l.b16 %v360
    %v2142 = vunpack.c.h.b16 %v360
    %v2143 = vunpack.c.l.b16 %v361
    %v2144 = vunpack.c.h.b16 %v361
    %v2145 = vunpack.c.l.b16 %v362
    %v2146 = vunpack.c.h.b16 %v362
    %v2147 = vunpack.c.l.b16 %v363
    %v2148 = vunpack.c.h.b16 %v363
    %v2149 = vunpack.c.l.b16 %v364
    %v2150 = vunpack.c.h.b16 %v364
    %v2151 = vunpack.c.l.b16 %v365
    %v2152 = vunpack.c.h.b16 %v365
    %v2153 = vunpack.c.l.b16 %v366
    %v2154 = vunpack.c.h.b16 %v366
    %v2155 = vunpack.c.l.b16 %v367
    %v2156 = vunpack.c.h.b16 %v367
    %v2157 = vunpack.c.l.b16 %v368
    %v2158 = vunpack.c.h.b16 %v368
    %v2159 = vunpack.c.l.b16 %v369
    %v2160 = vunpack.c.h.b16 %v369
    %v2161 = vunpack.c.l.b16 %v370
    %v2162 = vunpack.c.h.b16 %v370
    %v2163 = vunpack.c.l.b16 %v371
    %v2164 = vunpack.c.h.b16 %v371
    %v2165 = vunpack.c.l.b16 %v372
    %v2166 = vunpack.c.h.b16 %v372
    %v2167 = vunpack.c.l.b16 %v373
    %v2168 = vunpack.c.h.b16 %v373
    %v2169 = vunpack.c.l.b16 %v374
    %v2170 = vunpack.c.h.b16 %v374
    %v2171 = vunpack.c.l.b16 %v375
    %v2172 = vunpack.c.h.b16 %v375
    %v2173 = vunpack.c.l.b16 %v376
    %v2174 = vunpack.c.h.b16 %v376
    %v2175 = vunpack.c.l.b16 %v377
    %v2176 = vunpack.c.h.b16 %v377
    %v2177 = vunpack.c.l.b16 %v378
    %v2178 = vunpack.c.h.b16 %v378
    %v2179 = vunpack.c.l.b16 %v379
    %v2180 = vunpack.c.h.b16 %v379
    %v2181 = vunpack.c.l.b16 %v380
    %v2182 = vunpack.c.h.b16 %v380
    %v2183 = vunpack.c.l.b16 %v381
    %v2184 = vunpack.c.h.b16 %v381
    %v2185 = vunpack.c.l.b16 %v382
    %v2186 = vunpack.c.h.b16 %v382
    %v2187 = vunpack.c.l.b16 %v383
    %v2188 = vunpack.c.h.b16 %v383
    %v2189 = vunpack.c.l.b16 %v384
    %v2190 = vunpack.c.h.b16 %v384
    %v2191 = vunpack.c.l.b16 %v385
    %v2192 = vunpack.c.h.b16 %v385
    %v2193 = vunpack.c.l.b16 %v386
    %v2194 = vunpack.c.h.b16 %v386
    %v2195 = vunpack.c.l.b16 %v387
    %v2196 = vunpack.c.h.b16 %v387
    %v2197 = vunpack.c.l.b16 %v388
    %v2198 = vunpack.c.h.b16 %v388
    %v2199 = vunpack.c.l.b16 %v389
    %v2200 = vunpack.c.h.b16 %v389
    %v2201 = vunpack.c.l.b16 %v390
    %v2202 = vunpack.c.h.b16 %v390
    %v2203 = vunpack.c.l.b16 %v391
    %v2204 = vunpack.c.h.b16 %v391
    %v2205 = vunpack.c.l.b16 %v392
    %v2206 = vunpack.c.h.b16 %v392
    %v2207 = vunpack.c.l.b16 %v393
    %v2208 = vunpack.c.h.b16 %v393
    %v2209 = vunpack.c.l.b16 %v394
    %v2210 = vunpack.c.h.b16 %v394
    %v2211 = vunpack.c.l.b16 %v395
    %v2212 = vunpack.c.h.b16 %v395
    %v2213 = vunpack.c.l.b16 %v396
    %v2214 = vunpack.c.h.b16 %v396
    %v2215 = vunpack.c.l.b16 %v397
    %v2216 = vunpack.c.h.b16 %v397
    %v2217 = vunpack.c.l.b16 %v398
    %v2218 = vunpack.c.h.b16 %v398
    %v2219 = vunpack.c.l.b16 %v399
    %v2220 = vunpack.c.h.b16 %v399
    %v2221 = vunpack.c.l.b16 %v400
    %v2222 = vunpack.c.h.b16 %v400
    %v2223 = vunpack.c.l.b16 %v401
    %v2224 = vunpack.c.h.b16 %v401
    %v2225 = vunpack.c.l.b16 %v402
    %v2226 = vunpack.c.h.b16 %v402
    %v2227 = vunpack.c.l.b16 %v403
    %v2228 = vunpack.c.h.b16 %v403
    %v2229 = vunpack.c.l.b16 %v404
    %v2230 = vunpack.c.h.b16 %v404
    %v2231 = vunpack.c.l.b16 %v405
    %v2232 = vunpack.c.h.b16 %v405
    %v2233 = vunpack.c.l.b16 %v406
    %v2234 = vunpack.c.h.b16 %v406
    %v2235 = vunpack.c.l.b16 %v407
    %v2236 = vunpack.c.h.b16 %v407
    %v2237 = vunpack.c.l.b16 %v408
    %v2238 = vunpack.c.h.b16 %v408
    %v2239 = vunpack.c.l.b16 %v409
    %v2240 = vunpack.c.h.b16 %v409
    %v2241 = vunpack.c.l.b16 %v410
    %v2242 = vunpack.c.h.b16 %v410
    %v2243 = vunpack.c.l.b16 %v411
    %v2244 = vunpack.c.h.b16 %v411
    %v2245 = vunpack.c.l.b16 %v412
    %v2246 = vunpack.c.h.b16 %v412
    %v2247 = vunpack.c.l.b16 %v413
    %v2248 = vunpack.c.h.b16 %v413
    %v2249 = vunpack.c.l.b16 %v414
    %v2250 = vunpack.c.h.b16 %v414
    %v2251 = vunpack.c.l.b16 %v415
    %v2252 = vunpack.c.h.b16 %v415
    %v2253 = vunpack.c.l.b16 %v416
    %v2254 = vunpack.c.h.b16 %v416
    %v2255 = vunpack.c.l.b16 %v417
    %v2256 = vunpack.c.h.b16 %v417
    %v2257 = vunpack.c.l.b16 %v418
    %v2258 = vunpack.c.h.b16 %v418
    %v2259 = vunpack.c.l.b16 %v419
    %v2260 = vunpack.c.h.b16 %v419
    %v2261 = vunpack.c.l.b16 %v420
    %v2262 = vunpack.c.h.b16 %v420
    %v2263 = vunpack.c.l.b16 %v421
    %v2264 = vunpack.c.h.b16 %v421
    %v2265 = vunpack.c.l.b16 %v422
    %v2266 = vunpack.c.h.b16 %v422
    %v2267 = vunpack.c.l.b16 %v423
    %v2268 = vunpack.c.h.b16 %v423
    %v2269 = vunpack.c.l.b16 %v424
    %v2270 = vunpack.c.h.b16 %v424
    %v2271 = vunpack.c.l.b16 %v425
    %v2272 = vunpack.c.h.b16 %v425
    %v2273 = vunpack.c.l.b16 %v426
    %v2274 = vunpack.c.h.b16 %v426
    %v2275 = vunpack.c.l.b16 %v427
    %v2276 = vunpack.c.h.b16 %v427
    %v2277 = vunpack.c.l.b16 %v428
    %v2278 = vunpack.c.h.b16 %v428
    %v2279 = vunpack.c.l.b16 %v429
    %v2280 = vunpack.c.h.b16 %v429
    %v2281 = vunpack.c.l.b16 %v430
    %v2282 = vunpack.c.h.b16 %v430
    %v2283 = vunpack.c.l.b16 %v431
    %v2284 = vunpack.c.h.b16 %v431
    %v2285 = vunpack.c.l.b16 %v432
    %v2286 = vunpack.c.h.b16 %v432
    %v2287 = vunpack.c.l.b16 %v433
    %v2288 = vunpack.c.h.b16 %v433
    %v2289 = vunpack.c.l.b16 %v434
    %v2290 = vunpack.c.h.b16 %v434
    %v2291 = vunpack.c.l.b16 %v435
    %v2292 = vunpack.c.h.b16 %v435
    %v2293 = vunpack.c.l.b16 %v436
    %v2294 = vunpack.c.h.b16 %v436
    %v2295 = vunpack.c.l.b16 %v437
    %v2296 = vunpack.c.h.b16 %v437
    %v2297 = vunpack.c.l.b16 %v438
    %v2298 = vunpack.c.h.b16 %v438
    %v2299 = vunpack.c.l.b16 %v439
    %v2300 = vunpack.c.h.b16 %v439
    %v2301 = vunpack.c.l.b16 %v440
    %v2302 = vunpack.c.h.b16 %v440
    %v2303 = vunpack.c.l.b16 %v441
    %v2304 = vunpack.c.h.b16 %v441
    %v2305 = vunpack.c.l.b16 %v442
    %v2306 = vunpack.c.h.b16 %v442
    %v2307 = vunpack.c.l.b16 %v443
    %v2308 = vunpack.c.h.b16 %v443
    %v2309 = vunpack.c.l.b16 %v444
    %v2310 = vunpack.c.h.b16 %v444
    %v2311 = vunpack.c.l.b16 %v445
    %v2312 = vunpack.c.h.b16 %v445
    %v2313 = vunpack.c.l.b16 %v446
    %v2314 = vunpack.c.h.b16 %v446
    %v2315 = vunpack.c.l.b16 %v447
    %v2316 = vunpack.c.h.b16 %v447
    %v2317 = vunpack.c.l.b16 %v448
    %v2318 = vunpack.c.h.b16 %v448
    %v2319 = vunpack.c.l.b16 %v449
    %v2320 = vunpack.c.h.b16 %v449
    %v2321 = vunpack.c.l.b16 %v450
    %v2322 = vunpack.c.h.b16 %v450
    %v2323 = vunpack.c.l.b16 %v451
    %v2324 = vunpack.c.h.b16 %v451
    %v2325 = vunpack.c.l.b16 %v452
    %v2326 = vunpack.c.h.b16 %v452
    %v2327 = vunpack.c.l.b16 %v453
    %v2328 = vunpack.c.h.b16 %v453
    %v2329 = vunpack.c.l.b16 %v454
    %v2330 = vunpack.c.h.b16 %v454
    %v2331 = vunpack.c.l.b16 %v455
    %v2332 = vunpack.c.h.b16 %v455
    %v2333 = vunpack.c.l.b16 %v456
    %v2334 = vunpack.c.h.b16 %v456
    %v2335 = vunpack.c.l.b16 %v457
    %v2336 = vunpack.c.h.b16 %v457
    %v2337 = vunpack.c.l.b16 %v458
    %v2338 = vunpack.c.h.b16 %v458
    %v2339 = vunpack.c.l.b16 %v459
    %v2340 = vunpack.c.h.b16 %v459
    %v2341 = vunpack.c.l.b16 %v460
    %v2342 = vunpack.c.h.b16 %v460
    %v2343 = vunpack.c.l.b16 %v461
    %v2344 = vunpack.c.h.b16 %v461
    %v2345 = vunpack.c.l.b16 %v462
    %v2346 = vunpack.c.h.b16 %v462
    %v2347 = vunpack.c.l.b16 %v463
    %v2348 = vunpack.c.h.b16 %v463
    %v2349 = vunpack.c.l.b16 %v464
    %v2350 = vunpack.c.h.b16 %v464
    %v2351 = vunpack.c.l.b16 %v465
    %v2352 = vunpack.c.h.b16 %v465
    %v2353 = vunpack.c.l.b16 %v466
    %v2354 = vunpack.c.h.b16 %v466
    %v2355 = vunpack.c.l.b16 %v467
    %v2356 = vunpack.c.h.b16 %v467
    %v2357 = vunpack.c.l.b16 %v468
    %v2358 = vunpack.c.h.b16 %v468
    %v2359 = vunpack.c.l.b16 %v469
    %v2360 = vunpack.c.h.b16 %v469
    %v2361 = vunpack.c.l.b16 %v470
    %v2362 = vunpack.c.h.b16 %v470
    %v2363 = vunpack.c.l.b16 %v471
    %v2364 = vunpack.c.h.b16 %v471
    %v2365 = vunpack.c.l.b16 %v472
    %v2366 = vunpack.c.h.b16 %v472
    %v2367 = vunpack.c.l.b16 %v473
    %v2368 = vunpack.c.h.b16 %v473
    %v2369 = vunpack.c.l.b16 %v474
    %v2370 = vunpack.c.h.b16 %v474
    %v2371 = vunpack.c.l.b16 %v475
    %v2372 = vunpack.c.h.b16 %v475
    %v2373 = vunpack.c.l.b16 %v476
    %v2374 = vunpack.c.h.b16 %v476
    %v2375 = vunpack.c.l.b16 %v477
    %v2376 = vunpack.c.h.b16 %v477
    %v2377 = vunpack.c.l.b16 %v478
    %v2378 = vunpack.c.h.b16 %v478
    %v2379 = vunpack.c.l.b16 %v479
    %v2380 = vunpack.c.h.b16 %v479
    %v2381 = vunpack.c.l.b16 %v480
    %v2382 = vunpack.c.h.b16 %v480
    %v2383 = vunpack.c.l.b16 %v481
    %v2384 = vunpack.c.h.b16 %v481
    %v2385 = vunpack.c.l.b16 %v482
    %v2386 = vunpack.c.h.b16 %v482
    %v2387 = vunpack.c.l.b16 %v483
    %v2388 = vunpack.c.h.b16 %v483
    %v2389 = vunpack.c.l.b16 %v484
    %v2390 = vunpack.c.h.b16 %v484
    %v2391 = vunpack.c.l.b16 %v485
    %v2392 = vunpack.c.h.b16 %v485
    %v2393 = vunpack.c.l.b16 %v486
    %v2394 = vunpack.c.h.b16 %v486
    %v2395 = vunpack.c.l.b16 %v487
    %v2396 = vunpack.c.h.b16 %v487
    %v2397 = vunpack.c.l.b16 %v488
    %v2398 = vunpack.c.h.b16 %v488
    %v2399 = vunpack.c.l.b16 %v489
    %v2400 = vunpack.c.h.b16 %v489
    %v2401 = vunpack.c.l.b16 %v490
    %v2402 = vunpack.c.h.b16 %v490
    %v2403 = vunpack.c.l.b16 %v491
    %v2404 = vunpack.c.h.b16 %v491
    %v2405 = vunpack.c.l.b16 %v492
    %v2406 = vunpack.c.h.b16 %v492
    %v2407 = vunpack.c.l.b16 %v493
    %v2408 = vunpack.c.h.b16 %v493
    %v2409 = vunpack.c.l.b16 %v494
    %v2410 = vunpack.c.h.b16 %v494
    %v2411 = vunpack.c.l.b16 %v495
    %v2412 = vunpack.c.h.b16 %v495
    %v2413 = vunpack.c.l.b16 %v496
    %v2414 = vunpack.c.h.b16 %v496
    %v2415 = vunpack.c.l.b16 %v497
    %v2416 = vunpack.c.h.b16 %v497
    %v2417 = vunpack.c.l.b16 %v498
    %v2418 = vunpack.c.h.b16 %v498
    %v2419 = vunpack.c.l.b16 %v499
    %v2420 = vunpack.c.h.b16 %v499
    %v2421 = vunpack.c.l.b16 %v500
    %v2422 = vunpack.c.h.b16 %v500
    %v2423 = vunpack.c.l.b16 %v501
    %v2424 = vunpack.c.h.b16 %v501
    %v2425 = vunpack.c.l.b16 %v502
    %v2426 = vunpack.c.h.b16 %v502
    %v2427 = vunpack.c.l.b16 %v503
    %v2428 = vunpack.c.h.b16 %v503
    %v2429 = vunpack.c.l.b16 %v504
    %v2430 = vunpack.c.h.b16 %v504
    %v2431 = vunpack.c.l.b16 %v505
    %v2432 = vunpack.c.h.b16 %v505
    %v2433 = vunpack.c.l.b16 %v506
    %v2434 = vunpack.c.h.b16 %v506
    %v2435 = vunpack.c.l.b16 %v507
    %v2436 = vunpack.c.h.b16 %v507
    %v2437 = vunpack.c.l.b16 %v508
    %v2438 = vunpack.c.h.b16 %v508
    %v2439 = vunpack.c.l.b16 %v509
    %v2440 = vunpack.c.h.b16 %v509
    %v2441 = vunpack.c.l.b16 %v510
    %v2442 = vunpack.c.h.b16 %v510
    %v2443 = vunpack.c.l.b16 %v511
    %v2444 = vunpack.c.h.b16 %v511
    %v2445 = vunpack.c.l.b16 %v512
    %v2446 = vunpack.c.h.b16 %v512
    %v2447 = vunpack.c.l.b16 %v513
    %v2448 = vunpack.c.h.b16 %v513
    %v2449 = vunpack.c.l.b16 %v514
    %v2450 = vunpack.c.h.b16 %v514
    %v2451 = vunpack.c.l.b16 %v515
    %v2452 = vunpack.c.h.b16 %v515
    %v2453 = vunpack.c.l.b16 %v516
    %v2454 = vunpack.c.h.b16 %v516
    %v2455 = vunpack.c.l.b16 %v517
    %v2456 = vunpack.c.h.b16 %v517
    %v2457 = vunpack.c.l.b16 %v518
    %v2458 = vunpack.c.h.b16 %v518
    %v2459 = vunpack.c.l.b16 %v519
    %v2460 = vunpack.c.h.b16 %v519
    %v2461 = vunpack.c.l.b16 %v520
    %v2462 = vunpack.c.h.b16 %v520
    %v2463 = vunpack.c.l.b16 %v521
    %v2464 = vunpack.c.h.b16 %v521
    %v2465 = vunpack.c.l.b16 %v522
    %v2466 = vunpack.c.h.b16 %v522
    %v2467 = vunpack.c.l.b16 %v523
    %v2468 = vunpack.c.h.b16 %v523
    %v2469 = vunpack.c.l.b16 %v524
    %v2470 = vunpack.c.h.b16 %v524
    %v2471 = vunpack.c.l.b16 %v525
    %v2472 = vunpack.c.h.b16 %v525
    %v2473 = vunpack.c.l.b16 %v526
    %v2474 = vunpack.c.h.b16 %v526
    %v2475 = vunpack.c.l.b16 %v527
    %v2476 = vunpack.c.h.b16 %v527
    %v2477 = vunpack.c.l.b16 %v528
    %v2478 = vunpack.c.h.b16 %v528
    %v2479 = vunpack.c.l.b16 %v529
    %v2480 = vunpack.c.h.b16 %v529
    %v2481 = vunpack.c.l.b16 %v530
    %v2482 = vunpack.c.h.b16 %v530
    %v2483 = vunpack.c.l.b16 %v531
    %v2484 = vunpack.c.h.b16 %v531
    %v2485 = vunpack.c.l.b16 %v532
    %v2486 = vunpack.c.h.b16 %v532
    %v2487 = vunpack.c.l.b16 %v533
    %v2488 = vunpack.c.h.b16 %v533
    %v2489 = vunpack.c.l.b16 %v534
    %v2490 = vunpack.c.h.b16 %v534
    %v2491 = vunpack.c.l.b16 %v535
    %v2492 = vunpack.c.h.b16 %v535
    %v2493 = vunpack.c.l.b16 %v536
    %v2494 = vunpack.c.h.b16 %v536
    %v2495 = vunpack.c.l.b16 %v537
    %v2496 = vunpack.c.h.b16 %v537
    %v2497 = vunpack.c.l.b16 %v538
    %v2498 = vunpack.c.h.b16 %v538
    %v2499 = vunpack.c.l.b16 %v539
    %v2500 = vunpack.c.h.b16 %v539
    %v2501 = vunpack.c.l.b16 %v540
    %v2502 = vunpack.c.h.b16 %v540
    %v2503 = vunpack.c.l.b16 %v541
    %v2504 = vunpack.c.h.b16 %v541
    %v2505 = vunpack.c.l.b16 %v542
    %v2506 = vunpack.c.h.b16 %v542
    %v2507 = vunpack.c.l.b16 %v543
    %v2508 = vunpack.c.h.b16 %v543
    %v2509 = vunpack.c.l.b16 %v544
    %v2510 = vunpack.c.h.b16 %v544
    %v2511 = vunpack.c.l.b16 %v545
    %v2512 = vunpack.c.h.b16 %v545
    %v2513 = vunpack.c.l.b16 %v546
    %v2514 = vunpack.c.h.b16 %v546
    %v2515 = vunpack.c.l.b16 %v547
    %v2516 = vunpack.c.h.b16 %v547
    %v2517 = vunpack.c.l.b16 %v548
    %v2518 = vunpack.c.h.b16 %v548
    %v2519 = vunpack.c.l.b16 %v549
    %v2520 = vunpack.c.h.b16 %v549
    %v2521 = vunpack.c.l.b16 %v550
    %v2522 = vunpack.c.h.b16 %v550
    %v2523 = vunpack.c.l.b16 %v551
    %v2524 = vunpack.c.h.b16 %v551
    %v2525 = vunpack.c.l.b16 %v552
    %v2526 = vunpack.c.h.b16 %v552
    %v2527 = vunpack.c.l.b16 %v553
    %v2528 = vunpack.c.h.b16 %v553
    %v2529 = vunpack.c.l.b16 %v554
    %v2530 = vunpack.c.h.b16 %v554
    %v2531 = vunpack.c.l.b16 %v555
    %v2532 = vunpack.c.h.b16 %v555
    %v2533 = vunpack.c.l.b16 %v556
    %v2534 = vunpack.c.h.b16 %v556
    %v2535 = vunpack.c.l.b16 %v557
    %v2536 = vunpack.c.h.b16 %v557
    %v2537 = vunpack.c.l.b16 %v558
    %v2538 = vunpack.c.h.b16 %v558
    %v2539 = vunpack.c.l.b16 %v559
    %v2540 = vunpack.c.h.b16 %v559
    %v2541 = vunpack.c.l.b16 %v560
    %v2542 = vunpack.c.h.b16 %v560
    %v2543 = vunpack.c.l.b16 %v561
    %v2544 = vunpack.c.h.b16 %v561
    %v2545 = vunpack.c.l.b16 %v562
    %v2546 = vunpack.c.h.b16 %v562
    %v2547 = vunpack.c.l.b16 %v563
    %v2548 = vunpack.c.h.b16 %v563
    %v2549 = vunpack.c.l.b16 %v564
    %v2550 = vunpack.c.h.b16 %v564
    %v2551 = vunpack.c.l.b16 %v565
    %v2552 = vunpack.c.h.b16 %v565
    %v2553 = vunpack.c.l.b16 %v566
    %v2554 = vunpack.c.h.b16 %v566
    %v2555 = vunpack.c.l.b16 %v567
    %v2556 = vunpack.c.h.b16 %v567
    %v2557 = vunpack.c.l.b16 %v568
    %v2558 = vunpack.c.h.b16 %v568
    %v2559 = vunpack.c.l.b16 %v569
    %v2560 = vunpack.c.h.b16 %v569
    %v2561 = vunpack.c.l.b16 %v570
    %v2562 = vunpack.c.h.b16 %v570
    %v2563 = vunpack.c.l.b16 %v571
    %v2564 = vunpack.c.h.b16 %v571
    %v2565 = vunpack.c.l.b16 %v572
    %v2566 = vunpack.c.h.b16 %v572
    %v2567 = vunpack.c.l.b16 %v573
    %v2568 = vunpack.c.h.b16 %v573
    %v2569 = vunpack.c.l.b16 %v574
    %v2570 = vunpack.c.h.b16 %v574
    %v2571 = vunpack.c.l.b16 %v575
    %v2572 = vunpack.c.h.b16 %v575
    %v2573 = vunpack.c.l.b16 %v576
    %v2574 = vunpack.c.h.b16 %v576
    %v2575 = vunpack.c.l.b16 %v577
    %v2576 = vunpack.c.h.b16 %v577
    %v2577 = vunpack.c.l.b16 %v578
    %v2578 = vunpack.c.h.b16 %v578
    %v2579 = vunpack.c.l.b16 %v579
    %v2580 = vunpack.c.h.b16 %v579
    %v2581 = vunpack.c.l.b16 %v580
    %v2582 = vunpack.c.h.b16 %v580
    %v2583 = vunpack.c.l.b16 %v581
    %v2584 = vunpack.c.h.b16 %v581
    %v2585 = vunpack.c.l.b16 %v582
    %v2586 = vunpack.c.h.b16 %v582
    %v2587 = vunpack.c.l.b16 %v583
    %v2588 = vunpack.c.h.b16 %v583
    %v2589 = vunpack.c.l.b16 %v584
    %v2590 = vunpack.c.h.b16 %v584
    %v2591 = vunpack.c.l.b16 %v585
    %v2592 = vunpack.c.h.b16 %v585
    %v2593 = vunpack.c.l.b16 %v586
    %v2594 = vunpack.c.h.b16 %v586
    %v2595 = vunpack.c.l.b16 %v587
    %v2596 = vunpack.c.h.b16 %v587
    %v2597 = vunpack.c.l.b16 %v588
    %v2598 = vunpack.c.h.b16 %v588
    %v2599 = vunpack.c.l.b16 %v589
    %v2600 = vunpack.c.h.b16 %v589
    %v2601 = vunpack.c.l.b16 %v590
    %v2602 = vunpack.c.h.b16 %v590
    %v2603 = vunpack.c.l.b16 %v591
    %v2604 = vunpack.c.h.b16 %v591
    %v2605 = vunpack.c.l.b16 %v592
    %v2606 = vunpack.c.h.b16 %v592
    %v2607 = vunpack.c.l.b16 %v593
    %v2608 = vunpack.c.h.b16 %v593
    %v2609 = vunpack.c.l.b16 %v594
    %v2610 = vunpack.c.h.b16 %v594
    %v2611 = vunpack.c.l.b16 %v595
    %v2612 = vunpack.c.h.b16 %v595
    %v2613 = vunpack.c.l.b16 %v596
    %v2614 = vunpack.c.h.b16 %v596
    %v2615 = vunpack.c.l.b16 %v597
    %v2616 = vunpack.c.h.b16 %v597
    %v2617 = vunpack.c.l.b16 %v598
    %v2618 = vunpack.c.h.b16 %v598
    %v2619 = vunpack.c.l.b16 %v599
    %v2620 = vunpack.c.h.b16 %v599
    %v2621 = vunpack.c.l.b16 %v600
    %v2622 = vunpack.c.h.b16 %v600
    %v2623 = vunpack.c.l.b16 %v601
    %v2624 = vunpack.c.h.b16 %v601
    %v2625 = vunpack.c.l.b16 %v602
    %v2626 = vunpack.c.h.b16 %v602
    %v2627 = vunpack.c.l.b16 %v603
    %v2628 = vunpack.c.h.b16 %v603
    %v2629 = vunpack.c.l.b16 %v604
    %v2630 = vunpack.c.h.b16 %v604
    %v2631 = vunpack.c.l.b16 %v605
    %v2632 = vunpack.c.h.b16 %v605
    %v2633 = vunpack.c.l.b16 %v606
    %v2634 = vunpack.c.h.b16 %v606
    %v2635 = vunpack.c.l.b16 %v607
    %v2636 = vunpack.c.h.b16 %v607
    %v2637 = vunpack.c.l.b16 %v608
    %v2638 = vunpack.c.h.b16 %v608
    %v2639 = vunpack.c.l.b16 %v609
    %v2640 = vunpack.c.h.b16 %v609
    %v2641 = vunpack.c.l.b16 %v610
    %v2642 = vunpack.c.h.b16 %v610
    %v2643 = vunpack.c.l.b16 %v611
    %v2644 = vunpack.c.h.b16 %v611
    %v2645 = vunpack.c.l.b16 %v612
    %v2646 = vunpack.c.h.b16 %v612
    %v2647 = vunpack.c.l.b16 %v613
    %v2648 = vunpack.c.h.b16 %v613
    %v2649 = vunpack.c.l.b16 %v614
    %v2650 = vunpack.c.h.b16 %v614
    %v2651 = vunpack.c.l.b16 %v615
    %v2652 = vunpack.c.h.b16 %v615
    %v2653 = vunpack.c.l.b16 %v616
    %v2654 = vunpack.c.h.b16 %v616
    %v2655 = vunpack.c.l.b16 %v617
    %v2656 = vunpack.c.h.b16 %v617
    %v2657 = vunpack.c.l.b16 %v618
    %v2658 = vunpack.c.h.b16 %v618
    %v2659 = vunpack.c.l.b16 %v619
    %v2660 = vunpack.c.h.b16 %v619
    %v2661 = vunpack.c.l.b16 %v620
    %v2662 = vunpack.c.h.b16 %v620
    %v2663 = vunpack.c.l.b16 %v621
    %v2664 = vunpack.c.h.b16 %v621
    %v2665 = vunpack.c.l.b16 %v622
    %v2666 = vunpack.c.h.b16 %v622
    %v2667 = vunpack.c.l.b16 %v623
    %v2668 = vunpack.c.h.b16 %v623
    %v2669 = vunpack.c.l.b16 %v624
    %v2670 = vunpack.c.h.b16 %v624
    %v2671 = vunpack.c.l.b16 %v625
    %v2672 = vunpack.c.h.b16 %v625
    %v2673 = vunpack.c.l.b16 %v626
    %v2674 = vunpack.c.h.b16 %v626
    %v2675 = vunpack.c.l.b16 %v627
    %v2676 = vunpack.c.h.b16 %v627
    %v2677 = vunpack.c.l.b16 %v628
    %v2678 = vunpack.c.h.b16 %v628
    %v2679 = vunpack.c.l.b16 %v629
    %v2680 = vunpack.c.h.b16 %v629
    %v2681 = vunpack.c.l.b16 %v630
    %v2682 = vunpack.c.h.b16 %v630
    %v2683 = vunpack.c.l.b16 %v631
    %v2684 = vunpack.c.h.b16 %v631
    %v2685 = vunpack.c.l.b16 %v632
    %v2686 = vunpack.c.h.b16 %v632
    %v2687 = vunpack.c.l.b16 %v633
    %v2688 = vunpack.c.h.b16 %v633
    %v2689 = vunpack.c.l.b16 %v634
    %v2690 = vunpack.c.h.b16 %v634
    %v2691 = vunpack.c.l.b16 %v635
    %v2692 = vunpack.c.h.b16 %v635
    %v2693 = vunpack.c.l.b16 %v636
    %v2694 = vunpack.c.h.b16 %v636
    %v2695 = vunpack.c.l.b16 %v637
    %v2696 = vunpack.c.h.b16 %v637
    %v2697 = vunpack.c.l.b16 %v638
    %v2698 = vunpack.c.h.b16 %v638
    %v2699 = vunpack.c.l.b16 %v639
    %v2700 = vunpack.c.h.b16 %v639
    %v2701 = vunpack.c.l.b16 %v640
    %v2702 = vunpack.c.h.b16 %v640
    %v2703 = vunpack.c.l.b16 %v641
    %v2704 = vunpack.c.h.b16 %v641
    %v2705 = vunpack.c.l.b16 %v642
    %v2706 = vunpack.c.h.b16 %v642
    %v2707 = vunpack.c.l.b16 %v643
    %v2708 = vunpack.c.h.b16 %v643
    %v2709 = vunpack.c.l.b16 %v644
    %v2710 = vunpack.c.h.b16 %v644
    %v2711 = vunpack.c.l.b16 %v645
    %v2712 = vunpack.c.h.b16 %v645
    %v2713 = vunpack.c.l.b16 %v646
    %v2714 = vunpack.c.h.b16 %v646
    %v2715 = vunpack.c.l.b16 %v647
    %v2716 = vunpack.c.h.b16 %v647
    %v2717 = vunpack.c.l.b16 %v648
    %v2718 = vunpack.c.h.b16 %v648
    %v2719 = vunpack.c.l.b16 %v649
    %v2720 = vunpack.c.h.b16 %v649
    %v2721 = vunpack.c.l.b16 %v650
    %v2722 = vunpack.c.h.b16 %v650
    %v2723 = vunpack.c.l.b16 %v651
    %v2724 = vunpack.c.h.b16 %v651
    %v2725 = vunpack.c.l.b16 %v652
    %v2726 = vunpack.c.h.b16 %v652
    %v2727 = vunpack.c.l.b16 %v653
    %v2728 = vunpack.c.h.b16 %v653
    %v2729 = vunpack.c.l.b16 %v654
    %v2730 = vunpack.c.h.b16 %v654
    %v2731 = vunpack.c.l.b16 %v655
    %v2732 = vunpack.c.h.b16 %v655
    %v2733 = vunpack.c.l.b16 %v656
    %v2734 = vunpack.c.h.b16 %v656
    %v2735 = vunpack.c.l.b16 %v657
    %v2736 = vunpack.c.h.b16 %v657
    %v2737 = vunpack.c.l.b16 %v658
    %v2738 = vunpack.c.h.b16 %v658
    %v2739 = vunpack.c.l.b16 %v659
    %v2740 = vunpack.c.h.b16 %v659
    %v2741 = vunpack.c.l.b16 %v660
    %v2742 = vunpack.c.h.b16 %v660
    %v2743 = vunpack.c.l.b16 %v661
    %v2744 = vunpack.c.h.b16 %v661
    %v2745 = vunpack.c.l.b16 %v662
    %v2746 = vunpack.c.h.b16 %v662
    %v2747 = vunpack.c.l.b16 %v663
    %v2748 = vunpack.c.h.b16 %v663
    %v2749 = vunpack.c.l.b16 %v664
    %v2750 = vunpack.c.h.b16 %v664
    %v2751 = vunpack.c.l.b16 %v665
    %v2752 = vunpack.c.h.b16 %v665
    %v2753 = vunpack.c.l.b16 %v666
    %v2754 = vunpack.c.h.b16 %v666
    %v2755 = vunpack.c.l.b16 %v667
    %v2756 = vunpack.c.h.b16 %v667
    %v2757 = vunpack.c.l.b16 %v668
    %v2758 = vunpack.c.h.b16 %v668
    %v2759 = vunpack.c.l.b16 %v669
    %v2760 = vunpack.c.h.b16 %v669
    %v2761 = vunpack.c.l.b16 %v670
    %v2762 = vunpack.c.h.b16 %v670
    %v2763 = vunpack.c.l.b16 %v671
    %v2764 = vunpack.c.h.b16 %v671
    %v2765 = vunpack.c.l.b16 %v672
    %v2766 = vunpack.c.h.b16 %v672
    %v2767 = vunpack.c.l.b16 %v673
    %v2768 = vunpack.c.h.b16 %v673
    %v2769 = vunpack.c.l.b16 %v674
    %v2770 = vunpack.c.h.b16 %v674
    %v2771 = vunpack.c.l.b16 %v675
    %v2772 = vunpack.c.h.b16 %v675
    %v2773 = vunpack.c.l.b16 %v676
    %v2774 = vunpack.c.h.b16 %v676
    %v2775 = vunpack.c.l.b16 %v677
    %v2776 = vunpack.c.h.b16 %v677
    %v2777 = vunpack.c.l.b16 %v678
    %v2778 = vunpack.c.h.b16 %v678
    %v2779 = vunpack.c.l.b16 %v679
    %v2780 = vunpack.c.h.b16 %v679
    %v2781 = vunpack.c.l.b16 %v680
    %v2782 = vunpack.c.h.b16 %v680
    %v2783 = vunpack.c.l.b16 %v681
    %v2784 = vunpack.c.h.b16 %v681
    %v2785 = vunpack.c.l.b16 %v682
    %v2786 = vunpack.c.h.b16 %v682
    %v2787 = vunpack.c.l.b16 %v683
    %v2788 = vunpack.c.h.b16 %v683
    %v2789 = vunpack.c.l.b16 %v684
    %v2790 = vunpack.c.h.b16 %v684
    %v2791 = vunpack.c.l.b16 %v685
    %v2792 = vunpack.c.h.b16 %v685
    %v2793 = vunpack.c.l.b16 %v686
    %v2794 = vunpack.c.h.b16 %v686
    %v2795 = vunpack.c.l.b16 %v687
    %v2796 = vunpack.c.h.b16 %v687
    %v2797 = vunpack.c.l.b16 %v688
    %v2798 = vunpack.c.h.b16 %v688
    %v2799 = vunpack.c.l.b16 %v689
    %v2800 = vunpack.c.h.b16 %v689
    %v2801 = vunpack.c.l.b16 %v690
    %v2802 = vunpack.c.h.b16 %v690
    %v2803 = vunpack.c.l.b16 %v691
    %v2804 = vunpack.c.h.b16 %v691
    %v2805 = vunpack.c.l.b16 %v692
    %v2806 = vunpack.c.h.b16 %v692
    %v2807 = vunpack.c.l.b16 %v693
    %v2808 = vunpack.c.h.b16 %v693
    %v2809 = vunpack.c.l.b16 %v694
    %v2810 = vunpack.c.h.b16 %v694
    %v2811 = vunpack.c.l.b16 %v695
    %v2812 = vunpack.c.h.b16 %v695
    %v2813 = vunpack.c.l.b16 %v696
    %v2814 = vunpack.c.h.b16 %v696
    %v2815 = vunpack.c.l.b16 %v697
    %v2816 = vunpack.c.h.b16 %v697
    %v2817 = vunpack.c.l.b16 %v698
    %v2818 = vunpack.c.h.b16 %v698
    %v2819 = vunpack.c.l.b16 %v699
    %v2820 = vunpack.c.h.b16 %v699
    %v2821 = vunpack.c.l.b16 %v700
    %v2822 = vunpack.c.h.b16 %v700
    %v2823 = vunpack.c.l.b16 %v701
    %v2824 = vunpack.c.h.b16 %v701
    %v2825 = vunpack.c.l.b16 %v702
    %v2826 = vunpack.c.h.b16 %v702
    %v2827 = vunpack.c.l.b16 %v703
    %v2828 = vunpack.c.h.b16 %v703
    %v2829 = vunpack.c.l.b16 %v704
    %v2830 = vunpack.c.h.b16 %v704
    %v2831 = vunpack.c.l.b16 %v705
    %v2832 = vunpack.c.h.b16 %v705
    %v2833 = vunpack.c.l.b16 %v706
    %v2834 = vunpack.c.h.b16 %v706
    %v2835 = vunpack.c.l.b16 %v707
    %v2836 = vunpack.c.h.b16 %v707
    %v2837 = vunpack.c.l.b16 %v708
    %v2838 = vunpack.c.h.b16 %v708
    %v2839 = vunpack.c.l.b16 %v709
    %v2840 = vunpack.c.h.b16 %v709
    %v2841 = vunpack.c.l.b16 %v710
    %v2842 = vunpack.c.h.b16 %v710
    %v2843 = vunpack.c.l.b16 %v711
    %v2844 = vunpack.c.h.b16 %v711
    %v2845 = vunpack.c.l.b16 %v712
    %v2846 = vunpack.c.h.b16 %v712
    %v2847 = vunpack.c.l.b16 %v713
    %v2848 = vunpack.c.h.b16 %v713
    %v2849 = vunpack.c.l.b16 %v714
    %v2850 = vunpack.c.h.b16 %v714
    %v2851 = vunpack.c.l.b16 %v715
    %v2852 = vunpack.c.h.b16 %v715
    %v2853 = vunpack.c.l.b16 %v716
    %v2854 = vunpack.c.h.b16 %v716
    %v2855 = vunpack.c.l.b16 %v717
    %v2856 = vunpack.c.h.b16 %v717
    %v2857 = vunpack.c.l.b16 %v718
    %v2858 = vunpack.c.h.b16 %v718
    %v2859 = vunpack.c.l.b16 %v719
    %v2860 = vunpack.c.h.b16 %v719
    %v2861 = vunpack.c.l.b16 %v720
    %v2862 = vunpack.c.h.b16 %v720
    %v2863 = vunpack.c.l.b16 %v721
    %v2864 = vunpack.c.h.b16 %v721
    %v2865 = vunpack.c.l.b16 %v722
    %v2866 = vunpack.c.h.b16 %v722
    %v2867 = vunpack.c.l.b16 %v723
    %v2868 = vunpack.c.h.b16 %v723
    %v2869 = vunpack.c.l.b16 %v724
    %v2870 = vunpack.c.h.b16 %v724
    %v2871 = vunpack.c.l.b16 %v725
    %v2872 = vunpack.c.h.b16 %v725
    %v2873 = vunpack.c.l.b16 %v726
    %v2874 = vunpack.c.h.b16 %v726
    %v2875 = vunpack.c.l.b16 %v727
    %v2876 = vunpack.c.h.b16 %v727
    %v2877 = vunpack.c.l.b16 %v728
    %v2878 = vunpack.c.h.b16 %v728
    %v2879 = vunpack.c.l.b16 %v729
    %v2880 = vunpack.c.h.b16 %v729
    %v2881 = vunpack.c.l.b16 %v730
    %v2882 = vunpack.c.h.b16 %v730
    %v2883 = vunpack.c.l.b16 %v731
    %v2884 = vunpack.c.h.b16 %v731
    %v2885 = vunpack.c.l.b16 %v732
    %v2886 = vunpack.c.h.b16 %v732
    %v2887 = vunpack.c.l.b16 %v733
    %v2888 = vunpack.c.h.b16 %v733
    %v2889 = vunpack.c.l.b16 %v734
    %v2890 = vunpack.c.h.b16 %v734
    %v2891 = vunpack.c.l.b16 %v735
    %v2892 = vunpack.c.h.b16 %v735
    %v2893 = vunpack.c.l.b16 %v736
    %v2894 = vunpack.c.h.b16 %v736
    %v2895 = vunpack.c.l.b16 %v737
    %v2896 = vunpack.c.h.b16 %v737
    %v2897 = vunpack.c.l.b16 %v738
    %v2898 = vunpack.c.h.b16 %v738
    %v2899 = vunpack.c.l.b16 %v739
    %v2900 = vunpack.c.h.b16 %v739
    %v2901 = vunpack.c.l.b16 %v740
    %v2902 = vunpack.c.h.b16 %v740
    %v2903 = vunpack.c.l.b16 %v741
    %v2904 = vunpack.c.h.b16 %v741
    %v2905 = vunpack.c.l.b16 %v742
    %v2906 = vunpack.c.h.b16 %v742
    %v2907 = vunpack.c.l.b16 %v743
    %v2908 = vunpack.c.h.b16 %v743
    %v2909 = vunpack.c.l.b16 %v744
    %v2910 = vunpack.c.h.b16 %v744
    %v2911 = vunpack.c.l.b16 %v745
    %v2912 = vunpack.c.h.b16 %v745
    %v2913 = vunpack.c.l.b16 %v746
    %v2914 = vunpack.c.h.b16 %v746
    %v2915 = vunpack.c.l.b16 %v747
    %v2916 = vunpack.c.h.b16 %v747
    %v2917 = vunpack.c.l.b16 %v748
    %v2918 = vunpack.c.h.b16 %v748
    %v2919 = vunpack.c.l.b16 %v749
    %v2920 = vunpack.c.h.b16 %v749
    %v2921 = vunpack.c.l.b16 %v750
    %v2922 = vunpack.c.h.b16 %v750
    %v2923 = vunpack.c.l.b16 %v751
    %v2924 = vunpack.c.h.b16 %v751
    %v2925 = vunpack.c.l.b16 %v752
    %v2926 = vunpack.c.h.b16 %v752
    %v2927 = vunpack.c.l.b16 %v753
    %v2928 = vunpack.c.h.b16 %v753
    %v2929 = vunpack.c.l.b16 %v754
    %v2930 = vunpack.c.h.b16 %v754
    %v2931 = vunpack.c.l.b16 %v755
    %v2932 = vunpack.c.h.b16 %v755
    %v2933 = vunpack.c.l.b16 %v756
    %v2934 = vunpack.c.h.b16 %v756
    %v2935 = vunpack.c.l.b16 %v757
    %v2936 = vunpack.c.h.b16 %v757
    %v2937 = vunpack.c.l.b16 %v758
    %v2938 = vunpack.c.h.b16 %v758
    %v2939 = vunpack.c.l.b16 %v759
    %v2940 = vunpack.c.h.b16 %v759
    %v2941 = vunpack.c.l.b16 %v760
    %v2942 = vunpack.c.h.b16 %v760
    %v2943 = vunpack.c.l.b16 %v761
    %v2944 = vunpack.c.h.b16 %v761
    %v2945 = vunpack.c.l.b16 %v762
    %v2946 = vunpack.c.h.b16 %v762
    %v2947 = vunpack.c.l.b16 %v763
    %v2948 = vunpack.c.h.b16 %v763
    %v2949 = vunpack.c.l.b16 %v764
    %v2950 = vunpack.c.h.b16 %v764
    %v2951 = vunpack.c.l.b16 %v765
    %v2952 = vunpack.c.h.b16 %v765
    %v2953 = vunpack.c.l.b16 %v766
    %v2954 = vunpack.c.h.b16 %v766
    %v2955 = vunpack.c.l.b16 %v767
    %v2956 = vunpack.c.h.b16 %v767
    %v2957 = vunpack.c.l.b16 %v768
    %v2958 = vunpack.c.h.b16 %v768
    %v2959 = vunpack.c.l.b16 %v769
    %v2960 = vunpack.c.h.b16 %v769
    %v2961 = vunpack.c.l.b16 %v770
    %v2962 = vunpack.c.h.b16 %v770
    %v2963 = vunpack.c.l.b16 %v771
    %v2964 = vunpack.c.h.b16 %v771
    %v2965 = vunpack.c.l.b16 %v772
    %v2966 = vunpack.c.h.b16 %v772
    %v2967 = vunpack.c.l.b16 %v773
    %v2968 = vunpack.c.h.b16 %v773
    %v2969 = vunpack.c.l.b16 %v774
    %v2970 = vunpack.c.h.b16 %v774
    %v2971 = vunpack.c.l.b16 %v775
    %v2972 = vunpack.c.h.b16 %v775
    %v2973 = vunpack.c.l.b16 %v776
    %v2974 = vunpack.c.h.b16 %v776
    %v2975 = vunpack.c.l.b16 %v777
    %v2976 = vunpack.c.h.b16 %v777
    %v2977 = vunpack.c.l.b16 %v778
    %v2978 = vunpack.c.h.b16 %v778
    %v2979 = vunpack.c.l.b16 %v779
    %v2980 = vunpack.c.h.b16 %v779
    %v2981 = vunpack.c.l.b16 %v780
    %v2982 = vunpack.c.h.b16 %v780
    %v2983 = vunpack.c.l.b16 %v781
    %v2984 = vunpack.c.h.b16 %v781
    %v2985 = vunpack.c.l.b16 %v782
    %v2986 = vunpack.c.h.b16 %v782
    %v2987 = vunpack.c.l.b16 %v783
    %v2988 = vunpack.c.h.b16 %v783
    %v2989 = vunpack.c.l.b16 %v784
    %v2990 = vunpack.c.h.b16 %v784
    %v2991 = vunpack.c.l.b16 %v785
    %v2992 = vunpack.c.h.b16 %v785
    %v2993 = vunpack.c.l.b16 %v786
    %v2994 = vunpack.c.h.b16 %v786
    %v2995 = vunpack.c.l.b16 %v787
    %v2996 = vunpack.c.h.b16 %v787
    %v2997 = vunpack.c.l.b16 %v788
    %v2998 = vunpack.c.h.b16 %v788
    %v2999 = vunpack.c.l.b16 %v789
    %v3000 = vunpack.c.h.b16 %v789
    %v3001 = vunpack.c.l.b16 %v790
    %v3002 = vunpack.c.h.b16 %v790
    %v3003 = vunpack.c.l.b16 %v791
    %v3004 = vunpack.c.h.b16 %v791
    %v3005 = vunpack.c.l.b16 %v792
    %v3006 = vunpack.c.h.b16 %v792
    %v3007 = vunpack.c.l.b16 %v793
    %v3008 = vunpack.c.h.b16 %v793
    %v3009 = vunpack.c.l.b16 %v794
    %v3010 = vunpack.c.h.b16 %v794
    %v3011 = vunpack.c.l.b16 %v795
    %v3012 = vunpack.c.h.b16 %v795
    %v3013 = vunpack.c.l.b16 %v796
    %v3014 = vunpack.c.h.b16 %v796
    %v3015 = vunpack.c.l.b16 %v797
    %v3016 = vunpack.c.h.b16 %v797
    %v3017 = vunpack.c.l.b16 %v798
    %v3018 = vunpack.c.h.b16 %v798
    %v3019 = vunpack.c.l.b16 %v799
    %v3020 = vunpack.c.h.b16 %v799
    %v3021 = vunpack.c.l.b16 %v800
    %v3022 = vunpack.c.h.b16 %v800
    %v3023 = vunpack.c.l.b16 %v801
    %v3024 = vunpack.c.h.b16 %v801
    %v3025 = vunpack.c.l.b16 %v802
    %v3026 = vunpack.c.h.b16 %v802
    %v3027 = vunpack.c.l.b16 %v803
    %v3028 = vunpack.c.h.b16 %v803
    %v3029 = vunpack.c.l.b16 %v804
    %v3030 = vunpack.c.h.b16 %v804
    %v3031 = vunpack.c.l.b16 %v805
    %v3032 = vunpack.c.h.b16 %v805
    %v3033 = vunpack.c.l.b16 %v806
    %v3034 = vunpack.c.h.b16 %v806
    %v3035 = vunpack.c.l.b16 %v807
    %v3036 = vunpack.c.h.b16 %v807
    %v3037 = vunpack.c.l.b16 %v808
    %v3038 = vunpack.c.h.b16 %v808
    %v3039 = vunpack.c.l.b16 %v809
    %v3040 = vunpack.c.h.b16 %v809
    %v3041 = vunpack.c.l.b16 %v810
    %v3042 = vunpack.c.h.b16 %v810
    %v3043 = vunpack.c.l.b16 %v811
    %v3044 = vunpack.c.h.b16 %v811
    %v3045 = vunpack.c.l.b16 %v812
    %v3046 = vunpack.c.h.b16 %v812
    %v3047 = vunpack.c.l.b16 %v813
    %v3048 = vunpack.c.h.b16 %v813
    %v3049 = vunpack.c.l.b16 %v814
    %v3050 = vunpack.c.h.b16 %v814
    %v3051 = vunpack.c.l.b16 %v815
    %v3052 = vunpack.c.h.b16 %v815
    %v3053 = vunpack.c.l.b16 %v816
    %v3054 = vunpack.c.h.b16 %v816
    %v3055 = vunpack.c.l.b16 %v817
    %v3056 = vunpack.c.h.b16 %v817
    %v3057 = vunpack.c.l.b16 %v818
    %v3058 = vunpack.c.h.b16 %v818
    %v3059 = vunpack.c.l.b16 %v819
    %v3060 = vunpack.c.h.b16 %v819
    %v3061 = vunpack.c.l.b16 %v820
    %v3062 = vunpack.c.h.b16 %v820
    %v3063 = vunpack.c.l.b16 %v821
    %v3064 = vunpack.c.h.b16 %v821
    %v3065 = vunpack.c.l.b16 %v822
    %v3066 = vunpack.c.h.b16 %v822
    %v3067 = vunpack.c.l.b16 %v823
    %v3068 = vunpack.c.h.b16 %v823
    %v3069 = vunpack.c.l.b16 %v824
    %v3070 = vunpack.c.h.b16 %v824
    %v3071 = vunpack.c.l.b16 %v825
    %v3072 = vunpack.c.h.b16 %v825
    %v3073 = vunpack.c.l.b16 %v826
    %v3074 = vunpack.c.h.b16 %v826
    %v3075 = vunpack.c.l.b16 %v827
    %v3076 = vunpack.c.h.b16 %v827
    %v3077 = vunpack.c.l.b16 %v828
    %v3078 = vunpack.c.h.b16 %v828
    %v3079 = vunpack.c.l.b16 %v829
    %v3080 = vunpack.c.h.b16 %v829
    %v3081 = vunpack.c.l.b16 %v830
    %v3082 = vunpack.c.h.b16 %v830
    %v3083 = vunpack.c.l.b16 %v831
    %v3084 = vunpack.c.h.b16 %v831
    %v3085 = vunpack.c.l.b16 %v832
    %v3086 = vunpack.c.h.b16 %v832
    %v3087 = vunpack.c.l.b16 %v833
    %v3088 = vunpack.c.h.b16 %v833
    %v3089 = vunpack.c.l.b16 %v834
    %v3090 = vunpack.c.h.b16 %v834
    %v3091 = vunpack.c.l.b16 %v835
    %v3092 = vunpack.c.h.b16 %v835
    %v3093 = vunpack.c.l.b16 %v836
    %v3094 = vunpack.c.h.b16 %v836
    %v3095 = vunpack.c.l.b16 %v837
    %v3096 = vunpack.c.h.b16 %v837
    %v3097 = vunpack.c.l.b16 %v838
    %v3098 = vunpack.c.h.b16 %v838
    %v3099 = vunpack.c.l.b16 %v839
    %v3100 = vunpack.c.h.b16 %v839
    %v3101 = vunpack.c.l.b16 %v840
    %v3102 = vunpack.c.h.b16 %v840
    %v3103 = vunpack.c.l.b16 %v841
    %v3104 = vunpack.c.h.b16 %v841
    %v3105 = vunpack.c.l.b16 %v842
    %v3106 = vunpack.c.h.b16 %v842
    %v3107 = vunpack.c.l.b16 %v843
    %v3108 = vunpack.c.h.b16 %v843
    %v3109 = vunpack.c.l.b16 %v844
    %v3110 = vunpack.c.h.b16 %v844
    %v3111 = vunpack.c.l.b16 %v845
    %v3112 = vunpack.c.h.b16 %v845
    %v3113 = vunpack.c.l.b16 %v846
    %v3114 = vunpack.c.h.b16 %v846
    %v3115 = vunpack.c.l.b16 %v847
    %v3116 = vunpack.c.h.b16 %v847
    %v3117 = vunpack.c.l.b16 %v848
    %v3118 = vunpack.c.h.b16 %v848
    %v3119 = vunpack.c.l.b16 %v849
    %v3120 = vunpack.c.h.b16 %v849
    %v3121 = vunpack.c.l.b16 %v850
    %v3122 = vunpack.c.h.b16 %v850
    %v3123 = vunpack.c.l.b16 %v851
    %v3124 = vunpack.c.h.b16 %v851
    %v3125 = vunpack.c.l.b16 %v852
    %v3126 = vunpack.c.h.b16 %v852
    %v3127 = vunpack.c.l.b16 %v853
    %v3128 = vunpack.c.h.b16 %v853
    %v3129 = vunpack.c.l.b16 %v854
    %v3130 = vunpack.c.h.b16 %v854
    %v3131 = vunpack.c.l.b16 %v855
    %v3132 = vunpack.c.h.b16 %v855
    %v3133 = vunpack.c.l.b16 %v856
    %v3134 = vunpack.c.h.b16 %v856
    %v3135 = vunpack.c.l.b16 %v857
    %v3136 = vunpack.c.h.b16 %v857
    %v3137 = vunpack.c.l.b16 %v858
    %v3138 = vunpack.c.h.b16 %v858
    %v3139 = vunpack.c.l.b16 %v859
    %v3140 = vunpack.c.h.b16 %v859
    %v3141 = vunpack.c.l.b16 %v860
    %v3142 = vunpack.c.h.b16 %v860
    %v3143 = vunpack.c.l.b16 %v861
    %v3144 = vunpack.c.h.b16 %v861
    %v3145 = vunpack.c.l.b16 %v862
    %v3146 = vunpack.c.h.b16 %v862
    %v3147 = vunpack.c.l.b16 %v863
    %v3148 = vunpack.c.h.b16 %v863
    %v3149 = vunpack.c.l.b16 %v864
    %v3150 = vunpack.c.h.b16 %v864
    %v3151 = vunpack.c.l.b16 %v865
    %v3152 = vunpack.c.h.b16 %v865
    %v3153 = vunpack.c.l.b16 %v866
    %v3154 = vunpack.c.h.b16 %v866
    %v3155 = vunpack.c.l.b16 %v867
    %v3156 = vunpack.c.h.b16 %v867
    %v3157 = vunpack.c.l.b16 %v868
    %v3158 = vunpack.c.h.b16 %v868
    %v3159 = vunpack.c.l.b16 %v869
    %v3160 = vunpack.c.h.b16 %v869
    %v3161 = vunpack.c.l.b16 %v870
    %v3162 = vunpack.c.h.b16 %v870
    %v3163 = vunpack.c.l.b16 %v871
    %v3164 = vunpack.c.h.b16 %v871
    %v3165 = vunpack.c.l.b16 %v872
    %v3166 = vunpack.c.h.b16 %v872
    %v3167 = vunpack.c.l.b16 %v873
    %v3168 = vunpack.c.h.b16 %v873
    %v3169 = vunpack.c.l.b16 %v874
    %v3170 = vunpack.c.h.b16 %v874
    %v3171 = vunpack.c.l.b16 %v875
    %v3172 = vunpack.c.h.b16 %v875
    %v3173 = vunpack.c.l.b16 %v876
    %v3174 = vunpack.c.h.b16 %v876
    %v3175 = vunpack.c.l.b16 %v877
    %v3176 = vunpack.c.h.b16 %v877
    %v3177 = vunpack.c.l.b16 %v878
    %v3178 = vunpack.c.h.b16 %v878
    %v3179 = vunpack.c.l.b16 %v879
    %v3180 = vunpack.c.h.b16 %v879
    %v3181 = vunpack.c.l.b16 %v880
    %v3182 = vunpack.c.h.b16 %v880
    %v3183 = vunpack.c.l.b16 %v881
    %v3184 = vunpack.c.h.b16 %v881
    %v3185 = vunpack.c.l.b16 %v882
    %v3186 = vunpack.c.h.b16 %v882
    %v3187 = vunpack.c.l.b16 %v883
    %v3188 = vunpack.c.h.b16 %v883
    %v3189 = vunpack.c.l.b16 %v884
    %v3190 = vunpack.c.h.b16 %v884
    %v3191 = vunpack.c.l.b16 %v885
    %v3192 = vunpack.c.h.b16 %v885
    %v3193 = vunpack.c.l.b16 %v886
    %v3194 = vunpack.c.h.b16 %v886
    %v3195 = vunpack.c.l.b16 %v887
    %v3196 = vunpack.c.h.b16 %v887
    %v3197 = vunpack.c.l.b16 %v888
    %v3198 = vunpack.c.h.b16 %v888
    %v3199 = vunpack.c.l.b16 %v889
    %v3200 = vunpack.c.h.b16 %v889
    %v3201 = vunpack.c.l.b16 %v890
    %v3202 = vunpack.c.h.b16 %v890
    %v3203 = vunpack.c.l.b16 %v891
    %v3204 = vunpack.c.h.b16 %v891
    %v3205 = vunpack.c.l.b16 %v892
    %v3206 = vunpack.c.h.b16 %v892
    %v3207 = vunpack.c.l.b16 %v893
    %v3208 = vunpack.c.h.b16 %v893
    %v3209 = vunpack.c.l.b16 %v894
    %v3210 = vunpack.c.h.b16 %v894
    %v3211 = vunpack.c.l.b16 %v895
    %v3212 = vunpack.c.h.b16 %v895
    %v3213 = vunpack.c.l.b16 %v896
    %v3214 = vunpack.c.h.b16 %v896
    %v3215 = vunpack.c.l.b16 %v897
    %v3216 = vunpack.c.h.b16 %v897
    %v3217 = vunpack.c.l.b16 %v898
    %v3218 = vunpack.c.h.b16 %v898
    %v3219 = vunpack.c.l.b16 %v899
    %v3220 = vunpack.c.h.b16 %v899
    %v3221 = vunpack.c.l.b16 %v900
    %v3222 = vunpack.c.h.b16 %v900
    %v3223 = vunpack.c.l.b16 %v901
    %v3224 = vunpack.c.h.b16 %v901
    %v3225 = vunpack.c.l.b16 %v902
    %v3226 = vunpack.c.h.b16 %v902
    %v3227 = vunpack.c.l.b16 %v903
    %v3228 = vunpack.c.h.b16 %v903
    %v3229 = vunpack.c.l.b16 %v904
    %v3230 = vunpack.c.h.b16 %v904
    %v3231 = vunpack.c.l.b16 %v905
    %v3232 = vunpack.c.h.b16 %v905
    %v3233 = vunpack.c.l.b16 %v906
    %v3234 = vunpack.c.h.b16 %v906
    %v3235 = vunpack.c.l.b16 %v907
    %v3236 = vunpack.c.h.b16 %v907
    %v3237 = vunpack.c.l.b16 %v908
    %v3238 = vunpack.c.h.b16 %v908
    %v3239 = vunpack.c.l.b16 %v909
    %v3240 = vunpack.c.h.b16 %v909
    %v3241 = vunpack.c.l.b16 %v910
    %v3242 = vunpack.c.h.b16 %v910
    %v3243 = vunpack.c.l.b16 %v911
    %v3244 = vunpack.c.h.b16 %v911
    %v3245 = vunpack.c.l.b16 %v912
    %v3246 = vunpack.c.h.b16 %v912
    %v3247 = vpack.c.b16 %v1727, %v1711
    %v3248 = vpack.c.b16 %v1728, %v1712
    %v3249 = vpack.c.b16 %v1729, %v1713
    %v3250 = vpack.c.b16 %v1730, %v1714
    %v3251 = vpack.c.b16 %v1731, %v1715
    %v3252 = vpack.c.b16 %v1732, %v1716
    %v3253 = vpack.c.b16 %v1733, %v1717
    %v3254 = vpack.c.b16 %v1734, %v1718
    %v3255 = vpack.c.b16 %v1735, %v1719
    %v3256 = vpack.c.b16 %v1736, %v1720
    %v3257 = vpack.c.b16 %v1737, %v1721
    %v3258 = vpack.c.b16 %v1738, %v1722
    %v3259 = vpack.c.b16 %v1739, %v1723
    %v3260 = vpack.c.b16 %v1740, %v1724
    %v3261 = vpack.c.b16 %v1741, %v1725
    %v3262 = vpack.c.b16 %v1742, %v1726
    %v3263 = vpack.c.b16 %v1759, %v1743
    %v3264 = vpack.c.b16 %v1760, %v1744
    %v3265 = vpack.c.b16 %v1761, %v1745
    %v3266 = vpack.c.b16 %v1762, %v1746
    %v3267 = vpack.c.b16 %v1763, %v1747
    %v3268 = vpack.c.b16 %v1764, %v1748
    %v3269 = vpack.c.b16 %v1765, %v1749
    %v3270 = vpack.c.b16 %v1766, %v1750
    %v3271 = vpack.c.b16 %v1767, %v1751
    %v3272 = vpack.c.b16 %v1768, %v1752
    %v3273 = vpack.c.b16 %v1769, %v1753
    %v3274 = vpack.c.b16 %v1770, %v1754
    %v3275 = vpack.c.b16 %v1771, %v1755
    %v3276 = vpack.c.b16 %v1772, %v1756
    %v3277 = vpack.c.b16 %v1773, %v1757
    %v3278 = vpack.c.b16 %v1774, %v1758
    %v3279 = vpack.c.b16 %v1791, %v1775
    %v3280 = vpack.c.b16 %v1792, %v1776
    %v3281 = vpack.c.b16 %v1793, %v1777
    %v3282 = vpack.c.b16 %v1794, %v1778
    %v3283 = vpack.c.b16 %v1795, %v1779
    %v3284 = vpack.c.b16 %v1796, %v1780
    %v3285 = vpack.c.b16 %v1797, %v1781
    %v3286 = vpack.c.b16 %v1798, %v1782
    %v3287 = vpack.c.b16 %v1799, %v1783
    %v3288 = vpack.c.b16 %v1800, %v1784
    %v3289 = vpack.c.b16 %v1801, %v1785
    %v3290 = vpack.c.b16 %v1802, %v1786
    %v3291 = vpack.c.b16 %v1803, %v1787
    %v3292 = vpack.c.b16 %v1804, %v1788
    %v3293 = vpack.c.b16 %v1805, %v1789
    %v3294 = vpack.c.b16 %v1806, %v1790
    %v3295 = vpack.c.b16 %v1823, %v1807
    %v3296 = vpack.c.b16 %v1824, %v1808
    %v3297 = vpack.c.b16 %v1825, %v1809
    %v3298 = vpack.c.b16 %v1826, %v1810
    %v3299 = vpack.c.b16 %v1827, %v1811
    %v3300 = vpack.c.b16 %v1828, %v1812
    %v3301 = vpack.c.b16 %v1829, %v1813
    %v3302 = vpack.c.b16 %v1830, %v1814
    %v3303 = vpack.c.b16 %v1831, %v1815
    %v3304 = vpack.c.b16 %v1832, %v1816
    %v3305 = vpack.c.b16 %v1833, %v1817
    %v3306 = vpack.c.b16 %v1834, %v1818
    %v3307 = vpack.c.b16 %v1835, %v1819
    %v3308 = vpack.c.b16 %v1836, %v1820
    %v3309 = vpack.c.b16 %v1837, %v1821
    %v3310 = vpack.c.b16 %v1838, %v1822
    %v3311 = vpack.c.b16 %v1855, %v1839
    %v3312 = vpack.c.b16 %v1856, %v1840
    %v3313 = vpack.c.b16 %v1857, %v1841
    %v3314 = vpack.c.b16 %v1858, %v1842
    %v3315 = vpack.c.b16 %v1859, %v1843
    %v3316 = vpack.c.b16 %v1860, %v1844
    %v3317 = vpack.c.b16 %v1861, %v1845
    %v3318 = vpack.c.b16 %v1862, %v1846
    %v3319 = vpack.c.b16 %v1863, %v1847
    %v3320 = vpack.c.b16 %v1864, %v1848
    %v3321 = vpack.c.b16 %v1865, %v1849
    %v3322 = vpack.c.b16 %v1866, %v1850
    %v3323 = vpack.c.b16 %v1867, %v1851
    %v3324 = vpack.c.b16 %v1868, %v1852
    %v3325 = vpack.c.b16 %v1869, %v1853
    %v3326 = vpack.c.b16 %v1870, %v1854
    %v3327 = vpack.c.b16 %v1887, %v1871
    %v3328 = vpack.c.b16 %v1888, %v1872
    %v3329 = vpack.c.b16 %v1889, %v1873
    %v3330 = vpack.c.b16 %v1890, %v1874
    %v3331 = vpack.c.b16 %v1891, %v1875
    %v3332 = vpack.c.b16 %v1892, %v1876
    %v3333 = vpack.c.b16 %v1893, %v1877
    %v3334 = vpack.c.b16 %v1894, %v1878
    %v3335 = vpack.c.b16 %v1895, %v1879
    %v3336 = vpack.c.b16 %v1896, %v1880
    %v3337 = vpack.c.b16 %v1897, %v1881
    %v3338 = vpack.c.b16 %v1898, %v1882
    %v3339 = vpack.c.b16 %v1899, %v1883
    %v3340 = vpack.c.b16 %v1900, %v1884
    %v3341 = vpack.c.b16 %v1901, %v1885
    %v3342 = vpack.c.b16 %v1902, %v1886
    %v3343 = vpack.c.b16 %v1919, %v1903
    %v3344 = vpack.c.b16 %v1920, %v1904
    %v3345 = vpack.c.b16 %v1921, %v1905
    %v3346 = vpack.c.b16 %v1922, %v1906
    %v3347 = vpack.c.b16 %v1923, %v1907
    %v3348 = vpack.c.b16 %v1924, %v1908
    %v3349 = vpack.c.b16 %v1925, %v1909
    %v3350 = vpack.c.b16 %v1926, %v1910
    %v3351 = vpack.c.b16 %v1927, %v1911
    %v3352 = vpack.c.b16 %v1928, %v1912
    %v3353 = vpack.c.b16 %v1929, %v1913
    %v3354 = vpack.c.b16 %v1930, %v1914
    %v3355 = vpack.c.b16 %v1931, %v1915
    %v3356 = vpack.c.b16 %v1932, %v1916
    %v3357 = vpack.c.b16 %v1933, %v1917
    %v3358 = vpack.c.b16 %v1934, %v1918
    %v3359 = vpack.c.b16 %v1951, %v1935
    %v3360 = vpack.c.b16 %v1952, %v1936
    %v3361 = vpack.c.b16 %v1953, %v1937
    %v3362 = vpack.c.b16 %v1954, %v1938
    %v3363 = vpack.c.b16 %v1955, %v1939
    %v3364 = vpack.c.b16 %v1956, %v1940
    %v3365 = vpack.c.b16 %v1957, %v1941
    %v3366 = vpack.c.b16 %v1958, %v1942
    %v3367 = vpack.c.b16 %v1959, %v1943
    %v3368 = vpack.c.b16 %v1960, %v1944
    %v3369 = vpack.c.b16 %v1961, %v1945
    %v3370 = vpack.c.b16 %v1962, %v1946
    %v3371 = vpack.c.b16 %v1963, %v1947
    %v3372 = vpack.c.b16 %v1964, %v1948
    %v3373 = vpack.c.b16 %v1965, %v1949
    %v3374 = vpack.c.b16 %v1966, %v1950
    %v3375 = vpack.c.b16 %v1983, %v1967
    %v3376 = vpack.c.b16 %v1984, %v1968
    %v3377 = vpack.c.b16 %v1985, %v1969
    %v3378 = vpack.c.b16 %v1986, %v1970
    %v3379 = vpack.c.b16 %v1987, %v1971
    %v3380 = vpack.c.b16 %v1988, %v1972
    %v3381 = vpack.c.b16 %v1989, %v1973
    %v3382 = vpack.c.b16 %v1990, %v1974
    %v3383 = vpack.c.b16 %v1991, %v1975
    %v3384 = vpack.c.b16 %v1992, %v1976
    %v3385 = vpack.c.b16 %v1993, %v1977
    %v3386 = vpack.c.b16 %v1994, %v1978
    %v3387 = vpack.c.b16 %v1995, %v1979
    %v3388 = vpack.c.b16 %v1996, %v1980
    %v3389 = vpack.c.b16 %v1997, %v1981
    %v3390 = vpack.c.b16 %v1998, %v1982
    %v3391 = vpack.c.b16 %v2015, %v1999
    %v3392 = vpack.c.b16 %v2016, %v2000
    %v3393 = vpack.c.b16 %v2017, %v2001
    %v3394 = vpack.c.b16 %v2018, %v2002
    %v3395 = vpack.c.b16 %v2019, %v2003
    %v3396 = vpack.c.b16 %v2020, %v2004
    %v3397 = vpack.c.b16 %v2021, %v2005
    %v3398 = vpack.c.b16 %v2022, %v2006
    %v3399 = vpack.c.b16 %v2023, %v2007
    %v3400 = vpack.c.b16 %v2024, %v2008
    %v3401 = vpack.c.b16 %v2025, %v2009
    %v3402 = vpack.c.b16 %v2026, %v2010
    %v3403 = vpack.c.b16 %v2027, %v2011
    %v3404 = vpack.c.b16 %v2028, %v2012
    %v3405 = vpack.c.b16 %v2029, %v2013
    %v3406 = vpack.c.b16 %v2030, %v2014
    %v3407 = vpack.c.b16 %v2047, %v2031
    %v3408 = vpack.c.b16 %v2048, %v2032
    %v3409 = vpack.c.b16 %v2049, %v2033
    %v3410 = vpack.c.b16 %v2050, %v2034
    %v3411 = vpack.c.b16 %v2051, %v2035
    %v3412 = vpack.c.b16 %v2052, %v2036
    %v3413 = vpack.c.b16 %v2053, %v2037
    %v3414 = vpack.c.b16 %v2054, %v2038
    %v3415 = vpack.c.b16 %v2055, %v2039
    %v3416 = vpack.c.b16 %v2056, %v2040
    %v3417 = vpack.c.b16 %v2057, %v2041
    %v3418 = vpack.c.b16 %v2058, %v2042
    %v3419 = vpack.c.b16 %v2059, %v2043
    %v3420 = vpack.c.b16 %v2060, %v2044
    %v3421 = vpack.c.b16 %v2061, %v2045
    %v3422 = vpack.c.b16 %v2062, %v2046
    %v3423 = vpack.c.b16 %v2079, %v2063
    %v3424 = vpack.c.b16 %v2080, %v2064
    %v3425 = vpack.c.b16 %v2081, %v2065
    %v3426 = vpack.c.b16 %v2082, %v2066
    %v3427 = vpack.c.b16 %v2083, %v2067
    %v3428 = vpack.c.b16 %v2084, %v2068
    %v3429 = vpack.c.b16 %v2085, %v2069
    %v3430 = vpack.c.b16 %v2086, %v2070
    %v3431 = vpack.c.b16 %v2087, %v2071
    %v3432 = vpack.c.b16 %v2088, %v2072
    %v3433 = vpack.c.b16 %v2089, %v2073
    %v3434 = vpack.c.b16 %v2090, %v2074
    %v3435 = vpack.c.b16 %v2091, %v2075
    %v3436 = vpack.c.b16 %v2092, %v2076
    %v3437 = vpack.c.b16 %v2093, %v2077
    %v3438 = vpack.c.b16 %v2094, %v2078
    %v3439 = vpack.c.b16 %v2111, %v2095
    %v3440 = vpack.c.b16 %v2112, %v2096
    %v3441 = vpack.c.b16 %v2113, %v2097
    %v3442 = vpack.c.b16 %v2114, %v2098
    %v3443 = vpack.c.b16 %v2115, %v2099
    %v3444 = vpack.c.b16 %v2116, %v2100
    %v3445 = vpack.c.b16 %v2117, %v2101
    %v3446 = vpack.c.b16 %v2118, %v2102
    %v3447 = vpack.c.b16 %v2119, %v2103
    %v3448 = vpack.c.b16 %v2120, %v2104
    %v3449 = vpack.c.b16 %v2121, %v2105
    %v3450 = vpack.c.b16 %v2122, %v2106
    %v3451 = vpack.c.b16 %v2123, %v2107
    %v3452 = vpack.c.b16 %v2124, %v2108
    %v3453 = vpack.c.b16 %v2125, %v2109
    %v3454 = vpack.c.b16 %v2126, %v2110
    %v3455 = vpack.c.b16 %v2143, %v2127
    %v3456 = vpack.c.b16 %v2144, %v2128
    %v3457 = vpack.c.b16 %v2145, %v2129
    %v3458 = vpack.c.b16 %v2146, %v2130
    %v3459 = vpack.c.b16 %v2147, %v2131
    %v3460 = vpack.c.b16 %v2148, %v2132
    %v3461 = vpack.c.b16 %v2149, %v2133
    %v3462 = vpack.c.b16 %v2150, %v2134
    %v3463 = vpack.c.b16 %v2151, %v2135
    %v3464 = vpack.c.b16 %v2152, %v2136
    %v3465 = vpack.c.b16 %v2153, %v2137
    %v3466 = vpack.c.b16 %v2154, %v2138
    %v3467 = vpack.c.b16 %v2155, %v2139
    %v3468 = vpack.c.b16 %v2156, %v2140
    %v3469 = vpack.c.b16 %v2157, %v2141
    %v3470 = vpack.c.b16 %v2158, %v2142
    %v3471 = vpack.c.b16 %v2175, %v2159
    %v3472 = vpack.c.b16 %v2176, %v2160
    %v3473 = vpack.c.b16 %v2177, %v2161
    %v3474 = vpack.c.b16 %v2178, %v2162
    %v3475 = vpack.c.b16 %v2179, %v2163
    %v3476 = vpack.c.b16 %v2180, %v2164
    %v3477 = vpack.c.b16 %v2181, %v2165
    %v3478 = vpack.c.b16 %v2182, %v2166
    %v3479 = vpack.c.b16 %v2183, %v2167
    %v3480 = vpack.c.b16 %v2184, %v2168
    %v3481 = vpack.c.b16 %v2185, %v2169
    %v3482 = vpack.c.b16 %v2186, %v2170
    %v3483 = vpack.c.b16 %v2187, %v2171
    %v3484 = vpack.c.b16 %v2188, %v2172
    %v3485 = vpack.c.b16 %v2189, %v2173
    %v3486 = vpack.c.b16 %v2190, %v2174
    %v3487 = vpack.c.b16 %v2207, %v2191
    %v3488 = vpack.c.b16 %v2208, %v2192
    %v3489 = vpack.c.b16 %v2209, %v2193
    %v3490 = vpack.c.b16 %v2210, %v2194
    %v3491 = vpack.c.b16 %v2211, %v2195
    %v3492 = vpack.c.b16 %v2212, %v2196
    %v3493 = vpack.c.b16 %v2213, %v2197
    %v3494 = vpack.c.b16 %v2214, %v2198
    %v3495 = vpack.c.b16 %v2215, %v2199
    %v3496 = vpack.c.b16 %v2216, %v2200
    %v3497 = vpack.c.b16 %v2217, %v2201
    %v3498 = vpack.c.b16 %v2218, %v2202
    %v3499 = vpack.c.b16 %v2219, %v2203
    %v3500 = vpack.c.b16 %v2220, %v2204
    %v3501 = vpack.c.b16 %v2221, %v2205
    %v3502 = vpack.c.b16 %v2222, %v2206
    %v3503 = vpack.c.b16 %v2239, %v2223
    %v3504 = vpack.c.b16 %v2240, %v2224
    %v3505 = vpack.c.b16 %v2241, %v2225
    %v3506 = vpack.c.b16 %v2242, %v2226
    %v3507 = vpack.c.b16 %v2243, %v2227
    %v3508 = vpack.c.b16 %v2244, %v2228
    %v3509 = vpack.c.b16 %v2245, %v2229
    %v3510 = vpack.c.b16 %v2246, %v2230
    %v3511 = vpack.c.b16 %v2247, %v2231
    %v3512 = vpack.c.b16 %v2248, %v2232
    %v3513 = vpack.c.b16 %v2249, %v2233
    %v3514 = vpack.c.b16 %v2250, %v2234
    %v3515 = vpack.c.b16 %v2251, %v2235
    %v3516 = vpack.c.b16 %v2252, %v2236
    %v3517 = vpack.c.b16 %v2253, %v2237
    %v3518 = vpack.c.b16 %v2254, %v2238
    %v3519 = vpack.c.b16 %v2271, %v2255
    %v3520 = vpack.c.b16 %v2272, %v2256
    %v3521 = vpack.c.b16 %v2273, %v2257
    %v3522 = vpack.c.b16 %v2274, %v2258
    %v3523 = vpack.c.b16 %v2275, %v2259
    %v3524 = vpack.c.b16 %v2276, %v2260
    %v3525 = vpack.c.b16 %v2277, %v2261
    %v3526 = vpack.c.b16 %v2278, %v2262
    %v3527 = vpack.c.b16 %v2279, %v2263
    %v3528 = vpack.c.b16 %v2280, %v2264
    %v3529 = vpack.c.b16 %v2281, %v2265
    %v3530 = vpack.c.b16 %v2282, %v2266
    %v3531 = vpack.c.b16 %v2283, %v2267
    %v3532 = vpack.c.b16 %v2284, %v2268
    %v3533 = vpack.c.b16 %v2285, %v2269
    %v3534 = vpack.c.b16 %v2286, %v2270
    %v3535 = vpack.c.b16 %v2303, %v2287
    %v3536 = vpack.c.b16 %v2304, %v2288
    %v3537 = vpack.c.b16 %v2305, %v2289
    %v3538 = vpack.c.b16 %v2306, %v2290
    %v3539 = vpack.c.b16 %v2307, %v2291
    %v3540 = vpack.c.b16 %v2308, %v2292
    %v3541 = vpack.c.b16 %v2309, %v2293
    %v3542 = vpack.c.b16 %v2310, %v2294
    %v3543 = vpack.c.b16 %v2311, %v2295
    %v3544 = vpack.c.b16 %v2312, %v2296
    %v3545 = vpack.c.b16 %v2313, %v2297
    %v3546 = vpack.c.b16 %v2314, %v2298
    %v3547 = vpack.c.b16 %v2315, %v2299
    %v3548 = vpack.c.b16 %v2316, %v2300
    %v3549 = vpack.c.b16 %v2317, %v2301
    %v3550 = vpack.c.b16 %v2318, %v2302
    %v3551 = vpack.c.b16 %v2335, %v2319
    %v3552 = vpack.c.b16 %v2336, %v2320
    %v3553 = vpack.c.b16 %v2337, %v2321
    %v3554 = vpack.c.b16 %v2338, %v2322
    %v3555 = vpack.c.b16 %v2339, %v2323
    %v3556 = vpack.c.b16 %v2340, %v2324
    %v3557 = vpack.c.b16 %v2341, %v2325
    %v3558 = vpack.c.b16 %v2342, %v2326
    %v3559 = vpack.c.b16 %v2343, %v2327
    %v3560 = vpack.c.b16 %v2344, %v2328
    %v3561 = vpack.c.b16 %v2345, %v2329
    %v3562 = vpack.c.b16 %v2346, %v2330
    %v3563 = vpack.c.b16 %v2347, %v2331
    %v3564 = vpack.c.b16 %v2348, %v2332
    %v3565 = vpack.c.b16 %v2349, %v2333
    %v3566 = vpack.c.b16 %v2350, %v2334
    %v3567 = vpack.c.b16 %v2367, %v2351
    %v3568 = vpack.c.b16 %v2368, %v2352
    %v3569 = vpack.c.b16 %v2369, %v2353
    %v3570 = vpack.c.b16 %v2370, %v2354
    %v3571 = vpack.c.b16 %v2371, %v2355
    %v3572 = vpack.c.b16 %v2372, %v2356
    %v3573 = vpack.c.b16 %v2373, %v2357
    %v3574 = vpack.c.b16 %v2374, %v2358
    %v3575 = vpack.c.b16 %v2375, %v2359
    %v3576 = vpack.c.b16 %v2376, %v2360
    %v3577 = vpack.c.b16 %v2377, %v2361
    %v3578 = vpack.c.b16 %v2378, %v2362
    %v3579 = vpack.c.b16 %v2379, %v2363
    %v3580 = vpack.c.b16 %v2380, %v2364
    %v3581 = vpack.c.b16 %v2381, %v2365
    %v3582 = vpack.c.b16 %v2382, %v2366
    %v3583 = vpack.c.b16 %v2399, %v2383
    %v3584 = vpack.c.b16 %v2400, %v2384
    %v3585 = vpack.c.b16 %v2401, %v2385
    %v3586 = vpack.c.b16 %v2402, %v2386
    %v3587 = vpack.c.b16 %v2403, %v2387
    %v3588 = vpack.c.b16 %v2404, %v2388
    %v3589 = vpack.c.b16 %v2405, %v2389
    %v3590 = vpack.c.b16 %v2406, %v2390
    %v3591 = vpack.c.b16 %v2407, %v2391
    %v3592 = vpack.c.b16 %v2408, %v2392
    %v3593 = vpack.c.b16 %v2409, %v2393
    %v3594 = vpack.c.b16 %v2410, %v2394
    %v3595 = vpack.c.b16 %v2411, %v2395
    %v3596 = vpack.c.b16 %v2412, %v2396
    %v3597 = vpack.c.b16 %v2413, %v2397
    %v3598 = vpack.c.b16 %v2414, %v2398
    %v3599 = vpack.c.b16 %v2431, %v2415
    %v3600 = vpack.c.b16 %v2432, %v2416
    %v3601 = vpack.c.b16 %v2433, %v2417
    %v3602 = vpack.c.b16 %v2434, %v2418
    %v3603 = vpack.c.b16 %v2435, %v2419
    %v3604 = vpack.c.b16 %v2436, %v2420
    %v3605 = vpack.c.b16 %v2437, %v2421
    %v3606 = vpack.c.b16 %v2438, %v2422
    %v3607 = vpack.c.b16 %v2439, %v2423
    %v3608 = vpack.c.b16 %v2440, %v2424
    %v3609 = vpack.c.b16 %v2441, %v2425
    %v3610 = vpack.c.b16 %v2442, %v2426
    %v3611 = vpack.c.b16 %v2443, %v2427
    %v3612 = vpack.c.b16 %v2444, %v2428
    %v3613 = vpack.c.b16 %v2445, %v2429
    %v3614 = vpack.c.b16 %v2446, %v2430
    %v3615 = vpack.c.b16 %v2463, %v2447
    %v3616 = vpack.c.b16 %v2464, %v2448
    %v3617 = vpack.c.b16 %v2465, %v2449
    %v3618 = vpack.c.b16 %v2466, %v2450
    %v3619 = vpack.c.b16 %v2467, %v2451
    %v3620 = vpack.c.b16 %v2468, %v2452
    %v3621 = vpack.c.b16 %v2469, %v2453
    %v3622 = vpack.c.b16 %v2470, %v2454
    %v3623 = vpack.c.b16 %v2471, %v2455
    %v3624 = vpack.c.b16 %v2472, %v2456
    %v3625 = vpack.c.b16 %v2473, %v2457
    %v3626 = vpack.c.b16 %v2474, %v2458
    %v3627 = vpack.c.b16 %v2475, %v2459
    %v3628 = vpack.c.b16 %v2476, %v2460
    %v3629 = vpack.c.b16 %v2477, %v2461
    %v3630 = vpack.c.b16 %v2478, %v2462
    %v3631 = vpack.c.b16 %v2495, %v2479
    %v3632 = vpack.c.b16 %v2496, %v2480
    %v3633 = vpack.c.b16 %v2497, %v2481
    %v3634 = vpack.c.b16 %v2498, %v2482
    %v3635 = vpack.c.b16 %v2499, %v2483
    %v3636 = vpack.c.b16 %v2500, %v2484
    %v3637 = vpack.c.b16 %v2501, %v2485
    %v3638 = vpack.c.b16 %v2502, %v2486
    %v3639 = vpack.c.b16 %v2503, %v2487
    %v3640 = vpack.c.b16 %v2504, %v2488
    %v3641 = vpack.c.b16 %v2505, %v2489
    %v3642 = vpack.c.b16 %v2506, %v2490
    %v3643 = vpack.c.b16 %v2507, %v2491
    %v3644 = vpack.c.b16 %v2508, %v2492
    %v3645 = vpack.c.b16 %v2509, %v2493
    %v3646 = vpack.c.b16 %v2510, %v2494
    %v3647 = vpack.c.b16 %v2527, %v2511
    %v3648 = vpack.c.b16 %v2528, %v2512
    %v3649 = vpack.c.b16 %v2529, %v2513
    %v3650 = vpack.c.b16 %v2530, %v2514
    %v3651 = vpack.c.b16 %v2531, %v2515
    %v3652 = vpack.c.b16 %v2532, %v2516
    %v3653 = vpack.c.b16 %v2533, %v2517
    %v3654 = vpack.c.b16 %v2534, %v2518
    %v3655 = vpack.c.b16 %v2535, %v2519
    %v3656 = vpack.c.b16 %v2536, %v2520
    %v3657 = vpack.c.b16 %v2537, %v2521
    %v3658 = vpack.c.b16 %v2538, %v2522
    %v3659 = vpack.c.b16 %v2539, %v2523
    %v3660 = vpack.c.b16 %v2540, %v2524
    %v3661 = vpack.c.b16 %v2541, %v2525
    %v3662 = vpack.c.b16 %v2542, %v2526
    %v3663 = vpack.c.b16 %v2559, %v2543
    %v3664 = vpack.c.b16 %v2560, %v2544
    %v3665 = vpack.c.b16 %v2561, %v2545
    %v3666 = vpack.c.b16 %v2562, %v2546
    %v3667 = vpack.c.b16 %v2563, %v2547
    %v3668 = vpack.c.b16 %v2564, %v2548
    %v3669 = vpack.c.b16 %v2565, %v2549
    %v3670 = vpack.c.b16 %v2566, %v2550
    %v3671 = vpack.c.b16 %v2567, %v2551
    %v3672 = vpack.c.b16 %v2568, %v2552
    %v3673 = vpack.c.b16 %v2569, %v2553
    %v3674 = vpack.c.b16 %v2570, %v2554
    %v3675 = vpack.c.b16 %v2571, %v2555
    %v3676 = vpack.c.b16 %v2572, %v2556
    %v3677 = vpack.c.b16 %v2573, %v2557
    %v3678 = vpack.c.b16 %v2574, %v2558
    %v3679 = vpack.c.b16 %v2591, %v2575
    %v3680 = vpack.c.b16 %v2592, %v2576
    %v3681 = vpack.c.b16 %v2593, %v2577
    %v3682 = vpack.c.b16 %v2594, %v2578
    %v3683 = vpack.c.b16 %v2595, %v2579
    %v3684 = vpack.c.b16 %v2596, %v2580
    %v3685 = vpack.c.b16 %v2597, %v2581
    %v3686 = vpack.c.b16 %v2598, %v2582
    %v3687 = vpack.c.b16 %v2599, %v2583
    %v3688 = vpack.c.b16 %v2600, %v2584
    %v3689 = vpack.c.b16 %v2601, %v2585
    %v3690 = vpack.c.b16 %v2602, %v2586
    %v3691 = vpack.c.b16 %v2603, %v2587
    %v3692 = vpack.c.b16 %v2604, %v2588
    %v3693 = vpack.c.b16 %v2605, %v2589
    %v3694 = vpack.c.b16 %v2606, %v2590
    %v3695 = vpack.c.b16 %v2623, %v2607
    %v3696 = vpack.c.b16 %v2624, %v2608
    %v3697 = vpack.c.b16 %v2625, %v2609
    %v3698 = vpack.c.b16 %v2626, %v2610
    %v3699 = vpack.c.b16 %v2627, %v2611
    %v3700 = vpack.c.b16 %v2628, %v2612
    %v3701 = vpack.c.b16 %v2629, %v2613
    %v3702 = vpack.c.b16 %v2630, %v2614
    %v3703 = vpack.c.b16 %v2631, %v2615
    %v3704 = vpack.c.b16 %v2632, %v2616
    %v3705 = vpack.c.b16 %v2633, %v2617
    %v3706 = vpack.c.b16 %v2634, %v2618
    %v3707 = vpack.c.b16 %v2635, %v2619
    %v3708 = vpack.c.b16 %v2636, %v2620
    %v3709 = vpack.c.b16 %v2637, %v2621
    %v3710 = vpack.c.b16 %v2638, %v2622
    %v3711 = vpack.c.b16 %v2655, %v2639
    %v3712 = vpack.c.b16 %v2656, %v2640
    %v3713 = vpack.c.b16 %v2657, %v2641
    %v3714 = vpack.c.b16 %v2658, %v2642
    %v3715 = vpack.c.b16 %v2659, %v2643
    %v3716 = vpack.c.b16 %v2660, %v2644
    %v3717 = vpack.c.b16 %v2661, %v2645
    %v3718 = vpack.c.b16 %v2662, %v2646
    %v3719 = vpack.c.b16 %v2663, %v2647
    %v3720 = vpack.c.b16 %v2664, %v2648
    %v3721 = vpack.c.b16 %v2665, %v2649
    %v3722 = vpack.c.b16 %v2666, %v2650
    %v3723 = vpack.c.b16 %v2667, %v2651
    %v3724 = vpack.c.b16 %v2668, %v2652
    %v3725 = vpack.c.b16 %v2669, %v2653
    %v3726 = vpack.c.b16 %v2670, %v2654
    %v3727 = vpack.c.b16 %v2687, %v2671
    %v3728 = vpack.c.b16 %v2688, %v2672
    %v3729 = vpack.c.b16 %v2689, %v2673
    %v3730 = vpack.c.b16 %v2690, %v2674
    %v3731 = vpack.c.b16 %v2691, %v2675
    %v3732 = vpack.c.b16 %v2692, %v2676
    %v3733 = vpack.c.b16 %v2693, %v2677
    %v3734 = vpack.c.b16 %v2694, %v2678
    %v3735 = vpack.c.b16 %v2695, %v2679
    %v3736 = vpack.c.b16 %v2696, %v2680
    %v3737 = vpack.c.b16 %v2697, %v2681
    %v3738 = vpack.c.b16 %v2698, %v2682
    %v3739 = vpack.c.b16 %v2699, %v2683
    %v3740 = vpack.c.b16 %v2700, %v2684
    %v3741 = vpack.c.b16 %v2701, %v2685
    %v3742 = vpack.c.b16 %v2702, %v2686
    %v3743 = vpack.c.b16 %v2719, %v2703
    %v3744 = vpack.c.b16 %v2720, %v2704
    %v3745 = vpack.c.b16 %v2721, %v2705
    %v3746 = vpack.c.b16 %v2722, %v2706
    %v3747 = vpack.c.b16 %v2723, %v2707
    %v3748 = vpack.c.b16 %v2724, %v2708
    %v3749 = vpack.c.b16 %v2725, %v2709
    %v3750 = vpack.c.b16 %v2726, %v2710
    %v3751 = vpack.c.b16 %v2727, %v2711
    %v3752 = vpack.c.b16 %v2728, %v2712
    %v3753 = vpack.c.b16 %v2729, %v2713
    %v3754 = vpack.c.b16 %v2730, %v2714
    %v3755 = vpack.c.b16 %v2731, %v2715
    %v3756 = vpack.c.b16 %v2732, %v2716
    %v3757 = vpack.c.b16 %v2733, %v2717
    %v3758 = vpack.c.b16 %v2734, %v2718
    %v3759 = vpack.c.b16 %v2751, %v2735
    %v3760 = vpack.c.b16 %v2752, %v2736
    %v3761 = vpack.c.b16 %v2753, %v2737
    %v3762 = vpack.c.b16 %v2754, %v2738
    %v3763 = vpack.c.b16 %v2755, %v2739
    %v3764 = vpack.c.b16 %v2756, %v2740
    %v3765 = vpack.c.b16 %v2757, %v2741
    %v3766 = vpack.c.b16 %v2758, %v2742
    %v3767 = vpack.c.b16 %v2759, %v2743
    %v3768 = vpack.c.b16 %v2760, %v2744
    %v3769 = vpack.c.b16 %v2761, %v2745
    %v3770 = vpack.c.b16 %v2762, %v2746
    %v3771 = vpack.c.b16 %v2763, %v2747
    %v3772 = vpack.c.b16 %v2764, %v2748
    %v3773 = vpack.c.b16 %v2765, %v2749
    %v3774 = vpack.c.b16 %v2766, %v2750
    %v3775 = vpack.c.b16 %v2783, %v2767
    %v3776 = vpack.c.b16 %v2784, %v2768
    %v3777 = vpack.c.b16 %v2785, %v2769
    %v3778 = vpack.c.b16 %v2786, %v2770
    %v3779 = vpack.c.b16 %v2787, %v2771
    %v3780 = vpack.c.b16 %v2788, %v2772
    %v3781 = vpack.c.b16 %v2789, %v2773
    %v3782 = vpack.c.b16 %v2790, %v2774
    %v3783 = vpack.c.b16 %v2791, %v2775
    %v3784 = vpack.c.b16 %v2792, %v2776
    %v3785 = vpack.c.b16 %v2793, %v2777
    %v3786 = vpack.c.b16 %v2794, %v2778
    %v3787 = vpack.c.b16 %v2795, %v2779
    %v3788 = vpack.c.b16 %v2796, %v2780
    %v3789 = vpack.c.b16 %v2797, %v2781
    %v3790 = vpack.c.b16 %v2798, %v2782
    %v3791 = vpack.c.b16 %v2815, %v2799
    %v3792 = vpack.c.b16 %v2816, %v2800
    %v3793 = vpack.c.b16 %v2817, %v2801
    %v3794 = vpack.c.b16 %v2818, %v2802
    %v3795 = vpack.c.b16 %v2819, %v2803
    %v3796 = vpack.c.b16 %v2820, %v2804
    %v3797 = vpack.c.b16 %v2821, %v2805
    %v3798 = vpack.c.b16 %v2822, %v2806
    %v3799 = vpack.c.b16 %v2823, %v2807
    %v3800 = vpack.c.b16 %v2824, %v2808
    %v3801 = vpack.c.b16 %v2825, %v2809
    %v3802 = vpack.c.b16 %v2826, %v2810
    %v3803 = vpack.c.b16 %v2827, %v2811
    %v3804 = vpack.c.b16 %v2828, %v2812
    %v3805 = vpack.c.b16 %v2829, %v2813
    %v3806 = vpack.c.b16 %v2830, %v2814
    %v3807 = vpack.c.b16 %v2847, %v2831
    %v3808 = vpack.c.b16 %v2848, %v2832
    %v3809 = vpack.c.b16 %v2849, %v2833
    %v3810 = vpack.c.b16 %v2850, %v2834
    %v3811 = vpack.c.b16 %v2851, %v2835
    %v3812 = vpack.c.b16 %v2852, %v2836
    %v3813 = vpack.c.b16 %v2853, %v2837
    %v3814 = vpack.c.b16 %v2854, %v2838
    %v3815 = vpack.c.b16 %v2855, %v2839
    %v3816 = vpack.c.b16 %v2856, %v2840
    %v3817 = vpack.c.b16 %v2857, %v2841
    %v3818 = vpack.c.b16 %v2858, %v2842
    %v3819 = vpack.c.b16 %v2859, %v2843
    %v3820 = vpack.c.b16 %v2860, %v2844
    %v3821 = vpack.c.b16 %v2861, %v2845
    %v3822 = vpack.c.b16 %v2862, %v2846
    %v3823 = vpack.c.b16 %v2879, %v2863
    %v3824 = vpack.c.b16 %v2880, %v2864
    %v3825 = vpack.c.b16 %v2881, %v2865
    %v3826 = vpack.c.b16 %v2882, %v2866
    %v3827 = vpack.c.b16 %v2883, %v2867
    %v3828 = vpack.c.b16 %v2884, %v2868
    %v3829 = vpack.c.b16 %v2885, %v2869
    %v3830 = vpack.c.b16 %v2886, %v2870
    %v3831 = vpack.c.b16 %v2887, %v2871
    %v3832 = vpack.c.b16 %v2888, %v2872
    %v3833 = vpack.c.b16 %v2889, %v2873
    %v3834 = vpack.c.b16 %v2890, %v2874
    %v3835 = vpack.c.b16 %v2891, %v2875
    %v3836 = vpack.c.b16 %v2892, %v2876
    %v3837 = vpack.c.b16 %v2893, %v2877
    %v3838 = vpack.c.b16 %v2894, %v2878
    %v3839 = vpack.c.b16 %v2911, %v2895
    %v3840 = vpack.c.b16 %v2912, %v2896
    %v3841 = vpack.c.b16 %v2913, %v2897
    %v3842 = vpack.c.b16 %v2914, %v2898
    %v3843 = vpack.c.b16 %v2915, %v2899
    %v3844 = vpack.c.b16 %v2916, %v2900
    %v3845 = vpack.c.b16 %v2917, %v2901
    %v3846 = vpack.c.b16 %v2918, %v2902
    %v3847 = vpack.c.b16 %v2919, %v2903
    %v3848 = vpack.c.b16 %v2920, %v2904
    %v3849 = vpack.c.b16 %v2921, %v2905
    %v3850 = vpack.c.b16 %v2922, %v2906
    %v3851 = vpack.c.b16 %v2923, %v2907
    %v3852 = vpack.c.b16 %v2924, %v2908
    %v3853 = vpack.c.b16 %v2925, %v2909
    %v3854 = vpack.c.b16 %v2926, %v2910
    %v3855 = vpack.c.b16 %v2943, %v2927
    %v3856 = vpack.c.b16 %v2944, %v2928
    %v3857 = vpack.c.b16 %v2945, %v2929
    %v3858 = vpack.c.b16 %v2946, %v2930
    %v3859 = vpack.c.b16 %v2947, %v2931
    %v3860 = vpack.c.b16 %v2948, %v2932
    %v3861 = vpack.c.b16 %v2949, %v2933
    %v3862 = vpack.c.b16 %v2950, %v2934
    %v3863 = vpack.c.b16 %v2951, %v2935
    %v3864 = vpack.c.b16 %v2952, %v2936
    %v3865 = vpack.c.b16 %v2953, %v2937
    %v3866 = vpack.c.b16 %v2954, %v2938
    %v3867 = vpack.c.b16 %v2955, %v2939
    %v3868 = vpack.c.b16 %v2956, %v2940
    %v3869 = vpack.c.b16 %v2957, %v2941
    %v3870 = vpack.c.b16 %v2958, %v2942
    %v3871 = vpack.c.b16 %v2975, %v2959
    %v3872 = vpack.c.b16 %v2976, %v2960
    %v3873 = vpack.c.b16 %v2977, %v2961
    %v3874 = vpack.c.b16 %v2978, %v2962
    %v3875 = vpack.c.b16 %v2979, %v2963
    %v3876 = vpack.c.b16 %v2980, %v2964
    %v3877 = vpack.c.b16 %v2981, %v2965
    %v3878 = vpack.c.b16 %v2982, %v2966
    %v3879 = vpack.c.b16 %v2983, %v2967
    %v3880 = vpack.c.b16 %v2984, %v2968
    %v3881 = vpack.c.b16 %v2985, %v2969
    %v3882 = vpack.c.b16 %v2986, %v2970
    %v3883 = vpack.c.b16 %v2987, %v2971
    %v3884 = vpack.c.b16 %v2988, %v2972
    %v3885 = vpack.c.b16 %v2989, %v2973
    %v3886 = vpack.c.b16 %v2990, %v2974
    %v3887 = vpack.c.b16 %v3007, %v2991
    %v3888 = vpack.c.b16 %v3008, %v2992
    %v3889 = vpack.c.b16 %v3009, %v2993
    %v3890 = vpack.c.b16 %v3010, %v2994
    %v3891 = vpack.c.b16 %v3011, %v2995
    %v3892 = vpack.c.b16 %v3012, %v2996
    %v3893 = vpack.c.b16 %v3013, %v2997
    %v3894 = vpack.c.b16 %v3014, %v2998
    %v3895 = vpack.c.b16 %v3015, %v2999
    %v3896 = vpack.c.b16 %v3016, %v3000
    %v3897 = vpack.c.b16 %v3017, %v3001
    %v3898 = vpack.c.b16 %v3018, %v3002
    %v3899 = vpack.c.b16 %v3019, %v3003
    %v3900 = vpack.c.b16 %v3020, %v3004
    %v3901 = vpack.c.b16 %v3021, %v3005
    %v3902 = vpack.c.b16 %v3022, %v3006
    %v3903 = vpack.c.b16 %v3039, %v3023
    %v3904 = vpack.c.b16 %v3040, %v3024
    %v3905 = vpack.c.b16 %v3041, %v3025
    %v3906 = vpack.c.b16 %v3042, %v3026
    %v3907 = vpack.c.b16 %v3043, %v3027
    %v3908 = vpack.c.b16 %v3044, %v3028
    %v3909 = vpack.c.b16 %v3045, %v3029
    %v3910 = vpack.c.b16 %v3046, %v3030
    %v3911 = vpack.c.b16 %v3047, %v3031
    %v3912 = vpack.c.b16 %v3048, %v3032
    %v3913 = vpack.c.b16 %v3049, %v3033
    %v3914 = vpack.c.b16 %v3050, %v3034
    %v3915 = vpack.c.b16 %v3051, %v3035
    %v3916 = vpack.c.b16 %v3052, %v3036
    %v3917 = vpack.c.b16 %v3053, %v3037
    %v3918 = vpack.c.b16 %v3054, %v3038
    %v3919 = vpack.c.b16 %v3071, %v3055
    %v3920 = vpack.c.b16 %v3072, %v3056
    %v3921 = vpack.c.b16 %v3073, %v3057
    %v3922 = vpack.c.b16 %v3074, %v3058
    %v3923 = vpack.c.b16 %v3075, %v3059
    %v3924 = vpack.c.b16 %v3076, %v3060
    %v3925 = vpack.c.b16 %v3077, %v3061
    %v3926 = vpack.c.b16 %v3078, %v3062
    %v3927 = vpack.c.b16 %v3079, %v3063
    %v3928 = vpack.c.b16 %v3080, %v3064
    %v3929 = vpack.c.b16 %v3081, %v3065
    %v3930 = vpack.c.b16 %v3082, %v3066
    %v3931 = vpack.c.b16 %v3083, %v3067
    %v3932 = vpack.c.b16 %v3084, %v3068
    %v3933 = vpack.c.b16 %v3085, %v3069
    %v3934 = vpack.c.b16 %v3086, %v3070
    %v3935 = vpack.c.b16 %v3103, %v3087
    %v3936 = vpack.c.b16 %v3104, %v3088
    %v3937 = vpack.c.b16 %v3105, %v3089
    %v3938 = vpack.c.b16 %v3106, %v3090
    %v3939 = vpack.c.b16 %v3107, %v3091
    %v3940 = vpack.c.b16 %v3108, %v3092
    %v3941 = vpack.c.b16 %v3109, %v3093
    %v3942 = vpack.c.b16 %v3110, %v3094
    %v3943 = vpack.c.b16 %v3111, %v3095
    %v3944 = vpack.c.b16 %v3112, %v3096
    %v3945 = vpack.c.b16 %v3113, %v3097
    %v3946 = vpack.c.b16 %v3114, %v3098
    %v3947 = vpack.c.b16 %v3115, %v3099
    %v3948 = vpack.c.b16 %v3116, %v3100
    %v3949 = vpack.c.b16 %v3117, %v3101
    %v3950 = vpack.c.b16 %v3118, %v3102
    %v3951 = vpack.c.b16 %v3135, %v3119
    %v3952 = vpack.c.b16 %v3136, %v3120
    %v3953 = vpack.c.b16 %v3137, %v3121
    %v3954 = vpack.c.b16 %v3138, %v3122
    %v3955 = vpack.c.b16 %v3139, %v3123
    %v3956 = vpack.c.b16 %v3140, %v3124
    %v3957 = vpack.c.b16 %v3141, %v3125
    %v3958 = vpack.c.b16 %v3142, %v3126
    %v3959 = vpack.c.b16 %v3143, %v3127
    %v3960 = vpack.c.b16 %v3144, %v3128
    %v3961 = vpack.c.b16 %v3145, %v3129
    %v3962 = vpack.c.b16 %v3146, %v3130
    %v3963 = vpack.c.b16 %v3147, %v3131
    %v3964 = vpack.c.b16 %v3148, %v3132
    %v3965 = vpack.c.b16 %v3149, %v3133
    %v3966 = vpack.c.b16 %v3150, %v3134
    %v3967 = vpack.c.b16 %v3167, %v3151
    %v3968 = vpack.c.b16 %v3168, %v3152
    %v3969 = vpack.c.b16 %v3169, %v3153
    %v3970 = vpack.c.b16 %v3170, %v3154
    %v3971 = vpack.c.b16 %v3171, %v3155
    %v3972 = vpack.c.b16 %v3172, %v3156
    %v3973 = vpack.c.b16 %v3173, %v3157
    %v3974 = vpack.c.b16 %v3174, %v3158
    %v3975 = vpack.c.b16 %v3175, %v3159
    %v3976 = vpack.c.b16 %v3176, %v3160
    %v3977 = vpack.c.b16 %v3177, %v3161
    %v3978 = vpack.c.b16 %v3178, %v3162
    %v3979 = vpack.c.b16 %v3179, %v3163
    %v3980 = vpack.c.b16 %v3180, %v3164
    %v3981 = vpack.c.b16 %v3181, %v3165
    %v3982 = vpack.c.b16 %v3182, %v3166
    %v3983 = vpack.c.b16 %v3199, %v3183
    %v3984 = vpack.c.b16 %v3200, %v3184
    %v3985 = vpack.c.b16 %v3201, %v3185
    %v3986 = vpack.c.b16 %v3202, %v3186
    %v3987 = vpack.c.b16 %v3203, %v3187
    %v3988 = vpack.c.b16 %v3204, %v3188
    %v3989 = vpack.c.b16 %v3205, %v3189
    %v3990 = vpack.c.b16 %v3206, %v3190
    %v3991 = vpack.c.b16 %v3207, %v3191
    %v3992 = vpack.c.b16 %v3208, %v3192
    %v3993 = vpack.c.b16 %v3209, %v3193
    %v3994 = vpack.c.b16 %v3210, %v3194
    %v3995 = vpack.c.b16 %v3211, %v3195
    %v3996 = vpack.c.b16 %v3212, %v3196
    %v3997 = vpack.c.b16 %v3213, %v3197
    %v3998 = vpack.c.b16 %v3214, %v3198
    %v3999 = vpack.c.b16 %v3231, %v3215
    %v4000 = vpack.c.b16 %v3232, %v3216
    %v4001 = vpack.c.b16 %v3233, %v3217
    %v4002 = vpack.c.b16 %v3234, %v3218
    %v4003 = vpack.c.b16 %v3235, %v3219
    %v4004 = vpack.c.b16 %v3236, %v3220
    %v4005 = vpack.c.b16 %v3237, %v3221
    %v4006 = vpack.c.b16 %v3238, %v3222
    %v4007 = vpack.c.b16 %v3239, %v3223
    %v4008 = vpack.c.b16 %v3240, %v3224
    %v4009 = vpack.c.b16 %v3241, %v3225
    %v4010 = vpack.c.b16 %v3242, %v3226
    %v4011 = vpack.c.b16 %v3243, %v3227
    %v4012 = vpack.c.b16 %v3244, %v3228
    %v4013 = vpack.c.b16 %v3245, %v3229
    %v4014 = vpack.c.b16 %v3246, %v3230
    %4783 = vmatprep.subr.bf16.mxu0 %v3248
    %4784 = vmatpush1.bf16.msra.mxu0 %v3247
    %4785 = vmatprep.subr.bf16.mxu0 %v3264
    %4786 = vmatpush1.bf16.msra.mxu0 %v3263
    %4787 = vmatprep.subr.bf16.mxu0 %v3280
    %4788 = vmatpush1.bf16.msra.mxu0 %v3279
    %4789 = vmatprep.subr.bf16.mxu0 %v3296
    %4790 = vmatpush1.bf16.msra.mxu0 %v3295
    %4791 = vmatprep.subr.bf16.mxu0 %v3312
    %4792 = vmatpush1.bf16.msra.mxu0 %v3311
    %4793 = vmatprep.subr.bf16.mxu0 %v3328
    %4794 = vmatpush1.bf16.msra.mxu0 %v3327
    %4795 = vmatprep.subr.bf16.mxu0 %v3344
    %4796 = vmatpush1.bf16.msra.mxu0 %v3343
    %4797 = vmatprep.subr.bf16.mxu0 %v3360
    %4798 = vmatpush1.bf16.msra.mxu0 %v3359
    %4799 = vmatprep.subr.bf16.mxu0 %v3376
    %4800 = vmatpush1.bf16.msra.mxu0 %v3375
    %4801 = vmatprep.subr.bf16.mxu0 %v3392
    %4802 = vmatpush1.bf16.msra.mxu0 %v3391
    %4803 = vmatprep.subr.bf16.mxu0 %v3408
    %4804 = vmatpush1.bf16.msra.mxu0 %v3407
    %4805 = vmatprep.subr.bf16.mxu0 %v3424
    %4806 = vmatpush1.bf16.msra.mxu0 %v3423
    %4807 = vmatprep.subr.bf16.mxu0 %v3440
    %4808 = vmatpush1.bf16.msra.mxu0 %v3439
    %4809 = vmatprep.subr.bf16.mxu0 %v3456
    %4810 = vmatpush1.bf16.msra.mxu0 %v3455
    %4811 = vmatprep.subr.bf16.mxu0 %v3472
    %4812 = vmatpush1.bf16.msra.mxu0 %v3471
    %4813 = vmatprep.subr.bf16.mxu0 %v3488
    %4814 = vmatpush1.bf16.msra.mxu0 %v3487
    %4815 = vmatprep.mubr.bf16.mxu0 %v932
    %4816 = vmatmul.mubr.bf16.gmra.mrb[0].mxu0 %v931
    %v4817 = vpop.f32.mrb[0].mxu0
    %v4818 = vadd.f32 0.0, %v4817
    %v4819 = vpop.f32.mrb[0].mxu0
    %v4820 = vadd.f32 0.0, %v4819
    %v4821 = vpop.f32.mrb[0].mxu0
    %v4822 = vadd.f32 0.0, %v4821
    %v4823 = vpop.f32.mrb[0].mxu0
    %v4824 = vadd.f32 0.0, %v4823
    %4825 = vdwg.mxu0
    %4826 = vmatprep.subr.bf16.mxu0 %v3504
    %4827 = vmatpush1.bf16.msra.mxu0 %v3503
    %4828 = vmatprep.subr.bf16.mxu0 %v3520
    %4829 = vmatpush1.bf16.msra.mxu0 %v3519
    %4830 = vmatprep.subr.bf16.mxu0 %v3536
    %4831 = vmatpush1.bf16.msra.mxu0 %v3535
    %4832 = vmatprep.subr.bf16.mxu0 %v3552
    %4833 = vmatpush1.bf16.msra.mxu0 %v3551
    %4834 = vmatprep.subr.bf16.mxu0 %v3568
    %4835 = vmatpush1.bf16.msra.mxu0 %v3567
    %4836 = vmatprep.subr.bf16.mxu0 %v3584
    %4837 = vmatpush1.bf16.msra.mxu0 %v3583
    %4838 = vmatprep.subr.bf16.mxu0 %v3600
    %4839 = vmatpush1.bf16.msra.mxu0 %v3599
    %4840 = vmatprep.subr.bf16.mxu0 %v3616
    %4841 = vmatpush1.bf16.msra.mxu0 %v3615
    %4842 = vmatprep.subr.bf16.mxu0 %v3632
    %4843 = vmatpush1.bf16.msra.mxu0 %v3631
    %4844 = vmatprep.subr.bf16.mxu0 %v3648
    %4845 = vmatpush1.bf16.msra.mxu0 %v3647
    %4846 = vmatprep.subr.bf16.mxu0 %v3664
    %4847 = vmatpush1.bf16.msra.mxu0 %v3663
    %4848 = vmatprep.subr.bf16.mxu0 %v3680
    %4849 = vmatpush1.bf16.msra.mxu0 %v3679
    %4850 = vmatprep.subr.bf16.mxu0 %v3696
    %4851 = vmatpush1.bf16.msra.mxu0 %v3695
    %4852 = vmatprep.subr.bf16.mxu0 %v3712
    %4853 = vmatpush1.bf16.msra.mxu0 %v3711
    %4854 = vmatprep.subr.bf16.mxu0 %v3728
    %4855 = vmatpush1.bf16.msra.mxu0 %v3727
    %4856 = vmatprep.subr.bf16.mxu0 %v3744
    %4857 = vmatpush1.bf16.msra.mxu0 %v3743
    %4858 = vmatprep.mubr.bf16.mxu0 %v934
    %4859 = vmatmul.mubr.bf16.gmra.mrb[0].mxu0 %v933
    %v4860 = vpop.f32.mrb[0].mxu0
    %v4861 = vadd.f32 %v4818, %v4860
    %v4862 = vpop.f32.mrb[0].mxu0
    %v4863 = vadd.f32 %v4820, %v4862
    %v4864 = vpop.f32.mrb[0].mxu0
    %v4865 = vadd.f32 %v4822, %v4864
    %v4866 = vpop.f32.mrb[0].mxu0
    %v4867 = vadd.f32 %v4824, %v4866
    %4868 = vdwg.mxu0
    %4869 = vmatprep.subr.bf16.mxu0 %v3760
    %4870 = vmatpush1.bf16.msra.mxu0 %v3759
    %4871 = vmatprep.subr.bf16.mxu0 %v3776
    %4872 = vmatpush1.bf16.msra.mxu0 %v3775
    %4873 = vmatprep.subr.bf16.mxu0 %v3792
    %4874 = vmatpush1.bf16.msra.mxu0 %v3791
    %4875 = vmatprep.subr.bf16.mxu0 %v3808
    %4876 = vmatpush1.bf16.msra.mxu0 %v3807
    %4877 = vmatprep.subr.bf16.mxu0 %v3824
    %4878 = vmatpush1.bf16.msra.mxu0 %v3823
    %4879 = vmatprep.subr.bf16.mxu0 %v3840
    %4880 = vmatpush1.bf16.msra.mxu0 %v3839
    %4881 = vmatprep.subr.bf16.mxu0 %v3856
    %4882 = vmatpush1.bf16.msra.mxu0 %v3855
    %4883 = vmatprep.subr.bf16.mxu0 %v3872
    %4884 = vmatpush1.bf16.msra.mxu0 %v3871
    %4885 = vmatprep.subr.bf16.mxu0 %v3888
    %4886 = vmatpush1.bf16.msra.mxu0 %v3887
    %4887 = vmatprep.subr.bf16.mxu0 %v3904
    %4888 = vmatpush1.bf16.msra.mxu0 %v3903
    %4889 = vmatprep.subr.bf16.mxu0 %v3920
    %4890 = vmatpush1.bf16.msra.mxu0 %v3919
    %4891 = vmatprep.subr.bf16.mxu0 %v3936
    %4892 = vmatpush1.bf16.msra.mxu0 %v3935
    %4893 = vmatprep.subr.bf16.mxu0 %v3952
    %4894 = vmatpush1.bf16.msra.mxu0 %v3951
    %4895 = vmatprep.subr.bf16.mxu0 %v3968
    %4896 = vmatpush1.bf16.msra.mxu0 %v3967
    %4897 = vmatprep.subr.bf16.mxu0 %v3984
    %4898 = vmatpush1.bf16.msra.mxu0 %v3983
    %4899 = vmatprep.subr.bf16.mxu0 %v4000
    %4900 = vmatpush1.bf16.msra.mxu0 %v3999
    %4901 = vmatprep.mubr.bf16.mxu0 %v936
    %4902 = vmatmul.mubr.bf16.gmra.mrb[0].mxu0 %v935
    %v4903 = vpop.f32.mrb[0].mxu0
    %v4904 = vadd.f32 %v4861, %v4903
    %v4905 = vpop.f32.mrb[0].mxu0
    %v4906 = vadd.f32 %v4863, %v4905
    %v4907 = vpop.f32.mrb[0].mxu0
    %v4908 = vadd.f32 %v4865, %v4907
    %v4909 = vpop.f32.mrb[0].mxu0
    %v4910 = vadd.f32 %v4867, %v4909
    %4911 = vdwg.mxu0
    %4912 = vmatprep.subr.bf16.mxu0 %v3250
    %4913 = vmatpush1.bf16.msra.mxu0 %v3249
    %4914 = vmatprep.subr.bf16.mxu0 %v3266
    %4915 = vmatpush1.bf16.msra.mxu0 %v3265
    %4916 = vmatprep.subr.bf16.mxu0 %v3282
    %4917 = vmatpush1.bf16.msra.mxu0 %v3281
    %4918 = vmatprep.subr.bf16.mxu0 %v3298
    %4919 = vmatpush1.bf16.msra.mxu0 %v3297
    %4920 = vmatprep.subr.bf16.mxu0 %v3314
    %4921 = vmatpush1.bf16.msra.mxu0 %v3313
    %4922 = vmatprep.subr.bf16.mxu0 %v3330
    %4923 = vmatpush1.bf16.msra.mxu0 %v3329
    %4924 = vmatprep.subr.bf16.mxu0 %v3346
    %4925 = vmatpush1.bf16.msra.mxu0 %v3345
    %4926 = vmatprep.subr.bf16.mxu0 %v3362
    %4927 = vmatpush1.bf16.msra.mxu0 %v3361
    %4928 = vmatprep.subr.bf16.mxu0 %v3378
    %4929 = vmatpush1.bf16.msra.mxu0 %v3377
    %4930 = vmatprep.subr.bf16.mxu0 %v3394
    %4931 = vmatpush1.bf16.msra.mxu0 %v3393
    %4932 = vmatprep.subr.bf16.mxu0 %v3410
    %4933 = vmatpush1.bf16.msra.mxu0 %v3409
    %4934 = vmatprep.subr.bf16.mxu0 %v3426
    %4935 = vmatpush1.bf16.msra.mxu0 %v3425
    %4936 = vmatprep.subr.bf16.mxu0 %v3442
    %4937 = vmatpush1.bf16.msra.mxu0 %v3441
    %4938 = vmatprep.subr.bf16.mxu0 %v3458
    %4939 = vmatpush1.bf16.msra.mxu0 %v3457
    %4940 = vmatprep.subr.bf16.mxu0 %v3474
    %4941 = vmatpush1.bf16.msra.mxu0 %v3473
    %4942 = vmatprep.subr.bf16.mxu0 %v3490
    %4943 = vmatpush1.bf16.msra.mxu0 %v3489
    %4944 = vmatprep.mubr.bf16.mxu0 %v932
    %4945 = vmatmul.mubr.bf16.gmra.mrb[0].mxu0 %v931
    %v4946 = vpop.f32.mrb[0].mxu0
    %v4947 = vadd.f32 0.0, %v4946
    %v4948 = vpop.f32.mrb[0].mxu0
    %v4949 = vadd.f32 0.0, %v4948
    %v4950 = vpop.f32.mrb[0].mxu0
    %v4951 = vadd.f32 0.0, %v4950
    %v4952 = vpop.f32.mrb[0].mxu0
    %v4953 = vadd.f32 0.0, %v4952
    %4954 = vdwg.mxu0
    %4955 = vmatprep.subr.bf16.mxu0 %v3506
    %4956 = vmatpush1.bf16.msra.mxu0 %v3505
    %4957 = vmatprep.subr.bf16.mxu0 %v3522
    %4958 = vmatpush1.bf16.msra.mxu0 %v3521
    %4959 = vmatprep.subr.bf16.mxu0 %v3538
    %4960 = vmatpush1.bf16.msra.mxu0 %v3537
    %4961 = vmatprep.subr.bf16.mxu0 %v3554
    %4962 = vmatpush1.bf16.msra.mxu0 %v3553
    %4963 = vmatprep.subr.bf16.mxu0 %v3570
    %4964 = vmatpush1.bf16.msra.mxu0 %v3569
    %4965 = vmatprep.subr.bf16.mxu0 %v3586
    %4966 = vmatpush1.bf16.msra.mxu0 %v3585
    %4967 = vmatprep.subr.bf16.mxu0 %v3602
    %4968 = vmatpush1.bf16.msra.mxu0 %v3601
    %4969 = vmatprep.subr.bf16.mxu0 %v3618
    %4970 = vmatpush1.bf16.msra.mxu0 %v3617
    %4971 = vmatprep.subr.bf16.mxu0 %v3634
    %4972 = vmatpush1.bf16.msra.mxu0 %v3633
    %4973 = vmatprep.subr.bf16.mxu0 %v3650
    %4974 = vmatpush1.bf16.msra.mxu0 %v3649
    %4975 = vmatprep.subr.bf16.mxu0 %v3666
    %4976 = vmatpush1.bf16.msra.mxu0 %v3665
    %4977 = vmatprep.subr.bf16.mxu0 %v3682
    %4978 = vmatpush1.bf16.msra.mxu0 %v3681
    %4979 = vmatprep.subr.bf16.mxu0 %v3698
    %4980 = vmatpush1.bf16.msra.mxu0 %v3697
    %4981 = vmatprep.subr.bf16.mxu0 %v3714
    %4982 = vmatpush1.bf16.msra.mxu0 %v3713
    %4983 = vmatprep.subr.bf16.mxu0 %v3730
    %4984 = vmatpush1.bf16.msra.mxu0 %v3729
    %4985 = vmatprep.subr.bf16.mxu0 %v3746
    %4986 = vmatpush1.bf16.msra.mxu0 %v3745
    %4987 = vmatprep.mubr.bf16.mxu0 %v934
    %4988 = vmatmul.mubr.bf16.gmra.mrb[0].mxu0 %v933
    %v4989 = vpop.f32.mrb[0].mxu0
    %v4990 = vadd.f32 %v4947, %v4989
    %v4991 = vpop.f32.mrb[0].mxu0
    %v4992 = vadd.f32 %v4949, %v4991
    %v4993 = vpop.f32.mrb[0].mxu0
    %v4994 = vadd.f32 %v4951, %v4993
    %v4995 = vpop.f32.mrb[0].mxu0
    %v4996 = vadd.f32 %v4953, %v4995
    %4997 = vdwg.mxu0
    %4998 = vmatprep.subr.bf16.mxu0 %v3762
    %4999 = vmatpush1.bf16.msra.mxu0 %v3761
    %5000 = vmatprep.subr.bf16.mxu0 %v3778
    %5001 = vmatpush1.bf16.msra.mxu0 %v3777
    %5002 = vmatprep.subr.bf16.mxu0 %v3794
    %5003 = vmatpush1.bf16.msra.mxu0 %v3793
    %5004 = vmatprep.subr.bf16.mxu0 %v3810
    %5005 = vmatpush1.bf16.msra.mxu0 %v3809
    %5006 = vmatprep.subr.bf16.mxu0 %v3826
    %5007 = vmatpush1.bf16.msra.mxu0 %v3825
    %5008 = vmatprep.subr.bf16.mxu0 %v3842
    %5009 = vmatpush1.bf16.msra.mxu0 %v3841
    %5010 = vmatprep.subr.bf16.mxu0 %v3858
    %5011 = vmatpush1.bf16.msra.mxu0 %v3857
    %5012 = vmatprep.subr.bf16.mxu0 %v3874
    %5013 = vmatpush1.bf16.msra.mxu0 %v3873
    %5014 = vmatprep.subr.bf16.mxu0 %v3890
    %5015 = vmatpush1.bf16.msra.mxu0 %v3889
    %5016 = vmatprep.subr.bf16.mxu0 %v3906
    %5017 = vmatpush1.bf16.msra.mxu0 %v3905
    %5018 = vmatprep.subr.bf16.mxu0 %v3922
    %5019 = vmatpush1.bf16.msra.mxu0 %v3921
    %5020 = vmatprep.subr.bf16.mxu0 %v3938
    %5021 = vmatpush1.bf16.msra.mxu0 %v3937
    %5022 = vmatprep.subr.bf16.mxu0 %v3954
    %5023 = vmatpush1.bf16.msra.mxu0 %v3953
    %5024 = vmatprep.subr.bf16.mxu0 %v3970
    %5025 = vmatpush1.bf16.msra.mxu0 %v3969
    %5026 = vmatprep.subr.bf16.mxu0 %v3986
    %5027 = vmatpush1.bf16.msra.mxu0 %v3985
    %5028 = vmatprep.subr.bf16.mxu0 %v4002
    %5029 = vmatpush1.bf16.msra.mxu0 %v4001
    %5030 = vmatprep.mubr.bf16.mxu0 %v936
    %5031 = vmatmul.mubr.bf16.gmra.mrb[0].mxu0 %v935
    %v5032 = vpop.f32.mrb[0].mxu0
    %v5033 = vadd.f32 %v4990, %v5032
    %v5034 = vpop.f32.mrb[0].mxu0
    %v5035 = vadd.f32 %v4992, %v5034
    %v5036 = vpop.f32.mrb[0].mxu0
    %v5037 = vadd.f32 %v4994, %v5036
    %v5038 = vpop.f32.mrb[0].mxu0
    %v5039 = vadd.f32 %v4996, %v5038
    %5040 = vdwg.mxu0
    %5041 = vmatprep.subr.bf16.mxu0 %v3252
    %5042 = vmatpush1.bf16.msra.mxu0 %v3251
    %5043 = vmatprep.subr.bf16.mxu0 %v3268
    %5044 = vmatpush1.bf16.msra.mxu0 %v3267
    %5045 = vmatprep.subr.bf16.mxu0 %v3284
    %5046 = vmatpush1.bf16.msra.mxu0 %v3283
    %5047 = vmatprep.subr.bf16.mxu0 %v3300
    %5048 = vmatpush1.bf16.msra.mxu0 %v3299
    %5049 = vmatprep.subr.bf16.mxu0 %v3316
    %5050 = vmatpush1.bf16.msra.mxu0 %v3315
    %5051 = vmatprep.subr.bf16.mxu0 %v3332
    %5052 = vmatpush1.bf16.msra.mxu0 %v3331
    %5053 = vmatprep.subr.bf16.mxu0 %v3348
    %5054 = vmatpush1.bf16.msra.mxu0 %v3347
    %5055 = vmatprep.subr.bf16.mxu0 %v3364
    %5056 = vmatpush1.bf16.msra.mxu0 %v3363
    %5057 = vmatprep.subr.bf16.mxu0 %v3380
    %5058 = vmatpush1.bf16.msra.mxu0 %v3379
    %5059 = vmatprep.subr.bf16.mxu0 %v3396
    %5060 = vmatpush1.bf16.msra.mxu0 %v3395
    %5061 = vmatprep.subr.bf16.mxu0 %v3412
    %5062 = vmatpush1.bf16.msra.mxu0 %v3411
    %5063 = vmatprep.subr.bf16.mxu0 %v3428
    %5064 = vmatpush1.bf16.msra.mxu0 %v3427
    %5065 = vmatprep.subr.bf16.mxu0 %v3444
    %5066 = vmatpush1.bf16.msra.mxu0 %v3443
    %5067 = vmatprep.subr.bf16.mxu0 %v3460
    %5068 = vmatpush1.bf16.msra.mxu0 %v3459
    %5069 = vmatprep.subr.bf16.mxu0 %v3476
    %5070 = vmatpush1.bf16.msra.mxu0 %v3475
    %5071 = vmatprep.subr.bf16.mxu0 %v3492
    %5072 = vmatpush1.bf16.msra.mxu0 %v3491
    %5073 = vmatprep.mubr.bf16.mxu0 %v932
    %5074 = vmatmul.mubr.bf16.gmra.mrb[0].mxu0 %v931
    %v5075 = vpop.f32.mrb[0].mxu0
    %v5076 = vadd.f32 0.0, %v5075
    %v5077 = vpop.f32.mrb[0].mxu0
    %v5078 = vadd.f32 0.0, %v5077
    %v5079 = vpop.f32.mrb[0].mxu0
    %v5080 = vadd.f32 0.0, %v5079
    %v5081 = vpop.f32.mrb[0].mxu0
    %v5082 = vadd.f32 0.0, %v5081
    %5083 = vdwg.mxu0
    %5084 = vmatprep.subr.bf16.mxu0 %v3508
    %5085 = vmatpush1.bf16.msra.mxu0 %v3507
    %5086 = vmatprep.subr.bf16.mxu0 %v3524
    %5087 = vmatpush1.bf16.msra.mxu0 %v3523
    %5088 = vmatprep.subr.bf16.mxu0 %v3540
    %5089 = vmatpush1.bf16.msra.mxu0 %v3539
    %5090 = vmatprep.subr.bf16.mxu0 %v3556
    %5091 = vmatpush1.bf16.msra.mxu0 %v3555
    %5092 = vmatprep.subr.bf16.mxu0 %v3572
    %5093 = vmatpush1.bf16.msra.mxu0 %v3571
    %5094 = vmatprep.subr.bf16.mxu0 %v3588
    %5095 = vmatpush1.bf16.msra.mxu0 %v3587
    %5096 = vmatprep.subr.bf16.mxu0 %v3604
    %5097 = vmatpush1.bf16.msra.mxu0 %v3603
    %5098 = vmatprep.subr.bf16.mxu0 %v3620
    %5099 = vmatpush1.bf16.msra.mxu0 %v3619
    %5100 = vmatprep.subr.bf16.mxu0 %v3636
    %5101 = vmatpush1.bf16.msra.mxu0 %v3635
    %5102 = vmatprep.subr.bf16.mxu0 %v3652
    %5103 = vmatpush1.bf16.msra.mxu0 %v3651
    %5104 = vmatprep.subr.bf16.mxu0 %v3668
    %5105 = vmatpush1.bf16.msra.mxu0 %v3667
    %5106 = vmatprep.subr.bf16.mxu0 %v3684
    %5107 = vmatpush1.bf16.msra.mxu0 %v3683
    %5108 = vmatprep.subr.bf16.mxu0 %v3700
    %5109 = vmatpush1.bf16.msra.mxu0 %v3699
    %5110 = vmatprep.subr.bf16.mxu0 %v3716
    %5111 = vmatpush1.bf16.msra.mxu0 %v3715
    %5112 = vmatprep.subr.bf16.mxu0 %v3732
    %5113 = vmatpush1.bf16.msra.mxu0 %v3731
    %5114 = vmatprep.subr.bf16.mxu0 %v3748
    %5115 = vmatpush1.bf16.msra.mxu0 %v3747
    %5116 = vmatprep.mubr.bf16.mxu0 %v934
    %5117 = vmatmul.mubr.bf16.gmra.mrb[0].mxu0 %v933
    %v5118 = vpop.f32.mrb[0].mxu0
    %v5119 = vadd.f32 %v5076, %v5118
    %v5120 = vpop.f32.mrb[0].mxu0
    %v5121 = vadd.f32 %v5078, %v5120
    %v5122 = vpop.f32.mrb[0].mxu0
    %v5123 = vadd.f32 %v5080, %v5122
    %v5124 = vpop.f32.mrb[0].mxu0
    %v5125 = vadd.f32 %v5082, %v5124
    %5126 = vdwg.mxu0
    %5127 = vmatprep.subr.bf16.mxu0 %v3764
    %5128 = vmatpush1.bf16.msra.mxu0 %v3763
    %5129 = vmatprep.subr.bf16.mxu0 %v3780
    %5130 = vmatpush1.bf16.msra.mxu0 %v3779
    %5131 = vmatprep.subr.bf16.mxu0 %v3796
    %5132 = vmatpush1.bf16.msra.mxu0 %v3795
    %5133 = vmatprep.subr.bf16.mxu0 %v3812
    %5134 = vmatpush1.bf16.msra.mxu0 %v3811
    %5135 = vmatprep.subr.bf16.mxu0 %v3828
    %5136 = vmatpush1.bf16.msra.mxu0 %v3827
    %5137 = vmatprep.subr.bf16.mxu0 %v3844
    %5138 = vmatpush1.bf16.msra.mxu0 %v3843
    %5139 = vmatprep.subr.bf16.mxu0 %v3860
    %5140 = vmatpush1.bf16.msra.mxu0 %v3859
    %5141 = vmatprep.subr.bf16.mxu0 %v3876
    %5142 = vmatpush1.bf16.msra.mxu0 %v3875
    %5143 = vmatprep.subr.bf16.mxu0 %v3892
    %5144 = vmatpush1.bf16.msra.mxu0 %v3891
    %5145 = vmatprep.subr.bf16.mxu0 %v3908
    %5146 = vmatpush1.bf16.msra.mxu0 %v3907
    %5147 = vmatprep.subr.bf16.mxu0 %v3924
    %5148 = vmatpush1.bf16.msra.mxu0 %v3923
    %5149 = vmatprep.subr.bf16.mxu0 %v3940
    %5150 = vmatpush1.bf16.msra.mxu0 %v3939
    %5151 = vmatprep.subr.bf16.mxu0 %v3956
    %5152 = vmatpush1.bf16.msra.mxu0 %v3955
    %5153 = vmatprep.subr.bf16.mxu0 %v3972
    %5154 = vmatpush1.bf16.msra.mxu0 %v3971
    %5155 = vmatprep.subr.bf16.mxu0 %v3988
    %5156 = vmatpush1.bf16.msra.mxu0 %v3987
    %5157 = vmatprep.subr.bf16.mxu0 %v4004
    %5158 = vmatpush1.bf16.msra.mxu0 %v4003
    %5159 = vmatprep.mubr.bf16.mxu0 %v936
    %5160 = vmatmul.mubr.bf16.gmra.mrb[0].mxu0 %v935
    %v5161 = vpop.f32.mrb[0].mxu0
    %v5162 = vadd.f32 %v5119, %v5161
    %v5163 = vpop.f32.mrb[0].mxu0
    %v5164 = vadd.f32 %v5121, %v5163
    %v5165 = vpop.f32.mrb[0].mxu0
    %v5166 = vadd.f32 %v5123, %v5165
    %v5167 = vpop.f32.mrb[0].mxu0
    %v5168 = vadd.f32 %v5125, %v5167
    %5169 = vdwg.mxu0
    %5170 = vmatprep.subr.bf16.mxu0 %v3254
    %5171 = vmatpush1.bf16.msra.mxu0 %v3253
    %5172 = vmatprep.subr.bf16.mxu0 %v3270
    %5173 = vmatpush1.bf16.msra.mxu0 %v3269
    %5174 = vmatprep.subr.bf16.mxu0 %v3286
    %5175 = vmatpush1.bf16.msra.mxu0 %v3285
    %5176 = vmatprep.subr.bf16.mxu0 %v3302
    %5177 = vmatpush1.bf16.msra.mxu0 %v3301
    %5178 = vmatprep.subr.bf16.mxu0 %v3318
    %5179 = vmatpush1.bf16.msra.mxu0 %v3317
    %5180 = vmatprep.subr.bf16.mxu0 %v3334
    %5181 = vmatpush1.bf16.msra.mxu0 %v3333
    %5182 = vmatprep.subr.bf16.mxu0 %v3350
    %5183 = vmatpush1.bf16.msra.mxu0 %v3349
    %5184 = vmatprep.subr.bf16.mxu0 %v3366
    %5185 = vmatpush1.bf16.msra.mxu0 %v3365
    %5186 = vmatprep.subr.bf16.mxu0 %v3382
    %5187 = vmatpush1.bf16.msra.mxu0 %v3381
    %5188 = vmatprep.subr.bf16.mxu0 %v3398
    %5189 = vmatpush1.bf16.msra.mxu0 %v3397
    %5190 = vmatprep.subr.bf16.mxu0 %v3414
    %5191 = vmatpush1.bf16.msra.mxu0 %v3413
    %5192 = vmatprep.subr.bf16.mxu0 %v3430
    %5193 = vmatpush1.bf16.msra.mxu0 %v3429
    %5194 = vmatprep.subr.bf16.mxu0 %v3446
    %5195 = vmatpush1.bf16.msra.mxu0 %v3445
    %5196 = vmatprep.subr.bf16.mxu0 %v3462
    %5197 = vmatpush1.bf16.msra.mxu0 %v3461
    %5198 = vmatprep.subr.bf16.mxu0 %v3478
    %5199 = vmatpush1.bf16.msra.mxu0 %v3477
    %5200 = vmatprep.subr.bf16.mxu0 %v3494
    %5201 = vmatpush1.bf16.msra.mxu0 %v3493
    %5202 = vmatprep.mubr.bf16.mxu0 %v932
    %5203 = vmatmul.mubr.bf16.gmra.mrb[0].mxu0 %v931
    %v5204 = vpop.f32.mrb[0].mxu0
    %v5205 = vadd.f32 0.0, %v5204
    %v5206 = vpop.f32.mrb[0].mxu0
    %v5207 = vadd.f32 0.0, %v5206
    %v5208 = vpop.f32.mrb[0].mxu0
    %v5209 = vadd.f32 0.0, %v5208
    %v5210 = vpop.f32.mrb[0].mxu0
    %v5211 = vadd.f32 0.0, %v5210
    %5212 = vdwg.mxu0
    %5213 = vmatprep.subr.bf16.mxu0 %v3510
    %5214 = vmatpush1.bf16.msra.mxu0 %v3509
    %5215 = vmatprep.subr.bf16.mxu0 %v3526
    %5216 = vmatpush1.bf16.msra.mxu0 %v3525
    %5217 = vmatprep.subr.bf16.mxu0 %v3542
    %5218 = vmatpush1.bf16.msra.mxu0 %v3541
    %5219 = vmatprep.subr.bf16.mxu0 %v3558
    %5220 = vmatpush1.bf16.msra.mxu0 %v3557
    %5221 = vmatprep.subr.bf16.mxu0 %v3574
    %5222 = vmatpush1.bf16.msra.mxu0 %v3573
    %5223 = vmatprep.subr.bf16.mxu0 %v3590
    %5224 = vmatpush1.bf16.msra.mxu0 %v3589
    %5225 = vmatprep.subr.bf16.mxu0 %v3606
    %5226 = vmatpush1.bf16.msra.mxu0 %v3605
    %5227 = vmatprep.subr.bf16.mxu0 %v3622
    %5228 = vmatpush1.bf16.msra.mxu0 %v3621
    %5229 = vmatprep.subr.bf16.mxu0 %v3638
    %5230 = vmatpush1.bf16.msra.mxu0 %v3637
    %5231 = vmatprep.subr.bf16.mxu0 %v3654
    %5232 = vmatpush1.bf16.msra.mxu0 %v3653
    %5233 = vmatprep.subr.bf16.mxu0 %v3670
    %5234 = vmatpush1.bf16.msra.mxu0 %v3669
    %5235 = vmatprep.subr.bf16.mxu0 %v3686
    %5236 = vmatpush1.bf16.msra.mxu0 %v3685
    %5237 = vmatprep.subr.bf16.mxu0 %v3702
    %5238 = vmatpush1.bf16.msra.mxu0 %v3701
    %5239 = vmatprep.subr.bf16.mxu0 %v3718
    %5240 = vmatpush1.bf16.msra.mxu0 %v3717
    %5241 = vmatprep.subr.bf16.mxu0 %v3734
    %5242 = vmatpush1.bf16.msra.mxu0 %v3733
    %5243 = vmatprep.subr.bf16.mxu0 %v3750
    %5244 = vmatpush1.bf16.msra.mxu0 %v3749
    %5245 = vmatprep.mubr.bf16.mxu0 %v934
    %5246 = vmatmul.mubr.bf16.gmra.mrb[0].mxu0 %v933
    %v5247 = vpop.f32.mrb[0].mxu0
    %v5248 = vadd.f32 %v5205, %v5247
    %v5249 = vpop.f32.mrb[0].mxu0
    %v5250 = vadd.f32 %v5207, %v5249
    %v5251 = vpop.f32.mrb[0].mxu0
    %v5252 = vadd.f32 %v5209, %v5251
    %v5253 = vpop.f32.mrb[0].mxu0
    %v5254 = vadd.f32 %v5211, %v5253
    %5255 = vdwg.mxu0
    %5256 = vmatprep.subr.bf16.mxu0 %v3766
    %5257 = vmatpush1.bf16.msra.mxu0 %v3765
    %5258 = vmatprep.subr.bf16.mxu0 %v3782
    %5259 = vmatpush1.bf16.msra.mxu0 %v3781
    %5260 = vmatprep.subr.bf16.mxu0 %v3798
    %5261 = vmatpush1.bf16.msra.mxu0 %v3797
    %5262 = vmatprep.subr.bf16.mxu0 %v3814
    %5263 = vmatpush1.bf16.msra.mxu0 %v3813
    %5264 = vmatprep.subr.bf16.mxu0 %v3830
    %5265 = vmatpush1.bf16.msra.mxu0 %v3829
    %5266 = vmatprep.subr.bf16.mxu0 %v3846
    %5267 = vmatpush1.bf16.msra.mxu0 %v3845
    %5268 = vmatprep.subr.bf16.mxu0 %v3862
    %5269 = vmatpush1.bf16.msra.mxu0 %v3861
    %5270 = vmatprep.subr.bf16.mxu0 %v3878
    %5271 = vmatpush1.bf16.msra.mxu0 %v3877
    %5272 = vmatprep.subr.bf16.mxu0 %v3894
    %5273 = vmatpush1.bf16.msra.mxu0 %v3893
    %5274 = vmatprep.subr.bf16.mxu0 %v3910
    %5275 = vmatpush1.bf16.msra.mxu0 %v3909
    %5276 = vmatprep.subr.bf16.mxu0 %v3926
    %5277 = vmatpush1.bf16.msra.mxu0 %v3925
    %5278 = vmatprep.subr.bf16.mxu0 %v3942
    %5279 = vmatpush1.bf16.msra.mxu0 %v3941
    %5280 = vmatprep.subr.bf16.mxu0 %v3958
    %5281 = vmatpush1.bf16.msra.mxu0 %v3957
    %5282 = vmatprep.subr.bf16.mxu0 %v3974
    %5283 = vmatpush1.bf16.msra.mxu0 %v3973
    %5284 = vmatprep.subr.bf16.mxu0 %v3990
    %5285 = vmatpush1.bf16.msra.mxu0 %v3989
    %5286 = vmatprep.subr.bf16.mxu0 %v4006
    %5287 = vmatpush1.bf16.msra.mxu0 %v4005
    %5288 = vmatprep.mubr.bf16.mxu0 %v936
    %5289 = vmatmul.mubr.bf16.gmra.mrb[0].mxu0 %v935
    %v5290 = vpop.f32.mrb[0].mxu0
    %v5291 = vadd.f32 %v5248, %v5290
    %v5292 = vpop.f32.mrb[0].mxu0
    %v5293 = vadd.f32 %v5250, %v5292
    %v5294 = vpop.f32.mrb[0].mxu0
    %v5295 = vadd.f32 %v5252, %v5294
    %v5296 = vpop.f32.mrb[0].mxu0
    %v5297 = vadd.f32 %v5254, %v5296
    %5298 = vdwg.mxu0
    %5299 = vmatprep.subr.bf16.mxu0 %v3256
    %5300 = vmatpush1.bf16.msra.mxu0 %v3255
    %5301 = vmatprep.subr.bf16.mxu0 %v3272
    %5302 = vmatpush1.bf16.msra.mxu0 %v3271
    %5303 = vmatprep.subr.bf16.mxu0 %v3288
    %5304 = vmatpush1.bf16.msra.mxu0 %v3287
    %5305 = vmatprep.subr.bf16.mxu0 %v3304
    %5306 = vmatpush1.bf16.msra.mxu0 %v3303
    %5307 = vmatprep.subr.bf16.mxu0 %v3320
    %5308 = vmatpush1.bf16.msra.mxu0 %v3319
    %5309 = vmatprep.subr.bf16.mxu0 %v3336
    %5310 = vmatpush1.bf16.msra.mxu0 %v3335
    %5311 = vmatprep.subr.bf16.mxu0 %v3352
    %5312 = vmatpush1.bf16.msra.mxu0 %v3351
    %5313 = vmatprep.subr.bf16.mxu0 %v3368
    %5314 = vmatpush1.bf16.msra.mxu0 %v3367
    %5315 = vmatprep.subr.bf16.mxu0 %v3384
    %5316 = vmatpush1.bf16.msra.mxu0 %v3383
    %5317 = vmatprep.subr.bf16.mxu0 %v3400
    %5318 = vmatpush1.bf16.msra.mxu0 %v3399
    %5319 = vmatprep.subr.bf16.mxu0 %v3416
    %5320 = vmatpush1.bf16.msra.mxu0 %v3415
    %5321 = vmatprep.subr.bf16.mxu0 %v3432
    %5322 = vmatpush1.bf16.msra.mxu0 %v3431
    %5323 = vmatprep.subr.bf16.mxu0 %v3448
    %5324 = vmatpush1.bf16.msra.mxu0 %v3447
    %5325 = vmatprep.subr.bf16.mxu0 %v3464
    %5326 = vmatpush1.bf16.msra.mxu0 %v3463
    %5327 = vmatprep.subr.bf16.mxu0 %v3480
    %5328 = vmatpush1.bf16.msra.mxu0 %v3479
    %5329 = vmatprep.subr.bf16.mxu0 %v3496
    %5330 = vmatpush1.bf16.msra.mxu0 %v3495
    %5331 = vmatprep.mubr.bf16.mxu0 %v932
    %5332 = vmatmul.mubr.bf16.gmra.mrb[0].mxu0 %v931
    %v5333 = vpop.f32.mrb[0].mxu0
    %v5334 = vadd.f32 0.0, %v5333
    %v5335 = vpop.f32.mrb[0].mxu0
    %v5336 = vadd.f32 0.0, %v5335
    %v5337 = vpop.f32.mrb[0].mxu0
    %v5338 = vadd.f32 0.0, %v5337
    %v5339 = vpop.f32.mrb[0].mxu0
    %v5340 = vadd.f32 0.0, %v5339
    %5341 = vdwg.mxu0
    %5342 = vmatprep.subr.bf16.mxu0 %v3512
    %5343 = vmatpush1.bf16.msra.mxu0 %v3511
    %5344 = vmatprep.subr.bf16.mxu0 %v3528
    %5345 = vmatpush1.bf16.msra.mxu0 %v3527
    %5346 = vmatprep.subr.bf16.mxu0 %v3544
    %5347 = vmatpush1.bf16.msra.mxu0 %v3543
    %5348 = vmatprep.subr.bf16.mxu0 %v3560
    %5349 = vmatpush1.bf16.msra.mxu0 %v3559
    %5350 = vmatprep.subr.bf16.mxu0 %v3576
    %5351 = vmatpush1.bf16.msra.mxu0 %v3575
    %5352 = vmatprep.subr.bf16.mxu0 %v3592
    %5353 = vmatpush1.bf16.msra.mxu0 %v3591
    %5354 = vmatprep.subr.bf16.mxu0 %v3608
    %5355 = vmatpush1.bf16.msra.mxu0 %v3607
    %5356 = vmatprep.subr.bf16.mxu0 %v3624
    %5357 = vmatpush1.bf16.msra.mxu0 %v3623
    %5358 = vmatprep.subr.bf16.mxu0 %v3640
    %5359 = vmatpush1.bf16.msra.mxu0 %v3639
    %5360 = vmatprep.subr.bf16.mxu0 %v3656
    %5361 = vmatpush1.bf16.msra.mxu0 %v3655
    %5362 = vmatprep.subr.bf16.mxu0 %v3672
    %5363 = vmatpush1.bf16.msra.mxu0 %v3671
    %5364 = vmatprep.subr.bf16.mxu0 %v3688
    %5365 = vmatpush1.bf16.msra.mxu0 %v3687
    %5366 = vmatprep.subr.bf16.mxu0 %v3704
    %5367 = vmatpush1.bf16.msra.mxu0 %v3703
    %5368 = vmatprep.subr.bf16.mxu0 %v3720
    %5369 = vmatpush1.bf16.msra.mxu0 %v3719
    %5370 = vmatprep.subr.bf16.mxu0 %v3736
    %5371 = vmatpush1.bf16.msra.mxu0 %v3735
    %5372 = vmatprep.subr.bf16.mxu0 %v3752
    %5373 = vmatpush1.bf16.msra.mxu0 %v3751
    %5374 = vmatprep.mubr.bf16.mxu0 %v934
    %5375 = vmatmul.mubr.bf16.gmra.mrb[0].mxu0 %v933
    %v5376 = vpop.f32.mrb[0].mxu0
    %v5377 = vadd.f32 %v5334, %v5376
    %v5378 = vpop.f32.mrb[0].mxu0
    %v5379 = vadd.f32 %v5336, %v5378
    %v5380 = vpop.f32.mrb[0].mxu0
    %v5381 = vadd.f32 %v5338, %v5380
    %v5382 = vpop.f32.mrb[0].mxu0
    %v5383 = vadd.f32 %v5340, %v5382
    %5384 = vdwg.mxu0
    %5385 = vmatprep.subr.bf16.mxu0 %v3768
    %5386 = vmatpush1.bf16.msra.mxu0 %v3767
    %5387 = vmatprep.subr.bf16.mxu0 %v3784
    %5388 = vmatpush1.bf16.msra.mxu0 %v3783
    %5389 = vmatprep.subr.bf16.mxu0 %v3800
    %5390 = vmatpush1.bf16.msra.mxu0 %v3799
    %5391 = vmatprep.subr.bf16.mxu0 %v3816
    %5392 = vmatpush1.bf16.msra.mxu0 %v3815
    %5393 = vmatprep.subr.bf16.mxu0 %v3832
    %5394 = vmatpush1.bf16.msra.mxu0 %v3831
    %5395 = vmatprep.subr.bf16.mxu0 %v3848
    %5396 = vmatpush1.bf16.msra.mxu0 %v3847
    %5397 = vmatprep.subr.bf16.mxu0 %v3864
    %5398 = vmatpush1.bf16.msra.mxu0 %v3863
    %5399 = vmatprep.subr.bf16.mxu0 %v3880
    %5400 = vmatpush1.bf16.msra.mxu0 %v3879
    %5401 = vmatprep.subr.bf16.mxu0 %v3896
    %5402 = vmatpush1.bf16.msra.mxu0 %v3895
    %5403 = vmatprep.subr.bf16.mxu0 %v3912
    %5404 = vmatpush1.bf16.msra.mxu0 %v3911
    %5405 = vmatprep.subr.bf16.mxu0 %v3928
    %5406 = vmatpush1.bf16.msra.mxu0 %v3927
    %5407 = vmatprep.subr.bf16.mxu0 %v3944
    %5408 = vmatpush1.bf16.msra.mxu0 %v3943
    %5409 = vmatprep.subr.bf16.mxu0 %v3960
    %5410 = vmatpush1.bf16.msra.mxu0 %v3959
    %5411 = vmatprep.subr.bf16.mxu0 %v3976
    %5412 = vmatpush1.bf16.msra.mxu0 %v3975
    %5413 = vmatprep.subr.bf16.mxu0 %v3992
    %5414 = vmatpush1.bf16.msra.mxu0 %v3991
    %5415 = vmatprep.subr.bf16.mxu0 %v4008
    %5416 = vmatpush1.bf16.msra.mxu0 %v4007
    %5417 = vmatprep.mubr.bf16.mxu0 %v936
    %5418 = vmatmul.mubr.bf16.gmra.mrb[0].mxu0 %v935
    %v5419 = vpop.f32.mrb[0].mxu0
    %v5420 = vadd.f32 %v5377, %v5419
    %v5421 = vpop.f32.mrb[0].mxu0
    %v5422 = vadd.f32 %v5379, %v5421
    %v5423 = vpop.f32.mrb[0].mxu0
    %v5424 = vadd.f32 %v5381, %v5423
    %v5425 = vpop.f32.mrb[0].mxu0
    %v5426 = vadd.f32 %v5383, %v5425
    %5427 = vdwg.mxu0
    %5428 = vmatprep.subr.bf16.mxu0 %v3258
    %5429 = vmatpush1.bf16.msra.mxu0 %v3257
    %5430 = vmatprep.subr.bf16.mxu0 %v3274
    %5431 = vmatpush1.bf16.msra.mxu0 %v3273
    %5432 = vmatprep.subr.bf16.mxu0 %v3290
    %5433 = vmatpush1.bf16.msra.mxu0 %v3289
    %5434 = vmatprep.subr.bf16.mxu0 %v3306
    %5435 = vmatpush1.bf16.msra.mxu0 %v3305
    %5436 = vmatprep.subr.bf16.mxu0 %v3322
    %5437 = vmatpush1.bf16.msra.mxu0 %v3321
    %5438 = vmatprep.subr.bf16.mxu0 %v3338
    %5439 = vmatpush1.bf16.msra.mxu0 %v3337
    %5440 = vmatprep.subr.bf16.mxu0 %v3354
    %5441 = vmatpush1.bf16.msra.mxu0 %v3353
    %5442 = vmatprep.subr.bf16.mxu0 %v3370
    %5443 = vmatpush1.bf16.msra.mxu0 %v3369
    %5444 = vmatprep.subr.bf16.mxu0 %v3386
    %5445 = vmatpush1.bf16.msra.mxu0 %v3385
    %5446 = vmatprep.subr.bf16.mxu0 %v3402
    %5447 = vmatpush1.bf16.msra.mxu0 %v3401
    %5448 = vmatprep.subr.bf16.mxu0 %v3418
    %5449 = vmatpush1.bf16.msra.mxu0 %v3417
    %5450 = vmatprep.subr.bf16.mxu0 %v3434
    %5451 = vmatpush1.bf16.msra.mxu0 %v3433
    %5452 = vmatprep.subr.bf16.mxu0 %v3450
    %5453 = vmatpush1.bf16.msra.mxu0 %v3449
    %5454 = vmatprep.subr.bf16.mxu0 %v3466
    %5455 = vmatpush1.bf16.msra.mxu0 %v3465
    %5456 = vmatprep.subr.bf16.mxu0 %v3482
    %5457 = vmatpush1.bf16.msra.mxu0 %v3481
    %5458 = vmatprep.subr.bf16.mxu0 %v3498
    %5459 = vmatpush1.bf16.msra.mxu0 %v3497
    %5460 = vmatprep.mubr.bf16.mxu0 %v932
    %5461 = vmatmul.mubr.bf16.gmra.mrb[0].mxu0 %v931
    %v5462 = vpop.f32.mrb[0].mxu0
    %v5463 = vadd.f32 0.0, %v5462
    %v5464 = vpop.f32.mrb[0].mxu0
    %v5465 = vadd.f32 0.0, %v5464
    %v5466 = vpop.f32.mrb[0].mxu0
    %v5467 = vadd.f32 0.0, %v5466
    %v5468 = vpop.f32.mrb[0].mxu0
    %v5469 = vadd.f32 0.0, %v5468
    %5470 = vdwg.mxu0
    %5471 = vmatprep.subr.bf16.mxu0 %v3514
    %5472 = vmatpush1.bf16.msra.mxu0 %v3513
    %5473 = vmatprep.subr.bf16.mxu0 %v3530
    %5474 = vmatpush1.bf16.msra.mxu0 %v3529
    %5475 = vmatprep.subr.bf16.mxu0 %v3546
    %5476 = vmatpush1.bf16.msra.mxu0 %v3545
    %5477 = vmatprep.subr.bf16.mxu0 %v3562
    %5478 = vmatpush1.bf16.msra.mxu0 %v3561
    %5479 = vmatprep.subr.bf16.mxu0 %v3578
    %5480 = vmatpush1.bf16.msra.mxu0 %v3577
    %5481 = vmatprep.subr.bf16.mxu0 %v3594
    %5482 = vmatpush1.bf16.msra.mxu0 %v3593
    %5483 = vmatprep.subr.bf16.mxu0 %v3610
    %5484 = vmatpush1.bf16.msra.mxu0 %v3609
    %5485 = vmatprep.subr.bf16.mxu0 %v3626
    %5486 = vmatpush1.bf16.msra.mxu0 %v3625
    %5487 = vmatprep.subr.bf16.mxu0 %v3642
    %5488 = vmatpush1.bf16.msra.mxu0 %v3641
    %5489 = vmatprep.subr.bf16.mxu0 %v3658
    %5490 = vmatpush1.bf16.msra.mxu0 %v3657
    %5491 = vmatprep.subr.bf16.mxu0 %v3674
    %5492 = vmatpush1.bf16.msra.mxu0 %v3673
    %5493 = vmatprep.subr.bf16.mxu0 %v3690
    %5494 = vmatpush1.bf16.msra.mxu0 %v3689
    %5495 = vmatprep.subr.bf16.mxu0 %v3706
    %5496 = vmatpush1.bf16.msra.mxu0 %v3705
    %5497 = vmatprep.subr.bf16.mxu0 %v3722
    %5498 = vmatpush1.bf16.msra.mxu0 %v3721
    %5499 = vmatprep.subr.bf16.mxu0 %v3738
    %5500 = vmatpush1.bf16.msra.mxu0 %v3737
    %5501 = vmatprep.subr.bf16.mxu0 %v3754
    %5502 = vmatpush1.bf16.msra.mxu0 %v3753
    %5503 = vmatprep.mubr.bf16.mxu0 %v934
    %5504 = vmatmul.mubr.bf16.gmra.mrb[0].mxu0 %v933
    %v5505 = vpop.f32.mrb[0].mxu0
    %v5506 = vadd.f32 %v5463, %v5505
    %v5507 = vpop.f32.mrb[0].mxu0
    %v5508 = vadd.f32 %v5465, %v5507
    %v5509 = vpop.f32.mrb[0].mxu0
    %v5510 = vadd.f32 %v5467, %v5509
    %v5511 = vpop.f32.mrb[0].mxu0
    %v5512 = vadd.f32 %v5469, %v5511
    %5513 = vdwg.mxu0
    %5514 = vmatprep.subr.bf16.mxu0 %v3770
    %5515 = vmatpush1.bf16.msra.mxu0 %v3769
    %5516 = vmatprep.subr.bf16.mxu0 %v3786
    %5517 = vmatpush1.bf16.msra.mxu0 %v3785
    %5518 = vmatprep.subr.bf16.mxu0 %v3802
    %5519 = vmatpush1.bf16.msra.mxu0 %v3801
    %5520 = vmatprep.subr.bf16.mxu0 %v3818
    %5521 = vmatpush1.bf16.msra.mxu0 %v3817
    %5522 = vmatprep.subr.bf16.mxu0 %v3834
    %5523 = vmatpush1.bf16.msra.mxu0 %v3833
    %5524 = vmatprep.subr.bf16.mxu0 %v3850
    %5525 = vmatpush1.bf16.msra.mxu0 %v3849
    %5526 = vmatprep.subr.bf16.mxu0 %v3866
    %5527 = vmatpush1.bf16.msra.mxu0 %v3865
    %5528 = vmatprep.subr.bf16.mxu0 %v3882
    %5529 = vmatpush1.bf16.msra.mxu0 %v3881
    %5530 = vmatprep.subr.bf16.mxu0 %v3898
    %5531 = vmatpush1.bf16.msra.mxu0 %v3897
    %5532 = vmatprep.subr.bf16.mxu0 %v3914
    %5533 = vmatpush1.bf16.msra.mxu0 %v3913
    %5534 = vmatprep.subr.bf16.mxu0 %v3930
    %5535 = vmatpush1.bf16.msra.mxu0 %v3929
    %5536 = vmatprep.subr.bf16.mxu0 %v3946
    %5537 = vmatpush1.bf16.msra.mxu0 %v3945
    %5538 = vmatprep.subr.bf16.mxu0 %v3962
    %5539 = vmatpush1.bf16.msra.mxu0 %v3961
    %5540 = vmatprep.subr.bf16.mxu0 %v3978
    %5541 = vmatpush1.bf16.msra.mxu0 %v3977
    %5542 = vmatprep.subr.bf16.mxu0 %v3994
    %5543 = vmatpush1.bf16.msra.mxu0 %v3993
    %5544 = vmatprep.subr.bf16.mxu0 %v4010
    %5545 = vmatpush1.bf16.msra.mxu0 %v4009
    %5546 = vmatprep.mubr.bf16.mxu0 %v936
    %5547 = vmatmul.mubr.bf16.gmra.mrb[0].mxu0 %v935
    %v5548 = vpop.f32.mrb[0].mxu0
    %v5549 = vadd.f32 %v5506, %v5548
    %v5550 = vpop.f32.mrb[0].mxu0
    %v5551 = vadd.f32 %v5508, %v5550
    %v5552 = vpop.f32.mrb[0].mxu0
    %v5553 = vadd.f32 %v5510, %v5552
    %v5554 = vpop.f32.mrb[0].mxu0
    %v5555 = vadd.f32 %v5512, %v5554
    %5556 = vdwg.mxu0
    %5557 = vmatprep.subr.bf16.mxu0 %v3260
    %5558 = vmatpush1.bf16.msra.mxu0 %v3259
    %5559 = vmatprep.subr.bf16.mxu0 %v3276
    %5560 = vmatpush1.bf16.msra.mxu0 %v3275
    %5561 = vmatprep.subr.bf16.mxu0 %v3292
    %5562 = vmatpush1.bf16.msra.mxu0 %v3291
    %5563 = vmatprep.subr.bf16.mxu0 %v3308
    %5564 = vmatpush1.bf16.msra.mxu0 %v3307
    %5565 = vmatprep.subr.bf16.mxu0 %v3324
    %5566 = vmatpush1.bf16.msra.mxu0 %v3323
    %5567 = vmatprep.subr.bf16.mxu0 %v3340
    %5568 = vmatpush1.bf16.msra.mxu0 %v3339
    %5569 = vmatprep.subr.bf16.mxu0 %v3356
    %5570 = vmatpush1.bf16.msra.mxu0 %v3355
    %5571 = vmatprep.subr.bf16.mxu0 %v3372
    %5572 = vmatpush1.bf16.msra.mxu0 %v3371
    %5573 = vmatprep.subr.bf16.mxu0 %v3388
    %5574 = vmatpush1.bf16.msra.mxu0 %v3387
    %5575 = vmatprep.subr.bf16.mxu0 %v3404
    %5576 = vmatpush1.bf16.msra.mxu0 %v3403
    %5577 = vmatprep.subr.bf16.mxu0 %v3420
    %5578 = vmatpush1.bf16.msra.mxu0 %v3419
    %5579 = vmatprep.subr.bf16.mxu0 %v3436
    %5580 = vmatpush1.bf16.msra.mxu0 %v3435
    %5581 = vmatprep.subr.bf16.mxu0 %v3452
    %5582 = vmatpush1.bf16.msra.mxu0 %v3451
    %5583 = vmatprep.subr.bf16.mxu0 %v3468
    %5584 = vmatpush1.bf16.msra.mxu0 %v3467
    %5585 = vmatprep.subr.bf16.mxu0 %v3484
    %5586 = vmatpush1.bf16.msra.mxu0 %v3483
    %5587 = vmatprep.subr.bf16.mxu0 %v3500
    %5588 = vmatpush1.bf16.msra.mxu0 %v3499
    %5589 = vmatprep.mubr.bf16.mxu0 %v932
    %5590 = vmatmul.mubr.bf16.gmra.mrb[0].mxu0 %v931
    %v5591 = vpop.f32.mrb[0].mxu0
    %v5592 = vadd.f32 0.0, %v5591
    %v5593 = vpop.f32.mrb[0].mxu0
    %v5594 = vadd.f32 0.0, %v5593
    %v5595 = vpop.f32.mrb[0].mxu0
    %v5596 = vadd.f32 0.0, %v5595
    %v5597 = vpop.f32.mrb[0].mxu0
    %v5598 = vadd.f32 0.0, %v5597
    %5599 = vdwg.mxu0
    %5600 = vmatprep.subr.bf16.mxu0 %v3516
    %5601 = vmatpush1.bf16.msra.mxu0 %v3515
    %5602 = vmatprep.subr.bf16.mxu0 %v3532
    %5603 = vmatpush1.bf16.msra.mxu0 %v3531
    %5604 = vmatprep.subr.bf16.mxu0 %v3548
    %5605 = vmatpush1.bf16.msra.mxu0 %v3547
    %5606 = vmatprep.subr.bf16.mxu0 %v3564
    %5607 = vmatpush1.bf16.msra.mxu0 %v3563
    %5608 = vmatprep.subr.bf16.mxu0 %v3580
    %5609 = vmatpush1.bf16.msra.mxu0 %v3579
    %5610 = vmatprep.subr.bf16.mxu0 %v3596
    %5611 = vmatpush1.bf16.msra.mxu0 %v3595
    %5612 = vmatprep.subr.bf16.mxu0 %v3612
    %5613 = vmatpush1.bf16.msra.mxu0 %v3611
    %5614 = vmatprep.subr.bf16.mxu0 %v3628
    %5615 = vmatpush1.bf16.msra.mxu0 %v3627
    %5616 = vmatprep.subr.bf16.mxu0 %v3644
    %5617 = vmatpush1.bf16.msra.mxu0 %v3643
    %5618 = vmatprep.subr.bf16.mxu0 %v3660
    %5619 = vmatpush1.bf16.msra.mxu0 %v3659
    %5620 = vmatprep.subr.bf16.mxu0 %v3676
    %5621 = vmatpush1.bf16.msra.mxu0 %v3675
    %5622 = vmatprep.subr.bf16.mxu0 %v3692
    %5623 = vmatpush1.bf16.msra.mxu0 %v3691
    %5624 = vmatprep.subr.bf16.mxu0 %v3708
    %5625 = vmatpush1.bf16.msra.mxu0 %v3707
    %5626 = vmatprep.subr.bf16.mxu0 %v3724
    %5627 = vmatpush1.bf16.msra.mxu0 %v3723
    %5628 = vmatprep.subr.bf16.mxu0 %v3740
    %5629 = vmatpush1.bf16.msra.mxu0 %v3739
    %5630 = vmatprep.subr.bf16.mxu0 %v3756
    %5631 = vmatpush1.bf16.msra.mxu0 %v3755
    %5632 = vmatprep.mubr.bf16.mxu0 %v934
    %5633 = vmatmul.mubr.bf16.gmra.mrb[0].mxu0 %v933
    %v5634 = vpop.f32.mrb[0].mxu0
    %v5635 = vadd.f32 %v5592, %v5634
    %v5636 = vpop.f32.mrb[0].mxu0
    %v5637 = vadd.f32 %v5594, %v5636
    %v5638 = vpop.f32.mrb[0].mxu0
    %v5639 = vadd.f32 %v5596, %v5638
    %v5640 = vpop.f32.mrb[0].mxu0
    %v5641 = vadd.f32 %v5598, %v5640
    %5642 = vdwg.mxu0
    %5643 = vmatprep.subr.bf16.mxu0 %v3772
    %5644 = vmatpush1.bf16.msra.mxu0 %v3771
    %5645 = vmatprep.subr.bf16.mxu0 %v3788
    %5646 = vmatpush1.bf16.msra.mxu0 %v3787
    %5647 = vmatprep.subr.bf16.mxu0 %v3804
    %5648 = vmatpush1.bf16.msra.mxu0 %v3803
    %5649 = vmatprep.subr.bf16.mxu0 %v3820
    %5650 = vmatpush1.bf16.msra.mxu0 %v3819
    %5651 = vmatprep.subr.bf16.mxu0 %v3836
    %5652 = vmatpush1.bf16.msra.mxu0 %v3835
    %5653 = vmatprep.subr.bf16.mxu0 %v3852
    %5654 = vmatpush1.bf16.msra.mxu0 %v3851
    %5655 = vmatprep.subr.bf16.mxu0 %v3868
    %5656 = vmatpush1.bf16.msra.mxu0 %v3867
    %5657 = vmatprep.subr.bf16.mxu0 %v3884
    %5658 = vmatpush1.bf16.msra.mxu0 %v3883
    %5659 = vmatprep.subr.bf16.mxu0 %v3900
    %5660 = vmatpush1.bf16.msra.mxu0 %v3899
    %5661 = vmatprep.subr.bf16.mxu0 %v3916
    %5662 = vmatpush1.bf16.msra.mxu0 %v3915
    %5663 = vmatprep.subr.bf16.mxu0 %v3932
    %5664 = vmatpush1.bf16.msra.mxu0 %v3931
    %5665 = vmatprep.subr.bf16.mxu0 %v3948
    %5666 = vmatpush1.bf16.msra.mxu0 %v3947
    %5667 = vmatprep.subr.bf16.mxu0 %v3964
    %5668 = vmatpush1.bf16.msra.mxu0 %v3963
    %5669 = vmatprep.subr.bf16.mxu0 %v3980
    %5670 = vmatpush1.bf16.msra.mxu0 %v3979
    %5671 = vmatprep.subr.bf16.mxu0 %v3996
    %5672 = vmatpush1.bf16.msra.mxu0 %v3995
    %5673 = vmatprep.subr.bf16.mxu0 %v4012
    %5674 = vmatpush1.bf16.msra.mxu0 %v4011
    %5675 = vmatprep.mubr.bf16.mxu0 %v936
    %5676 = vmatmul.mubr.bf16.gmra.mrb[0].mxu0 %v935
    %v5677 = vpop.f32.mrb[0].mxu0
    %v5678 = vadd.f32 %v5635, %v5677
    %v5679 = vpop.f32.mrb[0].mxu0
    %v5680 = vadd.f32 %v5637, %v5679
    %v5681 = vpop.f32.mrb[0].mxu0
    %v5682 = vadd.f32 %v5639, %v5681
    %v5683 = vpop.f32.mrb[0].mxu0
    %v5684 = vadd.f32 %v5641, %v5683
    %5685 = vdwg.mxu0
    %5686 = vmatprep.subr.bf16.mxu0 %v3262
    %5687 = vmatpush1.bf16.msra.mxu0 %v3261
    %5688 = vmatprep.subr.bf16.mxu0 %v3278
    %5689 = vmatpush1.bf16.msra.mxu0 %v3277
    %5690 = vmatprep.subr.bf16.mxu0 %v3294
    %5691 = vmatpush1.bf16.msra.mxu0 %v3293
    %5692 = vmatprep.subr.bf16.mxu0 %v3310
    %5693 = vmatpush1.bf16.msra.mxu0 %v3309
    %5694 = vmatprep.subr.bf16.mxu0 %v3326
    %5695 = vmatpush1.bf16.msra.mxu0 %v3325
    %5696 = vmatprep.subr.bf16.mxu0 %v3342
    %5697 = vmatpush1.bf16.msra.mxu0 %v3341
    %5698 = vmatprep.subr.bf16.mxu0 %v3358
    %5699 = vmatpush1.bf16.msra.mxu0 %v3357
    %5700 = vmatprep.subr.bf16.mxu0 %v3374
    %5701 = vmatpush1.bf16.msra.mxu0 %v3373
    %5702 = vmatprep.subr.bf16.mxu0 %v3390
    %5703 = vmatpush1.bf16.msra.mxu0 %v3389
    %5704 = vmatprep.subr.bf16.mxu0 %v3406
    %5705 = vmatpush1.bf16.msra.mxu0 %v3405
    %5706 = vmatprep.subr.bf16.mxu0 %v3422
    %5707 = vmatpush1.bf16.msra.mxu0 %v3421
    %5708 = vmatprep.subr.bf16.mxu0 %v3438
    %5709 = vmatpush1.bf16.msra.mxu0 %v3437
    %5710 = vmatprep.subr.bf16.mxu0 %v3454
    %5711 = vmatpush1.bf16.msra.mxu0 %v3453
    %5712 = vmatprep.subr.bf16.mxu0 %v3470
    %5713 = vmatpush1.bf16.msra.mxu0 %v3469
    %5714 = vmatprep.subr.bf16.mxu0 %v3486
    %5715 = vmatpush1.bf16.msra.mxu0 %v3485
    %5716 = vmatprep.subr.bf16.mxu0 %v3502
    %5717 = vmatpush1.bf16.msra.mxu0 %v3501
    %5718 = vmatprep.mubr.bf16.mxu0 %v932
    %5719 = vmatmul.mubr.bf16.gmra.mrb[0].mxu0 %v931
    %v5720 = vpop.f32.mrb[0].mxu0
    %v5721 = vadd.f32 0.0, %v5720
    %v5722 = vpop.f32.mrb[0].mxu0
    %v5723 = vadd.f32 0.0, %v5722
    %v5724 = vpop.f32.mrb[0].mxu0
    %v5725 = vadd.f32 0.0, %v5724
    %v5726 = vpop.f32.mrb[0].mxu0
    %v5727 = vadd.f32 0.0, %v5726
    %5728 = vdwg.mxu0
    %5729 = vmatprep.subr.bf16.mxu0 %v3518
    %5730 = vmatpush1.bf16.msra.mxu0 %v3517
    %5731 = vmatprep.subr.bf16.mxu0 %v3534
    %5732 = vmatpush1.bf16.msra.mxu0 %v3533
    %5733 = vmatprep.subr.bf16.mxu0 %v3550
    %5734 = vmatpush1.bf16.msra.mxu0 %v3549
    %5735 = vmatprep.subr.bf16.mxu0 %v3566
    %5736 = vmatpush1.bf16.msra.mxu0 %v3565
    %5737 = vmatprep.subr.bf16.mxu0 %v3582
    %5738 = vmatpush1.bf16.msra.mxu0 %v3581
    %5739 = vmatprep.subr.bf16.mxu0 %v3598
    %5740 = vmatpush1.bf16.msra.mxu0 %v3597
    %5741 = vmatprep.subr.bf16.mxu0 %v3614
    %5742 = vmatpush1.bf16.msra.mxu0 %v3613
    %5743 = vmatprep.subr.bf16.mxu0 %v3630
    %5744 = vmatpush1.bf16.msra.mxu0 %v3629
    %5745 = vmatprep.subr.bf16.mxu0 %v3646
    %5746 = vmatpush1.bf16.msra.mxu0 %v3645
    %5747 = vmatprep.subr.bf16.mxu0 %v3662
    %5748 = vmatpush1.bf16.msra.mxu0 %v3661
    %5749 = vmatprep.subr.bf16.mxu0 %v3678
    %5750 = vmatpush1.bf16.msra.mxu0 %v3677
    %5751 = vmatprep.subr.bf16.mxu0 %v3694
    %5752 = vmatpush1.bf16.msra.mxu0 %v3693
    %5753 = vmatprep.subr.bf16.mxu0 %v3710
    %5754 = vmatpush1.bf16.msra.mxu0 %v3709
    %5755 = vmatprep.subr.bf16.mxu0 %v3726
    %5756 = vmatpush1.bf16.msra.mxu0 %v3725
    %5757 = vmatprep.subr.bf16.mxu0 %v3742
    %5758 = vmatpush1.bf16.msra.mxu0 %v3741
    %5759 = vmatprep.subr.bf16.mxu0 %v3758
    %5760 = vmatpush1.bf16.msra.mxu0 %v3757
    %5761 = vmatprep.mubr.bf16.mxu0 %v934
    %5762 = vmatmul.mubr.bf16.gmra.mrb[0].mxu0 %v933
    %v5763 = vpop.f32.mrb[0].mxu0
    %v5764 = vadd.f32 %v5721, %v5763
    %v5765 = vpop.f32.mrb[0].mxu0
    %v5766 = vadd.f32 %v5723, %v5765
    %v5767 = vpop.f32.mrb[0].mxu0
    %v5768 = vadd.f32 %v5725, %v5767
    %v5769 = vpop.f32.mrb[0].mxu0
    %v5770 = vadd.f32 %v5727, %v5769
    %5771 = vdwg.mxu0
    %5772 = vmatprep.subr.bf16.mxu0 %v3774
    %5773 = vmatpush1.bf16.msra.mxu0 %v3773
    %5774 = vmatprep.subr.bf16.mxu0 %v3790
    %5775 = vmatpush1.bf16.msra.mxu0 %v3789
    %5776 = vmatprep.subr.bf16.mxu0 %v3806
    %5777 = vmatpush1.bf16.msra.mxu0 %v3805
    %5778 = vmatprep.subr.bf16.mxu0 %v3822
    %5779 = vmatpush1.bf16.msra.mxu0 %v3821
    %5780 = vmatprep.subr.bf16.mxu0 %v3838
    %5781 = vmatpush1.bf16.msra.mxu0 %v3837
    %5782 = vmatprep.subr.bf16.mxu0 %v3854
    %5783 = vmatpush1.bf16.msra.mxu0 %v3853
    %5784 = vmatprep.subr.bf16.mxu0 %v3870
    %5785 = vmatpush1.bf16.msra.mxu0 %v3869
    %5786 = vmatprep.subr.bf16.mxu0 %v3886
    %5787 = vmatpush1.bf16.msra.mxu0 %v3885
    %5788 = vmatprep.subr.bf16.mxu0 %v3902
    %5789 = vmatpush1.bf16.msra.mxu0 %v3901
    %5790 = vmatprep.subr.bf16.mxu0 %v3918
    %5791 = vmatpush1.bf16.msra.mxu0 %v3917
    %5792 = vmatprep.subr.bf16.mxu0 %v3934
    %5793 = vmatpush1.bf16.msra.mxu0 %v3933
    %5794 = vmatprep.subr.bf16.mxu0 %v3950
    %5795 = vmatpush1.bf16.msra.mxu0 %v3949
    %5796 = vmatprep.subr.bf16.mxu0 %v3966
    %5797 = vmatpush1.bf16.msra.mxu0 %v3965
    %5798 = vmatprep.subr.bf16.mxu0 %v3982
    %5799 = vmatpush1.bf16.msra.mxu0 %v3981
    %5800 = vmatprep.subr.bf16.mxu0 %v3998
    %5801 = vmatpush1.bf16.msra.mxu0 %v3997
    %5802 = vmatprep.subr.bf16.mxu0 %v4014
    %5803 = vmatpush1.bf16.msra.mxu0 %v4013
    %5804 = vmatprep.mubr.bf16.mxu0 %v936
    %5805 = vmatmul.mubr.bf16.gmra.mrb[0].mxu0 %v935
    %v5806 = vpop.f32.mrb[0].mxu0
    %v5807 = vadd.f32 %v5764, %v5806
    %v5808 = vpop.f32.mrb[0].mxu0
    %v5809 = vadd.f32 %v5766, %v5808
    %v5810 = vpop.f32.mrb[0].mxu0
    %v5811 = vadd.f32 %v5768, %v5810
    %v5812 = vpop.f32.mrb[0].mxu0
    %v5813 = vadd.f32 %v5770, %v5812
    %5814 = vdwg.mxu0
    %v5815 = vadd.f32 %v107, %v4904
    %v5816 = vadd.f32 %v108, %v4906
    %v5817 = vadd.f32 %v109, %v5033
    %v5818 = vadd.f32 %v110, %v5035
    %v5819 = vadd.f32 %v111, %v5162
    %v5820 = vadd.f32 %v112, %v5164
    %v5821 = vadd.f32 %v113, %v5291
    %v5822 = vadd.f32 %v114, %v5293
    %v5823 = vadd.f32 %v115, %v5420
    %v5824 = vadd.f32 %v116, %v5422
    %v5825 = vadd.f32 %v117, %v5549
    %v5826 = vadd.f32 %v118, %v5551
    %v5827 = vadd.f32 %v119, %v5678
    %v5828 = vadd.f32 %v120, %v5680
    %v5829 = vadd.f32 %v121, %v5807
    %v5830 = vadd.f32 %v122, %v5809
    %v5831 = vadd.f32 %v123, %v4908
    %v5832 = vadd.f32 %v124, %v4910
    %v5833 = vadd.f32 %v125, %v5037
    %v5834 = vadd.f32 %v126, %v5039
    %v5835 = vadd.f32 %v127, %v5166
    %v5836 = vadd.f32 %v128, %v5168
    %v5837 = vadd.f32 %v129, %v5295
    %v5838 = vadd.f32 %v130, %v5297
    %v5839 = vadd.f32 %v131, %v5424
    %v5840 = vadd.f32 %v132, %v5426
    %v5841 = vadd.f32 %v133, %v5553
    %v5842 = vadd.f32 %v134, %v5555
    %v5843 = vadd.f32 %v135, %v5682
    %v5844 = vadd.f32 %v136, %v5684
    %v5845 = vadd.f32 %v137, %v5811
    %v5846 = vadd.f32 %v138, %v5813
    %5847 = vst [vmem:[#allocation2] sm:$0xff] %v5815
    %5848 = vst [vmem:[#allocation2 + $0x8] sm:$0xff] %v5816
    %5849 = vst [vmem:[#allocation2 + $0x10] sm:$0xff] %v5817
    %5850 = vst [vmem:[#allocation2 + $0x18] sm:$0xff] %v5818
    %5851 = vst [vmem:[#allocation2 + $0x20] sm:$0xff] %v5819
    %5852 = vst [vmem:[#allocation2 + $0x28] sm:$0xff] %v5820
    %5853 = vst [vmem:[#allocation2 + $0x30] sm:$0xff] %v5821
    %5854 = vst [vmem:[#allocation2 + $0x38] sm:$0xff] %v5822
    %5855 = vst [vmem:[#allocation2 + $0x40] sm:$0xff] %v5823
    %5856 = vst [vmem:[#allocation2 + $0x48] sm:$0xff] %v5824
    %5857 = vst [vmem:[#allocation2 + $0x50] sm:$0xff] %v5825
    %5858 = vst [vmem:[#allocation2 + $0x58] sm:$0xff] %v5826
    %5859 = vst [vmem:[#allocation2 + $0x60] sm:$0xff] %v5827
    %5860 = vst [vmem:[#allocation2 + $0x68] sm:$0xff] %v5828
    %5861 = vst [vmem:[#allocation2 + $0x70] sm:$0xff] %v5829
    %5862 = vst [vmem:[#allocation2 + $0x78] sm:$0xff] %v5830
    %5863 = vst [vmem:[#allocation2 + $0x80] sm:$0xff] %v5831
    %5864 = vst [vmem:[#allocation2 + $0x88] sm:$0xff] %v5832
    %5865 = vst [vmem:[#allocation2 + $0x90] sm:$0xff] %v5833
    %5866 = vst [vmem:[#allocation2 + $0x98] sm:$0xff] %v5834
    %5867 = vst [vmem:[#allocation2 + $0xa0] sm:$0xff] %v5835
    %5868 = vst [vmem:[#allocation2 + $0xa8] sm:$0xff] %v5836
    %5869 = vst [vmem:[#allocation2 + $0xb0] sm:$0xff] %v5837
    %5870 = vst [vmem:[#allocation2 + $0xb8] sm:$0xff] %v5838
    %5871 = vst [vmem:[#allocation2 + $0xc0] sm:$0xff] %v5839
    %5872 = vst [vmem:[#allocation2 + $0xc8] sm:$0xff] %v5840
    %5873 = vst [vmem:[#allocation2 + $0xd0] sm:$0xff] %v5841
    %5874 = vst [vmem:[#allocation2 + $0xd8] sm:$0xff] %v5842
    %5875 = vst [vmem:[#allocation2 + $0xe0] sm:$0xff] %v5843
    %5876 = vst [vmem:[#allocation2 + $0xe8] sm:$0xff] %v5844
    %5877 = vst [vmem:[#allocation2 + $0xf0] sm:$0xff] %v5845
    %5878 = vst [vmem:[#allocation2 + $0xf8] sm:$0xff] %v5846
    // Predicated region
    $region42: #{carl_forward.3} parent=1 // pred_check
      %p5879 = pneg %p71
    $region43: #{carl_forward.3} parent=1 // pred_check_branch
      %5881 = sbr.rel (%p5879) target = $region45
    $region44: #{carl_forward.3} parent=1 // pred_region
      %v5882 = vld [vmem:[#allocation2] sm:$0xff]
      %v5883 = vld [vmem:[#allocation2 + $0x8] sm:$0xff]
      %v5884 = vld [vmem:[#allocation2 + $0x10] sm:$0xff]
      %v5885 = vld [vmem:[#allocation2 + $0x18] sm:$0xff]
      %v5886 = vld [vmem:[#allocation2 + $0x20] sm:$0xff]
      %v5887 = vld [vmem:[#allocation2 + $0x28] sm:$0xff]
      %v5888 = vld [vmem:[#allocation2 + $0x30] sm:$0xff]
      %v5889 = vld [vmem:[#allocation2 + $0x38] sm:$0xff]
      %v5890 = vld [vmem:[#allocation2 + $0x40] sm:$0xff]
      %v5891 = vld [vmem:[#allocation2 + $0x48] sm:$0xff]
      %v5892 = vld [vmem:[#allocation2 + $0x50] sm:$0xff]
      %v5893 = vld [vmem:[#allocation2 + $0x58] sm:$0xff]
      %v5894 = vld [vmem:[#allocation2 + $0x60] sm:$0xff]
      %v5895 = vld [vmem:[#allocation2 + $0x68] sm:$0xff]
      %v5896 = vld [vmem:[#allocation2 + $0x70] sm:$0xff]
      %v5897 = vld [vmem:[#allocation2 + $0x78] sm:$0xff]
      %v5898 = vld [vmem:[#allocation2 + $0x80] sm:$0xff]
      %v5899 = vld [vmem:[#allocation2 + $0x88] sm:$0xff]
      %v5900 = vld [vmem:[#allocation2 + $0x90] sm:$0xff]
      %v5901 = vld [vmem:[#allocation2 + $0x98] sm:$0xff]
      %v5902 = vld [vmem:[#allocation2 + $0xa0] sm:$0xff]
      %v5903 = vld [vmem:[#allocation2 + $0xa8] sm:$0xff]
      %v5904 = vld [vmem:[#allocation2 + $0xb0] sm:$0xff]
      %v5905 = vld [vmem:[#allocation2 + $0xb8] sm:$0xff]
      %v5906 = vld [vmem:[#allocation2 + $0xc0] sm:$0xff]
      %v5907 = vld [vmem:[#allocation2 + $0xc8] sm:$0xff]
      %v5908 = vld [vmem:[#allocation2 + $0xd0] sm:$0xff]
      %v5909 = vld [vmem:[#allocation2 + $0xd8] sm:$0xff]
      %v5910 = vld [vmem:[#allocation2 + $0xe0] sm:$0xff]
      %v5911 = vld [vmem:[#allocation2 + $0xe8] sm:$0xff]
      %v5912 = vld [vmem:[#allocation2 + $0xf0] sm:$0xff]
      %v5913 = vld [vmem:[#allocation2 + $0xf8] sm:$0xff]
      %v5914 = vld [vmem:[#allocation5] sm:$0xff]
      %v5915 = vld [vmem:[#allocation5 + $0x8] sm:$0xff]
      %v5918 = vlaneseq
      %v5919 = vshrl.u32 %v5918, 7
      %v5920 = vsub.s32 0, %v5919
      %v5921 = vrot.slane %v5914, %v5920
      %v5922 = vlaneseq
      %v5923 = vshrl.u32 %v5922, 7
      %v5924 = vsub.s32 1, %v5923
      %v5925 = vrot.slane %v5914, %v5924
      %v5926 = vlaneseq
      %v5927 = vshrl.u32 %v5926, 7
      %v5928 = vsub.s32 2, %v5927
      %v5929 = vrot.slane %v5914, %v5928
      %v5930 = vlaneseq
      %v5931 = vshrl.u32 %v5930, 7
      %v5932 = vsub.s32 3, %v5931
      %v5933 = vrot.slane %v5914, %v5932
      %v5934 = vlaneseq
      %v5935 = vshrl.u32 %v5934, 7
      %v5936 = vsub.s32 4, %v5935
      %v5937 = vrot.slane %v5914, %v5936
      %v5938 = vlaneseq
      %v5939 = vshrl.u32 %v5938, 7
      %v5940 = vsub.s32 5, %v5939
      %v5941 = vrot.slane %v5914, %v5940
      %v5942 = vlaneseq
      %v5943 = vshrl.u32 %v5942, 7
      %v5944 = vsub.s32 6, %v5943
      %v5945 = vrot.slane %v5914, %v5944
      %v5946 = vlaneseq
      %v5947 = vshrl.u32 %v5946, 7
      %v5948 = vsub.s32 7, %v5947
      %v5949 = vrot.slane %v5914, %v5948
      %v5950 = vlaneseq
      %v5951 = vshrl.u32 %v5950, 7
      %v5952 = vsub.s32 0, %v5951
      %v5953 = vrot.slane %v5915, %v5952
      %v5954 = vlaneseq
      %v5955 = vshrl.u32 %v5954, 7
      %v5956 = vsub.s32 1, %v5955
      %v5957 = vrot.slane %v5915, %v5956
      %v5958 = vlaneseq
      %v5959 = vshrl.u32 %v5958, 7
      %v5960 = vsub.s32 2, %v5959
      %v5961 = vrot.slane %v5915, %v5960
      %v5962 = vlaneseq
      %v5963 = vshrl.u32 %v5962, 7
      %v5964 = vsub.s32 3, %v5963
      %v5965 = vrot.slane %v5915, %v5964
      %v5966 = vlaneseq
      %v5967 = vshrl.u32 %v5966, 7
      %v5968 = vsub.s32 4, %v5967
      %v5969 = vrot.slane %v5915, %v5968
      %v5970 = vlaneseq
      %v5971 = vshrl.u32 %v5970, 7
      %v5972 = vsub.s32 5, %v5971
      %v5973 = vrot.slane %v5915, %v5972
      %v5974 = vlaneseq
      %v5975 = vshrl.u32 %v5974, 7
      %v5976 = vsub.s32 6, %v5975
      %v5977 = vrot.slane %v5915, %v5976
      %v5978 = vlaneseq
      %v5979 = vshrl.u32 %v5978, 7
      %v5980 = vsub.s32 7, %v5979
      %v5981 = vrot.slane %v5915, %v5980
      %v5998 = vadd.f32 %v5882, %v5921
      %v5999 = vadd.f32 %v5883, %v5925
      %v6000 = vadd.f32 %v5884, %v5929
      %v6001 = vadd.f32 %v5885, %v5933
      %v6002 = vadd.f32 %v5886, %v5937
      %v6003 = vadd.f32 %v5887, %v5941
      %v6004 = vadd.f32 %v5888, %v5945
      %v6005 = vadd.f32 %v5889, %v5949
      %v6006 = vadd.f32 %v5890, %v5953
      %v6007 = vadd.f32 %v5891, %v5957
      %v6008 = vadd.f32 %v5892, %v5961
      %v6009 = vadd.f32 %v5893, %v5965
      %v6010 = vadd.f32 %v5894, %v5969
      %v6011 = vadd.f32 %v5895, %v5973
      %v6012 = vadd.f32 %v5896, %v5977
      %v6013 = vadd.f32 %v5897, %v5981
      %v6014 = vadd.f32 %v5898, %v5921
      %v6015 = vadd.f32 %v5899, %v5925
      %v6016 = vadd.f32 %v5900, %v5929
      %v6017 = vadd.f32 %v5901, %v5933
      %v6018 = vadd.f32 %v5902, %v5937
      %v6019 = vadd.f32 %v5903, %v5941
      %v6020 = vadd.f32 %v5904, %v5945
      %v6021 = vadd.f32 %v5905, %v5949
      %v6022 = vadd.f32 %v5906, %v5953
      %v6023 = vadd.f32 %v5907, %v5957
      %v6024 = vadd.f32 %v5908, %v5961
      %v6025 = vadd.f32 %v5909, %v5965
      %v6026 = vadd.f32 %v5910, %v5969
      %v6027 = vadd.f32 %v5911, %v5973
      %v6028 = vadd.f32 %v5912, %v5977
      %v6029 = vadd.f32 %v5913, %v5981
      %v6030 = vpack.c.bf16 %v6014, %v5998
      %v6031 = vpack.c.bf16 %v6015, %v5999
      %v6032 = vpack.c.bf16 %v6016, %v6000
      %v6033 = vpack.c.bf16 %v6017, %v6001
      %v6034 = vpack.c.bf16 %v6018, %v6002
      %v6035 = vpack.c.bf16 %v6019, %v6003
      %v6036 = vpack.c.bf16 %v6020, %v6004
      %v6037 = vpack.c.bf16 %v6021, %v6005
      %v6038 = vpack.c.bf16 %v6022, %v6006
      %v6039 = vpack.c.bf16 %v6023, %v6007
      %v6040 = vpack.c.bf16 %v6024, %v6008
      %v6041 = vpack.c.bf16 %v6025, %v6009
      %v6042 = vpack.c.bf16 %v6026, %v6010
      %v6043 = vpack.c.bf16 %v6027, %v6011
      %v6044 = vpack.c.bf16 %v6028, %v6012
      %v6045 = vpack.c.bf16 %v6029, %v6013
      %v6046 = vld [vmem:[#allocation7] sm:$0xff]
      %v6047 = vld [vmem:[#allocation7 + $0x8] sm:$0xff]
      %v6048 = vld [vmem:[#allocation7 + $0x10] sm:$0xff]
      %v6049 = vld [vmem:[#allocation7 + $0x18] sm:$0xff]
      %v6050 = vld [vmem:[#allocation7 + $0x20] sm:$0xff]
      %v6051 = vld [vmem:[#allocation7 + $0x28] sm:$0xff]
      %v6052 = vld [vmem:[#allocation7 + $0x30] sm:$0xff]
      %v6053 = vld [vmem:[#allocation7 + $0x38] sm:$0xff]
      %v6054 = vld [vmem:[#allocation7 + $0x40] sm:$0xff]
      %v6055 = vld [vmem:[#allocation7 + $0x48] sm:$0xff]
      %v6056 = vld [vmem:[#allocation7 + $0x50] sm:$0xff]
      %v6057 = vld [vmem:[#allocation7 + $0x58] sm:$0xff]
      %v6058 = vld [vmem:[#allocation7 + $0x60] sm:$0xff]
      %v6059 = vld [vmem:[#allocation7 + $0x68] sm:$0xff]
      %v6060 = vld [vmem:[#allocation7 + $0x70] sm:$0xff]
      %v6061 = vld [vmem:[#allocation7 + $0x78] sm:$0xff]
      %v6062 = vld [vmem:[#allocation7 + $0x80] sm:$0xff]
      %v6063 = vld [vmem:[#allocation7 + $0x88] sm:$0xff]
      %v6064 = vld [vmem:[#allocation7 + $0x90] sm:$0xff]
      %v6065 = vld [vmem:[#allocation7 + $0x98] sm:$0xff]
      %v6066 = vld [vmem:[#allocation7 + $0xa0] sm:$0xff]
      %v6067 = vld [vmem:[#allocation7 + $0xa8] sm:$0xff]
      %v6068 = vld [vmem:[#allocation7 + $0xb0] sm:$0xff]
      %v6069 = vld [vmem:[#allocation7 + $0xb8] sm:$0xff]
      %v6070 = vld [vmem:[#allocation7 + $0xc0] sm:$0xff]
      %v6071 = vld [vmem:[#allocation7 + $0xc8] sm:$0xff]
      %v6072 = vld [vmem:[#allocation7 + $0xd0] sm:$0xff]
      %v6073 = vld [vmem:[#allocation7 + $0xd8] sm:$0xff]
      %v6074 = vld [vmem:[#allocation7 + $0xe0] sm:$0xff]
      %v6075 = vld [vmem:[#allocation7 + $0xe8] sm:$0xff]
      %v6076 = vld [vmem:[#allocation7 + $0xf0] sm:$0xff]
      %v6077 = vld [vmem:[#allocation7 + $0xf8] sm:$0xff]
      %v6078 = vld [vmem:[#allocation7 + $0x100] sm:$0xff]
      %v6079 = vld [vmem:[#allocation7 + $0x108] sm:$0xff]
      %v6080 = vld [vmem:[#allocation7 + $0x110] sm:$0xff]
      %v6081 = vld [vmem:[#allocation7 + $0x118] sm:$0xff]
      %v6082 = vld [vmem:[#allocation7 + $0x120] sm:$0xff]
      %v6083 = vld [vmem:[#allocation7 + $0x128] sm:$0xff]
      %v6084 = vld [vmem:[#allocation7 + $0x130] sm:$0xff]
      %v6085 = vld [vmem:[#allocation7 + $0x138] sm:$0xff]
      %v6086 = vld [vmem:[#allocation7 + $0x140] sm:$0xff]
      %v6087 = vld [vmem:[#allocation7 + $0x148] sm:$0xff]
      %v6088 = vld [vmem:[#allocation7 + $0x150] sm:$0xff]
      %v6089 = vld [vmem:[#allocation7 + $0x158] sm:$0xff]
      %v6090 = vld [vmem:[#allocation7 + $0x160] sm:$0xff]
      %v6091 = vld [vmem:[#allocation7 + $0x168] sm:$0xff]
      %v6092 = vld [vmem:[#allocation7 + $0x170] sm:$0xff]
      %v6093 = vld [vmem:[#allocation7 + $0x178] sm:$0xff]
      %v6094 = vld [vmem:[#allocation7 + $0x180] sm:$0xff]
      %v6095 = vld [vmem:[#allocation7 + $0x188] sm:$0xff]
      %v6096 = vld [vmem:[#allocation7 + $0x190] sm:$0xff]
      %v6097 = vld [vmem:[#allocation7 + $0x198] sm:$0xff]
      %v6098 = vld [vmem:[#allocation7 + $0x1a0] sm:$0xff]
      %v6099 = vld [vmem:[#allocation7 + $0x1a8] sm:$0xff]
      %v6100 = vld [vmem:[#allocation7 + $0x1b0] sm:$0xff]
      %v6101 = vld [vmem:[#allocation7 + $0x1b8] sm:$0xff]
      %v6102 = vld [vmem:[#allocation7 + $0x1c0] sm:$0xff]
      %v6103 = vld [vmem:[#allocation7 + $0x1c8] sm:$0xff]
      %v6104 = vld [vmem:[#allocation7 + $0x1d0] sm:$0xff]
      %v6105 = vld [vmem:[#allocation7 + $0x1d8] sm:$0xff]
      %v6106 = vld [vmem:[#allocation7 + $0x1e0] sm:$0xff]
      %v6107 = vld [vmem:[#allocation7 + $0x1e8] sm:$0xff]
      %v6108 = vld [vmem:[#allocation7 + $0x1f0] sm:$0xff]
      %v6109 = vld [vmem:[#allocation7 + $0x1f8] sm:$0xff]
      %v6110 = vld [vmem:[#allocation7 + $0x200] sm:$0xff]
      %v6111 = vld [vmem:[#allocation7 + $0x208] sm:$0xff]
      %v6112 = vld [vmem:[#allocation7 + $0x210] sm:$0xff]
      %v6113 = vld [vmem:[#allocation7 + $0x218] sm:$0xff]
      %v6114 = vld [vmem:[#allocation7 + $0x220] sm:$0xff]
      %v6115 = vld [vmem:[#allocation7 + $0x228] sm:$0xff]
      %v6116 = vld [vmem:[#allocation7 + $0x230] sm:$0xff]
      %v6117 = vld [vmem:[#allocation7 + $0x238] sm:$0xff]
      %v6118 = vld [vmem:[#allocation7 + $0x240] sm:$0xff]
      %v6119 = vld [vmem:[#allocation7 + $0x248] sm:$0xff]
      %v6120 = vld [vmem:[#allocation7 + $0x250] sm:$0xff]
      %v6121 = vld [vmem:[#allocation7 + $0x258] sm:$0xff]
      %v6122 = vld [vmem:[#allocation7 + $0x260] sm:$0xff]
      %v6123 = vld [vmem:[#allocation7 + $0x268] sm:$0xff]
      %v6124 = vld [vmem:[#allocation7 + $0x270] sm:$0xff]
      %v6125 = vld [vmem:[#allocation7 + $0x278] sm:$0xff]
      %v6126 = vld [vmem:[#allocation7 + $0x280] sm:$0xff]
      %v6127 = vld [vmem:[#allocation7 + $0x288] sm:$0xff]
      %v6128 = vld [vmem:[#allocation7 + $0x290] sm:$0xff]
      %v6129 = vld [vmem:[#allocation7 + $0x298] sm:$0xff]
      %v6130 = vld [vmem:[#allocation7 + $0x2a0] sm:$0xff]
      %v6131 = vld [vmem:[#allocation7 + $0x2a8] sm:$0xff]
      %v6132 = vld [vmem:[#allocation7 + $0x2b0] sm:$0xff]
      %v6133 = vld [vmem:[#allocation7 + $0x2b8] sm:$0xff]
      %v6134 = vld [vmem:[#allocation7 + $0x2c0] sm:$0xff]
      %v6135 = vld [vmem:[#allocation7 + $0x2c8] sm:$0xff]
      %v6136 = vld [vmem:[#allocation7 + $0x2d0] sm:$0xff]
      %v6137 = vld [vmem:[#allocation7 + $0x2d8] sm:$0xff]
      %v6138 = vld [vmem:[#allocation7 + $0x2e0] sm:$0xff]
      %v6139 = vld [vmem:[#allocation7 + $0x2e8] sm:$0xff]
      %v6140 = vld [vmem:[#allocation7 + $0x2f0] sm:$0xff]
      %v6141 = vld [vmem:[#allocation7 + $0x2f8] sm:$0xff]
      %v6142 = vld [vmem:[#allocation7 + $0x300] sm:$0xff]
      %v6143 = vld [vmem:[#allocation7 + $0x308] sm:$0xff]
      %v6144 = vld [vmem:[#allocation7 + $0x310] sm:$0xff]
      %v6145 = vld [vmem:[#allocation7 + $0x318] sm:$0xff]
      %v6146 = vld [vmem:[#allocation7 + $0x320] sm:$0xff]
      %v6147 = vld [vmem:[#allocation7 + $0x328] sm:$0xff]
      %v6148 = vld [vmem:[#allocation7 + $0x330] sm:$0xff]
      %v6149 = vld [vmem:[#allocation7 + $0x338] sm:$0xff]
      %v6150 = vld [vmem:[#allocation7 + $0x340] sm:$0xff]
      %v6151 = vld [vmem:[#allocation7 + $0x348] sm:$0xff]
      %v6152 = vld [vmem:[#allocation7 + $0x350] sm:$0xff]
      %v6153 = vld [vmem:[#allocation7 + $0x358] sm:$0xff]
      %v6154 = vld [vmem:[#allocation7 + $0x360] sm:$0xff]
      %v6155 = vld [vmem:[#allocation7 + $0x368] sm:$0xff]
      %v6156 = vld [vmem:[#allocation7 + $0x370] sm:$0xff]
      %v6157 = vld [vmem:[#allocation7 + $0x378] sm:$0xff]
      %v6158 = vld [vmem:[#allocation7 + $0x380] sm:$0xff]
      %v6159 = vld [vmem:[#allocation7 + $0x388] sm:$0xff]
      %v6160 = vld [vmem:[#allocation7 + $0x390] sm:$0xff]
      %v6161 = vld [vmem:[#allocation7 + $0x398] sm:$0xff]
      %v6162 = vld [vmem:[#allocation7 + $0x3a0] sm:$0xff]
      %v6163 = vld [vmem:[#allocation7 + $0x3a8] sm:$0xff]
      %v6164 = vld [vmem:[#allocation7 + $0x3b0] sm:$0xff]
      %v6165 = vld [vmem:[#allocation7 + $0x3b8] sm:$0xff]
      %v6166 = vld [vmem:[#allocation7 + $0x3c0] sm:$0xff]
      %v6167 = vld [vmem:[#allocation7 + $0x3c8] sm:$0xff]
      %v6168 = vld [vmem:[#allocation7 + $0x3d0] sm:$0xff]
      %v6169 = vld [vmem:[#allocation7 + $0x3d8] sm:$0xff]
      %v6170 = vld [vmem:[#allocation7 + $0x3e0] sm:$0xff]
      %v6171 = vld [vmem:[#allocation7 + $0x3e8] sm:$0xff]
      %v6172 = vld [vmem:[#allocation7 + $0x3f0] sm:$0xff]
      %v6173 = vld [vmem:[#allocation7 + $0x3f8] sm:$0xff]
      %v6174 = vld [vmem:[#allocation7 + $0x400] sm:$0xff]
      %v6175 = vld [vmem:[#allocation7 + $0x408] sm:$0xff]
      %v6176 = vld [vmem:[#allocation7 + $0x410] sm:$0xff]
      %v6177 = vld [vmem:[#allocation7 + $0x418] sm:$0xff]
      %v6178 = vld [vmem:[#allocation7 + $0x420] sm:$0xff]
      %v6179 = vld [vmem:[#allocation7 + $0x428] sm:$0xff]
      %v6180 = vld [vmem:[#allocation7 + $0x430] sm:$0xff]
      %v6181 = vld [vmem:[#allocation7 + $0x438] sm:$0xff]
      %v6182 = vld [vmem:[#allocation7 + $0x440] sm:$0xff]
      %v6183 = vld [vmem:[#allocation7 + $0x448] sm:$0xff]
      %v6184 = vld [vmem:[#allocation7 + $0x450] sm:$0xff]
      %v6185 = vld [vmem:[#allocation7 + $0x458] sm:$0xff]
      %v6186 = vld [vmem:[#allocation7 + $0x460] sm:$0xff]
      %v6187 = vld [vmem:[#allocation7 + $0x468] sm:$0xff]
      %v6188 = vld [vmem:[#allocation7 + $0x470] sm:$0xff]
      %v6189 = vld [vmem:[#allocation7 + $0x478] sm:$0xff]
      %v6190 = vld [vmem:[#allocation7 + $0x480] sm:$0xff]
      %v6191 = vld [vmem:[#allocation7 + $0x488] sm:$0xff]
      %v6192 = vld [vmem:[#allocation7 + $0x490] sm:$0xff]
      %v6193 = vld [vmem:[#allocation7 + $0x498] sm:$0xff]
      %v6194 = vld [vmem:[#allocation7 + $0x4a0] sm:$0xff]
      %v6195 = vld [vmem:[#allocation7 + $0x4a8] sm:$0xff]
      %v6196 = vld [vmem:[#allocation7 + $0x4b0] sm:$0xff]
      %v6197 = vld [vmem:[#allocation7 + $0x4b8] sm:$0xff]
      %v6198 = vld [vmem:[#allocation7 + $0x4c0] sm:$0xff]
      %v6199 = vld [vmem:[#allocation7 + $0x4c8] sm:$0xff]
      %v6200 = vld [vmem:[#allocation7 + $0x4d0] sm:$0xff]
      %v6201 = vld [vmem:[#allocation7 + $0x4d8] sm:$0xff]
      %v6202 = vld [vmem:[#allocation7 + $0x4e0] sm:$0xff]
      %v6203 = vld [vmem:[#allocation7 + $0x4e8] sm:$0xff]
      %v6204 = vld [vmem:[#allocation7 + $0x4f0] sm:$0xff]
      %v6205 = vld [vmem:[#allocation7 + $0x4f8] sm:$0xff]
      %v6206 = vld [vmem:[#allocation7 + $0x500] sm:$0xff]
      %v6207 = vld [vmem:[#allocation7 + $0x508] sm:$0xff]
      %v6208 = vld [vmem:[#allocation7 + $0x510] sm:$0xff]
      %v6209 = vld [vmem:[#allocation7 + $0x518] sm:$0xff]
      %v6210 = vld [vmem:[#allocation7 + $0x520] sm:$0xff]
      %v6211 = vld [vmem:[#allocation7 + $0x528] sm:$0xff]
      %v6212 = vld [vmem:[#allocation7 + $0x530] sm:$0xff]
      %v6213 = vld [vmem:[#allocation7 + $0x538] sm:$0xff]
      %v6214 = vld [vmem:[#allocation7 + $0x540] sm:$0xff]
      %v6215 = vld [vmem:[#allocation7 + $0x548] sm:$0xff]
      %v6216 = vld [vmem:[#allocation7 + $0x550] sm:$0xff]
      %v6217 = vld [vmem:[#allocation7 + $0x558] sm:$0xff]
      %v6218 = vld [vmem:[#allocation7 + $0x560] sm:$0xff]
      %v6219 = vld [vmem:[#allocation7 + $0x568] sm:$0xff]
      %v6220 = vld [vmem:[#allocation7 + $0x570] sm:$0xff]
      %v6221 = vld [vmem:[#allocation7 + $0x578] sm:$0xff]
      %v6222 = vld [vmem:[#allocation7 + $0x580] sm:$0xff]
      %v6223 = vld [vmem:[#allocation7 + $0x588] sm:$0xff]
      %v6224 = vld [vmem:[#allocation7 + $0x590] sm:$0xff]
      %v6225 = vld [vmem:[#allocation7 + $0x598] sm:$0xff]
      %v6226 = vld [vmem:[#allocation7 + $0x5a0] sm:$0xff]
      %v6227 = vld [vmem:[#allocation7 + $0x5a8] sm:$0xff]
      %v6228 = vld [vmem:[#allocation7 + $0x5b0] sm:$0xff]
      %v6229 = vld [vmem:[#allocation7 + $0x5b8] sm:$0xff]
      %v6230 = vld [vmem:[#allocation7 + $0x5c0] sm:$0xff]
      %v6231 = vld [vmem:[#allocation7 + $0x5c8] sm:$0xff]
      %v6232 = vld [vmem:[#allocation7 + $0x5d0] sm:$0xff]
      %v6233 = vld [vmem:[#allocation7 + $0x5d8] sm:$0xff]
      %v6234 = vld [vmem:[#allocation7 + $0x5e0] sm:$0xff]
      %v6235 = vld [vmem:[#allocation7 + $0x5e8] sm:$0xff]
      %v6236 = vld [vmem:[#allocation7 + $0x5f0] sm:$0xff]
      %v6237 = vld [vmem:[#allocation7 + $0x5f8] sm:$0xff]
      %v6238 = vld [vmem:[#allocation7 + $0x600] sm:$0xff]
      %v6239 = vld [vmem:[#allocation7 + $0x608] sm:$0xff]
      %v6240 = vld [vmem:[#allocation7 + $0x610] sm:$0xff]
      %v6241 = vld [vmem:[#allocation7 + $0x618] sm:$0xff]
      %v6242 = vld [vmem:[#allocation7 + $0x620] sm:$0xff]
      %v6243 = vld [vmem:[#allocation7 + $0x628] sm:$0xff]
      %v6244 = vld [vmem:[#allocation7 + $0x630] sm:$0xff]
      %v6245 = vld [vmem:[#allocation7 + $0x638] sm:$0xff]
      %v6246 = vld [vmem:[#allocation7 + $0x640] sm:$0xff]
      %v6247 = vld [vmem:[#allocation7 + $0x648] sm:$0xff]
      %v6248 = vld [vmem:[#allocation7 + $0x650] sm:$0xff]
      %v6249 = vld [vmem:[#allocation7 + $0x658] sm:$0xff]
      %v6250 = vld [vmem:[#allocation7 + $0x660] sm:$0xff]
      %v6251 = vld [vmem:[#allocation7 + $0x668] sm:$0xff]
      %v6252 = vld [vmem:[#allocation7 + $0x670] sm:$0xff]
      %v6253 = vld [vmem:[#allocation7 + $0x678] sm:$0xff]
      %v6254 = vld [vmem:[#allocation7 + $0x680] sm:$0xff]
      %v6255 = vld [vmem:[#allocation7 + $0x688] sm:$0xff]
      %v6256 = vld [vmem:[#allocation7 + $0x690] sm:$0xff]
      %v6257 = vld [vmem:[#allocation7 + $0x698] sm:$0xff]
      %v6258 = vld [vmem:[#allocation7 + $0x6a0] sm:$0xff]
      %v6259 = vld [vmem:[#allocation7 + $0x6a8] sm:$0xff]
      %v6260 = vld [vmem:[#allocation7 + $0x6b0] sm:$0xff]
      %v6261 = vld [vmem:[#allocation7 + $0x6b8] sm:$0xff]
      %v6262 = vld [vmem:[#allocation7 + $0x6c0] sm:$0xff]
      %v6263 = vld [vmem:[#allocation7 + $0x6c8] sm:$0xff]
      %v6264 = vld [vmem:[#allocation7 + $0x6d0] sm:$0xff]
      %v6265 = vld [vmem:[#allocation7 + $0x6d8] sm:$0xff]
      %v6266 = vld [vmem:[#allocation7 + $0x6e0] sm:$0xff]
      %v6267 = vld [vmem:[#allocation7 + $0x6e8] sm:$0xff]
      %v6268 = vld [vmem:[#allocation7 + $0x6f0] sm:$0xff]
      %v6269 = vld [vmem:[#allocation7 + $0x6f8] sm:$0xff]
      %v6270 = vld [vmem:[#allocation7 + $0x700] sm:$0xff]
      %v6271 = vld [vmem:[#allocation7 + $0x708] sm:$0xff]
      %v6272 = vld [vmem:[#allocation7 + $0x710] sm:$0xff]
      %v6273 = vld [vmem:[#allocation7 + $0x718] sm:$0xff]
      %v6274 = vld [vmem:[#allocation7 + $0x720] sm:$0xff]
      %v6275 = vld [vmem:[#allocation7 + $0x728] sm:$0xff]
      %v6276 = vld [vmem:[#allocation7 + $0x730] sm:$0xff]
      %v6277 = vld [vmem:[#allocation7 + $0x738] sm:$0xff]
      %v6278 = vld [vmem:[#allocation7 + $0x740] sm:$0xff]
      %v6279 = vld [vmem:[#allocation7 + $0x748] sm:$0xff]
      %v6280 = vld [vmem:[#allocation7 + $0x750] sm:$0xff]
      %v6281 = vld [vmem:[#allocation7 + $0x758] sm:$0xff]
      %v6282 = vld [vmem:[#allocation7 + $0x760] sm:$0xff]
      %v6283 = vld [vmem:[#allocation7 + $0x768] sm:$0xff]
      %v6284 = vld [vmem:[#allocation7 + $0x770] sm:$0xff]
      %v6285 = vld [vmem:[#allocation7 + $0x778] sm:$0xff]
      %v6286 = vld [vmem:[#allocation7 + $0x780] sm:$0xff]
      %v6287 = vld [vmem:[#allocation7 + $0x788] sm:$0xff]
      %v6288 = vld [vmem:[#allocation7 + $0x790] sm:$0xff]
      %v6289 = vld [vmem:[#allocation7 + $0x798] sm:$0xff]
      %v6290 = vld [vmem:[#allocation7 + $0x7a0] sm:$0xff]
      %v6291 = vld [vmem:[#allocation7 + $0x7a8] sm:$0xff]
      %v6292 = vld [vmem:[#allocation7 + $0x7b0] sm:$0xff]
      %v6293 = vld [vmem:[#allocation7 + $0x7b8] sm:$0xff]
      %v6294 = vld [vmem:[#allocation7 + $0x7c0] sm:$0xff]
      %v6295 = vld [vmem:[#allocation7 + $0x7c8] sm:$0xff]
      %v6296 = vld [vmem:[#allocation7 + $0x7d0] sm:$0xff]
      %v6297 = vld [vmem:[#allocation7 + $0x7d8] sm:$0xff]
      %v6298 = vld [vmem:[#allocation7 + $0x7e0] sm:$0xff]
      %v6299 = vld [vmem:[#allocation7 + $0x7e8] sm:$0xff]
      %v6300 = vld [vmem:[#allocation7 + $0x7f0] sm:$0xff]
      %v6301 = vld [vmem:[#allocation7 + $0x7f8] sm:$0xff]
      %v6302 = vld [vmem:[#allocation8] sm:$0x3]
      %v6304 = vlaneseq
      %v6305 = vshrl.u32 %v6304, 7
      %v6306 = vsub.s32 0, %v6305
      %v6307 = vrot.slane %v6302, %v6306
      %v6308 = vlaneseq
      %v6309 = vshrl.u32 %v6308, 7
      %v6310 = vsub.s32 1, %v6309
      %v6311 = vrot.slane %v6302, %v6310
      %v6570 = vunpack.c.l.b16 %v6046
      %v6571 = vunpack.c.h.b16 %v6046
      %v6572 = vunpack.c.l.b16 %v6047
      %v6573 = vunpack.c.h.b16 %v6047
      %v6574 = vunpack.c.l.b16 %v6048
      %v6575 = vunpack.c.h.b16 %v6048
      %v6576 = vunpack.c.l.b16 %v6049
      %v6577 = vunpack.c.h.b16 %v6049
      %v6578 = vunpack.c.l.b16 %v6050
      %v6579 = vunpack.c.h.b16 %v6050
      %v6580 = vunpack.c.l.b16 %v6051
      %v6581 = vunpack.c.h.b16 %v6051
      %v6582 = vunpack.c.l.b16 %v6052
      %v6583 = vunpack.c.h.b16 %v6052
      %v6584 = vunpack.c.l.b16 %v6053
      %v6585 = vunpack.c.h.b16 %v6053
      %v6586 = vunpack.c.l.b16 %v6054
      %v6587 = vunpack.c.h.b16 %v6054
      %v6588 = vunpack.c.l.b16 %v6055
      %v6589 = vunpack.c.h.b16 %v6055
      %v6590 = vunpack.c.l.b16 %v6056
      %v6591 = vunpack.c.h.b16 %v6056
      %v6592 = vunpack.c.l.b16 %v6057
      %v6593 = vunpack.c.h.b16 %v6057
      %v6594 = vunpack.c.l.b16 %v6058
      %v6595 = vunpack.c.h.b16 %v6058
      %v6596 = vunpack.c.l.b16 %v6059
      %v6597 = vunpack.c.h.b16 %v6059
      %v6598 = vunpack.c.l.b16 %v6060
      %v6599 = vunpack.c.h.b16 %v6060
      %v6600 = vunpack.c.l.b16 %v6061
      %v6601 = vunpack.c.h.b16 %v6061
      %v6602 = vunpack.c.l.b16 %v6062
      %v6603 = vunpack.c.h.b16 %v6062
      %v6604 = vunpack.c.l.b16 %v6063
      %v6605 = vunpack.c.h.b16 %v6063
      %v6606 = vunpack.c.l.b16 %v6064
      %v6607 = vunpack.c.h.b16 %v6064
      %v6608 = vunpack.c.l.b16 %v6065
      %v6609 = vunpack.c.h.b16 %v6065
      %v6610 = vunpack.c.l.b16 %v6066
      %v6611 = vunpack.c.h.b16 %v6066
      %v6612 = vunpack.c.l.b16 %v6067
      %v6613 = vunpack.c.h.b16 %v6067
      %v6614 = vunpack.c.l.b16 %v6068
      %v6615 = vunpack.c.h.b16 %v6068
      %v6616 = vunpack.c.l.b16 %v6069
      %v6617 = vunpack.c.h.b16 %v6069
      %v6618 = vunpack.c.l.b16 %v6070
      %v6619 = vunpack.c.h.b16 %v6070
      %v6620 = vunpack.c.l.b16 %v6071
      %v6621 = vunpack.c.h.b16 %v6071
      %v6622 = vunpack.c.l.b16 %v6072
      %v6623 = vunpack.c.h.b16 %v6072
      %v6624 = vunpack.c.l.b16 %v6073
      %v6625 = vunpack.c.h.b16 %v6073
      %v6626 = vunpack.c.l.b16 %v6074
      %v6627 = vunpack.c.h.b16 %v6074
      %v6628 = vunpack.c.l.b16 %v6075
      %v6629 = vunpack.c.h.b16 %v6075
      %v6630 = vunpack.c.l.b16 %v6076
      %v6631 = vunpack.c.h.b16 %v6076
      %v6632 = vunpack.c.l.b16 %v6077
      %v6633 = vunpack.c.h.b16 %v6077
      %v6634 = vunpack.c.l.b16 %v6078
      %v6635 = vunpack.c.h.b16 %v6078
      %v6636 = vunpack.c.l.b16 %v6079
      %v6637 = vunpack.c.h.b16 %v6079
      %v6638 = vunpack.c.l.b16 %v6080
      %v6639 = vunpack.c.h.b16 %v6080
      %v6640 = vunpack.c.l.b16 %v6081
      %v6641 = vunpack.c.h.b16 %v6081
      %v6642 = vunpack.c.l.b16 %v6082
      %v6643 = vunpack.c.h.b16 %v6082
      %v6644 = vunpack.c.l.b16 %v6083
      %v6645 = vunpack.c.h.b16 %v6083
      %v6646 = vunpack.c.l.b16 %v6084
      %v6647 = vunpack.c.h.b16 %v6084
      %v6648 = vunpack.c.l.b16 %v6085
      %v6649 = vunpack.c.h.b16 %v6085
      %v6650 = vunpack.c.l.b16 %v6086
      %v6651 = vunpack.c.h.b16 %v6086
      %v6652 = vunpack.c.l.b16 %v6087
      %v6653 = vunpack.c.h.b16 %v6087
      %v6654 = vunpack.c.l.b16 %v6088
      %v6655 = vunpack.c.h.b16 %v6088
      %v6656 = vunpack.c.l.b16 %v6089
      %v6657 = vunpack.c.h.b16 %v6089
      %v6658 = vunpack.c.l.b16 %v6090
      %v6659 = vunpack.c.h.b16 %v6090
      %v6660 = vunpack.c.l.b16 %v6091
      %v6661 = vunpack.c.h.b16 %v6091
      %v6662 = vunpack.c.l.b16 %v6092
      %v6663 = vunpack.c.h.b16 %v6092
      %v6664 = vunpack.c.l.b16 %v6093
      %v6665 = vunpack.c.h.b16 %v6093
      %v6666 = vunpack.c.l.b16 %v6094
      %v6667 = vunpack.c.h.b16 %v6094
      %v6668 = vunpack.c.l.b16 %v6095
      %v6669 = vunpack.c.h.b16 %v6095
      %v6670 = vunpack.c.l.b16 %v6096
      %v6671 = vunpack.c.h.b16 %v6096
      %v6672 = vunpack.c.l.b16 %v6097
      %v6673 = vunpack.c.h.b16 %v6097
      %v6674 = vunpack.c.l.b16 %v6098
      %v6675 = vunpack.c.h.b16 %v6098
      %v6676 = vunpack.c.l.b16 %v6099
      %v6677 = vunpack.c.h.b16 %v6099
      %v6678 = vunpack.c.l.b16 %v6100
      %v6679 = vunpack.c.h.b16 %v6100
      %v6680 = vunpack.c.l.b16 %v6101
      %v6681 = vunpack.c.h.b16 %v6101
      %v6682 = vunpack.c.l.b16 %v6102
      %v6683 = vunpack.c.h.b16 %v6102
      %v6684 = vunpack.c.l.b16 %v6103
      %v6685 = vunpack.c.h.b16 %v6103
      %v6686 = vunpack.c.l.b16 %v6104
      %v6687 = vunpack.c.h.b16 %v6104
      %v6688 = vunpack.c.l.b16 %v6105
      %v6689 = vunpack.c.h.b16 %v6105
      %v6690 = vunpack.c.l.b16 %v6106
      %v6691 = vunpack.c.h.b16 %v6106
      %v6692 = vunpack.c.l.b16 %v6107
      %v6693 = vunpack.c.h.b16 %v6107
      %v6694 = vunpack.c.l.b16 %v6108
      %v6695 = vunpack.c.h.b16 %v6108
      %v6696 = vunpack.c.l.b16 %v6109
      %v6697 = vunpack.c.h.b16 %v6109
      %v6698 = vunpack.c.l.b16 %v6110
      %v6699 = vunpack.c.h.b16 %v6110
      %v6700 = vunpack.c.l.b16 %v6111
      %v6701 = vunpack.c.h.b16 %v6111
      %v6702 = vunpack.c.l.b16 %v6112
      %v6703 = vunpack.c.h.b16 %v6112
      %v6704 = vunpack.c.l.b16 %v6113
      %v6705 = vunpack.c.h.b16 %v6113
      %v6706 = vunpack.c.l.b16 %v6114
      %v6707 = vunpack.c.h.b16 %v6114
      %v6708 = vunpack.c.l.b16 %v6115
      %v6709 = vunpack.c.h.b16 %v6115
      %v6710 = vunpack.c.l.b16 %v6116
      %v6711 = vunpack.c.h.b16 %v6116
      %v6712 = vunpack.c.l.b16 %v6117
      %v6713 = vunpack.c.h.b16 %v6117
      %v6714 = vunpack.c.l.b16 %v6118
      %v6715 = vunpack.c.h.b16 %v6118
      %v6716 = vunpack.c.l.b16 %v6119
      %v6717 = vunpack.c.h.b16 %v6119
      %v6718 = vunpack.c.l.b16 %v6120
      %v6719 = vunpack.c.h.b16 %v6120
      %v6720 = vunpack.c.l.b16 %v6121
      %v6721 = vunpack.c.h.b16 %v6121
      %v6722 = vunpack.c.l.b16 %v6122
      %v6723 = vunpack.c.h.b16 %v6122
      %v6724 = vunpack.c.l.b16 %v6123
      %v6725 = vunpack.c.h.b16 %v6123
      %v6726 = vunpack.c.l.b16 %v6124
      %v6727 = vunpack.c.h.b16 %v6124
      %v6728 = vunpack.c.l.b16 %v6125
      %v6729 = vunpack.c.h.b16 %v6125
      %v6730 = vunpack.c.l.b16 %v6126
      %v6731 = vunpack.c.h.b16 %v6126
      %v6732 = vunpack.c.l.b16 %v6127
      %v6733 = vunpack.c.h.b16 %v6127
      %v6734 = vunpack.c.l.b16 %v6128
      %v6735 = vunpack.c.h.b16 %v6128
      %v6736 = vunpack.c.l.b16 %v6129
      %v6737 = vunpack.c.h.b16 %v6129
      %v6738 = vunpack.c.l.b16 %v6130
      %v6739 = vunpack.c.h.b16 %v6130
      %v6740 = vunpack.c.l.b16 %v6131
      %v6741 = vunpack.c.h.b16 %v6131
      %v6742 = vunpack.c.l.b16 %v6132
      %v6743 = vunpack.c.h.b16 %v6132
      %v6744 = vunpack.c.l.b16 %v6133
      %v6745 = vunpack.c.h.b16 %v6133
      %v6746 = vunpack.c.l.b16 %v6134
      %v6747 = vunpack.c.h.b16 %v6134
      %v6748 = vunpack.c.l.b16 %v6135
      %v6749 = vunpack.c.h.b16 %v6135
      %v6750 = vunpack.c.l.b16 %v6136
      %v6751 = vunpack.c.h.b16 %v6136
      %v6752 = vunpack.c.l.b16 %v6137
      %v6753 = vunpack.c.h.b16 %v6137
      %v6754 = vunpack.c.l.b16 %v6138
      %v6755 = vunpack.c.h.b16 %v6138
      %v6756 = vunpack.c.l.b16 %v6139
      %v6757 = vunpack.c.h.b16 %v6139
      %v6758 = vunpack.c.l.b16 %v6140
      %v6759 = vunpack.c.h.b16 %v6140
      %v6760 = vunpack.c.l.b16 %v6141
      %v6761 = vunpack.c.h.b16 %v6141
      %v6762 = vunpack.c.l.b16 %v6142
      %v6763 = vunpack.c.h.b16 %v6142
      %v6764 = vunpack.c.l.b16 %v6143
      %v6765 = vunpack.c.h.b16 %v6143
      %v6766 = vunpack.c.l.b16 %v6144
      %v6767 = vunpack.c.h.b16 %v6144
      %v6768 = vunpack.c.l.b16 %v6145
      %v6769 = vunpack.c.h.b16 %v6145
      %v6770 = vunpack.c.l.b16 %v6146
      %v6771 = vunpack.c.h.b16 %v6146
      %v6772 = vunpack.c.l.b16 %v6147
      %v6773 = vunpack.c.h.b16 %v6147
      %v6774 = vunpack.c.l.b16 %v6148
      %v6775 = vunpack.c.h.b16 %v6148
      %v6776 = vunpack.c.l.b16 %v6149
      %v6777 = vunpack.c.h.b16 %v6149
      %v6778 = vunpack.c.l.b16 %v6150
      %v6779 = vunpack.c.h.b16 %v6150
      %v6780 = vunpack.c.l.b16 %v6151
      %v6781 = vunpack.c.h.b16 %v6151
      %v6782 = vunpack.c.l.b16 %v6152
      %v6783 = vunpack.c.h.b16 %v6152
      %v6784 = vunpack.c.l.b16 %v6153
      %v6785 = vunpack.c.h.b16 %v6153
      %v6786 = vunpack.c.l.b16 %v6154
      %v6787 = vunpack.c.h.b16 %v6154
      %v6788 = vunpack.c.l.b16 %v6155
      %v6789 = vunpack.c.h.b16 %v6155
      %v6790 = vunpack.c.l.b16 %v6156
      %v6791 = vunpack.c.h.b16 %v6156
      %v6792 = vunpack.c.l.b16 %v6157
      %v6793 = vunpack.c.h.b16 %v6157
      %v6794 = vunpack.c.l.b16 %v6158
      %v6795 = vunpack.c.h.b16 %v6158
      %v6796 = vunpack.c.l.b16 %v6159
      %v6797 = vunpack.c.h.b16 %v6159
      %v6798 = vunpack.c.l.b16 %v6160
      %v6799 = vunpack.c.h.b16 %v6160
      %v6800 = vunpack.c.l.b16 %v6161
      %v6801 = vunpack.c.h.b16 %v6161
      %v6802 = vunpack.c.l.b16 %v6162
      %v6803 = vunpack.c.h.b16 %v6162
      %v6804 = vunpack.c.l.b16 %v6163
      %v6805 = vunpack.c.h.b16 %v6163
      %v6806 = vunpack.c.l.b16 %v6164
      %v6807 = vunpack.c.h.b16 %v6164
      %v6808 = vunpack.c.l.b16 %v6165
      %v6809 = vunpack.c.h.b16 %v6165
      %v6810 = vunpack.c.l.b16 %v6166
      %v6811 = vunpack.c.h.b16 %v6166
      %v6812 = vunpack.c.l.b16 %v6167
      %v6813 = vunpack.c.h.b16 %v6167
      %v6814 = vunpack.c.l.b16 %v6168
      %v6815 = vunpack.c.h.b16 %v6168
      %v6816 = vunpack.c.l.b16 %v6169
      %v6817 = vunpack.c.h.b16 %v6169
      %v6818 = vunpack.c.l.b16 %v6170
      %v6819 = vunpack.c.h.b16 %v6170
      %v6820 = vunpack.c.l.b16 %v6171
      %v6821 = vunpack.c.h.b16 %v6171
      %v6822 = vunpack.c.l.b16 %v6172
      %v6823 = vunpack.c.h.b16 %v6172
      %v6824 = vunpack.c.l.b16 %v6173
      %v6825 = vunpack.c.h.b16 %v6173
      %v6826 = vunpack.c.l.b16 %v6174
      %v6827 = vunpack.c.h.b16 %v6174
      %v6828 = vunpack.c.l.b16 %v6175
      %v6829 = vunpack.c.h.b16 %v6175
      %v6830 = vunpack.c.l.b16 %v6176
      %v6831 = vunpack.c.h.b16 %v6176
      %v6832 = vunpack.c.l.b16 %v6177
      %v6833 = vunpack.c.h.b16 %v6177
      %v6834 = vunpack.c.l.b16 %v6178
      %v6835 = vunpack.c.h.b16 %v6178
      %v6836 = vunpack.c.l.b16 %v6179
      %v6837 = vunpack.c.h.b16 %v6179
      %v6838 = vunpack.c.l.b16 %v6180
      %v6839 = vunpack.c.h.b16 %v6180
      %v6840 = vunpack.c.l.b16 %v6181
      %v6841 = vunpack.c.h.b16 %v6181
      %v6842 = vunpack.c.l.b16 %v6182
      %v6843 = vunpack.c.h.b16 %v6182
      %v6844 = vunpack.c.l.b16 %v6183
      %v6845 = vunpack.c.h.b16 %v6183
      %v6846 = vunpack.c.l.b16 %v6184
      %v6847 = vunpack.c.h.b16 %v6184
      %v6848 = vunpack.c.l.b16 %v6185
      %v6849 = vunpack.c.h.b16 %v6185
      %v6850 = vunpack.c.l.b16 %v6186
      %v6851 = vunpack.c.h.b16 %v6186
      %v6852 = vunpack.c.l.b16 %v6187
      %v6853 = vunpack.c.h.b16 %v6187
      %v6854 = vunpack.c.l.b16 %v6188
      %v6855 = vunpack.c.h.b16 %v6188
      %v6856 = vunpack.c.l.b16 %v6189
      %v6857 = vunpack.c.h.b16 %v6189
      %v6858 = vunpack.c.l.b16 %v6190
      %v6859 = vunpack.c.h.b16 %v6190
      %v6860 = vunpack.c.l.b16 %v6191
      %v6861 = vunpack.c.h.b16 %v6191
      %v6862 = vunpack.c.l.b16 %v6192
      %v6863 = vunpack.c.h.b16 %v6192
      %v6864 = vunpack.c.l.b16 %v6193
      %v6865 = vunpack.c.h.b16 %v6193
      %v6866 = vunpack.c.l.b16 %v6194
      %v6867 = vunpack.c.h.b16 %v6194
      %v6868 = vunpack.c.l.b16 %v6195
      %v6869 = vunpack.c.h.b16 %v6195
      %v6870 = vunpack.c.l.b16 %v6196
      %v6871 = vunpack.c.h.b16 %v6196
      %v6872 = vunpack.c.l.b16 %v6197
      %v6873 = vunpack.c.h.b16 %v6197
      %v6874 = vunpack.c.l.b16 %v6198
      %v6875 = vunpack.c.h.b16 %v6198
      %v6876 = vunpack.c.l.b16 %v6199
      %v6877 = vunpack.c.h.b16 %v6199
      %v6878 = vunpack.c.l.b16 %v6200
      %v6879 = vunpack.c.h.b16 %v6200
      %v6880 = vunpack.c.l.b16 %v6201
      %v6881 = vunpack.c.h.b16 %v6201
      %v6882 = vunpack.c.l.b16 %v6202
      %v6883 = vunpack.c.h.b16 %v6202
      %v6884 = vunpack.c.l.b16 %v6203
      %v6885 = vunpack.c.h.b16 %v6203
      %v6886 = vunpack.c.l.b16 %v6204
      %v6887 = vunpack.c.h.b16 %v6204
      %v6888 = vunpack.c.l.b16 %v6205
      %v6889 = vunpack.c.h.b16 %v6205
      %v6890 = vunpack.c.l.b16 %v6206
      %v6891 = vunpack.c.h.b16 %v6206
      %v6892 = vunpack.c.l.b16 %v6207
      %v6893 = vunpack.c.h.b16 %v6207
      %v6894 = vunpack.c.l.b16 %v6208
      %v6895 = vunpack.c.h.b16 %v6208
      %v6896 = vunpack.c.l.b16 %v6209
      %v6897 = vunpack.c.h.b16 %v6209
      %v6898 = vunpack.c.l.b16 %v6210
      %v6899 = vunpack.c.h.b16 %v6210
      %v6900 = vunpack.c.l.b16 %v6211
      %v6901 = vunpack.c.h.b16 %v6211
      %v6902 = vunpack.c.l.b16 %v6212
      %v6903 = vunpack.c.h.b16 %v6212
      %v6904 = vunpack.c.l.b16 %v6213
      %v6905 = vunpack.c.h.b16 %v6213
      %v6906 = vunpack.c.l.b16 %v6214
      %v6907 = vunpack.c.h.b16 %v6214
      %v6908 = vunpack.c.l.b16 %v6215
      %v6909 = vunpack.c.h.b16 %v6215
      %v6910 = vunpack.c.l.b16 %v6216
      %v6911 = vunpack.c.h.b16 %v6216
      %v6912 = vunpack.c.l.b16 %v6217
      %v6913 = vunpack.c.h.b16 %v6217
      %v6914 = vunpack.c.l.b16 %v6218
      %v6915 = vunpack.c.h.b16 %v6218
      %v6916 = vunpack.c.l.b16 %v6219
      %v6917 = vunpack.c.h.b16 %v6219
      %v6918 = vunpack.c.l.b16 %v6220
      %v6919 = vunpack.c.h.b16 %v6220
      %v6920 = vunpack.c.l.b16 %v6221
      %v6921 = vunpack.c.h.b16 %v6221
      %v6922 = vunpack.c.l.b16 %v6222
      %v6923 = vunpack.c.h.b16 %v6222
      %v6924 = vunpack.c.l.b16 %v6223
      %v6925 = vunpack.c.h.b16 %v6223
      %v6926 = vunpack.c.l.b16 %v6224
      %v6927 = vunpack.c.h.b16 %v6224
      %v6928 = vunpack.c.l.b16 %v6225
      %v6929 = vunpack.c.h.b16 %v6225
      %v6930 = vunpack.c.l.b16 %v6226
      %v6931 = vunpack.c.h.b16 %v6226
      %v6932 = vunpack.c.l.b16 %v6227
      %v6933 = vunpack.c.h.b16 %v6227
      %v6934 = vunpack.c.l.b16 %v6228
      %v6935 = vunpack.c.h.b16 %v6228
      %v6936 = vunpack.c.l.b16 %v6229
      %v6937 = vunpack.c.h.b16 %v6229
      %v6938 = vunpack.c.l.b16 %v6230
      %v6939 = vunpack.c.h.b16 %v6230
      %v6940 = vunpack.c.l.b16 %v6231
      %v6941 = vunpack.c.h.b16 %v6231
      %v6942 = vunpack.c.l.b16 %v6232
      %v6943 = vunpack.c.h.b16 %v6232
      %v6944 = vunpack.c.l.b16 %v6233
      %v6945 = vunpack.c.h.b16 %v6233
      %v6946 = vunpack.c.l.b16 %v6234
      %v6947 = vunpack.c.h.b16 %v6234
      %v6948 = vunpack.c.l.b16 %v6235
      %v6949 = vunpack.c.h.b16 %v6235
      %v6950 = vunpack.c.l.b16 %v6236
      %v6951 = vunpack.c.h.b16 %v6236
      %v6952 = vunpack.c.l.b16 %v6237
      %v6953 = vunpack.c.h.b16 %v6237
      %v6954 = vunpack.c.l.b16 %v6238
      %v6955 = vunpack.c.h.b16 %v6238
      %v6956 = vunpack.c.l.b16 %v6239
      %v6957 = vunpack.c.h.b16 %v6239
      %v6958 = vunpack.c.l.b16 %v6240
      %v6959 = vunpack.c.h.b16 %v6240
      %v6960 = vunpack.c.l.b16 %v6241
      %v6961 = vunpack.c.h.b16 %v6241
      %v6962 = vunpack.c.l.b16 %v6242
      %v6963 = vunpack.c.h.b16 %v6242
      %v6964 = vunpack.c.l.b16 %v6243
      %v6965 = vunpack.c.h.b16 %v6243
      %v6966 = vunpack.c.l.b16 %v6244
      %v6967 = vunpack.c.h.b16 %v6244
      %v6968 = vunpack.c.l.b16 %v6245
      %v6969 = vunpack.c.h.b16 %v6245
      %v6970 = vunpack.c.l.b16 %v6246
      %v6971 = vunpack.c.h.b16 %v6246
      %v6972 = vunpack.c.l.b16 %v6247
      %v6973 = vunpack.c.h.b16 %v6247
      %v6974 = vunpack.c.l.b16 %v6248
      %v6975 = vunpack.c.h.b16 %v6248
      %v6976 = vunpack.c.l.b16 %v6249
      %v6977 = vunpack.c.h.b16 %v6249
      %v6978 = vunpack.c.l.b16 %v6250
      %v6979 = vunpack.c.h.b16 %v6250
      %v6980 = vunpack.c.l.b16 %v6251
      %v6981 = vunpack.c.h.b16 %v6251
      %v6982 = vunpack.c.l.b16 %v6252
      %v6983 = vunpack.c.h.b16 %v6252
      %v6984 = vunpack.c.l.b16 %v6253
      %v6985 = vunpack.c.h.b16 %v6253
      %v6986 = vunpack.c.l.b16 %v6254
      %v6987 = vunpack.c.h.b16 %v6254
      %v6988 = vunpack.c.l.b16 %v6255
      %v6989 = vunpack.c.h.b16 %v6255
      %v6990 = vunpack.c.l.b16 %v6256
      %v6991 = vunpack.c.h.b16 %v6256
      %v6992 = vunpack.c.l.b16 %v6257
      %v6993 = vunpack.c.h.b16 %v6257
      %v6994 = vunpack.c.l.b16 %v6258
      %v6995 = vunpack.c.h.b16 %v6258
      %v6996 = vunpack.c.l.b16 %v6259
      %v6997 = vunpack.c.h.b16 %v6259
      %v6998 = vunpack.c.l.b16 %v6260
      %v6999 = vunpack.c.h.b16 %v6260
      %v7000 = vunpack.c.l.b16 %v6261
      %v7001 = vunpack.c.h.b16 %v6261
      %v7002 = vunpack.c.l.b16 %v6262
      %v7003 = vunpack.c.h.b16 %v6262
      %v7004 = vunpack.c.l.b16 %v6263
      %v7005 = vunpack.c.h.b16 %v6263
      %v7006 = vunpack.c.l.b16 %v6264
      %v7007 = vunpack.c.h.b16 %v6264
      %v7008 = vunpack.c.l.b16 %v6265
      %v7009 = vunpack.c.h.b16 %v6265
      %v7010 = vunpack.c.l.b16 %v6266
      %v7011 = vunpack.c.h.b16 %v6266
      %v7012 = vunpack.c.l.b16 %v6267
      %v7013 = vunpack.c.h.b16 %v6267
      %v7014 = vunpack.c.l.b16 %v6268
      %v7015 = vunpack.c.h.b16 %v6268
      %v7016 = vunpack.c.l.b16 %v6269
      %v7017 = vunpack.c.h.b16 %v6269
      %v7018 = vunpack.c.l.b16 %v6270
      %v7019 = vunpack.c.h.b16 %v6270
      %v7020 = vunpack.c.l.b16 %v6271
      %v7021 = vunpack.c.h.b16 %v6271
      %v7022 = vunpack.c.l.b16 %v6272
      %v7023 = vunpack.c.h.b16 %v6272
      %v7024 = vunpack.c.l.b16 %v6273
      %v7025 = vunpack.c.h.b16 %v6273
      %v7026 = vunpack.c.l.b16 %v6274
      %v7027 = vunpack.c.h.b16 %v6274
      %v7028 = vunpack.c.l.b16 %v6275
      %v7029 = vunpack.c.h.b16 %v6275
      %v7030 = vunpack.c.l.b16 %v6276
      %v7031 = vunpack.c.h.b16 %v6276
      %v7032 = vunpack.c.l.b16 %v6277
      %v7033 = vunpack.c.h.b16 %v6277
      %v7034 = vunpack.c.l.b16 %v6278
      %v7035 = vunpack.c.h.b16 %v6278
      %v7036 = vunpack.c.l.b16 %v6279
      %v7037 = vunpack.c.h.b16 %v6279
      %v7038 = vunpack.c.l.b16 %v6280
      %v7039 = vunpack.c.h.b16 %v6280
      %v7040 = vunpack.c.l.b16 %v6281
      %v7041 = vunpack.c.h.b16 %v6281
      %v7042 = vunpack.c.l.b16 %v6282
      %v7043 = vunpack.c.h.b16 %v6282
      %v7044 = vunpack.c.l.b16 %v6283
      %v7045 = vunpack.c.h.b16 %v6283
      %v7046 = vunpack.c.l.b16 %v6284
      %v7047 = vunpack.c.h.b16 %v6284
      %v7048 = vunpack.c.l.b16 %v6285
      %v7049 = vunpack.c.h.b16 %v6285
      %v7050 = vunpack.c.l.b16 %v6286
      %v7051 = vunpack.c.h.b16 %v6286
      %v7052 = vunpack.c.l.b16 %v6287
      %v7053 = vunpack.c.h.b16 %v6287
      %v7054 = vunpack.c.l.b16 %v6288
      %v7055 = vunpack.c.h.b16 %v6288
      %v7056 = vunpack.c.l.b16 %v6289
      %v7057 = vunpack.c.h.b16 %v6289
      %v7058 = vunpack.c.l.b16 %v6290
      %v7059 = vunpack.c.h.b16 %v6290
      %v7060 = vunpack.c.l.b16 %v6291
      %v7061 = vunpack.c.h.b16 %v6291
      %v7062 = vunpack.c.l.b16 %v6292
      %v7063 = vunpack.c.h.b16 %v6292
      %v7064 = vunpack.c.l.b16 %v6293
      %v7065 = vunpack.c.h.b16 %v6293
      %v7066 = vunpack.c.l.b16 %v6294
      %v7067 = vunpack.c.h.b16 %v6294
      %v7068 = vunpack.c.l.b16 %v6295
      %v7069 = vunpack.c.h.b16 %v6295
      %v7070 = vunpack.c.l.b16 %v6296
      %v7071 = vunpack.c.h.b16 %v6296
      %v7072 = vunpack.c.l.b16 %v6297
      %v7073 = vunpack.c.h.b16 %v6297
      %v7074 = vunpack.c.l.b16 %v6298
      %v7075 = vunpack.c.h.b16 %v6298
      %v7076 = vunpack.c.l.b16 %v6299
      %v7077 = vunpack.c.h.b16 %v6299
      %v7078 = vunpack.c.l.b16 %v6300
      %v7079 = vunpack.c.h.b16 %v6300
      %v7080 = vunpack.c.l.b16 %v6301
      %v7081 = vunpack.c.h.b16 %v6301
      %v7082 = vpack.c.b16 %v6572, %v6570
      %v7083 = vpack.c.b16 %v6573, %v6571
      %v7084 = vpack.c.b16 %v6576, %v6574
      %v7085 = vpack.c.b16 %v6577, %v6575
      %v7086 = vpack.c.b16 %v6580, %v6578
      %v7087 = vpack.c.b16 %v6581, %v6579
      %v7088 = vpack.c.b16 %v6584, %v6582
      %v7089 = vpack.c.b16 %v6585, %v6583
      %v7090 = vpack.c.b16 %v6588, %v6586
      %v7091 = vpack.c.b16 %v6589, %v6587
      %v7092 = vpack.c.b16 %v6592, %v6590
      %v7093 = vpack.c.b16 %v6593, %v6591
      %v7094 = vpack.c.b16 %v6596, %v6594
      %v7095 = vpack.c.b16 %v6597, %v6595
      %v7096 = vpack.c.b16 %v6600, %v6598
      %v7097 = vpack.c.b16 %v6601, %v6599
      %v7098 = vpack.c.b16 %v6604, %v6602
      %v7099 = vpack.c.b16 %v6605, %v6603
      %v7100 = vpack.c.b16 %v6608, %v6606
      %v7101 = vpack.c.b16 %v6609, %v6607
      %v7102 = vpack.c.b16 %v6612, %v6610
      %v7103 = vpack.c.b16 %v6613, %v6611
      %v7104 = vpack.c.b16 %v6616, %v6614
      %v7105 = vpack.c.b16 %v6617, %v6615
      %v7106 = vpack.c.b16 %v6620, %v6618
      %v7107 = vpack.c.b16 %v6621, %v6619
      %v7108 = vpack.c.b16 %v6624, %v6622
      %v7109 = vpack.c.b16 %v6625, %v6623
      %v7110 = vpack.c.b16 %v6628, %v6626
      %v7111 = vpack.c.b16 %v6629, %v6627
      %v7112 = vpack.c.b16 %v6632, %v6630
      %v7113 = vpack.c.b16 %v6633, %v6631
      %v7114 = vpack.c.b16 %v6636, %v6634
      %v7115 = vpack.c.b16 %v6637, %v6635
      %v7116 = vpack.c.b16 %v6640, %v6638
      %v7117 = vpack.c.b16 %v6641, %v6639
      %v7118 = vpack.c.b16 %v6644, %v6642
      %v7119 = vpack.c.b16 %v6645, %v6643
      %v7120 = vpack.c.b16 %v6648, %v6646
      %v7121 = vpack.c.b16 %v6649, %v6647
      %v7122 = vpack.c.b16 %v6652, %v6650
      %v7123 = vpack.c.b16 %v6653, %v6651
      %v7124 = vpack.c.b16 %v6656, %v6654
      %v7125 = vpack.c.b16 %v6657, %v6655
      %v7126 = vpack.c.b16 %v6660, %v6658
      %v7127 = vpack.c.b16 %v6661, %v6659
      %v7128 = vpack.c.b16 %v6664, %v6662
      %v7129 = vpack.c.b16 %v6665, %v6663
      %v7130 = vpack.c.b16 %v6668, %v6666
      %v7131 = vpack.c.b16 %v6669, %v6667
      %v7132 = vpack.c.b16 %v6672, %v6670
      %v7133 = vpack.c.b16 %v6673, %v6671
      %v7134 = vpack.c.b16 %v6676, %v6674
      %v7135 = vpack.c.b16 %v6677, %v6675
      %v7136 = vpack.c.b16 %v6680, %v6678
      %v7137 = vpack.c.b16 %v6681, %v6679
      %v7138 = vpack.c.b16 %v6684, %v6682
      %v7139 = vpack.c.b16 %v6685, %v6683
      %v7140 = vpack.c.b16 %v6688, %v6686
      %v7141 = vpack.c.b16 %v6689, %v6687
      %v7142 = vpack.c.b16 %v6692, %v6690
      %v7143 = vpack.c.b16 %v6693, %v6691
      %v7144 = vpack.c.b16 %v6696, %v6694
      %v7145 = vpack.c.b16 %v6697, %v6695
      %v7146 = vpack.c.b16 %v6700, %v6698
      %v7147 = vpack.c.b16 %v6701, %v6699
      %v7148 = vpack.c.b16 %v6704, %v6702
      %v7149 = vpack.c.b16 %v6705, %v6703
      %v7150 = vpack.c.b16 %v6708, %v6706
      %v7151 = vpack.c.b16 %v6709, %v6707
      %v7152 = vpack.c.b16 %v6712, %v6710
      %v7153 = vpack.c.b16 %v6713, %v6711
      %v7154 = vpack.c.b16 %v6716, %v6714
      %v7155 = vpack.c.b16 %v6717, %v6715
      %v7156 = vpack.c.b16 %v6720, %v6718
      %v7157 = vpack.c.b16 %v6721, %v6719
      %v7158 = vpack.c.b16 %v6724, %v6722
      %v7159 = vpack.c.b16 %v6725, %v6723
      %v7160 = vpack.c.b16 %v6728, %v6726
      %v7161 = vpack.c.b16 %v6729, %v6727
      %v7162 = vpack.c.b16 %v6732, %v6730
      %v7163 = vpack.c.b16 %v6733, %v6731
      %v7164 = vpack.c.b16 %v6736, %v6734
      %v7165 = vpack.c.b16 %v6737, %v6735
      %v7166 = vpack.c.b16 %v6740, %v6738
      %v7167 = vpack.c.b16 %v6741, %v6739
      %v7168 = vpack.c.b16 %v6744, %v6742
      %v7169 = vpack.c.b16 %v6745, %v6743
      %v7170 = vpack.c.b16 %v6748, %v6746
      %v7171 = vpack.c.b16 %v6749, %v6747
      %v7172 = vpack.c.b16 %v6752, %v6750
      %v7173 = vpack.c.b16 %v6753, %v6751
      %v7174 = vpack.c.b16 %v6756, %v6754
      %v7175 = vpack.c.b16 %v6757, %v6755
      %v7176 = vpack.c.b16 %v6760, %v6758
      %v7177 = vpack.c.b16 %v6761, %v6759
      %v7178 = vpack.c.b16 %v6764, %v6762
      %v7179 = vpack.c.b16 %v6765, %v6763
      %v7180 = vpack.c.b16 %v6768, %v6766
      %v7181 = vpack.c.b16 %v6769, %v6767
      %v7182 = vpack.c.b16 %v6772, %v6770
      %v7183 = vpack.c.b16 %v6773, %v6771
      %v7184 = vpack.c.b16 %v6776, %v6774
      %v7185 = vpack.c.b16 %v6777, %v6775
      %v7186 = vpack.c.b16 %v6780, %v6778
      %v7187 = vpack.c.b16 %v6781, %v6779
      %v7188 = vpack.c.b16 %v6784, %v6782
      %v7189 = vpack.c.b16 %v6785, %v6783
      %v7190 = vpack.c.b16 %v6788, %v6786
      %v7191 = vpack.c.b16 %v6789, %v6787
      %v7192 = vpack.c.b16 %v6792, %v6790
      %v7193 = vpack.c.b16 %v6793, %v6791
      %v7194 = vpack.c.b16 %v6796, %v6794
      %v7195 = vpack.c.b16 %v6797, %v6795
      %v7196 = vpack.c.b16 %v6800, %v6798
      %v7197 = vpack.c.b16 %v6801, %v6799
      %v7198 = vpack.c.b16 %v6804, %v6802
      %v7199 = vpack.c.b16 %v6805, %v6803
      %v7200 = vpack.c.b16 %v6808, %v6806
      %v7201 = vpack.c.b16 %v6809, %v6807
      %v7202 = vpack.c.b16 %v6812, %v6810
      %v7203 = vpack.c.b16 %v6813, %v6811
      %v7204 = vpack.c.b16 %v6816, %v6814
      %v7205 = vpack.c.b16 %v6817, %v6815
      %v7206 = vpack.c.b16 %v6820, %v6818
      %v7207 = vpack.c.b16 %v6821, %v6819
      %v7208 = vpack.c.b16 %v6824, %v6822
      %v7209 = vpack.c.b16 %v6825, %v6823
      %v7210 = vpack.c.b16 %v6828, %v6826
      %v7211 = vpack.c.b16 %v6829, %v6827
      %v7212 = vpack.c.b16 %v6832, %v6830
      %v7213 = vpack.c.b16 %v6833, %v6831
      %v7214 = vpack.c.b16 %v6836, %v6834
      %v7215 = vpack.c.b16 %v6837, %v6835
      %v7216 = vpack.c.b16 %v6840, %v6838
      %v7217 = vpack.c.b16 %v6841, %v6839
      %v7218 = vpack.c.b16 %v6844, %v6842
      %v7219 = vpack.c.b16 %v6845, %v6843
      %v7220 = vpack.c.b16 %v6848, %v6846
      %v7221 = vpack.c.b16 %v6849, %v6847
      %v7222 = vpack.c.b16 %v6852, %v6850
      %v7223 = vpack.c.b16 %v6853, %v6851
      %v7224 = vpack.c.b16 %v6856, %v6854
      %v7225 = vpack.c.b16 %v6857, %v6855
      %v7226 = vpack.c.b16 %v6860, %v6858
      %v7227 = vpack.c.b16 %v6861, %v6859
      %v7228 = vpack.c.b16 %v6864, %v6862
      %v7229 = vpack.c.b16 %v6865, %v6863
      %v7230 = vpack.c.b16 %v6868, %v6866
      %v7231 = vpack.c.b16 %v6869, %v6867
      %v7232 = vpack.c.b16 %v6872, %v6870
      %v7233 = vpack.c.b16 %v6873, %v6871
      %v7234 = vpack.c.b16 %v6876, %v6874
      %v7235 = vpack.c.b16 %v6877, %v6875
      %v7236 = vpack.c.b16 %v6880, %v6878
      %v7237 = vpack.c.b16 %v6881, %v6879
      %v7238 = vpack.c.b16 %v6884, %v6882
      %v7239 = vpack.c.b16 %v6885, %v6883
      %v7240 = vpack.c.b16 %v6888, %v6886
      %v7241 = vpack.c.b16 %v6889, %v6887
      %v7242 = vpack.c.b16 %v6892, %v6890
      %v7243 = vpack.c.b16 %v6893, %v6891
      %v7244 = vpack.c.b16 %v6896, %v6894
      %v7245 = vpack.c.b16 %v6897, %v6895
      %v7246 = vpack.c.b16 %v6900, %v6898
      %v7247 = vpack.c.b16 %v6901, %v6899
      %v7248 = vpack.c.b16 %v6904, %v6902
      %v7249 = vpack.c.b16 %v6905, %v6903
      %v7250 = vpack.c.b16 %v6908, %v6906
      %v7251 = vpack.c.b16 %v6909, %v6907
      %v7252 = vpack.c.b16 %v6912, %v6910
      %v7253 = vpack.c.b16 %v6913, %v6911
      %v7254 = vpack.c.b16 %v6916, %v6914
      %v7255 = vpack.c.b16 %v6917, %v6915
      %v7256 = vpack.c.b16 %v6920, %v6918
      %v7257 = vpack.c.b16 %v6921, %v6919
      %v7258 = vpack.c.b16 %v6924, %v6922
      %v7259 = vpack.c.b16 %v6925, %v6923
      %v7260 = vpack.c.b16 %v6928, %v6926
      %v7261 = vpack.c.b16 %v6929, %v6927
      %v7262 = vpack.c.b16 %v6932, %v6930
      %v7263 = vpack.c.b16 %v6933, %v6931
      %v7264 = vpack.c.b16 %v6936, %v6934
      %v7265 = vpack.c.b16 %v6937, %v6935
      %v7266 = vpack.c.b16 %v6940, %v6938
      %v7267 = vpack.c.b16 %v6941, %v6939
      %v7268 = vpack.c.b16 %v6944, %v6942
      %v7269 = vpack.c.b16 %v6945, %v6943
      %v7270 = vpack.c.b16 %v6948, %v6946
      %v7271 = vpack.c.b16 %v6949, %v6947
      %v7272 = vpack.c.b16 %v6952, %v6950
      %v7273 = vpack.c.b16 %v6953, %v6951
      %v7274 = vpack.c.b16 %v6956, %v6954
      %v7275 = vpack.c.b16 %v6957, %v6955
      %v7276 = vpack.c.b16 %v6960, %v6958
      %v7277 = vpack.c.b16 %v6961, %v6959
      %v7278 = vpack.c.b16 %v6964, %v6962
      %v7279 = vpack.c.b16 %v6965, %v6963
      %v7280 = vpack.c.b16 %v6968, %v6966
      %v7281 = vpack.c.b16 %v6969, %v6967
      %v7282 = vpack.c.b16 %v6972, %v6970
      %v7283 = vpack.c.b16 %v6973, %v6971
      %v7284 = vpack.c.b16 %v6976, %v6974
      %v7285 = vpack.c.b16 %v6977, %v6975
      %v7286 = vpack.c.b16 %v6980, %v6978
      %v7287 = vpack.c.b16 %v6981, %v6979
      %v7288 = vpack.c.b16 %v6984, %v6982
      %v7289 = vpack.c.b16 %v6985, %v6983
      %v7290 = vpack.c.b16 %v6988, %v6986
      %v7291 = vpack.c.b16 %v6989, %v6987
      %v7292 = vpack.c.b16 %v6992, %v6990
      %v7293 = vpack.c.b16 %v6993, %v6991
      %v7294 = vpack.c.b16 %v6996, %v6994
      %v7295 = vpack.c.b16 %v6997, %v6995
      %v7296 = vpack.c.b16 %v7000, %v6998
      %v7297 = vpack.c.b16 %v7001, %v6999
      %v7298 = vpack.c.b16 %v7004, %v7002
      %v7299 = vpack.c.b16 %v7005, %v7003
      %v7300 = vpack.c.b16 %v7008, %v7006
      %v7301 = vpack.c.b16 %v7009, %v7007
      %v7302 = vpack.c.b16 %v7012, %v7010
      %v7303 = vpack.c.b16 %v7013, %v7011
      %v7304 = vpack.c.b16 %v7016, %v7014
      %v7305 = vpack.c.b16 %v7017, %v7015
      %v7306 = vpack.c.b16 %v7020, %v7018
      %v7307 = vpack.c.b16 %v7021, %v7019
      %v7308 = vpack.c.b16 %v7024, %v7022
      %v7309 = vpack.c.b16 %v7025, %v7023
      %v7310 = vpack.c.b16 %v7028, %v7026
      %v7311 = vpack.c.b16 %v7029, %v7027
      %v7312 = vpack.c.b16 %v7032, %v7030
      %v7313 = vpack.c.b16 %v7033, %v7031
      %v7314 = vpack.c.b16 %v7036, %v7034
      %v7315 = vpack.c.b16 %v7037, %v7035
      %v7316 = vpack.c.b16 %v7040, %v7038
      %v7317 = vpack.c.b16 %v7041, %v7039
      %v7318 = vpack.c.b16 %v7044, %v7042
      %v7319 = vpack.c.b16 %v7045, %v7043
      %v7320 = vpack.c.b16 %v7048, %v7046
      %v7321 = vpack.c.b16 %v7049, %v7047
      %v7322 = vpack.c.b16 %v7052, %v7050
      %v7323 = vpack.c.b16 %v7053, %v7051
      %v7324 = vpack.c.b16 %v7056, %v7054
      %v7325 = vpack.c.b16 %v7057, %v7055
      %v7326 = vpack.c.b16 %v7060, %v7058
      %v7327 = vpack.c.b16 %v7061, %v7059
      %v7328 = vpack.c.b16 %v7064, %v7062
      %v7329 = vpack.c.b16 %v7065, %v7063
      %v7330 = vpack.c.b16 %v7068, %v7066
      %v7331 = vpack.c.b16 %v7069, %v7067
      %v7332 = vpack.c.b16 %v7072, %v7070
      %v7333 = vpack.c.b16 %v7073, %v7071
      %v7334 = vpack.c.b16 %v7076, %v7074
      %v7335 = vpack.c.b16 %v7077, %v7075
      %v7336 = vpack.c.b16 %v7080, %v7078
      %v7337 = vpack.c.b16 %v7081, %v7079
      %7594 = vmatprep.subr.bf16.mxu0 %v7083
      %7595 = vmatpush1.bf16.msra.mxu0 %v7082
      %7596 = vmatprep.subr.bf16.mxu0 %v7085
      %7597 = vmatpush1.bf16.msra.mxu0 %v7084
      %7598 = vmatprep.subr.bf16.mxu0 %v7087
      %7599 = vmatpush1.bf16.msra.mxu0 %v7086
      %7600 = vmatprep.subr.bf16.mxu0 %v7089
      %7601 = vmatpush1.bf16.msra.mxu0 %v7088
      %7602 = vmatprep.subr.bf16.mxu0 %v7091
      %7603 = vmatpush1.bf16.msra.mxu0 %v7090
      %7604 = vmatprep.subr.bf16.mxu0 %v7093
      %7605 = vmatpush1.bf16.msra.mxu0 %v7092
      %7606 = vmatprep.subr.bf16.mxu0 %v7095
      %7607 = vmatpush1.bf16.msra.mxu0 %v7094
      %7608 = vmatprep.subr.bf16.mxu0 %v7097
      %7609 = vmatpush1.bf16.msra.mxu0 %v7096
      %7610 = vmatprep.subr.bf16.mxu0 %v7099
      %7611 = vmatpush1.bf16.msra.mxu0 %v7098
      %7612 = vmatprep.subr.bf16.mxu0 %v7101
      %7613 = vmatpush1.bf16.msra.mxu0 %v7100
      %7614 = vmatprep.subr.bf16.mxu0 %v7103
      %7615 = vmatpush1.bf16.msra.mxu0 %v7102
      %7616 = vmatprep.subr.bf16.mxu0 %v7105
      %7617 = vmatpush1.bf16.msra.mxu0 %v7104
      %7618 = vmatprep.subr.bf16.mxu0 %v7107
      %7619 = vmatpush1.bf16.msra.mxu0 %v7106
      %7620 = vmatprep.subr.bf16.mxu0 %v7109
      %7621 = vmatpush1.bf16.msra.mxu0 %v7108
      %7622 = vmatprep.subr.bf16.mxu0 %v7111
      %7623 = vmatpush1.bf16.msra.mxu0 %v7110
      %7624 = vmatprep.subr.bf16.mxu0 %v7113
      %7625 = vmatpush1.bf16.msra.mxu0 %v7112
      %7626 = vmatprep.mubr.bf16.mxu0 %v6031
      %7627 = vmatmul.mubr.bf16.gmra.mrb[0].mxu0 %v6030
      %v7628 = vpop.f32.mrb[0].mxu0
      %v7629 = vadd.f32 %v6307, %v7628
      %v7630 = vpop.f32.mrb[0].mxu0
      %v7631 = vadd.f32 %v6311, %v7630
      %v7632 = vpop.f32.mrb[0].mxu0
      %v7633 = vadd.f32 %v6307, %v7632
      %v7634 = vpop.f32.mrb[0].mxu0
      %v7635 = vadd.f32 %v6311, %v7634
      %7636 = vdwg.mxu0
      %7637 = vmatprep.subr.bf16.mxu0 %v7115
      %7638 = vmatpush1.bf16.msra.mxu0 %v7114
      %7639 = vmatprep.subr.bf16.mxu0 %v7117
      %7640 = vmatpush1.bf16.msra.mxu0 %v7116
      %7641 = vmatprep.subr.bf16.mxu0 %v7119
      %7642 = vmatpush1.bf16.msra.mxu0 %v7118
      %7643 = vmatprep.subr.bf16.mxu0 %v7121
      %7644 = vmatpush1.bf16.msra.mxu0 %v7120
      %7645 = vmatprep.subr.bf16.mxu0 %v7123
      %7646 = vmatpush1.bf16.msra.mxu0 %v7122
      %7647 = vmatprep.subr.bf16.mxu0 %v7125
      %7648 = vmatpush1.bf16.msra.mxu0 %v7124
      %7649 = vmatprep.subr.bf16.mxu0 %v7127
      %7650 = vmatpush1.bf16.msra.mxu0 %v7126
      %7651 = vmatprep.subr.bf16.mxu0 %v7129
      %7652 = vmatpush1.bf16.msra.mxu0 %v7128
      %7653 = vmatprep.subr.bf16.mxu0 %v7131
      %7654 = vmatpush1.bf16.msra.mxu0 %v7130
      %7655 = vmatprep.subr.bf16.mxu0 %v7133
      %7656 = vmatpush1.bf16.msra.mxu0 %v7132
      %7657 = vmatprep.subr.bf16.mxu0 %v7135
      %7658 = vmatpush1.bf16.msra.mxu0 %v7134
      %7659 = vmatprep.subr.bf16.mxu0 %v7137
      %7660 = vmatpush1.bf16.msra.mxu0 %v7136
      %7661 = vmatprep.subr.bf16.mxu0 %v7139
      %7662 = vmatpush1.bf16.msra.mxu0 %v7138
      %7663 = vmatprep.subr.bf16.mxu0 %v7141
      %7664 = vmatpush1.bf16.msra.mxu0 %v7140
      %7665 = vmatprep.subr.bf16.mxu0 %v7143
      %7666 = vmatpush1.bf16.msra.mxu0 %v7142
      %7667 = vmatprep.subr.bf16.mxu0 %v7145
      %7668 = vmatpush1.bf16.msra.mxu0 %v7144
      %7669 = vmatprep.mubr.bf16.mxu0 %v6033
      %7670 = vmatmul.mubr.bf16.gmra.mrb[0].mxu0 %v6032
      %v7671 = vpop.f32.mrb[0].mxu0
      %v7672 = vadd.f32 %v7629, %v7671
      %v7673 = vpop.f32.mrb[0].mxu0
      %v7674 = vadd.f32 %v7631, %v7673
      %v7675 = vpop.f32.mrb[0].mxu0
      %v7676 = vadd.f32 %v7633, %v7675
      %v7677 = vpop.f32.mrb[0].mxu0
      %v7678 = vadd.f32 %v7635, %v7677
      %7679 = vdwg.mxu0
      %7680 = vmatprep.subr.bf16.mxu0 %v7147
      %7681 = vmatpush1.bf16.msra.mxu0 %v7146
      %7682 = vmatprep.subr.bf16.mxu0 %v7149
      %7683 = vmatpush1.bf16.msra.mxu0 %v7148
      %7684 = vmatprep.subr.bf16.mxu0 %v7151
      %7685 = vmatpush1.bf16.msra.mxu0 %v7150
      %7686 = vmatprep.subr.bf16.mxu0 %v7153
      %7687 = vmatpush1.bf16.msra.mxu0 %v7152
      %7688 = vmatprep.subr.bf16.mxu0 %v7155
      %7689 = vmatpush1.bf16.msra.mxu0 %v7154
      %7690 = vmatprep.subr.bf16.mxu0 %v7157
      %7691 = vmatpush1.bf16.msra.mxu0 %v7156
      %7692 = vmatprep.subr.bf16.mxu0 %v7159
      %7693 = vmatpush1.bf16.msra.mxu0 %v7158
      %7694 = vmatprep.subr.bf16.mxu0 %v7161
      %7695 = vmatpush1.bf16.msra.mxu0 %v7160
      %7696 = vmatprep.subr.bf16.mxu0 %v7163
      %7697 = vmatpush1.bf16.msra.mxu0 %v7162
      %7698 = vmatprep.subr.bf16.mxu0 %v7165
      %7699 = vmatpush1.bf16.msra.mxu0 %v7164
      %7700 = vmatprep.subr.bf16.mxu0 %v7167
      %7701 = vmatpush1.bf16.msra.mxu0 %v7166
      %7702 = vmatprep.subr.bf16.mxu0 %v7169
      %7703 = vmatpush1.bf16.msra.mxu0 %v7168
      %7704 = vmatprep.subr.bf16.mxu0 %v7171
      %7705 = vmatpush1.bf16.msra.mxu0 %v7170
      %7706 = vmatprep.subr.bf16.mxu0 %v7173
      %7707 = vmatpush1.bf16.msra.mxu0 %v7172
      %7708 = vmatprep.subr.bf16.mxu0 %v7175
      %7709 = vmatpush1.bf16.msra.mxu0 %v7174
      %7710 = vmatprep.subr.bf16.mxu0 %v7177
      %7711 = vmatpush1.bf16.msra.mxu0 %v7176
      %7712 = vmatprep.mubr.bf16.mxu0 %v6035
      %7713 = vmatmul.mubr.bf16.gmra.mrb[0].mxu0 %v6034
      %v7714 = vpop.f32.mrb[0].mxu0
      %v7715 = vadd.f32 %v7672, %v7714
      %v7716 = vpop.f32.mrb[0].mxu0
      %v7717 = vadd.f32 %v7674, %v7716
      %v7718 = vpop.f32.mrb[0].mxu0
      %v7719 = vadd.f32 %v7676, %v7718
      %v7720 = vpop.f32.mrb[0].mxu0
      %v7721 = vadd.f32 %v7678, %v7720
      %7722 = vdwg.mxu0
      %7723 = vmatprep.subr.bf16.mxu0 %v7179
      %7724 = vmatpush1.bf16.msra.mxu0 %v7178
      %7725 = vmatprep.subr.bf16.mxu0 %v7181
      %7726 = vmatpush1.bf16.msra.mxu0 %v7180
      %7727 = vmatprep.subr.bf16.mxu0 %v7183
      %7728 = vmatpush1.bf16.msra.mxu0 %v7182
      %7729 = vmatprep.subr.bf16.mxu0 %v7185
      %7730 = vmatpush1.bf16.msra.mxu0 %v7184
      %7731 = vmatprep.subr.bf16.mxu0 %v7187
      %7732 = vmatpush1.bf16.msra.mxu0 %v7186
      %7733 = vmatprep.subr.bf16.mxu0 %v7189
      %7734 = vmatpush1.bf16.msra.mxu0 %v7188
      %7735 = vmatprep.subr.bf16.mxu0 %v7191
      %7736 = vmatpush1.bf16.msra.mxu0 %v7190
      %7737 = vmatprep.subr.bf16.mxu0 %v7193
      %7738 = vmatpush1.bf16.msra.mxu0 %v7192
      %7739 = vmatprep.subr.bf16.mxu0 %v7195
      %7740 = vmatpush1.bf16.msra.mxu0 %v7194
      %7741 = vmatprep.subr.bf16.mxu0 %v7197
      %7742 = vmatpush1.bf16.msra.mxu0 %v7196
      %7743 = vmatprep.subr.bf16.mxu0 %v7199
      %7744 = vmatpush1.bf16.msra.mxu0 %v7198
      %7745 = vmatprep.subr.bf16.mxu0 %v7201
      %7746 = vmatpush1.bf16.msra.mxu0 %v7200
      %7747 = vmatprep.subr.bf16.mxu0 %v7203
      %7748 = vmatpush1.bf16.msra.mxu0 %v7202
      %7749 = vmatprep.subr.bf16.mxu0 %v7205
      %7750 = vmatpush1.bf16.msra.mxu0 %v7204
      %7751 = vmatprep.subr.bf16.mxu0 %v7207
      %7752 = vmatpush1.bf16.msra.mxu0 %v7206
      %7753 = vmatprep.subr.bf16.mxu0 %v7209
      %7754 = vmatpush1.bf16.msra.mxu0 %v7208
      %7755 = vmatprep.mubr.bf16.mxu0 %v6037
      %7756 = vmatmul.mubr.bf16.gmra.mrb[0].mxu0 %v6036
      %v7757 = vpop.f32.mrb[0].mxu0
      %v7758 = vadd.f32 %v7715, %v7757
      %v7759 = vpop.f32.mrb[0].mxu0
      %v7760 = vadd.f32 %v7717, %v7759
      %v7761 = vpop.f32.mrb[0].mxu0
      %v7762 = vadd.f32 %v7719, %v7761
      %v7763 = vpop.f32.mrb[0].mxu0
      %v7764 = vadd.f32 %v7721, %v7763
      %7765 = vdwg.mxu0
      %7766 = vmatprep.subr.bf16.mxu0 %v7211
      %7767 = vmatpush1.bf16.msra.mxu0 %v7210
      %7768 = vmatprep.subr.bf16.mxu0 %v7213
      %7769 = vmatpush1.bf16.msra.mxu0 %v7212
      %7770 = vmatprep.subr.bf16.mxu0 %v7215
      %7771 = vmatpush1.bf16.msra.mxu0 %v7214
      %7772 = vmatprep.subr.bf16.mxu0 %v7217
      %7773 = vmatpush1.bf16.msra.mxu0 %v7216
      %7774 = vmatprep.subr.bf16.mxu0 %v7219
      %7775 = vmatpush1.bf16.msra.mxu0 %v7218
      %7776 = vmatprep.subr.bf16.mxu0 %v7221
      %7777 = vmatpush1.bf16.msra.mxu0 %v7220
      %7778 = vmatprep.subr.bf16.mxu0 %v7223
      %7779 = vmatpush1.bf16.msra.mxu0 %v7222
      %7780 = vmatprep.subr.bf16.mxu0 %v7225
      %7781 = vmatpush1.bf16.msra.mxu0 %v7224
      %7782 = vmatprep.subr.bf16.mxu0 %v7227
      %7783 = vmatpush1.bf16.msra.mxu0 %v7226
      %7784 = vmatprep.subr.bf16.mxu0 %v7229
      %7785 = vmatpush1.bf16.msra.mxu0 %v7228
      %7786 = vmatprep.subr.bf16.mxu0 %v7231
      %7787 = vmatpush1.bf16.msra.mxu0 %v7230
      %7788 = vmatprep.subr.bf16.mxu0 %v7233
      %7789 = vmatpush1.bf16.msra.mxu0 %v7232
      %7790 = vmatprep.subr.bf16.mxu0 %v7235
      %7791 = vmatpush1.bf16.msra.mxu0 %v7234
      %7792 = vmatprep.subr.bf16.mxu0 %v7237
      %7793 = vmatpush1.bf16.msra.mxu0 %v7236
      %7794 = vmatprep.subr.bf16.mxu0 %v7239
      %7795 = vmatpush1.bf16.msra.mxu0 %v7238
      %7796 = vmatprep.subr.bf16.mxu0 %v7241
      %7797 = vmatpush1.bf16.msra.mxu0 %v7240
      %7798 = vmatprep.mubr.bf16.mxu0 %v6039
      %7799 = vmatmul.mubr.bf16.gmra.mrb[0].mxu0 %v6038
      %v7800 = vpop.f32.mrb[0].mxu0
      %v7801 = vadd.f32 %v7758, %v7800
      %v7802 = vpop.f32.mrb[0].mxu0
      %v7803 = vadd.f32 %v7760, %v7802
      %v7804 = vpop.f32.mrb[0].mxu0
      %v7805 = vadd.f32 %v7762, %v7804
      %v7806 = vpop.f32.mrb[0].mxu0
      %v7807 = vadd.f32 %v7764, %v7806
      %7808 = vdwg.mxu0
      %7809 = vmatprep.subr.bf16.mxu0 %v7243
      %7810 = vmatpush1.bf16.msra.mxu0 %v7242
      %7811 = vmatprep.subr.bf16.mxu0 %v7245
      %7812 = vmatpush1.bf16.msra.mxu0 %v7244
      %7813 = vmatprep.subr.bf16.mxu0 %v7247
      %7814 = vmatpush1.bf16.msra.mxu0 %v7246
      %7815 = vmatprep.subr.bf16.mxu0 %v7249
      %7816 = vmatpush1.bf16.msra.mxu0 %v7248
      %7817 = vmatprep.subr.bf16.mxu0 %v7251
      %7818 = vmatpush1.bf16.msra.mxu0 %v7250
      %7819 = vmatprep.subr.bf16.mxu0 %v7253
      %7820 = vmatpush1.bf16.msra.mxu0 %v7252
      %7821 = vmatprep.subr.bf16.mxu0 %v7255
      %7822 = vmatpush1.bf16.msra.mxu0 %v7254
      %7823 = vmatprep.subr.bf16.mxu0 %v7257
      %7824 = vmatpush1.bf16.msra.mxu0 %v7256
      %7825 = vmatprep.subr.bf16.mxu0 %v7259
      %7826 = vmatpush1.bf16.msra.mxu0 %v7258
      %7827 = vmatprep.subr.bf16.mxu0 %v7261
      %7828 = vmatpush1.bf16.msra.mxu0 %v7260
      %7829 = vmatprep.subr.bf16.mxu0 %v7263
      %7830 = vmatpush1.bf16.msra.mxu0 %v7262
      %7831 = vmatprep.subr.bf16.mxu0 %v7265
      %7832 = vmatpush1.bf16.msra.mxu0 %v7264
      %7833 = vmatprep.subr.bf16.mxu0 %v7267
      %7834 = vmatpush1.bf16.msra.mxu0 %v7266
      %7835 = vmatprep.subr.bf16.mxu0 %v7269
      %7836 = vmatpush1.bf16.msra.mxu0 %v7268
      %7837 = vmatprep.subr.bf16.mxu0 %v7271
      %7838 = vmatpush1.bf16.msra.mxu0 %v7270
      %7839 = vmatprep.subr.bf16.mxu0 %v7273
      %7840 = vmatpush1.bf16.msra.mxu0 %v7272
      %7841 = vmatprep.mubr.bf16.mxu0 %v6041
      %7842 = vmatmul.mubr.bf16.gmra.mrb[0].mxu0 %v6040
      %v7843 = vpop.f32.mrb[0].mxu0
      %v7844 = vadd.f32 %v7801, %v7843
      %v7845 = vpop.f32.mrb[0].mxu0
      %v7846 = vadd.f32 %v7803, %v7845
      %v7847 = vpop.f32.mrb[0].mxu0
      %v7848 = vadd.f32 %v7805, %v7847
      %v7849 = vpop.f32.mrb[0].mxu0
      %v7850 = vadd.f32 %v7807, %v7849
      %7851 = vdwg.mxu0
      %7852 = vmatprep.subr.bf16.mxu0 %v7275
      %7853 = vmatpush1.bf16.msra.mxu0 %v7274
      %7854 = vmatprep.subr.bf16.mxu0 %v7277
      %7855 = vmatpush1.bf16.msra.mxu0 %v7276
      %7856 = vmatprep.subr.bf16.mxu0 %v7279
      %7857 = vmatpush1.bf16.msra.mxu0 %v7278
      %7858 = vmatprep.subr.bf16.mxu0 %v7281
      %7859 = vmatpush1.bf16.msra.mxu0 %v7280
      %7860 = vmatprep.subr.bf16.mxu0 %v7283
      %7861 = vmatpush1.bf16.msra.mxu0 %v7282
      %7862 = vmatprep.subr.bf16.mxu0 %v7285
      %7863 = vmatpush1.bf16.msra.mxu0 %v7284
      %7864 = vmatprep.subr.bf16.mxu0 %v7287
      %7865 = vmatpush1.bf16.msra.mxu0 %v7286
      %7866 = vmatprep.subr.bf16.mxu0 %v7289
      %7867 = vmatpush1.bf16.msra.mxu0 %v7288
      %7868 = vmatprep.subr.bf16.mxu0 %v7291
      %7869 = vmatpush1.bf16.msra.mxu0 %v7290
      %7870 = vmatprep.subr.bf16.mxu0 %v7293
      %7871 = vmatpush1.bf16.msra.mxu0 %v7292
      %7872 = vmatprep.subr.bf16.mxu0 %v7295
      %7873 = vmatpush1.bf16.msra.mxu0 %v7294
      %7874 = vmatprep.subr.bf16.mxu0 %v7297
      %7875 = vmatpush1.bf16.msra.mxu0 %v7296
      %7876 = vmatprep.subr.bf16.mxu0 %v7299
      %7877 = vmatpush1.bf16.msra.mxu0 %v7298
      %7878 = vmatprep.subr.bf16.mxu0 %v7301
      %7879 = vmatpush1.bf16.msra.mxu0 %v7300
      %7880 = vmatprep.subr.bf16.mxu0 %v7303
      %7881 = vmatpush1.bf16.msra.mxu0 %v7302
      %7882 = vmatprep.subr.bf16.mxu0 %v7305
      %7883 = vmatpush1.bf16.msra.mxu0 %v7304
      %7884 = vmatprep.mubr.bf16.mxu0 %v6043
      %7885 = vmatmul.mubr.bf16.gmra.mrb[0].mxu0 %v6042
      %v7886 = vpop.f32.mrb[0].mxu0
      %v7887 = vadd.f32 %v7844, %v7886
      %v7888 = vpop.f32.mrb[0].mxu0
      %v7889 = vadd.f32 %v7846, %v7888
      %v7890 = vpop.f32.mrb[0].mxu0
      %v7891 = vadd.f32 %v7848, %v7890
      %v7892 = vpop.f32.mrb[0].mxu0
      %v7893 = vadd.f32 %v7850, %v7892
      %7894 = vdwg.mxu0
      %7895 = vmatprep.subr.bf16.mxu0 %v7307
      %7896 = vmatpush1.bf16.msra.mxu0 %v7306
      %7897 = vmatprep.subr.bf16.mxu0 %v7309
      %7898 = vmatpush1.bf16.msra.mxu0 %v7308
      %7899 = vmatprep.subr.bf16.mxu0 %v7311
      %7900 = vmatpush1.bf16.msra.mxu0 %v7310
      %7901 = vmatprep.subr.bf16.mxu0 %v7313
      %7902 = vmatpush1.bf16.msra.mxu0 %v7312
      %7903 = vmatprep.subr.bf16.mxu0 %v7315
      %7904 = vmatpush1.bf16.msra.mxu0 %v7314
      %7905 = vmatprep.subr.bf16.mxu0 %v7317
      %7906 = vmatpush1.bf16.msra.mxu0 %v7316
      %7907 = vmatprep.subr.bf16.mxu0 %v7319
      %7908 = vmatpush1.bf16.msra.mxu0 %v7318
      %7909 = vmatprep.subr.bf16.mxu0 %v7321
      %7910 = vmatpush1.bf16.msra.mxu0 %v7320
      %7911 = vmatprep.subr.bf16.mxu0 %v7323
      %7912 = vmatpush1.bf16.msra.mxu0 %v7322
      %7913 = vmatprep.subr.bf16.mxu0 %v7325
      %7914 = vmatpush1.bf16.msra.mxu0 %v7324
      %7915 = vmatprep.subr.bf16.mxu0 %v7327
      %7916 = vmatpush1.bf16.msra.mxu0 %v7326
      %7917 = vmatprep.subr.bf16.mxu0 %v7329
      %7918 = vmatpush1.bf16.msra.mxu0 %v7328
      %7919 = vmatprep.subr.bf16.mxu0 %v7331
      %7920 = vmatpush1.bf16.msra.mxu0 %v7330
      %7921 = vmatprep.subr.bf16.mxu0 %v7333
      %7922 = vmatpush1.bf16.msra.mxu0 %v7332
      %7923 = vmatprep.subr.bf16.mxu0 %v7335
      %7924 = vmatpush1.bf16.msra.mxu0 %v7334
      %7925 = vmatprep.subr.bf16.mxu0 %v7337
      %7926 = vmatpush1.bf16.msra.mxu0 %v7336
      %7927 = vmatprep.mubr.bf16.mxu0 %v6045
      %7928 = vmatmul.mubr.bf16.gmra.mrb[0].mxu0 %v6044
      %v7929 = vpop.f32.mrb[0].mxu0
      %v7930 = vadd.f32 %v7887, %v7929
      %v7931 = vpop.f32.mrb[0].mxu0
      %v7932 = vadd.f32 %v7889, %v7931
      %v7933 = vpop.f32.mrb[0].mxu0
      %v7934 = vadd.f32 %v7891, %v7933
      %v7935 = vpop.f32.mrb[0].mxu0
      %v7936 = vadd.f32 %v7893, %v7935
      %7937 = vdwg.mxu0
      %v7938 = vpack.c.bf16 %v7934, %v7930
      %v7939 = vpack.c.bf16 %v7936, %v7932
      %v7942 = vunpack.c.l.b16 %v7938
      %v7943 = vunpack.c.l.b16 %v7939
      %v7944 = vunpack.c.h.b16 %v7938
      %v7945 = vunpack.c.h.b16 %v7939
      %v7946 = vpack.c.b16 %v7943, %v7942
      %v7947 = vpack.c.b16 %v7945, %v7944
      %7950 = vst [vmem:[%s5] sm:$0xff] %v7946
      %7951 = vst [vmem:[%s5 + $0x8] sm:$0xff] %v7947
    $region45: #{carl_forward.3} parent=1 // pred_fallthru
      _
    // Predicated region
    $region46: #{carl_forward.3} parent=1 // pred_check
      _
    $region47: #{carl_forward.3} parent=1 // pred_check_branch
      %7953 = sbr.rel (0) target = $region49
    $region48: #{carl_forward.3} parent=1 // pred_region
      _
    $region49: #{carl_forward.3} parent=1 // pred_fallthru
      _
    // Predicated region
    $region50: #{carl_forward.3} parent=1 // pred_check
      _
    $region51: #{carl_forward.3} parent=1 // pred_check_branch
      %7955 = sbr.rel (0) target = $region53
    $region52: #{carl_forward.3} parent=1 // pred_region
      _
    $region53: #{carl_forward.3} parent=1 // pred_fallthru
      _
    %7956 = vsyncpa [#allocation4], 1
    %7957 = vsyncpa [#allocation6], 1
    %7958 = vsyncpa [#allocation9], 1

</llo_original>
